<compile_context>
chip_gen: v6e
topology: v6e:2x2x1
jax: 0.10.0
libtpu: 0.0.40
codegen_flags: <defaults>
</compile_context>

<pallas_src>
import functools

import jax
import jax.numpy as jnp
import numpy as np
from jax.experimental import pallas as pl
from jax.experimental.pallas import tpu as pltpu

VOCAB = 80
EMBED = 8
HIDDEN = 256
GATES = 4 * HIDDEN  # kernel column order after permutation: [i | f | o | g]


# ---------------------------------------------------------------------------
# Pallas kernel: single invocation, whole recurrence inside.
# ---------------------------------------------------------------------------
def lstm2_kernel(x_ref, wih0_ref, b0_ref, whh0_ref, w1_ref, b1_ref, out_ref, *, T, B):
    H = HIDDEN

    # Hoisted layer-0 input projection: one MXU pass over all T*B rows.
    xp = (jnp.dot(x_ref[...], wih0_ref[...], preferred_element_type=jnp.float32)
          + b0_ref[...])                      # (T*B, 4H)

    whh0 = whh0_ref[...]                      # (H, 4H)
    w1 = w1_ref[...]                          # (2H, 4H) fused [W_ih1; W_hh1]
    b1 = b1_ref[...]                          # (1, 4H)

    h0 = jnp.zeros((B, H), jnp.float32)
    c0 = jnp.zeros((B, H), jnp.float32)
    h1 = jnp.zeros((B, H), jnp.float32)
    c1 = jnp.zeros((B, H), jnp.float32)

    def apply_gates(gates, c_prev):
        # Columns ordered [i | f | o | g]: one big sigmoid, one tanh.
        sig = jax.nn.sigmoid(gates[:, :3 * H])
        i = sig[:, 0 * H:1 * H]
        f = sig[:, 1 * H:2 * H]
        o = sig[:, 2 * H:3 * H]
        g = jnp.tanh(gates[:, 3 * H:4 * H])
        c_new = f * c_prev + i * g
        h_new = o * jnp.tanh(c_new)
        return h_new, c_new

    for t in range(T):  # T is a static shape -> fully unrolled recurrence
        # Layer 0: hoisted input projection + recurrent matmul.
        g0 = xp[t * B:(t + 1) * B, :] + jnp.dot(h0, whh0,
                                                preferred_element_type=jnp.float32)
        h0, c0 = apply_gates(g0, c0)
        # Layer 1: single fused matmul over [h0_t, h1_prev].
        g1 = jnp.dot(jnp.concatenate([h0, h1], axis=-1), w1,
                     preferred_element_type=jnp.float32) + b1
        h1, c1 = apply_gates(g1, c1)

    out_ref[...] = h1


def lstm2_pallas(x_flat, T, B_pad, params):
    """x_flat: (T*B_pad, EMBED) f32, time-major rows -> (B_pad, HIDDEN) last-step h1."""
    kernel = functools.partial(lstm2_kernel, T=T, B=B_pad)
    full2 = lambda i: (0, 0)
    return pl.pallas_call(
        kernel,
        out_shape=jax.ShapeDtypeStruct((B_pad, HIDDEN), jnp.float32),
        grid_spec=pltpu.PrefetchScalarGridSpec(
            num_scalar_prefetch=0,
            grid=(1,),
            in_specs=[
                pl.BlockSpec((T * B_pad, EMBED), full2),      # x (all timesteps)
                pl.BlockSpec((EMBED, GATES), full2),          # W_ih layer0 (E, 4H)
                pl.BlockSpec((1, GATES), full2),              # b0 = b_ih0 + b_hh0
                pl.BlockSpec((HIDDEN, GATES), full2),         # W_hh layer0
                pl.BlockSpec((2 * HIDDEN, GATES), full2),     # fused [W_ih1; W_hh1]
                pl.BlockSpec((1, GATES), full2),              # b1 = b_ih1 + b_hh1
            ],
            out_specs=pl.BlockSpec((B_pad, HIDDEN), full2),
        ),
        compiler_params=pltpu.CompilerParams(
            dimension_semantics=("arbitrary",),
        ),
    )(x_flat, params["wih0"], params["b0"], params["whh0"], params["w1"], params["b1"])


# ---------------------------------------------------------------------------
# Full forward: embedding gather in (T, B) order (plain JAX glue) + Pallas LSTM.
# ---------------------------------------------------------------------------
@jax.jit
def shake_backbone_forward(tokens, kparams):
    # tokens: (B, T) int32
    B, T = tokens.shape
    B_pad = ((B + 7) // 8) * 8  # pad batch to the f32 sublane multiple
    x_tbe = jnp.take(kparams["embed"], tokens.T, axis=0).astype(jnp.float32)  # (T,B,E)
    x_tbe = jnp.pad(x_tbe, ((0, 0), (0, B_pad - B), (0, 0)))                  # (T,B_pad,E)
    x_flat = x_tbe.reshape(T * B_pad, EMBED)
    out = lstm2_pallas(x_flat, T, B_pad, kparams)                             # (B_pad, H)
    return out[:B]
    # TODO(synk): tokens could be scalar-prefetched (SMEM) and the 2.5KB embed table
    # gathered in-kernel to drop the separate XLA gather dispatch entirely.


# ---------------------------------------------------------------------------
# Parameters in PyTorch convention (shapes of nn.Embedding(80,8)+nn.LSTM(8,256,2)),
# plus a prep step that transposes / gate-permutes / fuses for the kernel.
# ---------------------------------------------------------------------------
def init_params(key):
    keys = jax.random.split(key, 9)
    bound = 1.0 / np.sqrt(HIDDEN)
    u = lambda k, shape: jax.random.uniform(k, shape, jnp.float32, -bound, bound)
    return {
        "embed": jax.random.normal(keys[0], (VOCAB, EMBED), jnp.float32),
        # layer 0 (input size EMBED); PyTorch gate order i, f, g, o
        "w_ih0": u(keys[1], (GATES, EMBED)),
        "w_hh0": u(keys[2], (GATES, HIDDEN)),
        "b_ih0": u(keys[3], (GATES,)),
        "b_hh0": u(keys[4], (GATES,)),
        # layer 1 (input size HIDDEN)
        "w_ih1": u(keys[5], (GATES, HIDDEN)),
        "w_hh1": u(keys[6], (GATES, HIDDEN)),
        "b_ih1": u(keys[7], (GATES,)),
        "b_hh1": u(keys[8], (GATES,)),
    }


def prepare_pallas_params(p):
    """PyTorch-layout weights -> kernel layout: transposed, gate order [i,f,o,g],
    biases summed, layer-1 weights fused along the contraction dim."""
    H = HIDDEN
    perm = np.concatenate([np.arange(0, H), np.arange(H, 2 * H),
                           np.arange(3 * H, 4 * H), np.arange(2 * H, 3 * H)])

    def prep_layer(wih, whh, bih, bhh):
        wih_t = wih.T[:, perm]                     # (in, 4H), permuted columns
        whh_t = whh.T[:, perm]                     # (H, 4H)
        b = (bih + bhh)[perm][None, :]             # (1, 4H)
        return wih_t, whh_t, b

    wih0, whh0, b0 = prep_layer(p["w_ih0"], p["w_hh0"], p["b_ih0"], p["b_hh0"])
    wih1, whh1, b1 = prep_layer(p["w_ih1"], p["w_hh1"], p["b_ih1"], p["b_hh1"])
    w1_fused = jnp.concatenate([wih1, whh1], axis=0)   # (2H, 4H)
    return {"embed": p["embed"], "wih0": wih0, "whh0": whh0, "b0": b0,
            "w1": w1_fused, "b1": b1}


# Pure-JAX reference (same math as torch.nn.LSTM forward) for validation.
def reference_forward(tokens, p):
    x = jnp.take(p["embed"], tokens, axis=0).astype(jnp.float32)  # (B, T, E)
    B, T, _ = x.shape
    H = HIDDEN

    def cell(xt, h, c, wih, whh, bih, bhh):
        gates = xt @ wih.T + h @ whh.T + bih + bhh
        i = jax.nn.sigmoid(gates[:, :H])
        f = jax.nn.sigmoid(gates[:, H:2 * H])
        g = jnp.tanh(gates[:, 2 * H:3 * H])
        o = jax.nn.sigmoid(gates[:, 3 * H:])
        c = f * c + i * g
        h = o * jnp.tanh(c)
        return h, c

    h0 = c0 = h1 = c1 = jnp.zeros((B, H), jnp.float32)
    for t in range(T):
        h0, c0 = cell(x[:, t], h0, c0, p["w_ih0"], p["w_hh0"], p["b_ih0"], p["b_hh0"])
        h1, c1 = cell(h0, h1, c1, p["w_ih1"], p["w_hh1"], p["b_ih1"], p["b_hh1"])
    return h1


if __name__ == "__main__":
    key = jax.random.PRNGKey(0)
    k_tok, k_par = jax.random.split(key)

    B, T = 2, 8
    tokens = jax.random.randint(k_tok, (B, T), 0, VOCAB, dtype=jnp.int32)
    params = init_params(k_par)
    kparams = prepare_pallas_params(params)

    out = shake_backbone_forward(tokens, kparams)
    out = jax.block_until_ready(out)

    ref = reference_forward(tokens, params)
    np.testing.assert_allclose(np.asarray(out), np.asarray(ref), rtol=1e-4, atol=1e-4)

    assert out.shape == (B, HIDDEN)
    print("KERNEL_OK")
</pallas_src>

<mosaic_0001>
module attributes {stable_mosaic.version = 11 : i64} {
  func.func @lstm2_kernel(%arg0: i32, %arg1: memref<64x8xf32, #tpu.memory_space<vmem>>, %arg2: memref<8x1024xf32, #tpu.memory_space<vmem>>, %arg3: memref<1x1024xf32, #tpu.memory_space<vmem>>, %arg4: memref<256x1024xf32, #tpu.memory_space<vmem>>, %arg5: memref<512x1024xf32, #tpu.memory_space<vmem>>, %arg6: memref<1x1024xf32, #tpu.memory_space<vmem>>, %arg7: memref<8x256xf32, #tpu.memory_space<vmem>>) attributes {dimension_semantics = [#tpu.dimension_semantics<arbitrary>], iteration_bounds = array<i64: 1>, scalar_prefetch = 0 : i64, scratch_operands = 0 : i64, tpu.core_type = #tpu.core_type<tc>, window_params = [{pipeline_mode = #tpu.pipeline_mode<synchronous>, transform_indices = @transform_0, window_bounds = array<i64: 64, 8>}, {pipeline_mode = #tpu.pipeline_mode<synchronous>, transform_indices = @transform_1, window_bounds = array<i64: 8, 1024>}, {pipeline_mode = #tpu.pipeline_mode<synchronous>, transform_indices = @transform_2, window_bounds = array<i64: 1, 1024>}, {pipeline_mode = #tpu.pipeline_mode<synchronous>, transform_indices = @transform_3, window_bounds = array<i64: 256, 1024>}, {pipeline_mode = #tpu.pipeline_mode<synchronous>, transform_indices = @transform_4, window_bounds = array<i64: 512, 1024>}, {pipeline_mode = #tpu.pipeline_mode<synchronous>, transform_indices = @transform_5, window_bounds = array<i64: 1, 1024>}, {pipeline_mode = #tpu.pipeline_mode<synchronous>, transform_indices = @transform_6, window_bounds = array<i64: 8, 256>}]} {
    %c0 = arith.constant 0 : index
    %c0_0 = arith.constant 0 : index
    %0 = vector.load %arg1[%c0, %c0_0] : memref<64x8xf32, #tpu.memory_space<vmem>>, vector<64x8xf32>
    %c0_1 = arith.constant 0 : index
    %c0_2 = arith.constant 0 : index
    %1 = vector.load %arg2[%c0_1, %c0_2] : memref<8x1024xf32, #tpu.memory_space<vmem>>, vector<8x1024xf32>
    %cst = arith.constant dense<0.000000e+00> : vector<64x1024xf32>
    %2 = tpu.matmul %0, %1, %cst {dimension_numbers = #tpu.dot_dimension_numbers<[1], [0], [0], [1], [0, 0, 1, 1], [], []>} : vector<64x8xf32>, vector<8x1024xf32>, vector<64x1024xf32> -> vector<64x1024xf32>
    %c0_3 = arith.constant 0 : index
    %c0_4 = arith.constant 0 : index
    %3 = vector.load %arg3[%c0_3, %c0_4] : memref<1x1024xf32, #tpu.memory_space<vmem>>, vector<1x1024xf32>
    %4 = vector.broadcast %3 : vector<1x1024xf32> to vector<64x1024xf32>
    %5 = arith.addf %2, %4 : vector<64x1024xf32>
    %c0_5 = arith.constant 0 : index
    %c0_6 = arith.constant 0 : index
    %6 = vector.load %arg4[%c0_5, %c0_6] : memref<256x1024xf32, #tpu.memory_space<vmem>>, vector<256x1024xf32>
    %c0_7 = arith.constant 0 : index
    %c0_8 = arith.constant 0 : index
    %7 = vector.load %arg5[%c0_7, %c0_8] : memref<512x1024xf32, #tpu.memory_space<vmem>>, vector<512x1024xf32>
    %c0_9 = arith.constant 0 : index
    %c0_10 = arith.constant 0 : index
    %8 = vector.load %arg6[%c0_9, %c0_10] : memref<1x1024xf32, #tpu.memory_space<vmem>>, vector<1x1024xf32>
    %cst_11 = arith.constant 0.000000e+00 : f32
    %9 = vector.broadcast %cst_11 : f32 to vector<8x256xf32>
    %cst_12 = arith.constant 0.000000e+00 : f32
    %10 = vector.broadcast %cst_12 : f32 to vector<8x256xf32>
    %cst_13 = arith.constant 0.000000e+00 : f32
    %11 = vector.broadcast %cst_13 : f32 to vector<8x256xf32>
    %cst_14 = arith.constant 0.000000e+00 : f32
    %12 = vector.broadcast %cst_14 : f32 to vector<8x256xf32>
    %13 = vector.extract_strided_slice %5 {offsets = [0, 0], sizes = [8, 1024], strides = [1, 1]} : vector<64x1024xf32> to vector<8x1024xf32>
    %cst_15 = arith.constant dense<0.000000e+00> : vector<8x1024xf32>
    %14 = tpu.matmul %9, %6, %cst_15 {dimension_numbers = #tpu.dot_dimension_numbers<[1], [0], [0], [1], [0, 0, 1, 1], [], []>} : vector<8x256xf32>, vector<256x1024xf32>, vector<8x1024xf32> -> vector<8x1024xf32>
    %15 = arith.addf %13, %14 : vector<8x1024xf32>
    %16 = vector.extract_strided_slice %15 {offsets = [0, 0], sizes = [8, 768], strides = [1, 1]} : vector<8x1024xf32> to vector<8x768xf32>
    %17 = arith.negf %16 : vector<8x768xf32>
    %18 = math.exp %17 : vector<8x768xf32>
    %cst_16 = arith.constant 1.000000e+00 : f32
    %19 = vector.broadcast %cst_16 : f32 to vector<8x768xf32>
    %20 = arith.addf %19, %18 : vector<8x768xf32>
    %21 = arith.divf %19, %20 : vector<8x768xf32>
    %22 = vector.extract_strided_slice %21 {offsets = [0, 0], sizes = [8, 256], strides = [1, 1]} : vector<8x768xf32> to vector<8x256xf32>
    %23 = vector.extract_strided_slice %21 {offsets = [0, 256], sizes = [8, 256], strides = [1, 1]} : vector<8x768xf32> to vector<8x256xf32>
    %24 = vector.extract_strided_slice %21 {offsets = [0, 512], sizes = [8, 256], strides = [1, 1]} : vector<8x768xf32> to vector<8x256xf32>
    %25 = vector.extract_strided_slice %15 {offsets = [0, 768], sizes = [8, 256], strides = [1, 1]} : vector<8x1024xf32> to vector<8x256xf32>
    %26 = math.tanh %25 : vector<8x256xf32>
    %27 = arith.mulf %23, %10 : vector<8x256xf32>
    %28 = arith.mulf %22, %26 : vector<8x256xf32>
    %29 = arith.addf %27, %28 : vector<8x256xf32>
    %30 = math.tanh %29 : vector<8x256xf32>
    %31 = arith.mulf %24, %30 : vector<8x256xf32>
    %32 = tpu.concatenate %31, %11 in 1 : vector<8x256xf32>, vector<8x256xf32> -> vector<8x512xf32>
    %cst_17 = arith.constant dense<0.000000e+00> : vector<8x1024xf32>
    %33 = tpu.matmul %32, %7, %cst_17 {dimension_numbers = #tpu.dot_dimension_numbers<[1], [0], [0], [1], [0, 0, 1, 1], [], []>} : vector<8x512xf32>, vector<512x1024xf32>, vector<8x1024xf32> -> vector<8x1024xf32>
    %34 = vector.broadcast %8 : vector<1x1024xf32> to vector<8x1024xf32>
    %35 = arith.addf %33, %34 : vector<8x1024xf32>
    %36 = vector.extract_strided_slice %35 {offsets = [0, 0], sizes = [8, 768], strides = [1, 1]} : vector<8x1024xf32> to vector<8x768xf32>
    %37 = arith.negf %36 : vector<8x768xf32>
    %38 = math.exp %37 : vector<8x768xf32>
    %cst_18 = arith.constant 1.000000e+00 : f32
    %39 = vector.broadcast %cst_18 : f32 to vector<8x768xf32>
    %40 = arith.addf %39, %38 : vector<8x768xf32>
    %41 = arith.divf %39, %40 : vector<8x768xf32>
    %42 = vector.extract_strided_slice %41 {offsets = [0, 0], sizes = [8, 256], strides = [1, 1]} : vector<8x768xf32> to vector<8x256xf32>
    %43 = vector.extract_strided_slice %41 {offsets = [0, 256], sizes = [8, 256], strides = [1, 1]} : vector<8x768xf32> to vector<8x256xf32>
    %44 = vector.extract_strided_slice %41 {offsets = [0, 512], sizes = [8, 256], strides = [1, 1]} : vector<8x768xf32> to vector<8x256xf32>
    %45 = vector.extract_strided_slice %35 {offsets = [0, 768], sizes = [8, 256], strides = [1, 1]} : vector<8x1024xf32> to vector<8x256xf32>
    %46 = math.tanh %45 : vector<8x256xf32>
    %47 = arith.mulf %43, %12 : vector<8x256xf32>
    %48 = arith.mulf %42, %46 : vector<8x256xf32>
    %49 = arith.addf %47, %48 : vector<8x256xf32>
    %50 = math.tanh %49 : vector<8x256xf32>
    %51 = arith.mulf %44, %50 : vector<8x256xf32>
    %52 = vector.extract_strided_slice %5 {offsets = [8, 0], sizes = [8, 1024], strides = [1, 1]} : vector<64x1024xf32> to vector<8x1024xf32>
    %cst_19 = arith.constant dense<0.000000e+00> : vector<8x1024xf32>
    %53 = tpu.matmul %31, %6, %cst_19 {dimension_numbers = #tpu.dot_dimension_numbers<[1], [0], [0], [1], [0, 0, 1, 1], [], []>} : vector<8x256xf32>, vector<256x1024xf32>, vector<8x1024xf32> -> vector<8x1024xf32>
    %54 = arith.addf %52, %53 : vector<8x1024xf32>
    %55 = vector.extract_strided_slice %54 {offsets = [0, 0], sizes = [8, 768], strides = [1, 1]} : vector<8x1024xf32> to vector<8x768xf32>
    %56 = arith.negf %55 : vector<8x768xf32>
    %57 = math.exp %56 : vector<8x768xf32>
    %cst_20 = arith.constant 1.000000e+00 : f32
    %58 = vector.broadcast %cst_20 : f32 to vector<8x768xf32>
    %59 = arith.addf %58, %57 : vector<8x768xf32>
    %60 = arith.divf %58, %59 : vector<8x768xf32>
    %61 = vector.extract_strided_slice %60 {offsets = [0, 0], sizes = [8, 256], strides = [1, 1]} : vector<8x768xf32> to vector<8x256xf32>
    %62 = vector.extract_strided_slice %60 {offsets = [0, 256], sizes = [8, 256], strides = [1, 1]} : vector<8x768xf32> to vector<8x256xf32>
    %63 = vector.extract_strided_slice %60 {offsets = [0, 512], sizes = [8, 256], strides = [1, 1]} : vector<8x768xf32> to vector<8x256xf32>
    %64 = vector.extract_strided_slice %54 {offsets = [0, 768], sizes = [8, 256], strides = [1, 1]} : vector<8x1024xf32> to vector<8x256xf32>
    %65 = math.tanh %64 : vector<8x256xf32>
    %66 = arith.mulf %62, %29 : vector<8x256xf32>
    %67 = arith.mulf %61, %65 : vector<8x256xf32>
    %68 = arith.addf %66, %67 : vector<8x256xf32>
    %69 = math.tanh %68 : vector<8x256xf32>
    %70 = arith.mulf %63, %69 : vector<8x256xf32>
    %71 = tpu.concatenate %70, %51 in 1 : vector<8x256xf32>, vector<8x256xf32> -> vector<8x512xf32>
    %cst_21 = arith.constant dense<0.000000e+00> : vector<8x1024xf32>
    %72 = tpu.matmul %71, %7, %cst_21 {dimension_numbers = #tpu.dot_dimension_numbers<[1], [0], [0], [1], [0, 0, 1, 1], [], []>} : vector<8x512xf32>, vector<512x1024xf32>, vector<8x1024xf32> -> vector<8x1024xf32>
    %73 = vector.broadcast %8 : vector<1x1024xf32> to vector<8x1024xf32>
    %74 = arith.addf %72, %73 : vector<8x1024xf32>
    %75 = vector.extract_strided_slice %74 {offsets = [0, 0], sizes = [8, 768], strides = [1, 1]} : vector<8x1024xf32> to vector<8x768xf32>
    %76 = arith.negf %75 : vector<8x768xf32>
    %77 = math.exp %76 : vector<8x768xf32>
    %cst_22 = arith.constant 1.000000e+00 : f32
    %78 = vector.broadcast %cst_22 : f32 to vector<8x768xf32>
    %79 = arith.addf %78, %77 : vector<8x768xf32>
    %80 = arith.divf %78, %79 : vector<8x768xf32>
    %81 = vector.extract_strided_slice %80 {offsets = [0, 0], sizes = [8, 256], strides = [1, 1]} : vector<8x768xf32> to vector<8x256xf32>
    %82 = vector.extract_strided_slice %80 {offsets = [0, 256], sizes = [8, 256], strides = [1, 1]} : vector<8x768xf32> to vector<8x256xf32>
    %83 = vector.extract_strided_slice %80 {offsets = [0, 512], sizes = [8, 256], strides = [1, 1]} : vector<8x768xf32> to vector<8x256xf32>
    %84 = vector.extract_strided_slice %74 {offsets = [0, 768], sizes = [8, 256], strides = [1, 1]} : vector<8x1024xf32> to vector<8x256xf32>
    %85 = math.tanh %84 : vector<8x256xf32>
    %86 = arith.mulf %82, %49 : vector<8x256xf32>
    %87 = arith.mulf %81, %85 : vector<8x256xf32>
    %88 = arith.addf %86, %87 : vector<8x256xf32>
    %89 = math.tanh %88 : vector<8x256xf32>
    %90 = arith.mulf %83, %89 : vector<8x256xf32>
    %91 = vector.extract_strided_slice %5 {offsets = [16, 0], sizes = [8, 1024], strides = [1, 1]} : vector<64x1024xf32> to vector<8x1024xf32>
    %cst_23 = arith.constant dense<0.000000e+00> : vector<8x1024xf32>
    %92 = tpu.matmul %70, %6, %cst_23 {dimension_numbers = #tpu.dot_dimension_numbers<[1], [0], [0], [1], [0, 0, 1, 1], [], []>} : vector<8x256xf32>, vector<256x1024xf32>, vector<8x1024xf32> -> vector<8x1024xf32>
    %93 = arith.addf %91, %92 : vector<8x1024xf32>
    %94 = vector.extract_strided_slice %93 {offsets = [0, 0], sizes = [8, 768], strides = [1, 1]} : vector<8x1024xf32> to vector<8x768xf32>
    %95 = arith.negf %94 : vector<8x768xf32>
    %96 = math.exp %95 : vector<8x768xf32>
    %cst_24 = arith.constant 1.000000e+00 : f32
    %97 = vector.broadcast %cst_24 : f32 to vector<8x768xf32>
    %98 = arith.addf %97, %96 : vector<8x768xf32>
    %99 = arith.divf %97, %98 : vector<8x768xf32>
    %100 = vector.extract_strided_slice %99 {offsets = [0, 0], sizes = [8, 256], strides = [1, 1]} : vector<8x768xf32> to vector<8x256xf32>
    %101 = vector.extract_strided_slice %99 {offsets = [0, 256], sizes = [8, 256], strides = [1, 1]} : vector<8x768xf32> to vector<8x256xf32>
    %102 = vector.extract_strided_slice %99 {offsets = [0, 512], sizes = [8, 256], strides = [1, 1]} : vector<8x768xf32> to vector<8x256xf32>
    %103 = vector.extract_strided_slice %93 {offsets = [0, 768], sizes = [8, 256], strides = [1, 1]} : vector<8x1024xf32> to vector<8x256xf32>
    %104 = math.tanh %103 : vector<8x256xf32>
    %105 = arith.mulf %101, %68 : vector<8x256xf32>
    %106 = arith.mulf %100, %104 : vector<8x256xf32>
    %107 = arith.addf %105, %106 : vector<8x256xf32>
    %108 = math.tanh %107 : vector<8x256xf32>
    %109 = arith.mulf %102, %108 : vector<8x256xf32>
    %110 = tpu.concatenate %109, %90 in 1 : vector<8x256xf32>, vector<8x256xf32> -> vector<8x512xf32>
    %cst_25 = arith.constant dense<0.000000e+00> : vector<8x1024xf32>
    %111 = tpu.matmul %110, %7, %cst_25 {dimension_numbers = #tpu.dot_dimension_numbers<[1], [0], [0], [1], [0, 0, 1, 1], [], []>} : vector<8x512xf32>, vector<512x1024xf32>, vector<8x1024xf32> -> vector<8x1024xf32>
    %112 = vector.broadcast %8 : vector<1x1024xf32> to vector<8x1024xf32>
    %113 = arith.addf %111, %112 : vector<8x1024xf32>
    %114 = vector.extract_strided_slice %113 {offsets = [0, 0], sizes = [8, 768], strides = [1, 1]} : vector<8x1024xf32> to vector<8x768xf32>
    %115 = arith.negf %114 : vector<8x768xf32>
    %116 = math.exp %115 : vector<8x768xf32>
    %cst_26 = arith.constant 1.000000e+00 : f32
    %117 = vector.broadcast %cst_26 : f32 to vector<8x768xf32>
    %118 = arith.addf %117, %116 : vector<8x768xf32>
    %119 = arith.divf %117, %118 : vector<8x768xf32>
    %120 = vector.extract_strided_slice %119 {offsets = [0, 0], sizes = [8, 256], strides = [1, 1]} : vector<8x768xf32> to vector<8x256xf32>
    %121 = vector.extract_strided_slice %119 {offsets = [0, 256], sizes = [8, 256], strides = [1, 1]} : vector<8x768xf32> to vector<8x256xf32>
    %122 = vector.extract_strided_slice %119 {offsets = [0, 512], sizes = [8, 256], strides = [1, 1]} : vector<8x768xf32> to vector<8x256xf32>
    %123 = vector.extract_strided_slice %113 {offsets = [0, 768], sizes = [8, 256], strides = [1, 1]} : vector<8x1024xf32> to vector<8x256xf32>
    %124 = math.tanh %123 : vector<8x256xf32>
    %125 = arith.mulf %121, %88 : vector<8x256xf32>
    %126 = arith.mulf %120, %124 : vector<8x256xf32>
    %127 = arith.addf %125, %126 : vector<8x256xf32>
    %128 = math.tanh %127 : vector<8x256xf32>
    %129 = arith.mulf %122, %128 : vector<8x256xf32>
    %130 = vector.extract_strided_slice %5 {offsets = [24, 0], sizes = [8, 1024], strides = [1, 1]} : vector<64x1024xf32> to vector<8x1024xf32>
    %cst_27 = arith.constant dense<0.000000e+00> : vector<8x1024xf32>
    %131 = tpu.matmul %109, %6, %cst_27 {dimension_numbers = #tpu.dot_dimension_numbers<[1], [0], [0], [1], [0, 0, 1, 1], [], []>} : vector<8x256xf32>, vector<256x1024xf32>, vector<8x1024xf32> -> vector<8x1024xf32>
    %132 = arith.addf %130, %131 : vector<8x1024xf32>
    %133 = vector.extract_strided_slice %132 {offsets = [0, 0], sizes = [8, 768], strides = [1, 1]} : vector<8x1024xf32> to vector<8x768xf32>
    %134 = arith.negf %133 : vector<8x768xf32>
    %135 = math.exp %134 : vector<8x768xf32>
    %cst_28 = arith.constant 1.000000e+00 : f32
    %136 = vector.broadcast %cst_28 : f32 to vector<8x768xf32>
    %137 = arith.addf %136, %135 : vector<8x768xf32>
    %138 = arith.divf %136, %137 : vector<8x768xf32>
    %139 = vector.extract_strided_slice %138 {offsets = [0, 0], sizes = [8, 256], strides = [1, 1]} : vector<8x768xf32> to vector<8x256xf32>
    %140 = vector.extract_strided_slice %138 {offsets = [0, 256], sizes = [8, 256], strides = [1, 1]} : vector<8x768xf32> to vector<8x256xf32>
    %141 = vector.extract_strided_slice %138 {offsets = [0, 512], sizes = [8, 256], strides = [1, 1]} : vector<8x768xf32> to vector<8x256xf32>
    %142 = vector.extract_strided_slice %132 {offsets = [0, 768], sizes = [8, 256], strides = [1, 1]} : vector<8x1024xf32> to vector<8x256xf32>
    %143 = math.tanh %142 : vector<8x256xf32>
    %144 = arith.mulf %140, %107 : vector<8x256xf32>
    %145 = arith.mulf %139, %143 : vector<8x256xf32>
    %146 = arith.addf %144, %145 : vector<8x256xf32>
    %147 = math.tanh %146 : vector<8x256xf32>
    %148 = arith.mulf %141, %147 : vector<8x256xf32>
    %149 = tpu.concatenate %148, %129 in 1 : vector<8x256xf32>, vector<8x256xf32> -> vector<8x512xf32>
    %cst_29 = arith.constant dense<0.000000e+00> : vector<8x1024xf32>
    %150 = tpu.matmul %149, %7, %cst_29 {dimension_numbers = #tpu.dot_dimension_numbers<[1], [0], [0], [1], [0, 0, 1, 1], [], []>} : vector<8x512xf32>, vector<512x1024xf32>, vector<8x1024xf32> -> vector<8x1024xf32>
    %151 = vector.broadcast %8 : vector<1x1024xf32> to vector<8x1024xf32>
    %152 = arith.addf %150, %151 : vector<8x1024xf32>
    %153 = vector.extract_strided_slice %152 {offsets = [0, 0], sizes = [8, 768], strides = [1, 1]} : vector<8x1024xf32> to vector<8x768xf32>
    %154 = arith.negf %153 : vector<8x768xf32>
    %155 = math.exp %154 : vector<8x768xf32>
    %cst_30 = arith.constant 1.000000e+00 : f32
    %156 = vector.broadcast %cst_30 : f32 to vector<8x768xf32>
    %157 = arith.addf %156, %155 : vector<8x768xf32>
    %158 = arith.divf %156, %157 : vector<8x768xf32>
    %159 = vector.extract_strided_slice %158 {offsets = [0, 0], sizes = [8, 256], strides = [1, 1]} : vector<8x768xf32> to vector<8x256xf32>
    %160 = vector.extract_strided_slice %158 {offsets = [0, 256], sizes = [8, 256], strides = [1, 1]} : vector<8x768xf32> to vector<8x256xf32>
    %161 = vector.extract_strided_slice %158 {offsets = [0, 512], sizes = [8, 256], strides = [1, 1]} : vector<8x768xf32> to vector<8x256xf32>
    %162 = vector.extract_strided_slice %152 {offsets = [0, 768], sizes = [8, 256], strides = [1, 1]} : vector<8x1024xf32> to vector<8x256xf32>
    %163 = math.tanh %162 : vector<8x256xf32>
    %164 = arith.mulf %160, %127 : vector<8x256xf32>
    %165 = arith.mulf %159, %163 : vector<8x256xf32>
    %166 = arith.addf %164, %165 : vector<8x256xf32>
    %167 = math.tanh %166 : vector<8x256xf32>
    %168 = arith.mulf %161, %167 : vector<8x256xf32>
    %169 = vector.extract_strided_slice %5 {offsets = [32, 0], sizes = [8, 1024], strides = [1, 1]} : vector<64x1024xf32> to vector<8x1024xf32>
    %cst_31 = arith.constant dense<0.000000e+00> : vector<8x1024xf32>
    %170 = tpu.matmul %148, %6, %cst_31 {dimension_numbers = #tpu.dot_dimension_numbers<[1], [0], [0], [1], [0, 0, 1, 1], [], []>} : vector<8x256xf32>, vector<256x1024xf32>, vector<8x1024xf32> -> vector<8x1024xf32>
    %171 = arith.addf %169, %170 : vector<8x1024xf32>
    %172 = vector.extract_strided_slice %171 {offsets = [0, 0], sizes = [8, 768], strides = [1, 1]} : vector<8x1024xf32> to vector<8x768xf32>
    %173 = arith.negf %172 : vector<8x768xf32>
    %174 = math.exp %173 : vector<8x768xf32>
    %cst_32 = arith.constant 1.000000e+00 : f32
    %175 = vector.broadcast %cst_32 : f32 to vector<8x768xf32>
    %176 = arith.addf %175, %174 : vector<8x768xf32>
    %177 = arith.divf %175, %176 : vector<8x768xf32>
    %178 = vector.extract_strided_slice %177 {offsets = [0, 0], sizes = [8, 256], strides = [1, 1]} : vector<8x768xf32> to vector<8x256xf32>
    %179 = vector.extract_strided_slice %177 {offsets = [0, 256], sizes = [8, 256], strides = [1, 1]} : vector<8x768xf32> to vector<8x256xf32>
    %180 = vector.extract_strided_slice %177 {offsets = [0, 512], sizes = [8, 256], strides = [1, 1]} : vector<8x768xf32> to vector<8x256xf32>
    %181 = vector.extract_strided_slice %171 {offsets = [0, 768], sizes = [8, 256], strides = [1, 1]} : vector<8x1024xf32> to vector<8x256xf32>
    %182 = math.tanh %181 : vector<8x256xf32>
    %183 = arith.mulf %179, %146 : vector<8x256xf32>
    %184 = arith.mulf %178, %182 : vector<8x256xf32>
    %185 = arith.addf %183, %184 : vector<8x256xf32>
    %186 = math.tanh %185 : vector<8x256xf32>
    %187 = arith.mulf %180, %186 : vector<8x256xf32>
    %188 = tpu.concatenate %187, %168 in 1 : vector<8x256xf32>, vector<8x256xf32> -> vector<8x512xf32>
    %cst_33 = arith.constant dense<0.000000e+00> : vector<8x1024xf32>
    %189 = tpu.matmul %188, %7, %cst_33 {dimension_numbers = #tpu.dot_dimension_numbers<[1], [0], [0], [1], [0, 0, 1, 1], [], []>} : vector<8x512xf32>, vector<512x1024xf32>, vector<8x1024xf32> -> vector<8x1024xf32>
    %190 = vector.broadcast %8 : vector<1x1024xf32> to vector<8x1024xf32>
    %191 = arith.addf %189, %190 : vector<8x1024xf32>
    %192 = vector.extract_strided_slice %191 {offsets = [0, 0], sizes = [8, 768], strides = [1, 1]} : vector<8x1024xf32> to vector<8x768xf32>
    %193 = arith.negf %192 : vector<8x768xf32>
    %194 = math.exp %193 : vector<8x768xf32>
    %cst_34 = arith.constant 1.000000e+00 : f32
    %195 = vector.broadcast %cst_34 : f32 to vector<8x768xf32>
    %196 = arith.addf %195, %194 : vector<8x768xf32>
    %197 = arith.divf %195, %196 : vector<8x768xf32>
    %198 = vector.extract_strided_slice %197 {offsets = [0, 0], sizes = [8, 256], strides = [1, 1]} : vector<8x768xf32> to vector<8x256xf32>
    %199 = vector.extract_strided_slice %197 {offsets = [0, 256], sizes = [8, 256], strides = [1, 1]} : vector<8x768xf32> to vector<8x256xf32>
    %200 = vector.extract_strided_slice %197 {offsets = [0, 512], sizes = [8, 256], strides = [1, 1]} : vector<8x768xf32> to vector<8x256xf32>
    %201 = vector.extract_strided_slice %191 {offsets = [0, 768], sizes = [8, 256], strides = [1, 1]} : vector<8x1024xf32> to vector<8x256xf32>
    %202 = math.tanh %201 : vector<8x256xf32>
    %203 = arith.mulf %199, %166 : vector<8x256xf32>
    %204 = arith.mulf %198, %202 : vector<8x256xf32>
    %205 = arith.addf %203, %204 : vector<8x256xf32>
    %206 = math.tanh %205 : vector<8x256xf32>
    %207 = arith.mulf %200, %206 : vector<8x256xf32>
    %208 = vector.extract_strided_slice %5 {offsets = [40, 0], sizes = [8, 1024], strides = [1, 1]} : vector<64x1024xf32> to vector<8x1024xf32>
    %cst_35 = arith.constant dense<0.000000e+00> : vector<8x1024xf32>
    %209 = tpu.matmul %187, %6, %cst_35 {dimension_numbers = #tpu.dot_dimension_numbers<[1], [0], [0], [1], [0, 0, 1, 1], [], []>} : vector<8x256xf32>, vector<256x1024xf32>, vector<8x1024xf32> -> vector<8x1024xf32>
    %210 = arith.addf %208, %209 : vector<8x1024xf32>
    %211 = vector.extract_strided_slice %210 {offsets = [0, 0], sizes = [8, 768], strides = [1, 1]} : vector<8x1024xf32> to vector<8x768xf32>
    %212 = arith.negf %211 : vector<8x768xf32>
    %213 = math.exp %212 : vector<8x768xf32>
    %cst_36 = arith.constant 1.000000e+00 : f32
    %214 = vector.broadcast %cst_36 : f32 to vector<8x768xf32>
    %215 = arith.addf %214, %213 : vector<8x768xf32>
    %216 = arith.divf %214, %215 : vector<8x768xf32>
    %217 = vector.extract_strided_slice %216 {offsets = [0, 0], sizes = [8, 256], strides = [1, 1]} : vector<8x768xf32> to vector<8x256xf32>
    %218 = vector.extract_strided_slice %216 {offsets = [0, 256], sizes = [8, 256], strides = [1, 1]} : vector<8x768xf32> to vector<8x256xf32>
    %219 = vector.extract_strided_slice %216 {offsets = [0, 512], sizes = [8, 256], strides = [1, 1]} : vector<8x768xf32> to vector<8x256xf32>
    %220 = vector.extract_strided_slice %210 {offsets = [0, 768], sizes = [8, 256], strides = [1, 1]} : vector<8x1024xf32> to vector<8x256xf32>
    %221 = math.tanh %220 : vector<8x256xf32>
    %222 = arith.mulf %218, %185 : vector<8x256xf32>
    %223 = arith.mulf %217, %221 : vector<8x256xf32>
    %224 = arith.addf %222, %223 : vector<8x256xf32>
    %225 = math.tanh %224 : vector<8x256xf32>
    %226 = arith.mulf %219, %225 : vector<8x256xf32>
    %227 = tpu.concatenate %226, %207 in 1 : vector<8x256xf32>, vector<8x256xf32> -> vector<8x512xf32>
    %cst_37 = arith.constant dense<0.000000e+00> : vector<8x1024xf32>
    %228 = tpu.matmul %227, %7, %cst_37 {dimension_numbers = #tpu.dot_dimension_numbers<[1], [0], [0], [1], [0, 0, 1, 1], [], []>} : vector<8x512xf32>, vector<512x1024xf32>, vector<8x1024xf32> -> vector<8x1024xf32>
    %229 = vector.broadcast %8 : vector<1x1024xf32> to vector<8x1024xf32>
    %230 = arith.addf %228, %229 : vector<8x1024xf32>
    %231 = vector.extract_strided_slice %230 {offsets = [0, 0], sizes = [8, 768], strides = [1, 1]} : vector<8x1024xf32> to vector<8x768xf32>
    %232 = arith.negf %231 : vector<8x768xf32>
    %233 = math.exp %232 : vector<8x768xf32>
    %cst_38 = arith.constant 1.000000e+00 : f32
    %234 = vector.broadcast %cst_38 : f32 to vector<8x768xf32>
    %235 = arith.addf %234, %233 : vector<8x768xf32>
    %236 = arith.divf %234, %235 : vector<8x768xf32>
    %237 = vector.extract_strided_slice %236 {offsets = [0, 0], sizes = [8, 256], strides = [1, 1]} : vector<8x768xf32> to vector<8x256xf32>
    %238 = vector.extract_strided_slice %236 {offsets = [0, 256], sizes = [8, 256], strides = [1, 1]} : vector<8x768xf32> to vector<8x256xf32>
    %239 = vector.extract_strided_slice %236 {offsets = [0, 512], sizes = [8, 256], strides = [1, 1]} : vector<8x768xf32> to vector<8x256xf32>
    %240 = vector.extract_strided_slice %230 {offsets = [0, 768], sizes = [8, 256], strides = [1, 1]} : vector<8x1024xf32> to vector<8x256xf32>
    %241 = math.tanh %240 : vector<8x256xf32>
    %242 = arith.mulf %238, %205 : vector<8x256xf32>
    %243 = arith.mulf %237, %241 : vector<8x256xf32>
    %244 = arith.addf %242, %243 : vector<8x256xf32>
    %245 = math.tanh %244 : vector<8x256xf32>
    %246 = arith.mulf %239, %245 : vector<8x256xf32>
    %247 = vector.extract_strided_slice %5 {offsets = [48, 0], sizes = [8, 1024], strides = [1, 1]} : vector<64x1024xf32> to vector<8x1024xf32>
    %cst_39 = arith.constant dense<0.000000e+00> : vector<8x1024xf32>
    %248 = tpu.matmul %226, %6, %cst_39 {dimension_numbers = #tpu.dot_dimension_numbers<[1], [0], [0], [1], [0, 0, 1, 1], [], []>} : vector<8x256xf32>, vector<256x1024xf32>, vector<8x1024xf32> -> vector<8x1024xf32>
    %249 = arith.addf %247, %248 : vector<8x1024xf32>
    %250 = vector.extract_strided_slice %249 {offsets = [0, 0], sizes = [8, 768], strides = [1, 1]} : vector<8x1024xf32> to vector<8x768xf32>
    %251 = arith.negf %250 : vector<8x768xf32>
    %252 = math.exp %251 : vector<8x768xf32>
    %cst_40 = arith.constant 1.000000e+00 : f32
    %253 = vector.broadcast %cst_40 : f32 to vector<8x768xf32>
    %254 = arith.addf %253, %252 : vector<8x768xf32>
    %255 = arith.divf %253, %254 : vector<8x768xf32>
    %256 = vector.extract_strided_slice %255 {offsets = [0, 0], sizes = [8, 256], strides = [1, 1]} : vector<8x768xf32> to vector<8x256xf32>
    %257 = vector.extract_strided_slice %255 {offsets = [0, 256], sizes = [8, 256], strides = [1, 1]} : vector<8x768xf32> to vector<8x256xf32>
    %258 = vector.extract_strided_slice %255 {offsets = [0, 512], sizes = [8, 256], strides = [1, 1]} : vector<8x768xf32> to vector<8x256xf32>
    %259 = vector.extract_strided_slice %249 {offsets = [0, 768], sizes = [8, 256], strides = [1, 1]} : vector<8x1024xf32> to vector<8x256xf32>
    %260 = math.tanh %259 : vector<8x256xf32>
    %261 = arith.mulf %257, %224 : vector<8x256xf32>
    %262 = arith.mulf %256, %260 : vector<8x256xf32>
    %263 = arith.addf %261, %262 : vector<8x256xf32>
    %264 = math.tanh %263 : vector<8x256xf32>
    %265 = arith.mulf %258, %264 : vector<8x256xf32>
    %266 = tpu.concatenate %265, %246 in 1 : vector<8x256xf32>, vector<8x256xf32> -> vector<8x512xf32>
    %cst_41 = arith.constant dense<0.000000e+00> : vector<8x1024xf32>
    %267 = tpu.matmul %266, %7, %cst_41 {dimension_numbers = #tpu.dot_dimension_numbers<[1], [0], [0], [1], [0, 0, 1, 1], [], []>} : vector<8x512xf32>, vector<512x1024xf32>, vector<8x1024xf32> -> vector<8x1024xf32>
    %268 = vector.broadcast %8 : vector<1x1024xf32> to vector<8x1024xf32>
    %269 = arith.addf %267, %268 : vector<8x1024xf32>
    %270 = vector.extract_strided_slice %269 {offsets = [0, 0], sizes = [8, 768], strides = [1, 1]} : vector<8x1024xf32> to vector<8x768xf32>
    %271 = arith.negf %270 : vector<8x768xf32>
    %272 = math.exp %271 : vector<8x768xf32>
    %cst_42 = arith.constant 1.000000e+00 : f32
    %273 = vector.broadcast %cst_42 : f32 to vector<8x768xf32>
    %274 = arith.addf %273, %272 : vector<8x768xf32>
    %275 = arith.divf %273, %274 : vector<8x768xf32>
    %276 = vector.extract_strided_slice %275 {offsets = [0, 0], sizes = [8, 256], strides = [1, 1]} : vector<8x768xf32> to vector<8x256xf32>
    %277 = vector.extract_strided_slice %275 {offsets = [0, 256], sizes = [8, 256], strides = [1, 1]} : vector<8x768xf32> to vector<8x256xf32>
    %278 = vector.extract_strided_slice %275 {offsets = [0, 512], sizes = [8, 256], strides = [1, 1]} : vector<8x768xf32> to vector<8x256xf32>
    %279 = vector.extract_strided_slice %269 {offsets = [0, 768], sizes = [8, 256], strides = [1, 1]} : vector<8x1024xf32> to vector<8x256xf32>
    %280 = math.tanh %279 : vector<8x256xf32>
    %281 = arith.mulf %277, %244 : vector<8x256xf32>
    %282 = arith.mulf %276, %280 : vector<8x256xf32>
    %283 = arith.addf %281, %282 : vector<8x256xf32>
    %284 = math.tanh %283 : vector<8x256xf32>
    %285 = arith.mulf %278, %284 : vector<8x256xf32>
    %286 = vector.extract_strided_slice %5 {offsets = [56, 0], sizes = [8, 1024], strides = [1, 1]} : vector<64x1024xf32> to vector<8x1024xf32>
    %cst_43 = arith.constant dense<0.000000e+00> : vector<8x1024xf32>
    %287 = tpu.matmul %265, %6, %cst_43 {dimension_numbers = #tpu.dot_dimension_numbers<[1], [0], [0], [1], [0, 0, 1, 1], [], []>} : vector<8x256xf32>, vector<256x1024xf32>, vector<8x1024xf32> -> vector<8x1024xf32>
    %288 = arith.addf %286, %287 : vector<8x1024xf32>
    %289 = vector.extract_strided_slice %288 {offsets = [0, 0], sizes = [8, 768], strides = [1, 1]} : vector<8x1024xf32> to vector<8x768xf32>
    %290 = arith.negf %289 : vector<8x768xf32>
    %291 = math.exp %290 : vector<8x768xf32>
    %cst_44 = arith.constant 1.000000e+00 : f32
    %292 = vector.broadcast %cst_44 : f32 to vector<8x768xf32>
    %293 = arith.addf %292, %291 : vector<8x768xf32>
    %294 = arith.divf %292, %293 : vector<8x768xf32>
    %295 = vector.extract_strided_slice %294 {offsets = [0, 0], sizes = [8, 256], strides = [1, 1]} : vector<8x768xf32> to vector<8x256xf32>
    %296 = vector.extract_strided_slice %294 {offsets = [0, 256], sizes = [8, 256], strides = [1, 1]} : vector<8x768xf32> to vector<8x256xf32>
    %297 = vector.extract_strided_slice %294 {offsets = [0, 512], sizes = [8, 256], strides = [1, 1]} : vector<8x768xf32> to vector<8x256xf32>
    %298 = vector.extract_strided_slice %288 {offsets = [0, 768], sizes = [8, 256], strides = [1, 1]} : vector<8x1024xf32> to vector<8x256xf32>
    %299 = math.tanh %298 : vector<8x256xf32>
    %300 = arith.mulf %296, %263 : vector<8x256xf32>
    %301 = arith.mulf %295, %299 : vector<8x256xf32>
    %302 = arith.addf %300, %301 : vector<8x256xf32>
    %303 = math.tanh %302 : vector<8x256xf32>
    %304 = arith.mulf %297, %303 : vector<8x256xf32>
    %305 = tpu.concatenate %304, %285 in 1 : vector<8x256xf32>, vector<8x256xf32> -> vector<8x512xf32>
    %cst_45 = arith.constant dense<0.000000e+00> : vector<8x1024xf32>
    %306 = tpu.matmul %305, %7, %cst_45 {dimension_numbers = #tpu.dot_dimension_numbers<[1], [0], [0], [1], [0, 0, 1, 1], [], []>} : vector<8x512xf32>, vector<512x1024xf32>, vector<8x1024xf32> -> vector<8x1024xf32>
    %307 = vector.broadcast %8 : vector<1x1024xf32> to vector<8x1024xf32>
    %308 = arith.addf %306, %307 : vector<8x1024xf32>
    %309 = vector.extract_strided_slice %308 {offsets = [0, 0], sizes = [8, 768], strides = [1, 1]} : vector<8x1024xf32> to vector<8x768xf32>
    %310 = arith.negf %309 : vector<8x768xf32>
    %311 = math.exp %310 : vector<8x768xf32>
    %cst_46 = arith.constant 1.000000e+00 : f32
    %312 = vector.broadcast %cst_46 : f32 to vector<8x768xf32>
    %313 = arith.addf %312, %311 : vector<8x768xf32>
    %314 = arith.divf %312, %313 : vector<8x768xf32>
    %315 = vector.extract_strided_slice %314 {offsets = [0, 0], sizes = [8, 256], strides = [1, 1]} : vector<8x768xf32> to vector<8x256xf32>
    %316 = vector.extract_strided_slice %314 {offsets = [0, 256], sizes = [8, 256], strides = [1, 1]} : vector<8x768xf32> to vector<8x256xf32>
    %317 = vector.extract_strided_slice %314 {offsets = [0, 512], sizes = [8, 256], strides = [1, 1]} : vector<8x768xf32> to vector<8x256xf32>
    %318 = vector.extract_strided_slice %308 {offsets = [0, 768], sizes = [8, 256], strides = [1, 1]} : vector<8x1024xf32> to vector<8x256xf32>
    %319 = math.tanh %318 : vector<8x256xf32>
    %320 = arith.mulf %316, %283 : vector<8x256xf32>
    %321 = arith.mulf %315, %319 : vector<8x256xf32>
    %322 = arith.addf %320, %321 : vector<8x256xf32>
    %323 = math.tanh %322 : vector<8x256xf32>
    %324 = arith.mulf %317, %323 : vector<8x256xf32>
    %c0_47 = arith.constant 0 : index
    %c0_48 = arith.constant 0 : index
    %325 = vector.load %arg7[%c0_47, %c0_48] : memref<8x256xf32, #tpu.memory_space<vmem>>, vector<8x256xf32>
    tpu.vector_store %arg7[%c0_47, %c0_48], %324 {strides = array<i32>} : memref<8x256xf32, #tpu.memory_space<vmem>>, vector<8x256xf32>,
    return
  }
  func.func @transform_0(%arg0: i32) -> (i32, i32) {
    %c0_i32 = arith.constant 0 : i32
    %c0_i32_0 = arith.constant 0 : i32
    %c0_i32_1 = arith.constant 0 : i32
    return %c0_i32, %c0_i32_0 : i32, i32
  }
  func.func @transform_1(%arg0: i32) -> (i32, i32) {
    %c0_i32 = arith.constant 0 : i32
    %c0_i32_0 = arith.constant 0 : i32
    %c0_i32_1 = arith.constant 0 : i32
    return %c0_i32, %c0_i32_0 : i32, i32
  }
  func.func @transform_2(%arg0: i32) -> (i32, i32) {
    %c0_i32 = arith.constant 0 : i32
    %c0_i32_0 = arith.constant 0 : i32
    %c0_i32_1 = arith.constant 0 : i32
    return %c0_i32, %c0_i32_0 : i32, i32
  }
  func.func @transform_3(%arg0: i32) -> (i32, i32) {
    %c0_i32 = arith.constant 0 : i32
    %c0_i32_0 = arith.constant 0 : i32
    %c0_i32_1 = arith.constant 0 : i32
    return %c0_i32, %c0_i32_0 : i32, i32
  }
  func.func @transform_4(%arg0: i32) -> (i32, i32) {
    %c0_i32 = arith.constant 0 : i32
    %c0_i32_0 = arith.constant 0 : i32
    %c0_i32_1 = arith.constant 0 : i32
    return %c0_i32, %c0_i32_0 : i32, i32
  }
  func.func @transform_5(%arg0: i32) -> (i32, i32) {
    %c0_i32 = arith.constant 0 : i32
    %c0_i32_0 = arith.constant 0 : i32
    %c0_i32_1 = arith.constant 0 : i32
    return %c0_i32, %c0_i32_0 : i32, i32
  }
  func.func @transform_6(%arg0: i32) -> (i32, i32) {
    %c0_i32 = arith.constant 0 : i32
    %c0_i32_0 = arith.constant 0 : i32
    %c0_i32_1 = arith.constant 0 : i32
    return %c0_i32, %c0_i32_0 : i32, i32
  }
}

</mosaic_0001>

<llo_original>
// kernel: shake_backbone_forward.1
$region0: #{shake_backbone_forward.1}
  #allocation0 [shape = 'u32[]', space=smem, size = 0x4, offset = 0x4, fixed_abs, tag = 'smem constant byte address 0x4 - core index']
  #allocation1 [shape = 'u32[144,128]{1,0:T(1,128)}', space=vmem, size = 0x12000, scoped, tag = 'internal scratch']
  %s0 = inlined_call_operand.vmem [shape: f32[64,8], index: 0, kind: input, shape index: {}]
  %s1 = inlined_call_operand.hbm [shape: f32[8,1024], index: 1, kind: input, shape index: {}]
  %s2 = inlined_call_operand.hbm [shape: f32[1,1024], index: 2, kind: input, shape index: {}]
  %s3 = inlined_call_operand.hbm [shape: f32[256,1024], index: 3, kind: input, shape index: {}]
  %s4 = inlined_call_operand.hbm [shape: f32[512,1024], index: 4, kind: input, shape index: {}]
  %s5 = inlined_call_operand.hbm [shape: f32[1,1024], index: 5, kind: input, shape index: {}]
  %s6 = inlined_call_operand.vmem [shape: f32[8,256], index: 6, kind: output, shape index: {}]
  %s7 = sld [smem:[#allocation0]]
  $region54: #{shake_backbone_forward.1} parent=0
    _
  %s9 = ssub.s32 1, %s7
  %s10 = scalar_select 0, %s9, %s7
  $region1: #{shake_backbone_forward.1} parent=0
    #allocation2 [shape = 'u8[32768]{0}', space=vmem, size = 0x8000, scoped, tag = 'input window, operand 1, single buffered']
    #allocation3 [shape = 's32[1]{0}', space=sflag, size = 0x4, scoped, tag = 'scoped memory for shake_backbone_forward.1']
    #allocation4 [shape = 'u8[4096]{0}', space=vmem, size = 0x1000, scoped, tag = 'input window, operand 2, single buffered']
    #allocation5 [shape = 's32[1]{0}', space=sflag, size = 0x4, scoped, tag = 'scoped memory for shake_backbone_forward.1']
    #allocation6 [shape = 'u8[1048576]{0}', space=vmem, size = 0x100000, scoped, tag = 'input window, operand 3, single buffered']
    #allocation7 [shape = 'u8[2097152]{0}', space=vmem, size = 0x200000, scoped, tag = 'input window, operand 4, single buffered']
    #allocation8 [shape = 's32[1]{0}', space=sflag, size = 0x4, scoped, tag = 'scoped memory for shake_backbone_forward.1']
    #allocation9 [shape = 'u8[4096]{0}', space=vmem, size = 0x1000, scoped, tag = 'input window, operand 5, single buffered']
    %11 = vsyncpa [#allocation3], 0
    %12 = vsyncpa [#allocation5], 0
    %13 = vsyncpa [#allocation8], 0
    // Predicated region
    $region2: #{shake_backbone_forward.1} parent=1 // pred_check
      _
    $region3: #{shake_backbone_forward.1} parent=1 // pred_check_branch
      %15 = sbr.rel (0) target = $region5
    $region4: #{shake_backbone_forward.1} parent=1 // pred_region
      _
    $region5: #{shake_backbone_forward.1} parent=1 // pred_fallthru
      _
    // Predicated region
    $region6: #{shake_backbone_forward.1} parent=1 // pred_check
      _
    $region7: #{shake_backbone_forward.1} parent=1 // pred_check_branch
      %17 = sbr.rel (0) target = $region9
    $region8: #{shake_backbone_forward.1} parent=1 // pred_region
      %s19 = ssub.s32 1024, 1024
      %20 = vsyncadd [#allocation3], %s19
      %s22 = sshll.u32 [#allocation2], 4
      %s23 = int_to_ptr.vmem [resolvable:$true] %s22
      %25 = dma.hbm_to_vmem [thread:$0]  %s1, 1024, %s23, [#allocation3]
    $region9: #{shake_backbone_forward.1} parent=1 // pred_fallthru
      _
    // Predicated region
    $region10: #{shake_backbone_forward.1} parent=1 // pred_check
      _
    $region11: #{shake_backbone_forward.1} parent=1 // pred_check_branch
      %27 = sbr.rel (0) target = $region13
    $region12: #{shake_backbone_forward.1} parent=1 // pred_region
      %s29 = ssub.s32 128, 128
      %30 = vsyncadd [#allocation5], %s29
      %s32 = sshll.u32 [#allocation4], 4
      %s33 = int_to_ptr.vmem [resolvable:$true] %s32
      %35 = dma.hbm_to_vmem [thread:$0]  %s2, 128, %s33, [#allocation5]
    $region13: #{shake_backbone_forward.1} parent=1 // pred_fallthru
      _
    // Predicated region
    $region14: #{shake_backbone_forward.1} parent=1 // pred_check
      _
    $region15: #{shake_backbone_forward.1} parent=1 // pred_check_branch
      %37 = sbr.rel (0) target = $region17
    $region16: #{shake_backbone_forward.1} parent=1 // pred_region
      %s39 = ssub.s32 32768, 32768
      %40 = vsyncadd [#allocation5], %s39
      %s41 = sshll.u32 [#allocation6], 4
      %s42 = int_to_ptr.vmem [resolvable:$true] %s41
      %47 = dma.hbm_to_vmem [thread:$0]  %s3, 32768, %s42, [#allocation5], 1024, 1024, 64
    $region17: #{shake_backbone_forward.1} parent=1 // pred_fallthru
      _
    // Predicated region
    $region18: #{shake_backbone_forward.1} parent=1 // pred_check
      _
    $region19: #{shake_backbone_forward.1} parent=1 // pred_check_branch
      %49 = sbr.rel (0) target = $region21
    $region20: #{shake_backbone_forward.1} parent=1 // pred_region
      %s51 = ssub.s32 65536, 65536
      %52 = vsyncadd [#allocation8], %s51
      %s53 = sshll.u32 [#allocation7], 4
      %s54 = int_to_ptr.vmem [resolvable:$true] %s53
      %59 = dma.hbm_to_vmem [thread:$0]  %s4, 65536, %s54, [#allocation8], 1024, 1024, 64
    $region21: #{shake_backbone_forward.1} parent=1 // pred_fallthru
      _
    // Predicated region
    $region22: #{shake_backbone_forward.1} parent=1 // pred_check
      _
    $region23: #{shake_backbone_forward.1} parent=1 // pred_check_branch
      %61 = sbr.rel (0) target = $region25
    $region24: #{shake_backbone_forward.1} parent=1 // pred_region
      %s63 = ssub.s32 128, 128
      %64 = vsyncadd [#allocation8], %s63
      %s66 = sshll.u32 [#allocation9], 4
      %s67 = int_to_ptr.vmem [resolvable:$true] %s66
      %69 = dma.hbm_to_vmem [thread:$0]  %s5, 128, %s67, [#allocation8]
    $region25: #{shake_backbone_forward.1} parent=1 // pred_fallthru
      _
    // Predicated region
    $region26: #{shake_backbone_forward.1} parent=1 // pred_check
      _
    $region27: #{shake_backbone_forward.1} parent=1 // pred_check_branch
      %71 = sbr.rel (0) target = $region29
    $region28: #{shake_backbone_forward.1} parent=1 // pred_region
      %72 = dma.done [#allocation3], 1024
    $region29: #{shake_backbone_forward.1} parent=1 // pred_fallthru
      _
    // Predicated region
    $region30: #{shake_backbone_forward.1} parent=1 // pred_check
      _
    $region31: #{shake_backbone_forward.1} parent=1 // pred_check_branch
      %74 = sbr.rel (0) target = $region33
    $region32: #{shake_backbone_forward.1} parent=1 // pred_region
      %75 = dma.done [#allocation5], 128
    $region33: #{shake_backbone_forward.1} parent=1 // pred_fallthru
      _
    // Predicated region
    $region34: #{shake_backbone_forward.1} parent=1 // pred_check
      _
    $region35: #{shake_backbone_forward.1} parent=1 // pred_check_branch
      %77 = sbr.rel (0) target = $region37
    $region36: #{shake_backbone_forward.1} parent=1 // pred_region
      %78 = dma.done [#allocation5], 32768
    $region37: #{shake_backbone_forward.1} parent=1 // pred_fallthru
      _
    // Predicated region
    $region38: #{shake_backbone_forward.1} parent=1 // pred_check
      _
    $region39: #{shake_backbone_forward.1} parent=1 // pred_check_branch
      %80 = sbr.rel (0) target = $region41
    $region40: #{shake_backbone_forward.1} parent=1 // pred_region
      %81 = dma.done [#allocation8], 65536
    $region41: #{shake_backbone_forward.1} parent=1 // pred_fallthru
      _
    // Predicated region
    $region42: #{shake_backbone_forward.1} parent=1 // pred_check
      _
    $region43: #{shake_backbone_forward.1} parent=1 // pred_check_branch
      %83 = sbr.rel (0) target = $region45
    $region44: #{shake_backbone_forward.1} parent=1 // pred_region
      %84 = dma.done [#allocation8], 128
    $region45: #{shake_backbone_forward.1} parent=1 // pred_fallthru
      _
    %v85 = vld [vmem:[%s0] sm:$0xff]
    %v86 = vld [vmem:[%s0 + $0x8] sm:$0xff]
    %v87 = vld [vmem:[%s0 + $0x10] sm:$0xff]
    %v88 = vld [vmem:[%s0 + $0x18] sm:$0xff]
    %v89 = vld [vmem:[%s0 + $0x20] sm:$0xff]
    %v90 = vld [vmem:[%s0 + $0x28] sm:$0xff]
    %v91 = vld [vmem:[%s0 + $0x30] sm:$0xff]
    %v92 = vld [vmem:[%s0 + $0x38] sm:$0xff]
    %v93 = vld [vmem:[#allocation2] sm:$0xff]
    %v94 = vld [vmem:[#allocation2 + $0x8] sm:$0xff]
    %v95 = vld [vmem:[#allocation2 + $0x10] sm:$0xff]
    %v96 = vld [vmem:[#allocation2 + $0x18] sm:$0xff]
    %v97 = vld [vmem:[#allocation2 + $0x20] sm:$0xff]
    %v98 = vld [vmem:[#allocation2 + $0x28] sm:$0xff]
    %v99 = vld [vmem:[#allocation2 + $0x30] sm:$0xff]
    %v100 = vld [vmem:[#allocation2 + $0x38] sm:$0xff]
    %v101 = vld [vmem:[#allocation4] sm:$0xff]
    %v103 = vlaneseq
    %v104 = vshrl.u32 %v103, 7
    %v105 = vsub.s32 0, %v104
    %v106 = vrot.slane %v101, %v105
    %v107 = vlaneseq
    %v108 = vshrl.u32 %v107, 7
    %v109 = vsub.s32 1, %v108
    %v110 = vrot.slane %v101, %v109
    %v111 = vlaneseq
    %v112 = vshrl.u32 %v111, 7
    %v113 = vsub.s32 2, %v112
    %v114 = vrot.slane %v101, %v113
    %v115 = vlaneseq
    %v116 = vshrl.u32 %v115, 7
    %v117 = vsub.s32 3, %v116
    %v118 = vrot.slane %v101, %v117
    %v119 = vlaneseq
    %v120 = vshrl.u32 %v119, 7
    %v121 = vsub.s32 4, %v120
    %v122 = vrot.slane %v101, %v121
    %v123 = vlaneseq
    %v124 = vshrl.u32 %v123, 7
    %v125 = vsub.s32 5, %v124
    %v126 = vrot.slane %v101, %v125
    %v127 = vlaneseq
    %v128 = vshrl.u32 %v127, 7
    %v129 = vsub.s32 6, %v128
    %v130 = vrot.slane %v101, %v129
    %v131 = vlaneseq
    %v132 = vshrl.u32 %v131, 7
    %v133 = vsub.s32 7, %v132
    %v134 = vrot.slane %v101, %v133
    %vm143 = vcmask 64512
    %v145 = vsel %vm143, %v85, 0
    %v148 = vsel %vm143, %v86, 0
    %v151 = vsel %vm143, %v87, 0
    %v154 = vsel %vm143, %v88, 0
    %v157 = vsel %vm143, %v89, 0
    %v160 = vsel %vm143, %v90, 0
    %v163 = vsel %vm143, %v91, 0
    %v166 = vsel %vm143, %v92, 0
    %168 = vmatprep.subr.mxu0 0.0
    %169 = vmatpush1.msra.mxu0 0.0
    %170 = vmatprep.subr.mxu0 0.0
    %171 = vmatpush1.msra.mxu0 0.0
    %172 = vmatprep.subr.mxu0 0.0
    %173 = vmatpush1.msra.mxu0 0.0
    %174 = vmatprep.subr.mxu0 0.0
    %175 = vmatpush1.msra.mxu0 0.0
    %176 = vmatprep.subr.mxu0 0.0
    %177 = vmatpush1.msra.mxu0 0.0
    %178 = vmatprep.subr.mxu0 0.0
    %179 = vmatpush1.msra.mxu0 0.0
    %180 = vmatprep.subr.mxu0 0.0
    %181 = vmatpush1.msra.mxu0 0.0
    %182 = vmatprep.subr.mxu0 0.0
    %183 = vmatpush1.msra.mxu0 0.0
    %184 = vmatprep.subr.mxu0 0.0
    %185 = vmatpush1.msra.mxu0 0.0
    %186 = vmatprep.subr.mxu0 0.0
    %187 = vmatpush1.msra.mxu0 0.0
    %188 = vmatprep.subr.mxu0 0.0
    %189 = vmatpush1.msra.mxu0 0.0
    %190 = vmatprep.subr.mxu0 0.0
    %191 = vmatpush1.msra.mxu0 0.0
    %192 = vmatprep.subr.mxu0 0.0
    %193 = vmatpush1.msra.mxu0 0.0
    %194 = vmatprep.subr.mxu0 0.0
    %195 = vmatpush1.msra.mxu0 0.0
    %196 = vmatprep.subr.mxu0 0.0
    %197 = vmatpush1.msra.mxu0 0.0
    %198 = vmatprep.subr.mxu0 %v94
    %199 = vmatpush1.msra.mxu0 %v93
    %200 = vmatprep.subr.mxu0 0.0
    %201 = vmatpush2.msra.mxu0 0.0
    %202 = vmatprep.subr.mxu0 0.0
    %203 = vmatpush2.msra.mxu0 0.0
    %204 = vmatprep.subr.mxu0 0.0
    %205 = vmatpush2.msra.mxu0 0.0
    %206 = vmatprep.subr.mxu0 0.0
    %207 = vmatpush2.msra.mxu0 0.0
    %208 = vmatprep.subr.mxu0 0.0
    %209 = vmatpush2.msra.mxu0 0.0
    %210 = vmatprep.subr.mxu0 0.0
    %211 = vmatpush2.msra.mxu0 0.0
    %212 = vmatprep.subr.mxu0 0.0
    %213 = vmatpush2.msra.mxu0 0.0
    %214 = vmatprep.subr.mxu0 0.0
    %215 = vmatpush2.msra.mxu0 0.0
    %216 = vmatprep.subr.mxu0 0.0
    %217 = vmatpush2.msra.mxu0 0.0
    %218 = vmatprep.subr.mxu0 0.0
    %219 = vmatpush2.msra.mxu0 0.0
    %220 = vmatprep.subr.mxu0 0.0
    %221 = vmatpush2.msra.mxu0 0.0
    %222 = vmatprep.subr.mxu0 0.0
    %223 = vmatpush2.msra.mxu0 0.0
    %224 = vmatprep.subr.mxu0 0.0
    %225 = vmatpush2.msra.mxu0 0.0
    %226 = vmatprep.subr.mxu0 0.0
    %227 = vmatpush2.msra.mxu0 0.0
    %228 = vmatprep.subr.mxu0 0.0
    %229 = vmatpush2.msra.mxu0 0.0
    %230 = vmatprep.subr.mxu0 0.0
    %231 = vmatpush2.msra.mxu0 0.0
    %232 = vmatprep.mubr.f32.mxu0 0.0
    %233 = vmatmul.mubr.f32.gmra.mxu0 %v145
    %v234 = vpop.f32.mrf.mxu0
    %v235 = vadd.f32 %v106, %v234
    %v236 = vpop.f32.mrf.mxu0
    %v237 = vadd.f32 %v110, %v236
    %238 = vmatprep.mubr.f32.mxu0 0.0
    %239 = vmatmul.mubr.f32.gmra.mxu0 %v148
    %v240 = vpop.f32.mrf.mxu0
    %v241 = vadd.f32 %v106, %v240
    %v242 = vpop.f32.mrf.mxu0
    %v243 = vadd.f32 %v110, %v242
    %244 = vmatprep.mubr.f32.mxu0 0.0
    %245 = vmatmul.mubr.f32.gmra.mxu0 %v151
    %v246 = vpop.f32.mrf.mxu0
    %v247 = vadd.f32 %v106, %v246
    %v248 = vpop.f32.mrf.mxu0
    %v249 = vadd.f32 %v110, %v248
    %250 = vmatprep.mubr.f32.mxu0 0.0
    %251 = vmatmul.mubr.f32.gmra.mxu0 %v154
    %v252 = vpop.f32.mrf.mxu0
    %v253 = vadd.f32 %v106, %v252
    %v254 = vpop.f32.mrf.mxu0
    %v255 = vadd.f32 %v110, %v254
    %256 = vmatprep.mubr.f32.mxu0 0.0
    %257 = vmatmul.mubr.f32.gmra.mxu0 %v157
    %v258 = vpop.f32.mrf.mxu0
    %v259 = vadd.f32 %v106, %v258
    %v260 = vpop.f32.mrf.mxu0
    %v261 = vadd.f32 %v110, %v260
    %262 = vmatprep.mubr.f32.mxu0 0.0
    %263 = vmatmul.mubr.f32.gmra.mxu0 %v160
    %v264 = vpop.f32.mrf.mxu0
    %v265 = vadd.f32 %v106, %v264
    %v266 = vpop.f32.mrf.mxu0
    %v267 = vadd.f32 %v110, %v266
    %268 = vmatprep.mubr.f32.mxu0 0.0
    %269 = vmatmul.mubr.f32.gmra.mxu0 %v163
    %v270 = vpop.f32.mrf.mxu0
    %v271 = vadd.f32 %v106, %v270
    %v272 = vpop.f32.mrf.mxu0
    %v273 = vadd.f32 %v110, %v272
    %274 = vmatprep.mubr.f32.mxu0 0.0
    %275 = vmatmul.mubr.f32.gmra.mxu0 %v166
    %v276 = vpop.f32.mrf.mxu0
    %v277 = vadd.f32 %v106, %v276
    %v278 = vpop.f32.mrf.mxu0
    %v279 = vadd.f32 %v110, %v278
    %280 = vdwg.mxu0
    %281 = vmatprep.subr.mxu0 0.0
    %282 = vmatpush1.msra.mxu0 0.0
    %283 = vmatprep.subr.mxu0 0.0
    %284 = vmatpush1.msra.mxu0 0.0
    %285 = vmatprep.subr.mxu0 0.0
    %286 = vmatpush1.msra.mxu0 0.0
    %287 = vmatprep.subr.mxu0 0.0
    %288 = vmatpush1.msra.mxu0 0.0
    %289 = vmatprep.subr.mxu0 0.0
    %290 = vmatpush1.msra.mxu0 0.0
    %291 = vmatprep.subr.mxu0 0.0
    %292 = vmatpush1.msra.mxu0 0.0
    %293 = vmatprep.subr.mxu0 0.0
    %294 = vmatpush1.msra.mxu0 0.0
    %295 = vmatprep.subr.mxu0 0.0
    %296 = vmatpush1.msra.mxu0 0.0
    %297 = vmatprep.subr.mxu0 0.0
    %298 = vmatpush1.msra.mxu0 0.0
    %299 = vmatprep.subr.mxu0 0.0
    %300 = vmatpush1.msra.mxu0 0.0
    %301 = vmatprep.subr.mxu0 0.0
    %302 = vmatpush1.msra.mxu0 0.0
    %303 = vmatprep.subr.mxu0 0.0
    %304 = vmatpush1.msra.mxu0 0.0
    %305 = vmatprep.subr.mxu0 0.0
    %306 = vmatpush1.msra.mxu0 0.0
    %307 = vmatprep.subr.mxu0 0.0
    %308 = vmatpush1.msra.mxu0 0.0
    %309 = vmatprep.subr.mxu0 0.0
    %310 = vmatpush1.msra.mxu0 0.0
    %311 = vmatprep.subr.mxu0 %v96
    %312 = vmatpush1.msra.mxu0 %v95
    %313 = vmatprep.subr.mxu0 0.0
    %314 = vmatpush2.msra.mxu0 0.0
    %315 = vmatprep.subr.mxu0 0.0
    %316 = vmatpush2.msra.mxu0 0.0
    %317 = vmatprep.subr.mxu0 0.0
    %318 = vmatpush2.msra.mxu0 0.0
    %319 = vmatprep.subr.mxu0 0.0
    %320 = vmatpush2.msra.mxu0 0.0
    %321 = vmatprep.subr.mxu0 0.0
    %322 = vmatpush2.msra.mxu0 0.0
    %323 = vmatprep.subr.mxu0 0.0
    %324 = vmatpush2.msra.mxu0 0.0
    %325 = vmatprep.subr.mxu0 0.0
    %326 = vmatpush2.msra.mxu0 0.0
    %327 = vmatprep.subr.mxu0 0.0
    %328 = vmatpush2.msra.mxu0 0.0
    %329 = vmatprep.subr.mxu0 0.0
    %330 = vmatpush2.msra.mxu0 0.0
    %331 = vmatprep.subr.mxu0 0.0
    %332 = vmatpush2.msra.mxu0 0.0
    %333 = vmatprep.subr.mxu0 0.0
    %334 = vmatpush2.msra.mxu0 0.0
    %335 = vmatprep.subr.mxu0 0.0
    %336 = vmatpush2.msra.mxu0 0.0
    %337 = vmatprep.subr.mxu0 0.0
    %338 = vmatpush2.msra.mxu0 0.0
    %339 = vmatprep.subr.mxu0 0.0
    %340 = vmatpush2.msra.mxu0 0.0
    %341 = vmatprep.subr.mxu0 0.0
    %342 = vmatpush2.msra.mxu0 0.0
    %343 = vmatprep.subr.mxu0 0.0
    %344 = vmatpush2.msra.mxu0 0.0
    %345 = vmatprep.mubr.f32.mxu0 0.0
    %346 = vmatmul.mubr.f32.gmra.mxu0 %v145
    %v347 = vpop.f32.mrf.mxu0
    %v348 = vadd.f32 %v114, %v347
    %v349 = vpop.f32.mrf.mxu0
    %v350 = vadd.f32 %v118, %v349
    %351 = vmatprep.mubr.f32.mxu0 0.0
    %352 = vmatmul.mubr.f32.gmra.mxu0 %v148
    %v353 = vpop.f32.mrf.mxu0
    %v354 = vadd.f32 %v114, %v353
    %v355 = vpop.f32.mrf.mxu0
    %v356 = vadd.f32 %v118, %v355
    %357 = vmatprep.mubr.f32.mxu0 0.0
    %358 = vmatmul.mubr.f32.gmra.mxu0 %v151
    %v359 = vpop.f32.mrf.mxu0
    %v360 = vadd.f32 %v114, %v359
    %v361 = vpop.f32.mrf.mxu0
    %v362 = vadd.f32 %v118, %v361
    %363 = vmatprep.mubr.f32.mxu0 0.0
    %364 = vmatmul.mubr.f32.gmra.mxu0 %v154
    %v365 = vpop.f32.mrf.mxu0
    %v366 = vadd.f32 %v114, %v365
    %v367 = vpop.f32.mrf.mxu0
    %v368 = vadd.f32 %v118, %v367
    %369 = vmatprep.mubr.f32.mxu0 0.0
    %370 = vmatmul.mubr.f32.gmra.mxu0 %v157
    %v371 = vpop.f32.mrf.mxu0
    %v372 = vadd.f32 %v114, %v371
    %v373 = vpop.f32.mrf.mxu0
    %v374 = vadd.f32 %v118, %v373
    %375 = vmatprep.mubr.f32.mxu0 0.0
    %376 = vmatmul.mubr.f32.gmra.mxu0 %v160
    %v377 = vpop.f32.mrf.mxu0
    %v378 = vadd.f32 %v114, %v377
    %v379 = vpop.f32.mrf.mxu0
    %v380 = vadd.f32 %v118, %v379
    %381 = vmatprep.mubr.f32.mxu0 0.0
    %382 = vmatmul.mubr.f32.gmra.mxu0 %v163
    %v383 = vpop.f32.mrf.mxu0
    %v384 = vadd.f32 %v114, %v383
    %v385 = vpop.f32.mrf.mxu0
    %v386 = vadd.f32 %v118, %v385
    %387 = vmatprep.mubr.f32.mxu0 0.0
    %388 = vmatmul.mubr.f32.gmra.mxu0 %v166
    %v389 = vpop.f32.mrf.mxu0
    %v390 = vadd.f32 %v114, %v389
    %v391 = vpop.f32.mrf.mxu0
    %v392 = vadd.f32 %v118, %v391
    %393 = vdwg.mxu0
    %394 = vmatprep.subr.mxu0 0.0
    %395 = vmatpush1.msra.mxu0 0.0
    %396 = vmatprep.subr.mxu0 0.0
    %397 = vmatpush1.msra.mxu0 0.0
    %398 = vmatprep.subr.mxu0 0.0
    %399 = vmatpush1.msra.mxu0 0.0
    %400 = vmatprep.subr.mxu0 0.0
    %401 = vmatpush1.msra.mxu0 0.0
    %402 = vmatprep.subr.mxu0 0.0
    %403 = vmatpush1.msra.mxu0 0.0
    %404 = vmatprep.subr.mxu0 0.0
    %405 = vmatpush1.msra.mxu0 0.0
    %406 = vmatprep.subr.mxu0 0.0
    %407 = vmatpush1.msra.mxu0 0.0
    %408 = vmatprep.subr.mxu0 0.0
    %409 = vmatpush1.msra.mxu0 0.0
    %410 = vmatprep.subr.mxu0 0.0
    %411 = vmatpush1.msra.mxu0 0.0
    %412 = vmatprep.subr.mxu0 0.0
    %413 = vmatpush1.msra.mxu0 0.0
    %414 = vmatprep.subr.mxu0 0.0
    %415 = vmatpush1.msra.mxu0 0.0
    %416 = vmatprep.subr.mxu0 0.0
    %417 = vmatpush1.msra.mxu0 0.0
    %418 = vmatprep.subr.mxu0 0.0
    %419 = vmatpush1.msra.mxu0 0.0
    %420 = vmatprep.subr.mxu0 0.0
    %421 = vmatpush1.msra.mxu0 0.0
    %422 = vmatprep.subr.mxu0 0.0
    %423 = vmatpush1.msra.mxu0 0.0
    %424 = vmatprep.subr.mxu0 %v98
    %425 = vmatpush1.msra.mxu0 %v97
    %426 = vmatprep.subr.mxu0 0.0
    %427 = vmatpush2.msra.mxu0 0.0
    %428 = vmatprep.subr.mxu0 0.0
    %429 = vmatpush2.msra.mxu0 0.0
    %430 = vmatprep.subr.mxu0 0.0
    %431 = vmatpush2.msra.mxu0 0.0
    %432 = vmatprep.subr.mxu0 0.0
    %433 = vmatpush2.msra.mxu0 0.0
    %434 = vmatprep.subr.mxu0 0.0
    %435 = vmatpush2.msra.mxu0 0.0
    %436 = vmatprep.subr.mxu0 0.0
    %437 = vmatpush2.msra.mxu0 0.0
    %438 = vmatprep.subr.mxu0 0.0
    %439 = vmatpush2.msra.mxu0 0.0
    %440 = vmatprep.subr.mxu0 0.0
    %441 = vmatpush2.msra.mxu0 0.0
    %442 = vmatprep.subr.mxu0 0.0
    %443 = vmatpush2.msra.mxu0 0.0
    %444 = vmatprep.subr.mxu0 0.0
    %445 = vmatpush2.msra.mxu0 0.0
    %446 = vmatprep.subr.mxu0 0.0
    %447 = vmatpush2.msra.mxu0 0.0
    %448 = vmatprep.subr.mxu0 0.0
    %449 = vmatpush2.msra.mxu0 0.0
    %450 = vmatprep.subr.mxu0 0.0
    %451 = vmatpush2.msra.mxu0 0.0
    %452 = vmatprep.subr.mxu0 0.0
    %453 = vmatpush2.msra.mxu0 0.0
    %454 = vmatprep.subr.mxu0 0.0
    %455 = vmatpush2.msra.mxu0 0.0
    %456 = vmatprep.subr.mxu0 0.0
    %457 = vmatpush2.msra.mxu0 0.0
    %458 = vmatprep.mubr.f32.mxu0 0.0
    %459 = vmatmul.mubr.f32.gmra.mxu0 %v145
    %v460 = vpop.f32.mrf.mxu0
    %v461 = vadd.f32 %v122, %v460
    %v462 = vpop.f32.mrf.mxu0
    %v463 = vadd.f32 %v126, %v462
    %464 = vmatprep.mubr.f32.mxu0 0.0
    %465 = vmatmul.mubr.f32.gmra.mxu0 %v148
    %v466 = vpop.f32.mrf.mxu0
    %v467 = vadd.f32 %v122, %v466
    %v468 = vpop.f32.mrf.mxu0
    %v469 = vadd.f32 %v126, %v468
    %470 = vmatprep.mubr.f32.mxu0 0.0
    %471 = vmatmul.mubr.f32.gmra.mxu0 %v151
    %v472 = vpop.f32.mrf.mxu0
    %v473 = vadd.f32 %v122, %v472
    %v474 = vpop.f32.mrf.mxu0
    %v475 = vadd.f32 %v126, %v474
    %476 = vmatprep.mubr.f32.mxu0 0.0
    %477 = vmatmul.mubr.f32.gmra.mxu0 %v154
    %v478 = vpop.f32.mrf.mxu0
    %v479 = vadd.f32 %v122, %v478
    %v480 = vpop.f32.mrf.mxu0
    %v481 = vadd.f32 %v126, %v480
    %482 = vmatprep.mubr.f32.mxu0 0.0
    %483 = vmatmul.mubr.f32.gmra.mxu0 %v157
    %v484 = vpop.f32.mrf.mxu0
    %v485 = vadd.f32 %v122, %v484
    %v486 = vpop.f32.mrf.mxu0
    %v487 = vadd.f32 %v126, %v486
    %488 = vmatprep.mubr.f32.mxu0 0.0
    %489 = vmatmul.mubr.f32.gmra.mxu0 %v160
    %v490 = vpop.f32.mrf.mxu0
    %v491 = vadd.f32 %v122, %v490
    %v492 = vpop.f32.mrf.mxu0
    %v493 = vadd.f32 %v126, %v492
    %494 = vmatprep.mubr.f32.mxu0 0.0
    %495 = vmatmul.mubr.f32.gmra.mxu0 %v163
    %v496 = vpop.f32.mrf.mxu0
    %v497 = vadd.f32 %v122, %v496
    %v498 = vpop.f32.mrf.mxu0
    %v499 = vadd.f32 %v126, %v498
    %500 = vmatprep.mubr.f32.mxu0 0.0
    %501 = vmatmul.mubr.f32.gmra.mxu0 %v166
    %v502 = vpop.f32.mrf.mxu0
    %v503 = vadd.f32 %v122, %v502
    %v504 = vpop.f32.mrf.mxu0
    %v505 = vadd.f32 %v126, %v504
    %506 = vdwg.mxu0
    %507 = vmatprep.subr.mxu0 0.0
    %508 = vmatpush1.msra.mxu0 0.0
    %509 = vmatprep.subr.mxu0 0.0
    %510 = vmatpush1.msra.mxu0 0.0
    %511 = vmatprep.subr.mxu0 0.0
    %512 = vmatpush1.msra.mxu0 0.0
    %513 = vmatprep.subr.mxu0 0.0
    %514 = vmatpush1.msra.mxu0 0.0
    %515 = vmatprep.subr.mxu0 0.0
    %516 = vmatpush1.msra.mxu0 0.0
    %517 = vmatprep.subr.mxu0 0.0
    %518 = vmatpush1.msra.mxu0 0.0
    %519 = vmatprep.subr.mxu0 0.0
    %520 = vmatpush1.msra.mxu0 0.0
    %521 = vmatprep.subr.mxu0 0.0
    %522 = vmatpush1.msra.mxu0 0.0
    %523 = vmatprep.subr.mxu0 0.0
    %524 = vmatpush1.msra.mxu0 0.0
    %525 = vmatprep.subr.mxu0 0.0
    %526 = vmatpush1.msra.mxu0 0.0
    %527 = vmatprep.subr.mxu0 0.0
    %528 = vmatpush1.msra.mxu0 0.0
    %529 = vmatprep.subr.mxu0 0.0
    %530 = vmatpush1.msra.mxu0 0.0
    %531 = vmatprep.subr.mxu0 0.0
    %532 = vmatpush1.msra.mxu0 0.0
    %533 = vmatprep.subr.mxu0 0.0
    %534 = vmatpush1.msra.mxu0 0.0
    %535 = vmatprep.subr.mxu0 0.0
    %536 = vmatpush1.msra.mxu0 0.0
    %537 = vmatprep.subr.mxu0 %v100
    %538 = vmatpush1.msra.mxu0 %v99
    %539 = vmatprep.subr.mxu0 0.0
    %540 = vmatpush2.msra.mxu0 0.0
    %541 = vmatprep.subr.mxu0 0.0
    %542 = vmatpush2.msra.mxu0 0.0
    %543 = vmatprep.subr.mxu0 0.0
    %544 = vmatpush2.msra.mxu0 0.0
    %545 = vmatprep.subr.mxu0 0.0
    %546 = vmatpush2.msra.mxu0 0.0
    %547 = vmatprep.subr.mxu0 0.0
    %548 = vmatpush2.msra.mxu0 0.0
    %549 = vmatprep.subr.mxu0 0.0
    %550 = vmatpush2.msra.mxu0 0.0
    %551 = vmatprep.subr.mxu0 0.0
    %552 = vmatpush2.msra.mxu0 0.0
    %553 = vmatprep.subr.mxu0 0.0
    %554 = vmatpush2.msra.mxu0 0.0
    %555 = vmatprep.subr.mxu0 0.0
    %556 = vmatpush2.msra.mxu0 0.0
    %557 = vmatprep.subr.mxu0 0.0
    %558 = vmatpush2.msra.mxu0 0.0
    %559 = vmatprep.subr.mxu0 0.0
    %560 = vmatpush2.msra.mxu0 0.0
    %561 = vmatprep.subr.mxu0 0.0
    %562 = vmatpush2.msra.mxu0 0.0
    %563 = vmatprep.subr.mxu0 0.0
    %564 = vmatpush2.msra.mxu0 0.0
    %565 = vmatprep.subr.mxu0 0.0
    %566 = vmatpush2.msra.mxu0 0.0
    %567 = vmatprep.subr.mxu0 0.0
    %568 = vmatpush2.msra.mxu0 0.0
    %569 = vmatprep.subr.mxu0 0.0
    %570 = vmatpush2.msra.mxu0 0.0
    %571 = vmatprep.mubr.f32.mxu0 0.0
    %572 = vmatmul.mubr.f32.gmra.mxu0 %v145
    %v573 = vpop.f32.mrf.mxu0
    %v574 = vadd.f32 %v130, %v573
    %v575 = vpop.f32.mrf.mxu0
    %v576 = vadd.f32 %v134, %v575
    %577 = vmatprep.mubr.f32.mxu0 0.0
    %578 = vmatmul.mubr.f32.gmra.mxu0 %v148
    %v579 = vpop.f32.mrf.mxu0
    %v580 = vadd.f32 %v130, %v579
    %v581 = vpop.f32.mrf.mxu0
    %v582 = vadd.f32 %v134, %v581
    %583 = vmatprep.mubr.f32.mxu0 0.0
    %584 = vmatmul.mubr.f32.gmra.mxu0 %v151
    %v585 = vpop.f32.mrf.mxu0
    %v586 = vadd.f32 %v130, %v585
    %v587 = vpop.f32.mrf.mxu0
    %v588 = vadd.f32 %v134, %v587
    %589 = vmatprep.mubr.f32.mxu0 0.0
    %590 = vmatmul.mubr.f32.gmra.mxu0 %v154
    %v591 = vpop.f32.mrf.mxu0
    %v592 = vadd.f32 %v130, %v591
    %v593 = vpop.f32.mrf.mxu0
    %v594 = vadd.f32 %v134, %v593
    %595 = vmatprep.mubr.f32.mxu0 0.0
    %596 = vmatmul.mubr.f32.gmra.mxu0 %v157
    %v597 = vpop.f32.mrf.mxu0
    %v598 = vadd.f32 %v130, %v597
    %v599 = vpop.f32.mrf.mxu0
    %v600 = vadd.f32 %v134, %v599
    %601 = vmatprep.mubr.f32.mxu0 0.0
    %602 = vmatmul.mubr.f32.gmra.mxu0 %v160
    %v603 = vpop.f32.mrf.mxu0
    %v604 = vadd.f32 %v130, %v603
    %v605 = vpop.f32.mrf.mxu0
    %v606 = vadd.f32 %v134, %v605
    %607 = vmatprep.mubr.f32.mxu0 0.0
    %608 = vmatmul.mubr.f32.gmra.mxu0 %v163
    %v609 = vpop.f32.mrf.mxu0
    %v610 = vadd.f32 %v130, %v609
    %v611 = vpop.f32.mrf.mxu0
    %v612 = vadd.f32 %v134, %v611
    %613 = vmatprep.mubr.f32.mxu0 0.0
    %614 = vmatmul.mubr.f32.gmra.mxu0 %v166
    %v615 = vpop.f32.mrf.mxu0
    %v616 = vadd.f32 %v130, %v615
    %v617 = vpop.f32.mrf.mxu0
    %v618 = vadd.f32 %v134, %v617
    %619 = vdwg.mxu0
    %v620 = vld [vmem:[#allocation6] sm:$0xff]
    %v621 = vld [vmem:[#allocation6 + $0x8] sm:$0xff]
    %v622 = vld [vmem:[#allocation6 + $0x10] sm:$0xff]
    %v623 = vld [vmem:[#allocation6 + $0x18] sm:$0xff]
    %v624 = vld [vmem:[#allocation6 + $0x20] sm:$0xff]
    %v625 = vld [vmem:[#allocation6 + $0x28] sm:$0xff]
    %v626 = vld [vmem:[#allocation6 + $0x30] sm:$0xff]
    %v627 = vld [vmem:[#allocation6 + $0x38] sm:$0xff]
    %v628 = vld [vmem:[#allocation6 + $0x40] sm:$0xff]
    %v629 = vld [vmem:[#allocation6 + $0x48] sm:$0xff]
    %v630 = vld [vmem:[#allocation6 + $0x50] sm:$0xff]
    %v631 = vld [vmem:[#allocation6 + $0x58] sm:$0xff]
    %v632 = vld [vmem:[#allocation6 + $0x60] sm:$0xff]
    %v633 = vld [vmem:[#allocation6 + $0x68] sm:$0xff]
    %v634 = vld [vmem:[#allocation6 + $0x70] sm:$0xff]
    %v635 = vld [vmem:[#allocation6 + $0x78] sm:$0xff]
    %v636 = vld [vmem:[#allocation6 + $0x80] sm:$0xff]
    %v637 = vld [vmem:[#allocation6 + $0x88] sm:$0xff]
    %v638 = vld [vmem:[#allocation6 + $0x90] sm:$0xff]
    %v639 = vld [vmem:[#allocation6 + $0x98] sm:$0xff]
    %v640 = vld [vmem:[#allocation6 + $0xa0] sm:$0xff]
    %v641 = vld [vmem:[#allocation6 + $0xa8] sm:$0xff]
    %v642 = vld [vmem:[#allocation6 + $0xb0] sm:$0xff]
    %v643 = vld [vmem:[#allocation6 + $0xb8] sm:$0xff]
    %v644 = vld [vmem:[#allocation6 + $0xc0] sm:$0xff]
    %v645 = vld [vmem:[#allocation6 + $0xc8] sm:$0xff]
    %v646 = vld [vmem:[#allocation6 + $0xd0] sm:$0xff]
    %v647 = vld [vmem:[#allocation6 + $0xd8] sm:$0xff]
    %v648 = vld [vmem:[#allocation6 + $0xe0] sm:$0xff]
    %v649 = vld [vmem:[#allocation6 + $0xe8] sm:$0xff]
    %v650 = vld [vmem:[#allocation6 + $0xf0] sm:$0xff]
    %v651 = vld [vmem:[#allocation6 + $0xf8] sm:$0xff]
    %v652 = vld [vmem:[#allocation6 + $0x100] sm:$0xff]
    %v653 = vld [vmem:[#allocation6 + $0x108] sm:$0xff]
    %v654 = vld [vmem:[#allocation6 + $0x110] sm:$0xff]
    %v655 = vld [vmem:[#allocation6 + $0x118] sm:$0xff]
    %v656 = vld [vmem:[#allocation6 + $0x120] sm:$0xff]
    %v657 = vld [vmem:[#allocation6 + $0x128] sm:$0xff]
    %v658 = vld [vmem:[#allocation6 + $0x130] sm:$0xff]
    %v659 = vld [vmem:[#allocation6 + $0x138] sm:$0xff]
    %v660 = vld [vmem:[#allocation6 + $0x140] sm:$0xff]
    %v661 = vld [vmem:[#allocation6 + $0x148] sm:$0xff]
    %v662 = vld [vmem:[#allocation6 + $0x150] sm:$0xff]
    %v663 = vld [vmem:[#allocation6 + $0x158] sm:$0xff]
    %v664 = vld [vmem:[#allocation6 + $0x160] sm:$0xff]
    %v665 = vld [vmem:[#allocation6 + $0x168] sm:$0xff]
    %v666 = vld [vmem:[#allocation6 + $0x170] sm:$0xff]
    %v667 = vld [vmem:[#allocation6 + $0x178] sm:$0xff]
    %v668 = vld [vmem:[#allocation6 + $0x180] sm:$0xff]
    %v669 = vld [vmem:[#allocation6 + $0x188] sm:$0xff]
    %v670 = vld [vmem:[#allocation6 + $0x190] sm:$0xff]
    %v671 = vld [vmem:[#allocation6 + $0x198] sm:$0xff]
    %v672 = vld [vmem:[#allocation6 + $0x1a0] sm:$0xff]
    %v673 = vld [vmem:[#allocation6 + $0x1a8] sm:$0xff]
    %v674 = vld [vmem:[#allocation6 + $0x1b0] sm:$0xff]
    %v675 = vld [vmem:[#allocation6 + $0x1b8] sm:$0xff]
    %v676 = vld [vmem:[#allocation6 + $0x1c0] sm:$0xff]
    %v677 = vld [vmem:[#allocation6 + $0x1c8] sm:$0xff]
    %v678 = vld [vmem:[#allocation6 + $0x1d0] sm:$0xff]
    %v679 = vld [vmem:[#allocation6 + $0x1d8] sm:$0xff]
    %v680 = vld [vmem:[#allocation6 + $0x1e0] sm:$0xff]
    %v681 = vld [vmem:[#allocation6 + $0x1e8] sm:$0xff]
    %v682 = vld [vmem:[#allocation6 + $0x1f0] sm:$0xff]
    %v683 = vld [vmem:[#allocation6 + $0x1f8] sm:$0xff]
    %v684 = vld [vmem:[#allocation6 + $0x200] sm:$0xff]
    %v685 = vld [vmem:[#allocation6 + $0x208] sm:$0xff]
    %v686 = vld [vmem:[#allocation6 + $0x210] sm:$0xff]
    %v687 = vld [vmem:[#allocation6 + $0x218] sm:$0xff]
    %v688 = vld [vmem:[#allocation6 + $0x220] sm:$0xff]
    %v689 = vld [vmem:[#allocation6 + $0x228] sm:$0xff]
    %v690 = vld [vmem:[#allocation6 + $0x230] sm:$0xff]
    %v691 = vld [vmem:[#allocation6 + $0x238] sm:$0xff]
    %v692 = vld [vmem:[#allocation6 + $0x240] sm:$0xff]
    %v693 = vld [vmem:[#allocation6 + $0x248] sm:$0xff]
    %v694 = vld [vmem:[#allocation6 + $0x250] sm:$0xff]
    %v695 = vld [vmem:[#allocation6 + $0x258] sm:$0xff]
    %v696 = vld [vmem:[#allocation6 + $0x260] sm:$0xff]
    %v697 = vld [vmem:[#allocation6 + $0x268] sm:$0xff]
    %v698 = vld [vmem:[#allocation6 + $0x270] sm:$0xff]
    %v699 = vld [vmem:[#allocation6 + $0x278] sm:$0xff]
    %v700 = vld [vmem:[#allocation6 + $0x280] sm:$0xff]
    %v701 = vld [vmem:[#allocation6 + $0x288] sm:$0xff]
    %v702 = vld [vmem:[#allocation6 + $0x290] sm:$0xff]
    %v703 = vld [vmem:[#allocation6 + $0x298] sm:$0xff]
    %v704 = vld [vmem:[#allocation6 + $0x2a0] sm:$0xff]
    %v705 = vld [vmem:[#allocation6 + $0x2a8] sm:$0xff]
    %v706 = vld [vmem:[#allocation6 + $0x2b0] sm:$0xff]
    %v707 = vld [vmem:[#allocation6 + $0x2b8] sm:$0xff]
    %v708 = vld [vmem:[#allocation6 + $0x2c0] sm:$0xff]
    %v709 = vld [vmem:[#allocation6 + $0x2c8] sm:$0xff]
    %v710 = vld [vmem:[#allocation6 + $0x2d0] sm:$0xff]
    %v711 = vld [vmem:[#allocation6 + $0x2d8] sm:$0xff]
    %v712 = vld [vmem:[#allocation6 + $0x2e0] sm:$0xff]
    %v713 = vld [vmem:[#allocation6 + $0x2e8] sm:$0xff]
    %v714 = vld [vmem:[#allocation6 + $0x2f0] sm:$0xff]
    %v715 = vld [vmem:[#allocation6 + $0x2f8] sm:$0xff]
    %v716 = vld [vmem:[#allocation6 + $0x300] sm:$0xff]
    %v717 = vld [vmem:[#allocation6 + $0x308] sm:$0xff]
    %v718 = vld [vmem:[#allocation6 + $0x310] sm:$0xff]
    %v719 = vld [vmem:[#allocation6 + $0x318] sm:$0xff]
    %v720 = vld [vmem:[#allocation6 + $0x320] sm:$0xff]
    %v721 = vld [vmem:[#allocation6 + $0x328] sm:$0xff]
    %v722 = vld [vmem:[#allocation6 + $0x330] sm:$0xff]
    %v723 = vld [vmem:[#allocation6 + $0x338] sm:$0xff]
    %v724 = vld [vmem:[#allocation6 + $0x340] sm:$0xff]
    %v725 = vld [vmem:[#allocation6 + $0x348] sm:$0xff]
    %v726 = vld [vmem:[#allocation6 + $0x350] sm:$0xff]
    %v727 = vld [vmem:[#allocation6 + $0x358] sm:$0xff]
    %v728 = vld [vmem:[#allocation6 + $0x360] sm:$0xff]
    %v729 = vld [vmem:[#allocation6 + $0x368] sm:$0xff]
    %v730 = vld [vmem:[#allocation6 + $0x370] sm:$0xff]
    %v731 = vld [vmem:[#allocation6 + $0x378] sm:$0xff]
    %v732 = vld [vmem:[#allocation6 + $0x380] sm:$0xff]
    %v733 = vld [vmem:[#allocation6 + $0x388] sm:$0xff]
    %v734 = vld [vmem:[#allocation6 + $0x390] sm:$0xff]
    %v735 = vld [vmem:[#allocation6 + $0x398] sm:$0xff]
    %v736 = vld [vmem:[#allocation6 + $0x3a0] sm:$0xff]
    %v737 = vld [vmem:[#allocation6 + $0x3a8] sm:$0xff]
    %v738 = vld [vmem:[#allocation6 + $0x3b0] sm:$0xff]
    %v739 = vld [vmem:[#allocation6 + $0x3b8] sm:$0xff]
    %v740 = vld [vmem:[#allocation6 + $0x3c0] sm:$0xff]
    %v741 = vld [vmem:[#allocation6 + $0x3c8] sm:$0xff]
    %v742 = vld [vmem:[#allocation6 + $0x3d0] sm:$0xff]
    %v743 = vld [vmem:[#allocation6 + $0x3d8] sm:$0xff]
    %v744 = vld [vmem:[#allocation6 + $0x3e0] sm:$0xff]
    %v745 = vld [vmem:[#allocation6 + $0x3e8] sm:$0xff]
    %v746 = vld [vmem:[#allocation6 + $0x3f0] sm:$0xff]
    %v747 = vld [vmem:[#allocation6 + $0x3f8] sm:$0xff]
    %v748 = vld [vmem:[#allocation6 + $0x400] sm:$0xff]
    %v749 = vld [vmem:[#allocation6 + $0x408] sm:$0xff]
    %v750 = vld [vmem:[#allocation6 + $0x410] sm:$0xff]
    %v751 = vld [vmem:[#allocation6 + $0x418] sm:$0xff]
    %v752 = vld [vmem:[#allocation6 + $0x420] sm:$0xff]
    %v753 = vld [vmem:[#allocation6 + $0x428] sm:$0xff]
    %v754 = vld [vmem:[#allocation6 + $0x430] sm:$0xff]
    %v755 = vld [vmem:[#allocation6 + $0x438] sm:$0xff]
    %v756 = vld [vmem:[#allocation6 + $0x440] sm:$0xff]
    %v757 = vld [vmem:[#allocation6 + $0x448] sm:$0xff]
    %v758 = vld [vmem:[#allocation6 + $0x450] sm:$0xff]
    %v759 = vld [vmem:[#allocation6 + $0x458] sm:$0xff]
    %v760 = vld [vmem:[#allocation6 + $0x460] sm:$0xff]
    %v761 = vld [vmem:[#allocation6 + $0x468] sm:$0xff]
    %v762 = vld [vmem:[#allocation6 + $0x470] sm:$0xff]
    %v763 = vld [vmem:[#allocation6 + $0x478] sm:$0xff]
    %v764 = vld [vmem:[#allocation6 + $0x480] sm:$0xff]
    %v765 = vld [vmem:[#allocation6 + $0x488] sm:$0xff]
    %v766 = vld [vmem:[#allocation6 + $0x490] sm:$0xff]
    %v767 = vld [vmem:[#allocation6 + $0x498] sm:$0xff]
    %v768 = vld [vmem:[#allocation6 + $0x4a0] sm:$0xff]
    %v769 = vld [vmem:[#allocation6 + $0x4a8] sm:$0xff]
    %v770 = vld [vmem:[#allocation6 + $0x4b0] sm:$0xff]
    %v771 = vld [vmem:[#allocation6 + $0x4b8] sm:$0xff]
    %v772 = vld [vmem:[#allocation6 + $0x4c0] sm:$0xff]
    %v773 = vld [vmem:[#allocation6 + $0x4c8] sm:$0xff]
    %v774 = vld [vmem:[#allocation6 + $0x4d0] sm:$0xff]
    %v775 = vld [vmem:[#allocation6 + $0x4d8] sm:$0xff]
    %v776 = vld [vmem:[#allocation6 + $0x4e0] sm:$0xff]
    %v777 = vld [vmem:[#allocation6 + $0x4e8] sm:$0xff]
    %v778 = vld [vmem:[#allocation6 + $0x4f0] sm:$0xff]
    %v779 = vld [vmem:[#allocation6 + $0x4f8] sm:$0xff]
    %v780 = vld [vmem:[#allocation6 + $0x500] sm:$0xff]
    %v781 = vld [vmem:[#allocation6 + $0x508] sm:$0xff]
    %v782 = vld [vmem:[#allocation6 + $0x510] sm:$0xff]
    %v783 = vld [vmem:[#allocation6 + $0x518] sm:$0xff]
    %v784 = vld [vmem:[#allocation6 + $0x520] sm:$0xff]
    %v785 = vld [vmem:[#allocation6 + $0x528] sm:$0xff]
    %v786 = vld [vmem:[#allocation6 + $0x530] sm:$0xff]
    %v787 = vld [vmem:[#allocation6 + $0x538] sm:$0xff]
    %v788 = vld [vmem:[#allocation6 + $0x540] sm:$0xff]
    %v789 = vld [vmem:[#allocation6 + $0x548] sm:$0xff]
    %v790 = vld [vmem:[#allocation6 + $0x550] sm:$0xff]
    %v791 = vld [vmem:[#allocation6 + $0x558] sm:$0xff]
    %v792 = vld [vmem:[#allocation6 + $0x560] sm:$0xff]
    %v793 = vld [vmem:[#allocation6 + $0x568] sm:$0xff]
    %v794 = vld [vmem:[#allocation6 + $0x570] sm:$0xff]
    %v795 = vld [vmem:[#allocation6 + $0x578] sm:$0xff]
    %v796 = vld [vmem:[#allocation6 + $0x580] sm:$0xff]
    %v797 = vld [vmem:[#allocation6 + $0x588] sm:$0xff]
    %v798 = vld [vmem:[#allocation6 + $0x590] sm:$0xff]
    %v799 = vld [vmem:[#allocation6 + $0x598] sm:$0xff]
    %v800 = vld [vmem:[#allocation6 + $0x5a0] sm:$0xff]
    %v801 = vld [vmem:[#allocation6 + $0x5a8] sm:$0xff]
    %v802 = vld [vmem:[#allocation6 + $0x5b0] sm:$0xff]
    %v803 = vld [vmem:[#allocation6 + $0x5b8] sm:$0xff]
    %v804 = vld [vmem:[#allocation6 + $0x5c0] sm:$0xff]
    %v805 = vld [vmem:[#allocation6 + $0x5c8] sm:$0xff]
    %v806 = vld [vmem:[#allocation6 + $0x5d0] sm:$0xff]
    %v807 = vld [vmem:[#allocation6 + $0x5d8] sm:$0xff]
    %v808 = vld [vmem:[#allocation6 + $0x5e0] sm:$0xff]
    %v809 = vld [vmem:[#allocation6 + $0x5e8] sm:$0xff]
    %v810 = vld [vmem:[#allocation6 + $0x5f0] sm:$0xff]
    %v811 = vld [vmem:[#allocation6 + $0x5f8] sm:$0xff]
    %v812 = vld [vmem:[#allocation6 + $0x600] sm:$0xff]
    %v813 = vld [vmem:[#allocation6 + $0x608] sm:$0xff]
    %v814 = vld [vmem:[#allocation6 + $0x610] sm:$0xff]
    %v815 = vld [vmem:[#allocation6 + $0x618] sm:$0xff]
    %v816 = vld [vmem:[#allocation6 + $0x620] sm:$0xff]
    %v817 = vld [vmem:[#allocation6 + $0x628] sm:$0xff]
    %v818 = vld [vmem:[#allocation6 + $0x630] sm:$0xff]
    %v819 = vld [vmem:[#allocation6 + $0x638] sm:$0xff]
    %v820 = vld [vmem:[#allocation6 + $0x640] sm:$0xff]
    %v821 = vld [vmem:[#allocation6 + $0x648] sm:$0xff]
    %v822 = vld [vmem:[#allocation6 + $0x650] sm:$0xff]
    %v823 = vld [vmem:[#allocation6 + $0x658] sm:$0xff]
    %v824 = vld [vmem:[#allocation6 + $0x660] sm:$0xff]
    %v825 = vld [vmem:[#allocation6 + $0x668] sm:$0xff]
    %v826 = vld [vmem:[#allocation6 + $0x670] sm:$0xff]
    %v827 = vld [vmem:[#allocation6 + $0x678] sm:$0xff]
    %v828 = vld [vmem:[#allocation6 + $0x680] sm:$0xff]
    %v829 = vld [vmem:[#allocation6 + $0x688] sm:$0xff]
    %v830 = vld [vmem:[#allocation6 + $0x690] sm:$0xff]
    %v831 = vld [vmem:[#allocation6 + $0x698] sm:$0xff]
    %v832 = vld [vmem:[#allocation6 + $0x6a0] sm:$0xff]
    %v833 = vld [vmem:[#allocation6 + $0x6a8] sm:$0xff]
    %v834 = vld [vmem:[#allocation6 + $0x6b0] sm:$0xff]
    %v835 = vld [vmem:[#allocation6 + $0x6b8] sm:$0xff]
    %v836 = vld [vmem:[#allocation6 + $0x6c0] sm:$0xff]
    %v837 = vld [vmem:[#allocation6 + $0x6c8] sm:$0xff]
    %v838 = vld [vmem:[#allocation6 + $0x6d0] sm:$0xff]
    %v839 = vld [vmem:[#allocation6 + $0x6d8] sm:$0xff]
    %v840 = vld [vmem:[#allocation6 + $0x6e0] sm:$0xff]
    %v841 = vld [vmem:[#allocation6 + $0x6e8] sm:$0xff]
    %v842 = vld [vmem:[#allocation6 + $0x6f0] sm:$0xff]
    %v843 = vld [vmem:[#allocation6 + $0x6f8] sm:$0xff]
    %v844 = vld [vmem:[#allocation6 + $0x700] sm:$0xff]
    %v845 = vld [vmem:[#allocation6 + $0x708] sm:$0xff]
    %v846 = vld [vmem:[#allocation6 + $0x710] sm:$0xff]
    %v847 = vld [vmem:[#allocation6 + $0x718] sm:$0xff]
    %v848 = vld [vmem:[#allocation6 + $0x720] sm:$0xff]
    %v849 = vld [vmem:[#allocation6 + $0x728] sm:$0xff]
    %v850 = vld [vmem:[#allocation6 + $0x730] sm:$0xff]
    %v851 = vld [vmem:[#allocation6 + $0x738] sm:$0xff]
    %v852 = vld [vmem:[#allocation6 + $0x740] sm:$0xff]
    %v853 = vld [vmem:[#allocation6 + $0x748] sm:$0xff]
    %v854 = vld [vmem:[#allocation6 + $0x750] sm:$0xff]
    %v855 = vld [vmem:[#allocation6 + $0x758] sm:$0xff]
    %v856 = vld [vmem:[#allocation6 + $0x760] sm:$0xff]
    %v857 = vld [vmem:[#allocation6 + $0x768] sm:$0xff]
    %v858 = vld [vmem:[#allocation6 + $0x770] sm:$0xff]
    %v859 = vld [vmem:[#allocation6 + $0x778] sm:$0xff]
    %v860 = vld [vmem:[#allocation6 + $0x780] sm:$0xff]
    %v861 = vld [vmem:[#allocation6 + $0x788] sm:$0xff]
    %v862 = vld [vmem:[#allocation6 + $0x790] sm:$0xff]
    %v863 = vld [vmem:[#allocation6 + $0x798] sm:$0xff]
    %v864 = vld [vmem:[#allocation6 + $0x7a0] sm:$0xff]
    %v865 = vld [vmem:[#allocation6 + $0x7a8] sm:$0xff]
    %v866 = vld [vmem:[#allocation6 + $0x7b0] sm:$0xff]
    %v867 = vld [vmem:[#allocation6 + $0x7b8] sm:$0xff]
    %v868 = vld [vmem:[#allocation6 + $0x7c0] sm:$0xff]
    %v869 = vld [vmem:[#allocation6 + $0x7c8] sm:$0xff]
    %v870 = vld [vmem:[#allocation6 + $0x7d0] sm:$0xff]
    %v871 = vld [vmem:[#allocation6 + $0x7d8] sm:$0xff]
    %v872 = vld [vmem:[#allocation6 + $0x7e0] sm:$0xff]
    %v873 = vld [vmem:[#allocation6 + $0x7e8] sm:$0xff]
    %v874 = vld [vmem:[#allocation6 + $0x7f0] sm:$0xff]
    %v875 = vld [vmem:[#allocation6 + $0x7f8] sm:$0xff]
    %v876 = vld [vmem:[#allocation7] sm:$0xff]
    %v877 = vld [vmem:[#allocation7 + $0x8] sm:$0xff]
    %v878 = vld [vmem:[#allocation7 + $0x10] sm:$0xff]
    %v879 = vld [vmem:[#allocation7 + $0x18] sm:$0xff]
    %v880 = vld [vmem:[#allocation7 + $0x20] sm:$0xff]
    %v881 = vld [vmem:[#allocation7 + $0x28] sm:$0xff]
    %v882 = vld [vmem:[#allocation7 + $0x30] sm:$0xff]
    %v883 = vld [vmem:[#allocation7 + $0x38] sm:$0xff]
    %v884 = vld [vmem:[#allocation7 + $0x40] sm:$0xff]
    %v885 = vld [vmem:[#allocation7 + $0x48] sm:$0xff]
    %v886 = vld [vmem:[#allocation7 + $0x50] sm:$0xff]
    %v887 = vld [vmem:[#allocation7 + $0x58] sm:$0xff]
    %v888 = vld [vmem:[#allocation7 + $0x60] sm:$0xff]
    %v889 = vld [vmem:[#allocation7 + $0x68] sm:$0xff]
    %v890 = vld [vmem:[#allocation7 + $0x70] sm:$0xff]
    %v891 = vld [vmem:[#allocation7 + $0x78] sm:$0xff]
    %v892 = vld [vmem:[#allocation7 + $0x80] sm:$0xff]
    %v893 = vld [vmem:[#allocation7 + $0x88] sm:$0xff]
    %v894 = vld [vmem:[#allocation7 + $0x90] sm:$0xff]
    %v895 = vld [vmem:[#allocation7 + $0x98] sm:$0xff]
    %v896 = vld [vmem:[#allocation7 + $0xa0] sm:$0xff]
    %v897 = vld [vmem:[#allocation7 + $0xa8] sm:$0xff]
    %v898 = vld [vmem:[#allocation7 + $0xb0] sm:$0xff]
    %v899 = vld [vmem:[#allocation7 + $0xb8] sm:$0xff]
    %v900 = vld [vmem:[#allocation7 + $0xc0] sm:$0xff]
    %v901 = vld [vmem:[#allocation7 + $0xc8] sm:$0xff]
    %v902 = vld [vmem:[#allocation7 + $0xd0] sm:$0xff]
    %v903 = vld [vmem:[#allocation7 + $0xd8] sm:$0xff]
    %v904 = vld [vmem:[#allocation7 + $0xe0] sm:$0xff]
    %v905 = vld [vmem:[#allocation7 + $0xe8] sm:$0xff]
    %v906 = vld [vmem:[#allocation7 + $0xf0] sm:$0xff]
    %v907 = vld [vmem:[#allocation7 + $0xf8] sm:$0xff]
    %v908 = vld [vmem:[#allocation7 + $0x100] sm:$0xff]
    %v909 = vld [vmem:[#allocation7 + $0x108] sm:$0xff]
    %v910 = vld [vmem:[#allocation7 + $0x110] sm:$0xff]
    %v911 = vld [vmem:[#allocation7 + $0x118] sm:$0xff]
    %v912 = vld [vmem:[#allocation7 + $0x120] sm:$0xff]
    %v913 = vld [vmem:[#allocation7 + $0x128] sm:$0xff]
    %v914 = vld [vmem:[#allocation7 + $0x130] sm:$0xff]
    %v915 = vld [vmem:[#allocation7 + $0x138] sm:$0xff]
    %v916 = vld [vmem:[#allocation7 + $0x140] sm:$0xff]
    %v917 = vld [vmem:[#allocation7 + $0x148] sm:$0xff]
    %v918 = vld [vmem:[#allocation7 + $0x150] sm:$0xff]
    %v919 = vld [vmem:[#allocation7 + $0x158] sm:$0xff]
    %v920 = vld [vmem:[#allocation7 + $0x160] sm:$0xff]
    %v921 = vld [vmem:[#allocation7 + $0x168] sm:$0xff]
    %v922 = vld [vmem:[#allocation7 + $0x170] sm:$0xff]
    %v923 = vld [vmem:[#allocation7 + $0x178] sm:$0xff]
    %v924 = vld [vmem:[#allocation7 + $0x180] sm:$0xff]
    %v925 = vld [vmem:[#allocation7 + $0x188] sm:$0xff]
    %v926 = vld [vmem:[#allocation7 + $0x190] sm:$0xff]
    %v927 = vld [vmem:[#allocation7 + $0x198] sm:$0xff]
    %v928 = vld [vmem:[#allocation7 + $0x1a0] sm:$0xff]
    %v929 = vld [vmem:[#allocation7 + $0x1a8] sm:$0xff]
    %v930 = vld [vmem:[#allocation7 + $0x1b0] sm:$0xff]
    %v931 = vld [vmem:[#allocation7 + $0x1b8] sm:$0xff]
    %v932 = vld [vmem:[#allocation7 + $0x1c0] sm:$0xff]
    %v933 = vld [vmem:[#allocation7 + $0x1c8] sm:$0xff]
    %v934 = vld [vmem:[#allocation7 + $0x1d0] sm:$0xff]
    %v935 = vld [vmem:[#allocation7 + $0x1d8] sm:$0xff]
    %v936 = vld [vmem:[#allocation7 + $0x1e0] sm:$0xff]
    %v937 = vld [vmem:[#allocation7 + $0x1e8] sm:$0xff]
    %v938 = vld [vmem:[#allocation7 + $0x1f0] sm:$0xff]
    %v939 = vld [vmem:[#allocation7 + $0x1f8] sm:$0xff]
    %v940 = vld [vmem:[#allocation7 + $0x200] sm:$0xff]
    %v941 = vld [vmem:[#allocation7 + $0x208] sm:$0xff]
    %v942 = vld [vmem:[#allocation7 + $0x210] sm:$0xff]
    %v943 = vld [vmem:[#allocation7 + $0x218] sm:$0xff]
    %v944 = vld [vmem:[#allocation7 + $0x220] sm:$0xff]
    %v945 = vld [vmem:[#allocation7 + $0x228] sm:$0xff]
    %v946 = vld [vmem:[#allocation7 + $0x230] sm:$0xff]
    %v947 = vld [vmem:[#allocation7 + $0x238] sm:$0xff]
    %v948 = vld [vmem:[#allocation7 + $0x240] sm:$0xff]
    %v949 = vld [vmem:[#allocation7 + $0x248] sm:$0xff]
    %v950 = vld [vmem:[#allocation7 + $0x250] sm:$0xff]
    %v951 = vld [vmem:[#allocation7 + $0x258] sm:$0xff]
    %v952 = vld [vmem:[#allocation7 + $0x260] sm:$0xff]
    %v953 = vld [vmem:[#allocation7 + $0x268] sm:$0xff]
    %v954 = vld [vmem:[#allocation7 + $0x270] sm:$0xff]
    %v955 = vld [vmem:[#allocation7 + $0x278] sm:$0xff]
    %v956 = vld [vmem:[#allocation7 + $0x280] sm:$0xff]
    %v957 = vld [vmem:[#allocation7 + $0x288] sm:$0xff]
    %v958 = vld [vmem:[#allocation7 + $0x290] sm:$0xff]
    %v959 = vld [vmem:[#allocation7 + $0x298] sm:$0xff]
    %v960 = vld [vmem:[#allocation7 + $0x2a0] sm:$0xff]
    %v961 = vld [vmem:[#allocation7 + $0x2a8] sm:$0xff]
    %v962 = vld [vmem:[#allocation7 + $0x2b0] sm:$0xff]
    %v963 = vld [vmem:[#allocation7 + $0x2b8] sm:$0xff]
    %v964 = vld [vmem:[#allocation7 + $0x2c0] sm:$0xff]
    %v965 = vld [vmem:[#allocation7 + $0x2c8] sm:$0xff]
    %v966 = vld [vmem:[#allocation7 + $0x2d0] sm:$0xff]
    %v967 = vld [vmem:[#allocation7 + $0x2d8] sm:$0xff]
    %v968 = vld [vmem:[#allocation7 + $0x2e0] sm:$0xff]
    %v969 = vld [vmem:[#allocation7 + $0x2e8] sm:$0xff]
    %v970 = vld [vmem:[#allocation7 + $0x2f0] sm:$0xff]
    %v971 = vld [vmem:[#allocation7 + $0x2f8] sm:$0xff]
    %v972 = vld [vmem:[#allocation7 + $0x300] sm:$0xff]
    %v973 = vld [vmem:[#allocation7 + $0x308] sm:$0xff]
    %v974 = vld [vmem:[#allocation7 + $0x310] sm:$0xff]
    %v975 = vld [vmem:[#allocation7 + $0x318] sm:$0xff]
    %v976 = vld [vmem:[#allocation7 + $0x320] sm:$0xff]
    %v977 = vld [vmem:[#allocation7 + $0x328] sm:$0xff]
    %v978 = vld [vmem:[#allocation7 + $0x330] sm:$0xff]
    %v979 = vld [vmem:[#allocation7 + $0x338] sm:$0xff]
    %v980 = vld [vmem:[#allocation7 + $0x340] sm:$0xff]
    %v981 = vld [vmem:[#allocation7 + $0x348] sm:$0xff]
    %v982 = vld [vmem:[#allocation7 + $0x350] sm:$0xff]
    %v983 = vld [vmem:[#allocation7 + $0x358] sm:$0xff]
    %v984 = vld [vmem:[#allocation7 + $0x360] sm:$0xff]
    %v985 = vld [vmem:[#allocation7 + $0x368] sm:$0xff]
    %v986 = vld [vmem:[#allocation7 + $0x370] sm:$0xff]
    %v987 = vld [vmem:[#allocation7 + $0x378] sm:$0xff]
    %v988 = vld [vmem:[#allocation7 + $0x380] sm:$0xff]
    %v989 = vld [vmem:[#allocation7 + $0x388] sm:$0xff]
    %v990 = vld [vmem:[#allocation7 + $0x390] sm:$0xff]
    %v991 = vld [vmem:[#allocation7 + $0x398] sm:$0xff]
    %v992 = vld [vmem:[#allocation7 + $0x3a0] sm:$0xff]
    %v993 = vld [vmem:[#allocation7 + $0x3a8] sm:$0xff]
    %v994 = vld [vmem:[#allocation7 + $0x3b0] sm:$0xff]
    %v995 = vld [vmem:[#allocation7 + $0x3b8] sm:$0xff]
    %v996 = vld [vmem:[#allocation7 + $0x3c0] sm:$0xff]
    %v997 = vld [vmem:[#allocation7 + $0x3c8] sm:$0xff]
    %v998 = vld [vmem:[#allocation7 + $0x3d0] sm:$0xff]
    %v999 = vld [vmem:[#allocation7 + $0x3d8] sm:$0xff]
    %v1000 = vld [vmem:[#allocation7 + $0x3e0] sm:$0xff]
    %v1001 = vld [vmem:[#allocation7 + $0x3e8] sm:$0xff]
    %v1002 = vld [vmem:[#allocation7 + $0x3f0] sm:$0xff]
    %v1003 = vld [vmem:[#allocation7 + $0x3f8] sm:$0xff]
    %v1004 = vld [vmem:[#allocation7 + $0x400] sm:$0xff]
    %v1005 = vld [vmem:[#allocation7 + $0x408] sm:$0xff]
    %v1006 = vld [vmem:[#allocation7 + $0x410] sm:$0xff]
    %v1007 = vld [vmem:[#allocation7 + $0x418] sm:$0xff]
    %v1008 = vld [vmem:[#allocation7 + $0x420] sm:$0xff]
    %v1009 = vld [vmem:[#allocation7 + $0x428] sm:$0xff]
    %v1010 = vld [vmem:[#allocation7 + $0x430] sm:$0xff]
    %v1011 = vld [vmem:[#allocation7 + $0x438] sm:$0xff]
    %v1012 = vld [vmem:[#allocation7 + $0x440] sm:$0xff]
    %v1013 = vld [vmem:[#allocation7 + $0x448] sm:$0xff]
    %v1014 = vld [vmem:[#allocation7 + $0x450] sm:$0xff]
    %v1015 = vld [vmem:[#allocation7 + $0x458] sm:$0xff]
    %v1016 = vld [vmem:[#allocation7 + $0x460] sm:$0xff]
    %v1017 = vld [vmem:[#allocation7 + $0x468] sm:$0xff]
    %v1018 = vld [vmem:[#allocation7 + $0x470] sm:$0xff]
    %v1019 = vld [vmem:[#allocation7 + $0x478] sm:$0xff]
    %v1020 = vld [vmem:[#allocation7 + $0x480] sm:$0xff]
    %v1021 = vld [vmem:[#allocation7 + $0x488] sm:$0xff]
    %v1022 = vld [vmem:[#allocation7 + $0x490] sm:$0xff]
    %v1023 = vld [vmem:[#allocation7 + $0x498] sm:$0xff]
    %v1024 = vld [vmem:[#allocation7 + $0x4a0] sm:$0xff]
    %v1025 = vld [vmem:[#allocation7 + $0x4a8] sm:$0xff]
    %v1026 = vld [vmem:[#allocation7 + $0x4b0] sm:$0xff]
    %v1027 = vld [vmem:[#allocation7 + $0x4b8] sm:$0xff]
    %v1028 = vld [vmem:[#allocation7 + $0x4c0] sm:$0xff]
    %v1029 = vld [vmem:[#allocation7 + $0x4c8] sm:$0xff]
    %v1030 = vld [vmem:[#allocation7 + $0x4d0] sm:$0xff]
    %v1031 = vld [vmem:[#allocation7 + $0x4d8] sm:$0xff]
    %v1032 = vld [vmem:[#allocation7 + $0x4e0] sm:$0xff]
    %v1033 = vld [vmem:[#allocation7 + $0x4e8] sm:$0xff]
    %v1034 = vld [vmem:[#allocation7 + $0x4f0] sm:$0xff]
    %v1035 = vld [vmem:[#allocation7 + $0x4f8] sm:$0xff]
    %v1036 = vld [vmem:[#allocation7 + $0x500] sm:$0xff]
    %v1037 = vld [vmem:[#allocation7 + $0x508] sm:$0xff]
    %v1038 = vld [vmem:[#allocation7 + $0x510] sm:$0xff]
    %v1039 = vld [vmem:[#allocation7 + $0x518] sm:$0xff]
    %v1040 = vld [vmem:[#allocation7 + $0x520] sm:$0xff]
    %v1041 = vld [vmem:[#allocation7 + $0x528] sm:$0xff]
    %v1042 = vld [vmem:[#allocation7 + $0x530] sm:$0xff]
    %v1043 = vld [vmem:[#allocation7 + $0x538] sm:$0xff]
    %v1044 = vld [vmem:[#allocation7 + $0x540] sm:$0xff]
    %v1045 = vld [vmem:[#allocation7 + $0x548] sm:$0xff]
    %v1046 = vld [vmem:[#allocation7 + $0x550] sm:$0xff]
    %v1047 = vld [vmem:[#allocation7 + $0x558] sm:$0xff]
    %v1048 = vld [vmem:[#allocation7 + $0x560] sm:$0xff]
    %v1049 = vld [vmem:[#allocation7 + $0x568] sm:$0xff]
    %v1050 = vld [vmem:[#allocation7 + $0x570] sm:$0xff]
    %v1051 = vld [vmem:[#allocation7 + $0x578] sm:$0xff]
    %v1052 = vld [vmem:[#allocation7 + $0x580] sm:$0xff]
    %v1053 = vld [vmem:[#allocation7 + $0x588] sm:$0xff]
    %v1054 = vld [vmem:[#allocation7 + $0x590] sm:$0xff]
    %v1055 = vld [vmem:[#allocation7 + $0x598] sm:$0xff]
    %v1056 = vld [vmem:[#allocation7 + $0x5a0] sm:$0xff]
    %v1057 = vld [vmem:[#allocation7 + $0x5a8] sm:$0xff]
    %v1058 = vld [vmem:[#allocation7 + $0x5b0] sm:$0xff]
    %v1059 = vld [vmem:[#allocation7 + $0x5b8] sm:$0xff]
    %v1060 = vld [vmem:[#allocation7 + $0x5c0] sm:$0xff]
    %v1061 = vld [vmem:[#allocation7 + $0x5c8] sm:$0xff]
    %v1062 = vld [vmem:[#allocation7 + $0x5d0] sm:$0xff]
    %v1063 = vld [vmem:[#allocation7 + $0x5d8] sm:$0xff]
    %v1064 = vld [vmem:[#allocation7 + $0x5e0] sm:$0xff]
    %v1065 = vld [vmem:[#allocation7 + $0x5e8] sm:$0xff]
    %v1066 = vld [vmem:[#allocation7 + $0x5f0] sm:$0xff]
    %v1067 = vld [vmem:[#allocation7 + $0x5f8] sm:$0xff]
    %v1068 = vld [vmem:[#allocation7 + $0x600] sm:$0xff]
    %v1069 = vld [vmem:[#allocation7 + $0x608] sm:$0xff]
    %v1070 = vld [vmem:[#allocation7 + $0x610] sm:$0xff]
    %v1071 = vld [vmem:[#allocation7 + $0x618] sm:$0xff]
    %v1072 = vld [vmem:[#allocation7 + $0x620] sm:$0xff]
    %v1073 = vld [vmem:[#allocation7 + $0x628] sm:$0xff]
    %v1074 = vld [vmem:[#allocation7 + $0x630] sm:$0xff]
    %v1075 = vld [vmem:[#allocation7 + $0x638] sm:$0xff]
    %v1076 = vld [vmem:[#allocation7 + $0x640] sm:$0xff]
    %v1077 = vld [vmem:[#allocation7 + $0x648] sm:$0xff]
    %v1078 = vld [vmem:[#allocation7 + $0x650] sm:$0xff]
    %v1079 = vld [vmem:[#allocation7 + $0x658] sm:$0xff]
    %v1080 = vld [vmem:[#allocation7 + $0x660] sm:$0xff]
    %v1081 = vld [vmem:[#allocation7 + $0x668] sm:$0xff]
    %v1082 = vld [vmem:[#allocation7 + $0x670] sm:$0xff]
    %v1083 = vld [vmem:[#allocation7 + $0x678] sm:$0xff]
    %v1084 = vld [vmem:[#allocation7 + $0x680] sm:$0xff]
    %v1085 = vld [vmem:[#allocation7 + $0x688] sm:$0xff]
    %v1086 = vld [vmem:[#allocation7 + $0x690] sm:$0xff]
    %v1087 = vld [vmem:[#allocation7 + $0x698] sm:$0xff]
    %v1088 = vld [vmem:[#allocation7 + $0x6a0] sm:$0xff]
    %v1089 = vld [vmem:[#allocation7 + $0x6a8] sm:$0xff]
    %v1090 = vld [vmem:[#allocation7 + $0x6b0] sm:$0xff]
    %v1091 = vld [vmem:[#allocation7 + $0x6b8] sm:$0xff]
    %v1092 = vld [vmem:[#allocation7 + $0x6c0] sm:$0xff]
    %v1093 = vld [vmem:[#allocation7 + $0x6c8] sm:$0xff]
    %v1094 = vld [vmem:[#allocation7 + $0x6d0] sm:$0xff]
    %v1095 = vld [vmem:[#allocation7 + $0x6d8] sm:$0xff]
    %v1096 = vld [vmem:[#allocation7 + $0x6e0] sm:$0xff]
    %v1097 = vld [vmem:[#allocation7 + $0x6e8] sm:$0xff]
    %v1098 = vld [vmem:[#allocation7 + $0x6f0] sm:$0xff]
    %v1099 = vld [vmem:[#allocation7 + $0x6f8] sm:$0xff]
    %v1100 = vld [vmem:[#allocation7 + $0x700] sm:$0xff]
    %v1101 = vld [vmem:[#allocation7 + $0x708] sm:$0xff]
    %v1102 = vld [vmem:[#allocation7 + $0x710] sm:$0xff]
    %v1103 = vld [vmem:[#allocation7 + $0x718] sm:$0xff]
    %v1104 = vld [vmem:[#allocation7 + $0x720] sm:$0xff]
    %v1105 = vld [vmem:[#allocation7 + $0x728] sm:$0xff]
    %v1106 = vld [vmem:[#allocation7 + $0x730] sm:$0xff]
    %v1107 = vld [vmem:[#allocation7 + $0x738] sm:$0xff]
    %v1108 = vld [vmem:[#allocation7 + $0x740] sm:$0xff]
    %v1109 = vld [vmem:[#allocation7 + $0x748] sm:$0xff]
    %v1110 = vld [vmem:[#allocation7 + $0x750] sm:$0xff]
    %v1111 = vld [vmem:[#allocation7 + $0x758] sm:$0xff]
    %v1112 = vld [vmem:[#allocation7 + $0x760] sm:$0xff]
    %v1113 = vld [vmem:[#allocation7 + $0x768] sm:$0xff]
    %v1114 = vld [vmem:[#allocation7 + $0x770] sm:$0xff]
    %v1115 = vld [vmem:[#allocation7 + $0x778] sm:$0xff]
    %v1116 = vld [vmem:[#allocation7 + $0x780] sm:$0xff]
    %v1117 = vld [vmem:[#allocation7 + $0x788] sm:$0xff]
    %v1118 = vld [vmem:[#allocation7 + $0x790] sm:$0xff]
    %v1119 = vld [vmem:[#allocation7 + $0x798] sm:$0xff]
    %v1120 = vld [vmem:[#allocation7 + $0x7a0] sm:$0xff]
    %v1121 = vld [vmem:[#allocation7 + $0x7a8] sm:$0xff]
    %v1122 = vld [vmem:[#allocation7 + $0x7b0] sm:$0xff]
    %v1123 = vld [vmem:[#allocation7 + $0x7b8] sm:$0xff]
    %v1124 = vld [vmem:[#allocation7 + $0x7c0] sm:$0xff]
    %v1125 = vld [vmem:[#allocation7 + $0x7c8] sm:$0xff]
    %v1126 = vld [vmem:[#allocation7 + $0x7d0] sm:$0xff]
    %v1127 = vld [vmem:[#allocation7 + $0x7d8] sm:$0xff]
    %v1128 = vld [vmem:[#allocation7 + $0x7e0] sm:$0xff]
    %v1129 = vld [vmem:[#allocation7 + $0x7e8] sm:$0xff]
    %v1130 = vld [vmem:[#allocation7 + $0x7f0] sm:$0xff]
    %v1131 = vld [vmem:[#allocation7 + $0x7f8] sm:$0xff]
    %v1132 = vld [vmem:[#allocation7 + $0x800] sm:$0xff]
    %v1133 = vld [vmem:[#allocation7 + $0x808] sm:$0xff]
    %v1134 = vld [vmem:[#allocation7 + $0x810] sm:$0xff]
    %v1135 = vld [vmem:[#allocation7 + $0x818] sm:$0xff]
    %v1136 = vld [vmem:[#allocation7 + $0x820] sm:$0xff]
    %v1137 = vld [vmem:[#allocation7 + $0x828] sm:$0xff]
    %v1138 = vld [vmem:[#allocation7 + $0x830] sm:$0xff]
    %v1139 = vld [vmem:[#allocation7 + $0x838] sm:$0xff]
    %v1140 = vld [vmem:[#allocation7 + $0x840] sm:$0xff]
    %v1141 = vld [vmem:[#allocation7 + $0x848] sm:$0xff]
    %v1142 = vld [vmem:[#allocation7 + $0x850] sm:$0xff]
    %v1143 = vld [vmem:[#allocation7 + $0x858] sm:$0xff]
    %v1144 = vld [vmem:[#allocation7 + $0x860] sm:$0xff]
    %v1145 = vld [vmem:[#allocation7 + $0x868] sm:$0xff]
    %v1146 = vld [vmem:[#allocation7 + $0x870] sm:$0xff]
    %v1147 = vld [vmem:[#allocation7 + $0x878] sm:$0xff]
    %v1148 = vld [vmem:[#allocation7 + $0x880] sm:$0xff]
    %v1149 = vld [vmem:[#allocation7 + $0x888] sm:$0xff]
    %v1150 = vld [vmem:[#allocation7 + $0x890] sm:$0xff]
    %v1151 = vld [vmem:[#allocation7 + $0x898] sm:$0xff]
    %v1152 = vld [vmem:[#allocation7 + $0x8a0] sm:$0xff]
    %v1153 = vld [vmem:[#allocation7 + $0x8a8] sm:$0xff]
    %v1154 = vld [vmem:[#allocation7 + $0x8b0] sm:$0xff]
    %v1155 = vld [vmem:[#allocation7 + $0x8b8] sm:$0xff]
    %v1156 = vld [vmem:[#allocation7 + $0x8c0] sm:$0xff]
    %v1157 = vld [vmem:[#allocation7 + $0x8c8] sm:$0xff]
    %v1158 = vld [vmem:[#allocation7 + $0x8d0] sm:$0xff]
    %v1159 = vld [vmem:[#allocation7 + $0x8d8] sm:$0xff]
    %v1160 = vld [vmem:[#allocation7 + $0x8e0] sm:$0xff]
    %v1161 = vld [vmem:[#allocation7 + $0x8e8] sm:$0xff]
    %v1162 = vld [vmem:[#allocation7 + $0x8f0] sm:$0xff]
    %v1163 = vld [vmem:[#allocation7 + $0x8f8] sm:$0xff]
    %v1164 = vld [vmem:[#allocation7 + $0x900] sm:$0xff]
    %v1165 = vld [vmem:[#allocation7 + $0x908] sm:$0xff]
    %v1166 = vld [vmem:[#allocation7 + $0x910] sm:$0xff]
    %v1167 = vld [vmem:[#allocation7 + $0x918] sm:$0xff]
    %v1168 = vld [vmem:[#allocation7 + $0x920] sm:$0xff]
    %v1169 = vld [vmem:[#allocation7 + $0x928] sm:$0xff]
    %v1170 = vld [vmem:[#allocation7 + $0x930] sm:$0xff]
    %v1171 = vld [vmem:[#allocation7 + $0x938] sm:$0xff]
    %v1172 = vld [vmem:[#allocation7 + $0x940] sm:$0xff]
    %v1173 = vld [vmem:[#allocation7 + $0x948] sm:$0xff]
    %v1174 = vld [vmem:[#allocation7 + $0x950] sm:$0xff]
    %v1175 = vld [vmem:[#allocation7 + $0x958] sm:$0xff]
    %v1176 = vld [vmem:[#allocation7 + $0x960] sm:$0xff]
    %v1177 = vld [vmem:[#allocation7 + $0x968] sm:$0xff]
    %v1178 = vld [vmem:[#allocation7 + $0x970] sm:$0xff]
    %v1179 = vld [vmem:[#allocation7 + $0x978] sm:$0xff]
    %v1180 = vld [vmem:[#allocation7 + $0x980] sm:$0xff]
    %v1181 = vld [vmem:[#allocation7 + $0x988] sm:$0xff]
    %v1182 = vld [vmem:[#allocation7 + $0x990] sm:$0xff]
    %v1183 = vld [vmem:[#allocation7 + $0x998] sm:$0xff]
    %v1184 = vld [vmem:[#allocation7 + $0x9a0] sm:$0xff]
    %v1185 = vld [vmem:[#allocation7 + $0x9a8] sm:$0xff]
    %v1186 = vld [vmem:[#allocation7 + $0x9b0] sm:$0xff]
    %v1187 = vld [vmem:[#allocation7 + $0x9b8] sm:$0xff]
    %v1188 = vld [vmem:[#allocation7 + $0x9c0] sm:$0xff]
    %v1189 = vld [vmem:[#allocation7 + $0x9c8] sm:$0xff]
    %v1190 = vld [vmem:[#allocation7 + $0x9d0] sm:$0xff]
    %v1191 = vld [vmem:[#allocation7 + $0x9d8] sm:$0xff]
    %v1192 = vld [vmem:[#allocation7 + $0x9e0] sm:$0xff]
    %v1193 = vld [vmem:[#allocation7 + $0x9e8] sm:$0xff]
    %v1194 = vld [vmem:[#allocation7 + $0x9f0] sm:$0xff]
    %v1195 = vld [vmem:[#allocation7 + $0x9f8] sm:$0xff]
    %v1196 = vld [vmem:[#allocation7 + $0xa00] sm:$0xff]
    %v1197 = vld [vmem:[#allocation7 + $0xa08] sm:$0xff]
    %v1198 = vld [vmem:[#allocation7 + $0xa10] sm:$0xff]
    %v1199 = vld [vmem:[#allocation7 + $0xa18] sm:$0xff]
    %v1200 = vld [vmem:[#allocation7 + $0xa20] sm:$0xff]
    %v1201 = vld [vmem:[#allocation7 + $0xa28] sm:$0xff]
    %v1202 = vld [vmem:[#allocation7 + $0xa30] sm:$0xff]
    %v1203 = vld [vmem:[#allocation7 + $0xa38] sm:$0xff]
    %v1204 = vld [vmem:[#allocation7 + $0xa40] sm:$0xff]
    %v1205 = vld [vmem:[#allocation7 + $0xa48] sm:$0xff]
    %v1206 = vld [vmem:[#allocation7 + $0xa50] sm:$0xff]
    %v1207 = vld [vmem:[#allocation7 + $0xa58] sm:$0xff]
    %v1208 = vld [vmem:[#allocation7 + $0xa60] sm:$0xff]
    %v1209 = vld [vmem:[#allocation7 + $0xa68] sm:$0xff]
    %v1210 = vld [vmem:[#allocation7 + $0xa70] sm:$0xff]
    %v1211 = vld [vmem:[#allocation7 + $0xa78] sm:$0xff]
    %v1212 = vld [vmem:[#allocation7 + $0xa80] sm:$0xff]
    %v1213 = vld [vmem:[#allocation7 + $0xa88] sm:$0xff]
    %v1214 = vld [vmem:[#allocation7 + $0xa90] sm:$0xff]
    %v1215 = vld [vmem:[#allocation7 + $0xa98] sm:$0xff]
    %v1216 = vld [vmem:[#allocation7 + $0xaa0] sm:$0xff]
    %v1217 = vld [vmem:[#allocation7 + $0xaa8] sm:$0xff]
    %v1218 = vld [vmem:[#allocation7 + $0xab0] sm:$0xff]
    %v1219 = vld [vmem:[#allocation7 + $0xab8] sm:$0xff]
    %v1220 = vld [vmem:[#allocation7 + $0xac0] sm:$0xff]
    %v1221 = vld [vmem:[#allocation7 + $0xac8] sm:$0xff]
    %v1222 = vld [vmem:[#allocation7 + $0xad0] sm:$0xff]
    %v1223 = vld [vmem:[#allocation7 + $0xad8] sm:$0xff]
    %v1224 = vld [vmem:[#allocation7 + $0xae0] sm:$0xff]
    %v1225 = vld [vmem:[#allocation7 + $0xae8] sm:$0xff]
    %v1226 = vld [vmem:[#allocation7 + $0xaf0] sm:$0xff]
    %v1227 = vld [vmem:[#allocation7 + $0xaf8] sm:$0xff]
    %v1228 = vld [vmem:[#allocation7 + $0xb00] sm:$0xff]
    %v1229 = vld [vmem:[#allocation7 + $0xb08] sm:$0xff]
    %v1230 = vld [vmem:[#allocation7 + $0xb10] sm:$0xff]
    %v1231 = vld [vmem:[#allocation7 + $0xb18] sm:$0xff]
    %v1232 = vld [vmem:[#allocation7 + $0xb20] sm:$0xff]
    %v1233 = vld [vmem:[#allocation7 + $0xb28] sm:$0xff]
    %v1234 = vld [vmem:[#allocation7 + $0xb30] sm:$0xff]
    %v1235 = vld [vmem:[#allocation7 + $0xb38] sm:$0xff]
    %v1236 = vld [vmem:[#allocation7 + $0xb40] sm:$0xff]
    %v1237 = vld [vmem:[#allocation7 + $0xb48] sm:$0xff]
    %v1238 = vld [vmem:[#allocation7 + $0xb50] sm:$0xff]
    %v1239 = vld [vmem:[#allocation7 + $0xb58] sm:$0xff]
    %v1240 = vld [vmem:[#allocation7 + $0xb60] sm:$0xff]
    %v1241 = vld [vmem:[#allocation7 + $0xb68] sm:$0xff]
    %v1242 = vld [vmem:[#allocation7 + $0xb70] sm:$0xff]
    %v1243 = vld [vmem:[#allocation7 + $0xb78] sm:$0xff]
    %v1244 = vld [vmem:[#allocation7 + $0xb80] sm:$0xff]
    %v1245 = vld [vmem:[#allocation7 + $0xb88] sm:$0xff]
    %v1246 = vld [vmem:[#allocation7 + $0xb90] sm:$0xff]
    %v1247 = vld [vmem:[#allocation7 + $0xb98] sm:$0xff]
    %v1248 = vld [vmem:[#allocation7 + $0xba0] sm:$0xff]
    %v1249 = vld [vmem:[#allocation7 + $0xba8] sm:$0xff]
    %v1250 = vld [vmem:[#allocation7 + $0xbb0] sm:$0xff]
    %v1251 = vld [vmem:[#allocation7 + $0xbb8] sm:$0xff]
    %v1252 = vld [vmem:[#allocation7 + $0xbc0] sm:$0xff]
    %v1253 = vld [vmem:[#allocation7 + $0xbc8] sm:$0xff]
    %v1254 = vld [vmem:[#allocation7 + $0xbd0] sm:$0xff]
    %v1255 = vld [vmem:[#allocation7 + $0xbd8] sm:$0xff]
    %v1256 = vld [vmem:[#allocation7 + $0xbe0] sm:$0xff]
    %v1257 = vld [vmem:[#allocation7 + $0xbe8] sm:$0xff]
    %v1258 = vld [vmem:[#allocation7 + $0xbf0] sm:$0xff]
    %v1259 = vld [vmem:[#allocation7 + $0xbf8] sm:$0xff]
    %v1260 = vld [vmem:[#allocation7 + $0xc00] sm:$0xff]
    %v1261 = vld [vmem:[#allocation7 + $0xc08] sm:$0xff]
    %v1262 = vld [vmem:[#allocation7 + $0xc10] sm:$0xff]
    %v1263 = vld [vmem:[#allocation7 + $0xc18] sm:$0xff]
    %v1264 = vld [vmem:[#allocation7 + $0xc20] sm:$0xff]
    %v1265 = vld [vmem:[#allocation7 + $0xc28] sm:$0xff]
    %v1266 = vld [vmem:[#allocation7 + $0xc30] sm:$0xff]
    %v1267 = vld [vmem:[#allocation7 + $0xc38] sm:$0xff]
    %v1268 = vld [vmem:[#allocation7 + $0xc40] sm:$0xff]
    %v1269 = vld [vmem:[#allocation7 + $0xc48] sm:$0xff]
    %v1270 = vld [vmem:[#allocation7 + $0xc50] sm:$0xff]
    %v1271 = vld [vmem:[#allocation7 + $0xc58] sm:$0xff]
    %v1272 = vld [vmem:[#allocation7 + $0xc60] sm:$0xff]
    %v1273 = vld [vmem:[#allocation7 + $0xc68] sm:$0xff]
    %v1274 = vld [vmem:[#allocation7 + $0xc70] sm:$0xff]
    %v1275 = vld [vmem:[#allocation7 + $0xc78] sm:$0xff]
    %v1276 = vld [vmem:[#allocation7 + $0xc80] sm:$0xff]
    %v1277 = vld [vmem:[#allocation7 + $0xc88] sm:$0xff]
    %v1278 = vld [vmem:[#allocation7 + $0xc90] sm:$0xff]
    %v1279 = vld [vmem:[#allocation7 + $0xc98] sm:$0xff]
    %v1280 = vld [vmem:[#allocation7 + $0xca0] sm:$0xff]
    %v1281 = vld [vmem:[#allocation7 + $0xca8] sm:$0xff]
    %v1282 = vld [vmem:[#allocation7 + $0xcb0] sm:$0xff]
    %v1283 = vld [vmem:[#allocation7 + $0xcb8] sm:$0xff]
    %v1284 = vld [vmem:[#allocation7 + $0xcc0] sm:$0xff]
    %v1285 = vld [vmem:[#allocation7 + $0xcc8] sm:$0xff]
    %v1286 = vld [vmem:[#allocation7 + $0xcd0] sm:$0xff]
    %v1287 = vld [vmem:[#allocation7 + $0xcd8] sm:$0xff]
    %v1288 = vld [vmem:[#allocation7 + $0xce0] sm:$0xff]
    %v1289 = vld [vmem:[#allocation7 + $0xce8] sm:$0xff]
    %v1290 = vld [vmem:[#allocation7 + $0xcf0] sm:$0xff]
    %v1291 = vld [vmem:[#allocation7 + $0xcf8] sm:$0xff]
    %v1292 = vld [vmem:[#allocation7 + $0xd00] sm:$0xff]
    %v1293 = vld [vmem:[#allocation7 + $0xd08] sm:$0xff]
    %v1294 = vld [vmem:[#allocation7 + $0xd10] sm:$0xff]
    %v1295 = vld [vmem:[#allocation7 + $0xd18] sm:$0xff]
    %v1296 = vld [vmem:[#allocation7 + $0xd20] sm:$0xff]
    %v1297 = vld [vmem:[#allocation7 + $0xd28] sm:$0xff]
    %v1298 = vld [vmem:[#allocation7 + $0xd30] sm:$0xff]
    %v1299 = vld [vmem:[#allocation7 + $0xd38] sm:$0xff]
    %v1300 = vld [vmem:[#allocation7 + $0xd40] sm:$0xff]
    %v1301 = vld [vmem:[#allocation7 + $0xd48] sm:$0xff]
    %v1302 = vld [vmem:[#allocation7 + $0xd50] sm:$0xff]
    %v1303 = vld [vmem:[#allocation7 + $0xd58] sm:$0xff]
    %v1304 = vld [vmem:[#allocation7 + $0xd60] sm:$0xff]
    %v1305 = vld [vmem:[#allocation7 + $0xd68] sm:$0xff]
    %v1306 = vld [vmem:[#allocation7 + $0xd70] sm:$0xff]
    %v1307 = vld [vmem:[#allocation7 + $0xd78] sm:$0xff]
    %v1308 = vld [vmem:[#allocation7 + $0xd80] sm:$0xff]
    %v1309 = vld [vmem:[#allocation7 + $0xd88] sm:$0xff]
    %v1310 = vld [vmem:[#allocation7 + $0xd90] sm:$0xff]
    %v1311 = vld [vmem:[#allocation7 + $0xd98] sm:$0xff]
    %v1312 = vld [vmem:[#allocation7 + $0xda0] sm:$0xff]
    %v1313 = vld [vmem:[#allocation7 + $0xda8] sm:$0xff]
    %v1314 = vld [vmem:[#allocation7 + $0xdb0] sm:$0xff]
    %v1315 = vld [vmem:[#allocation7 + $0xdb8] sm:$0xff]
    %v1316 = vld [vmem:[#allocation7 + $0xdc0] sm:$0xff]
    %v1317 = vld [vmem:[#allocation7 + $0xdc8] sm:$0xff]
    %v1318 = vld [vmem:[#allocation7 + $0xdd0] sm:$0xff]
    %v1319 = vld [vmem:[#allocation7 + $0xdd8] sm:$0xff]
    %v1320 = vld [vmem:[#allocation7 + $0xde0] sm:$0xff]
    %v1321 = vld [vmem:[#allocation7 + $0xde8] sm:$0xff]
    %v1322 = vld [vmem:[#allocation7 + $0xdf0] sm:$0xff]
    %v1323 = vld [vmem:[#allocation7 + $0xdf8] sm:$0xff]
    %v1324 = vld [vmem:[#allocation7 + $0xe00] sm:$0xff]
    %v1325 = vld [vmem:[#allocation7 + $0xe08] sm:$0xff]
    %v1326 = vld [vmem:[#allocation7 + $0xe10] sm:$0xff]
    %v1327 = vld [vmem:[#allocation7 + $0xe18] sm:$0xff]
    %v1328 = vld [vmem:[#allocation7 + $0xe20] sm:$0xff]
    %v1329 = vld [vmem:[#allocation7 + $0xe28] sm:$0xff]
    %v1330 = vld [vmem:[#allocation7 + $0xe30] sm:$0xff]
    %v1331 = vld [vmem:[#allocation7 + $0xe38] sm:$0xff]
    %v1332 = vld [vmem:[#allocation7 + $0xe40] sm:$0xff]
    %v1333 = vld [vmem:[#allocation7 + $0xe48] sm:$0xff]
    %v1334 = vld [vmem:[#allocation7 + $0xe50] sm:$0xff]
    %v1335 = vld [vmem:[#allocation7 + $0xe58] sm:$0xff]
    %v1336 = vld [vmem:[#allocation7 + $0xe60] sm:$0xff]
    %v1337 = vld [vmem:[#allocation7 + $0xe68] sm:$0xff]
    %v1338 = vld [vmem:[#allocation7 + $0xe70] sm:$0xff]
    %v1339 = vld [vmem:[#allocation7 + $0xe78] sm:$0xff]
    %v1340 = vld [vmem:[#allocation7 + $0xe80] sm:$0xff]
    %v1341 = vld [vmem:[#allocation7 + $0xe88] sm:$0xff]
    %v1342 = vld [vmem:[#allocation7 + $0xe90] sm:$0xff]
    %v1343 = vld [vmem:[#allocation7 + $0xe98] sm:$0xff]
    %v1344 = vld [vmem:[#allocation7 + $0xea0] sm:$0xff]
    %v1345 = vld [vmem:[#allocation7 + $0xea8] sm:$0xff]
    %v1346 = vld [vmem:[#allocation7 + $0xeb0] sm:$0xff]
    %v1347 = vld [vmem:[#allocation7 + $0xeb8] sm:$0xff]
    %v1348 = vld [vmem:[#allocation7 + $0xec0] sm:$0xff]
    %v1349 = vld [vmem:[#allocation7 + $0xec8] sm:$0xff]
    %v1350 = vld [vmem:[#allocation7 + $0xed0] sm:$0xff]
    %v1351 = vld [vmem:[#allocation7 + $0xed8] sm:$0xff]
    %v1352 = vld [vmem:[#allocation7 + $0xee0] sm:$0xff]
    %v1353 = vld [vmem:[#allocation7 + $0xee8] sm:$0xff]
    %v1354 = vld [vmem:[#allocation7 + $0xef0] sm:$0xff]
    %v1355 = vld [vmem:[#allocation7 + $0xef8] sm:$0xff]
    %v1356 = vld [vmem:[#allocation7 + $0xf00] sm:$0xff]
    %v1357 = vld [vmem:[#allocation7 + $0xf08] sm:$0xff]
    %v1358 = vld [vmem:[#allocation7 + $0xf10] sm:$0xff]
    %v1359 = vld [vmem:[#allocation7 + $0xf18] sm:$0xff]
    %v1360 = vld [vmem:[#allocation7 + $0xf20] sm:$0xff]
    %v1361 = vld [vmem:[#allocation7 + $0xf28] sm:$0xff]
    %v1362 = vld [vmem:[#allocation7 + $0xf30] sm:$0xff]
    %v1363 = vld [vmem:[#allocation7 + $0xf38] sm:$0xff]
    %v1364 = vld [vmem:[#allocation7 + $0xf40] sm:$0xff]
    %v1365 = vld [vmem:[#allocation7 + $0xf48] sm:$0xff]
    %v1366 = vld [vmem:[#allocation7 + $0xf50] sm:$0xff]
    %v1367 = vld [vmem:[#allocation7 + $0xf58] sm:$0xff]
    %v1368 = vld [vmem:[#allocation7 + $0xf60] sm:$0xff]
    %v1369 = vld [vmem:[#allocation7 + $0xf68] sm:$0xff]
    %v1370 = vld [vmem:[#allocation7 + $0xf70] sm:$0xff]
    %v1371 = vld [vmem:[#allocation7 + $0xf78] sm:$0xff]
    %v1372 = vld [vmem:[#allocation7 + $0xf80] sm:$0xff]
    %v1373 = vld [vmem:[#allocation7 + $0xf88] sm:$0xff]
    %v1374 = vld [vmem:[#allocation7 + $0xf90] sm:$0xff]
    %v1375 = vld [vmem:[#allocation7 + $0xf98] sm:$0xff]
    %v1376 = vld [vmem:[#allocation7 + $0xfa0] sm:$0xff]
    %v1377 = vld [vmem:[#allocation7 + $0xfa8] sm:$0xff]
    %v1378 = vld [vmem:[#allocation7 + $0xfb0] sm:$0xff]
    %v1379 = vld [vmem:[#allocation7 + $0xfb8] sm:$0xff]
    %v1380 = vld [vmem:[#allocation7 + $0xfc0] sm:$0xff]
    %v1381 = vld [vmem:[#allocation7 + $0xfc8] sm:$0xff]
    %v1382 = vld [vmem:[#allocation7 + $0xfd0] sm:$0xff]
    %v1383 = vld [vmem:[#allocation7 + $0xfd8] sm:$0xff]
    %v1384 = vld [vmem:[#allocation7 + $0xfe0] sm:$0xff]
    %v1385 = vld [vmem:[#allocation7 + $0xfe8] sm:$0xff]
    %v1386 = vld [vmem:[#allocation7 + $0xff0] sm:$0xff]
    %v1387 = vld [vmem:[#allocation7 + $0xff8] sm:$0xff]
    %v1388 = vld [vmem:[#allocation9] sm:$0xff]
    %1389 = vmatprep.subr.mxu0 %v741
    %1390 = vmatpush1.msra.mxu0 %v740
    %1391 = vmatprep.subr.mxu0 %v733
    %1392 = vmatpush1.msra.mxu0 %v732
    %1393 = vmatprep.subr.mxu0 %v725
    %1394 = vmatpush1.msra.mxu0 %v724
    %1395 = vmatprep.subr.mxu0 %v717
    %1396 = vmatpush1.msra.mxu0 %v716
    %1397 = vmatprep.subr.mxu0 %v709
    %1398 = vmatpush1.msra.mxu0 %v708
    %1399 = vmatprep.subr.mxu0 %v701
    %1400 = vmatpush1.msra.mxu0 %v700
    %1401 = vmatprep.subr.mxu0 %v693
    %1402 = vmatpush1.msra.mxu0 %v692
    %1403 = vmatprep.subr.mxu0 %v685
    %1404 = vmatpush1.msra.mxu0 %v684
    %1405 = vmatprep.subr.mxu0 %v677
    %1406 = vmatpush1.msra.mxu0 %v676
    %1407 = vmatprep.subr.mxu0 %v669
    %1408 = vmatpush1.msra.mxu0 %v668
    %1409 = vmatprep.subr.mxu0 %v661
    %1410 = vmatpush1.msra.mxu0 %v660
    %1411 = vmatprep.subr.mxu0 %v653
    %1412 = vmatpush1.msra.mxu0 %v652
    %1413 = vmatprep.subr.mxu0 %v645
    %1414 = vmatpush1.msra.mxu0 %v644
    %1415 = vmatprep.subr.mxu0 %v637
    %1416 = vmatpush1.msra.mxu0 %v636
    %1417 = vmatprep.subr.mxu0 %v629
    %1418 = vmatpush1.msra.mxu0 %v628
    %1419 = vmatprep.subr.mxu0 %v621
    %1420 = vmatpush1.msra.mxu0 %v620
    %1421 = vmatprep.subr.mxu0 %v869
    %1422 = vmatpush2.msra.mxu0 %v868
    %1423 = vmatprep.subr.mxu0 %v861
    %1424 = vmatpush2.msra.mxu0 %v860
    %1425 = vmatprep.subr.mxu0 %v853
    %1426 = vmatpush2.msra.mxu0 %v852
    %1427 = vmatprep.subr.mxu0 %v845
    %1428 = vmatpush2.msra.mxu0 %v844
    %1429 = vmatprep.subr.mxu0 %v837
    %1430 = vmatpush2.msra.mxu0 %v836
    %1431 = vmatprep.subr.mxu0 %v829
    %1432 = vmatpush2.msra.mxu0 %v828
    %1433 = vmatprep.subr.mxu0 %v821
    %1434 = vmatpush2.msra.mxu0 %v820
    %1435 = vmatprep.subr.mxu0 %v813
    %1436 = vmatpush2.msra.mxu0 %v812
    %1437 = vmatprep.subr.mxu0 %v805
    %1438 = vmatpush2.msra.mxu0 %v804
    %1439 = vmatprep.subr.mxu0 %v797
    %1440 = vmatpush2.msra.mxu0 %v796
    %1441 = vmatprep.subr.mxu0 %v789
    %1442 = vmatpush2.msra.mxu0 %v788
    %1443 = vmatprep.subr.mxu0 %v781
    %1444 = vmatpush2.msra.mxu0 %v780
    %1445 = vmatprep.subr.mxu0 %v773
    %1446 = vmatpush2.msra.mxu0 %v772
    %1447 = vmatprep.subr.mxu0 %v765
    %1448 = vmatpush2.msra.mxu0 %v764
    %1449 = vmatprep.subr.mxu0 %v757
    %1450 = vmatpush2.msra.mxu0 %v756
    %1451 = vmatprep.subr.mxu0 %v749
    %1452 = vmatpush2.msra.mxu0 %v748
    %1453 = vmatprep.mubr.f32.mxu0 0.0
    %1454 = vmatmul.mubr.f32.gmra.mxu0 0.0
    %v1455 = vpop.f32.mrf.mxu0
    %v1456 = vadd.f32 0.0, %v1455
    %v1457 = vpop.f32.mrf.mxu0
    %v1458 = vadd.f32 0.0, %v1457
    %1459 = vdwg.mxu0
    %1460 = vmatprep.subr.mxu0 %v743
    %1461 = vmatpush1.msra.mxu0 %v742
    %1462 = vmatprep.subr.mxu0 %v735
    %1463 = vmatpush1.msra.mxu0 %v734
    %1464 = vmatprep.subr.mxu0 %v727
    %1465 = vmatpush1.msra.mxu0 %v726
    %1466 = vmatprep.subr.mxu0 %v719
    %1467 = vmatpush1.msra.mxu0 %v718
    %1468 = vmatprep.subr.mxu0 %v711
    %1469 = vmatpush1.msra.mxu0 %v710
    %1470 = vmatprep.subr.mxu0 %v703
    %1471 = vmatpush1.msra.mxu0 %v702
    %1472 = vmatprep.subr.mxu0 %v695
    %1473 = vmatpush1.msra.mxu0 %v694
    %1474 = vmatprep.subr.mxu0 %v687
    %1475 = vmatpush1.msra.mxu0 %v686
    %1476 = vmatprep.subr.mxu0 %v679
    %1477 = vmatpush1.msra.mxu0 %v678
    %1478 = vmatprep.subr.mxu0 %v671
    %1479 = vmatpush1.msra.mxu0 %v670
    %1480 = vmatprep.subr.mxu0 %v663
    %1481 = vmatpush1.msra.mxu0 %v662
    %1482 = vmatprep.subr.mxu0 %v655
    %1483 = vmatpush1.msra.mxu0 %v654
    %1484 = vmatprep.subr.mxu0 %v647
    %1485 = vmatpush1.msra.mxu0 %v646
    %1486 = vmatprep.subr.mxu0 %v639
    %1487 = vmatpush1.msra.mxu0 %v638
    %1488 = vmatprep.subr.mxu0 %v631
    %1489 = vmatpush1.msra.mxu0 %v630
    %1490 = vmatprep.subr.mxu0 %v623
    %1491 = vmatpush1.msra.mxu0 %v622
    %1492 = vmatprep.subr.mxu0 %v871
    %1493 = vmatpush2.msra.mxu0 %v870
    %1494 = vmatprep.subr.mxu0 %v863
    %1495 = vmatpush2.msra.mxu0 %v862
    %1496 = vmatprep.subr.mxu0 %v855
    %1497 = vmatpush2.msra.mxu0 %v854
    %1498 = vmatprep.subr.mxu0 %v847
    %1499 = vmatpush2.msra.mxu0 %v846
    %1500 = vmatprep.subr.mxu0 %v839
    %1501 = vmatpush2.msra.mxu0 %v838
    %1502 = vmatprep.subr.mxu0 %v831
    %1503 = vmatpush2.msra.mxu0 %v830
    %1504 = vmatprep.subr.mxu0 %v823
    %1505 = vmatpush2.msra.mxu0 %v822
    %1506 = vmatprep.subr.mxu0 %v815
    %1507 = vmatpush2.msra.mxu0 %v814
    %1508 = vmatprep.subr.mxu0 %v807
    %1509 = vmatpush2.msra.mxu0 %v806
    %1510 = vmatprep.subr.mxu0 %v799
    %1511 = vmatpush2.msra.mxu0 %v798
    %1512 = vmatprep.subr.mxu0 %v791
    %1513 = vmatpush2.msra.mxu0 %v790
    %1514 = vmatprep.subr.mxu0 %v783
    %1515 = vmatpush2.msra.mxu0 %v782
    %1516 = vmatprep.subr.mxu0 %v775
    %1517 = vmatpush2.msra.mxu0 %v774
    %1518 = vmatprep.subr.mxu0 %v767
    %1519 = vmatpush2.msra.mxu0 %v766
    %1520 = vmatprep.subr.mxu0 %v759
    %1521 = vmatpush2.msra.mxu0 %v758
    %1522 = vmatprep.subr.mxu0 %v751
    %1523 = vmatpush2.msra.mxu0 %v750
    %1524 = vmatprep.mubr.f32.mxu0 0.0
    %1525 = vmatmul.mubr.f32.gmra.mxu0 0.0
    %v1526 = vpop.f32.mrf.mxu0
    %v1527 = vadd.f32 0.0, %v1526
    %v1528 = vpop.f32.mrf.mxu0
    %v1529 = vadd.f32 0.0, %v1528
    %1530 = vdwg.mxu0
    %1531 = vmatprep.subr.mxu0 %v745
    %1532 = vmatpush1.msra.mxu0 %v744
    %1533 = vmatprep.subr.mxu0 %v737
    %1534 = vmatpush1.msra.mxu0 %v736
    %1535 = vmatprep.subr.mxu0 %v729
    %1536 = vmatpush1.msra.mxu0 %v728
    %1537 = vmatprep.subr.mxu0 %v721
    %1538 = vmatpush1.msra.mxu0 %v720
    %1539 = vmatprep.subr.mxu0 %v713
    %1540 = vmatpush1.msra.mxu0 %v712
    %1541 = vmatprep.subr.mxu0 %v705
    %1542 = vmatpush1.msra.mxu0 %v704
    %1543 = vmatprep.subr.mxu0 %v697
    %1544 = vmatpush1.msra.mxu0 %v696
    %1545 = vmatprep.subr.mxu0 %v689
    %1546 = vmatpush1.msra.mxu0 %v688
    %1547 = vmatprep.subr.mxu0 %v681
    %1548 = vmatpush1.msra.mxu0 %v680
    %1549 = vmatprep.subr.mxu0 %v673
    %1550 = vmatpush1.msra.mxu0 %v672
    %1551 = vmatprep.subr.mxu0 %v665
    %1552 = vmatpush1.msra.mxu0 %v664
    %1553 = vmatprep.subr.mxu0 %v657
    %1554 = vmatpush1.msra.mxu0 %v656
    %1555 = vmatprep.subr.mxu0 %v649
    %1556 = vmatpush1.msra.mxu0 %v648
    %1557 = vmatprep.subr.mxu0 %v641
    %1558 = vmatpush1.msra.mxu0 %v640
    %1559 = vmatprep.subr.mxu0 %v633
    %1560 = vmatpush1.msra.mxu0 %v632
    %1561 = vmatprep.subr.mxu0 %v625
    %1562 = vmatpush1.msra.mxu0 %v624
    %1563 = vmatprep.subr.mxu0 %v873
    %1564 = vmatpush2.msra.mxu0 %v872
    %1565 = vmatprep.subr.mxu0 %v865
    %1566 = vmatpush2.msra.mxu0 %v864
    %1567 = vmatprep.subr.mxu0 %v857
    %1568 = vmatpush2.msra.mxu0 %v856
    %1569 = vmatprep.subr.mxu0 %v849
    %1570 = vmatpush2.msra.mxu0 %v848
    %1571 = vmatprep.subr.mxu0 %v841
    %1572 = vmatpush2.msra.mxu0 %v840
    %1573 = vmatprep.subr.mxu0 %v833
    %1574 = vmatpush2.msra.mxu0 %v832
    %1575 = vmatprep.subr.mxu0 %v825
    %1576 = vmatpush2.msra.mxu0 %v824
    %1577 = vmatprep.subr.mxu0 %v817
    %1578 = vmatpush2.msra.mxu0 %v816
    %1579 = vmatprep.subr.mxu0 %v809
    %1580 = vmatpush2.msra.mxu0 %v808
    %1581 = vmatprep.subr.mxu0 %v801
    %1582 = vmatpush2.msra.mxu0 %v800
    %1583 = vmatprep.subr.mxu0 %v793
    %1584 = vmatpush2.msra.mxu0 %v792
    %1585 = vmatprep.subr.mxu0 %v785
    %1586 = vmatpush2.msra.mxu0 %v784
    %1587 = vmatprep.subr.mxu0 %v777
    %1588 = vmatpush2.msra.mxu0 %v776
    %1589 = vmatprep.subr.mxu0 %v769
    %1590 = vmatpush2.msra.mxu0 %v768
    %1591 = vmatprep.subr.mxu0 %v761
    %1592 = vmatpush2.msra.mxu0 %v760
    %1593 = vmatprep.subr.mxu0 %v753
    %1594 = vmatpush2.msra.mxu0 %v752
    %1595 = vmatprep.mubr.f32.mxu0 0.0
    %1596 = vmatmul.mubr.f32.gmra.mxu0 0.0
    %v1597 = vpop.f32.mrf.mxu0
    %v1598 = vadd.f32 0.0, %v1597
    %v1599 = vpop.f32.mrf.mxu0
    %v1600 = vadd.f32 0.0, %v1599
    %1601 = vdwg.mxu0
    %1602 = vmatprep.subr.mxu0 %v747
    %1603 = vmatpush1.msra.mxu0 %v746
    %1604 = vmatprep.subr.mxu0 %v739
    %1605 = vmatpush1.msra.mxu0 %v738
    %1606 = vmatprep.subr.mxu0 %v731
    %1607 = vmatpush1.msra.mxu0 %v730
    %1608 = vmatprep.subr.mxu0 %v723
    %1609 = vmatpush1.msra.mxu0 %v722
    %1610 = vmatprep.subr.mxu0 %v715
    %1611 = vmatpush1.msra.mxu0 %v714
    %1612 = vmatprep.subr.mxu0 %v707
    %1613 = vmatpush1.msra.mxu0 %v706
    %1614 = vmatprep.subr.mxu0 %v699
    %1615 = vmatpush1.msra.mxu0 %v698
    %1616 = vmatprep.subr.mxu0 %v691
    %1617 = vmatpush1.msra.mxu0 %v690
    %1618 = vmatprep.subr.mxu0 %v683
    %1619 = vmatpush1.msra.mxu0 %v682
    %1620 = vmatprep.subr.mxu0 %v675
    %1621 = vmatpush1.msra.mxu0 %v674
    %1622 = vmatprep.subr.mxu0 %v667
    %1623 = vmatpush1.msra.mxu0 %v666
    %1624 = vmatprep.subr.mxu0 %v659
    %1625 = vmatpush1.msra.mxu0 %v658
    %1626 = vmatprep.subr.mxu0 %v651
    %1627 = vmatpush1.msra.mxu0 %v650
    %1628 = vmatprep.subr.mxu0 %v643
    %1629 = vmatpush1.msra.mxu0 %v642
    %1630 = vmatprep.subr.mxu0 %v635
    %1631 = vmatpush1.msra.mxu0 %v634
    %1632 = vmatprep.subr.mxu0 %v627
    %1633 = vmatpush1.msra.mxu0 %v626
    %1634 = vmatprep.subr.mxu0 %v875
    %1635 = vmatpush2.msra.mxu0 %v874
    %1636 = vmatprep.subr.mxu0 %v867
    %1637 = vmatpush2.msra.mxu0 %v866
    %1638 = vmatprep.subr.mxu0 %v859
    %1639 = vmatpush2.msra.mxu0 %v858
    %1640 = vmatprep.subr.mxu0 %v851
    %1641 = vmatpush2.msra.mxu0 %v850
    %1642 = vmatprep.subr.mxu0 %v843
    %1643 = vmatpush2.msra.mxu0 %v842
    %1644 = vmatprep.subr.mxu0 %v835
    %1645 = vmatpush2.msra.mxu0 %v834
    %1646 = vmatprep.subr.mxu0 %v827
    %1647 = vmatpush2.msra.mxu0 %v826
    %1648 = vmatprep.subr.mxu0 %v819
    %1649 = vmatpush2.msra.mxu0 %v818
    %1650 = vmatprep.subr.mxu0 %v811
    %1651 = vmatpush2.msra.mxu0 %v810
    %1652 = vmatprep.subr.mxu0 %v803
    %1653 = vmatpush2.msra.mxu0 %v802
    %1654 = vmatprep.subr.mxu0 %v795
    %1655 = vmatpush2.msra.mxu0 %v794
    %1656 = vmatprep.subr.mxu0 %v787
    %1657 = vmatpush2.msra.mxu0 %v786
    %1658 = vmatprep.subr.mxu0 %v779
    %1659 = vmatpush2.msra.mxu0 %v778
    %1660 = vmatprep.subr.mxu0 %v771
    %1661 = vmatpush2.msra.mxu0 %v770
    %1662 = vmatprep.subr.mxu0 %v763
    %1663 = vmatpush2.msra.mxu0 %v762
    %1664 = vmatprep.subr.mxu0 %v755
    %1665 = vmatpush2.msra.mxu0 %v754
    %1666 = vmatprep.mubr.f32.mxu0 0.0
    %1667 = vmatmul.mubr.f32.gmra.mxu0 0.0
    %v1668 = vpop.f32.mrf.mxu0
    %v1669 = vadd.f32 0.0, %v1668
    %v1670 = vpop.f32.mrf.mxu0
    %v1671 = vadd.f32 0.0, %v1670
    %1672 = vdwg.mxu0
    %v1673 = vadd.f32 %v235, %v1456
    %v1674 = vadd.f32 %v237, %v1458
    %v1675 = vadd.f32 %v348, %v1527
    %v1676 = vadd.f32 %v350, %v1529
    %v1677 = vadd.f32 %v461, %v1598
    %v1678 = vadd.f32 %v463, %v1600
    %v1679 = vadd.f32 %v574, %v1669
    %v1680 = vadd.f32 %v576, %v1671
    %v1681 = vxor.u32 %v1673, 2147483648
    %v1682 = vxor.u32 %v1674, 2147483648
    %v1683 = vxor.u32 %v1675, 2147483648
    %v1684 = vxor.u32 %v1676, 2147483648
    %v1685 = vxor.u32 %v1677, 2147483648
    %v1686 = vxor.u32 %v1678, 2147483648
    %v1687 = vmul.f32 %v1681, 1.442695
    %v1688 = vpow.pop %v1687
    %v1689 = vmul.f32 %v1682, 1.442695
    %v1690 = vpow.pop %v1689
    %v1691 = vmul.f32 %v1683, 1.442695
    %v1692 = vpow.pop %v1691
    %v1693 = vmul.f32 %v1684, 1.442695
    %v1694 = vpow.pop %v1693
    %v1695 = vmul.f32 %v1685, 1.442695
    %v1696 = vpow.pop %v1695
    %v1697 = vmul.f32 %v1686, 1.442695
    %v1698 = vpow.pop %v1697
    %v1699 = vadd.f32 %v1688, 1.0
    %v1700 = vadd.f32 %v1690, 1.0
    %v1701 = vadd.f32 %v1692, 1.0
    %v1702 = vadd.f32 %v1694, 1.0
    %v1703 = vadd.f32 %v1696, 1.0
    %v1704 = vadd.f32 %v1698, 1.0
    %v1705 = vrcp.pop %v1699
    %v1706 = vmul.f32 1.0, %v1705
    %v1707 = vrcp.pop %v1700
    %v1708 = vmul.f32 1.0, %v1707
    %v1709 = vrcp.pop %v1701
    %v1710 = vmul.f32 1.0, %v1709
    %v1711 = vrcp.pop %v1702
    %v1712 = vmul.f32 1.0, %v1711
    %v1713 = vrcp.pop %v1703
    %v1714 = vmul.f32 1.0, %v1713
    %v1715 = vrcp.pop %v1704
    %v1716 = vmul.f32 1.0, %v1715
    %v1717 = vtanh.pop %v1679
    %v1718 = vtanh.pop %v1680
    %v1719 = vmul.f32 %v1710, 0.0
    %v1720 = vmul.f32 %v1712, 0.0
    %v1721 = vmul.f32 %v1706, %v1717
    %v1722 = vmul.f32 %v1708, %v1718
    %v1723 = vadd.f32 %v1719, %v1721
    %v1724 = vadd.f32 %v1720, %v1722
    %v1725 = vtanh.pop %v1723
    %v1726 = vtanh.pop %v1724
    %v1727 = vmul.f32 %v1714, %v1725
    %v1728 = vmul.f32 %v1716, %v1726
    %v1730 = vlaneseq
    %v1731 = vshrl.u32 %v1730, 7
    %v1732 = vsub.s32 0, %v1731
    %v1733 = vrot.slane %v1388, %v1732
    %v1734 = vlaneseq
    %v1735 = vshrl.u32 %v1734, 7
    %v1736 = vsub.s32 1, %v1735
    %v1737 = vrot.slane %v1388, %v1736
    %v1738 = vlaneseq
    %v1739 = vshrl.u32 %v1738, 7
    %v1740 = vsub.s32 2, %v1739
    %v1741 = vrot.slane %v1388, %v1740
    %v1742 = vlaneseq
    %v1743 = vshrl.u32 %v1742, 7
    %v1744 = vsub.s32 3, %v1743
    %v1745 = vrot.slane %v1388, %v1744
    %v1746 = vlaneseq
    %v1747 = vshrl.u32 %v1746, 7
    %v1748 = vsub.s32 4, %v1747
    %v1749 = vrot.slane %v1388, %v1748
    %v1750 = vlaneseq
    %v1751 = vshrl.u32 %v1750, 7
    %v1752 = vsub.s32 5, %v1751
    %v1753 = vrot.slane %v1388, %v1752
    %v1754 = vlaneseq
    %v1755 = vshrl.u32 %v1754, 7
    %v1756 = vsub.s32 6, %v1755
    %v1757 = vrot.slane %v1388, %v1756
    %v1758 = vlaneseq
    %v1759 = vshrl.u32 %v1758, 7
    %v1760 = vsub.s32 7, %v1759
    %v1761 = vrot.slane %v1388, %v1760
    %1770 = vmatprep.subr.mxu0 %v997
    %1771 = vmatpush1.msra.mxu0 %v996
    %1772 = vmatprep.subr.mxu0 %v989
    %1773 = vmatpush1.msra.mxu0 %v988
    %1774 = vmatprep.subr.mxu0 %v981
    %1775 = vmatpush1.msra.mxu0 %v980
    %1776 = vmatprep.subr.mxu0 %v973
    %1777 = vmatpush1.msra.mxu0 %v972
    %1778 = vmatprep.subr.mxu0 %v965
    %1779 = vmatpush1.msra.mxu0 %v964
    %1780 = vmatprep.subr.mxu0 %v957
    %1781 = vmatpush1.msra.mxu0 %v956
    %1782 = vmatprep.subr.mxu0 %v949
    %1783 = vmatpush1.msra.mxu0 %v948
    %1784 = vmatprep.subr.mxu0 %v941
    %1785 = vmatpush1.msra.mxu0 %v940
    %1786 = vmatprep.subr.mxu0 %v933
    %1787 = vmatpush1.msra.mxu0 %v932
    %1788 = vmatprep.subr.mxu0 %v925
    %1789 = vmatpush1.msra.mxu0 %v924
    %1790 = vmatprep.subr.mxu0 %v917
    %1791 = vmatpush1.msra.mxu0 %v916
    %1792 = vmatprep.subr.mxu0 %v909
    %1793 = vmatpush1.msra.mxu0 %v908
    %1794 = vmatprep.subr.mxu0 %v901
    %1795 = vmatpush1.msra.mxu0 %v900
    %1796 = vmatprep.subr.mxu0 %v893
    %1797 = vmatpush1.msra.mxu0 %v892
    %1798 = vmatprep.subr.mxu0 %v885
    %1799 = vmatpush1.msra.mxu0 %v884
    %1800 = vmatprep.subr.mxu0 %v877
    %1801 = vmatpush1.msra.mxu0 %v876
    %1802 = vmatprep.subr.mxu0 %v1125
    %1803 = vmatpush2.msra.mxu0 %v1124
    %1804 = vmatprep.subr.mxu0 %v1117
    %1805 = vmatpush2.msra.mxu0 %v1116
    %1806 = vmatprep.subr.mxu0 %v1109
    %1807 = vmatpush2.msra.mxu0 %v1108
    %1808 = vmatprep.subr.mxu0 %v1101
    %1809 = vmatpush2.msra.mxu0 %v1100
    %1810 = vmatprep.subr.mxu0 %v1093
    %1811 = vmatpush2.msra.mxu0 %v1092
    %1812 = vmatprep.subr.mxu0 %v1085
    %1813 = vmatpush2.msra.mxu0 %v1084
    %1814 = vmatprep.subr.mxu0 %v1077
    %1815 = vmatpush2.msra.mxu0 %v1076
    %1816 = vmatprep.subr.mxu0 %v1069
    %1817 = vmatpush2.msra.mxu0 %v1068
    %1818 = vmatprep.subr.mxu0 %v1061
    %1819 = vmatpush2.msra.mxu0 %v1060
    %1820 = vmatprep.subr.mxu0 %v1053
    %1821 = vmatpush2.msra.mxu0 %v1052
    %1822 = vmatprep.subr.mxu0 %v1045
    %1823 = vmatpush2.msra.mxu0 %v1044
    %1824 = vmatprep.subr.mxu0 %v1037
    %1825 = vmatpush2.msra.mxu0 %v1036
    %1826 = vmatprep.subr.mxu0 %v1029
    %1827 = vmatpush2.msra.mxu0 %v1028
    %1828 = vmatprep.subr.mxu0 %v1021
    %1829 = vmatpush2.msra.mxu0 %v1020
    %1830 = vmatprep.subr.mxu0 %v1013
    %1831 = vmatpush2.msra.mxu0 %v1012
    %1832 = vmatprep.subr.mxu0 %v1005
    %1833 = vmatpush2.msra.mxu0 %v1004
    %1834 = vmatprep.mubr.f32.mxu0 %v1728
    %1835 = vmatmul.mubr.f32.gmra.mxu0 %v1727
    %v1836 = vpop.f32.mrf.mxu0
    %v1837 = vadd.f32 %v1733, %v1836
    %v1838 = vpop.f32.mrf.mxu0
    %v1839 = vadd.f32 %v1737, %v1838
    %1840 = vdwg.mxu0
    %1841 = vmatprep.subr.mxu0 %v1253
    %1842 = vmatpush1.msra.mxu0 %v1252
    %1843 = vmatprep.subr.mxu0 %v1245
    %1844 = vmatpush1.msra.mxu0 %v1244
    %1845 = vmatprep.subr.mxu0 %v1237
    %1846 = vmatpush1.msra.mxu0 %v1236
    %1847 = vmatprep.subr.mxu0 %v1229
    %1848 = vmatpush1.msra.mxu0 %v1228
    %1849 = vmatprep.subr.mxu0 %v1221
    %1850 = vmatpush1.msra.mxu0 %v1220
    %1851 = vmatprep.subr.mxu0 %v1213
    %1852 = vmatpush1.msra.mxu0 %v1212
    %1853 = vmatprep.subr.mxu0 %v1205
    %1854 = vmatpush1.msra.mxu0 %v1204
    %1855 = vmatprep.subr.mxu0 %v1197
    %1856 = vmatpush1.msra.mxu0 %v1196
    %1857 = vmatprep.subr.mxu0 %v1189
    %1858 = vmatpush1.msra.mxu0 %v1188
    %1859 = vmatprep.subr.mxu0 %v1181
    %1860 = vmatpush1.msra.mxu0 %v1180
    %1861 = vmatprep.subr.mxu0 %v1173
    %1862 = vmatpush1.msra.mxu0 %v1172
    %1863 = vmatprep.subr.mxu0 %v1165
    %1864 = vmatpush1.msra.mxu0 %v1164
    %1865 = vmatprep.subr.mxu0 %v1157
    %1866 = vmatpush1.msra.mxu0 %v1156
    %1867 = vmatprep.subr.mxu0 %v1149
    %1868 = vmatpush1.msra.mxu0 %v1148
    %1869 = vmatprep.subr.mxu0 %v1141
    %1870 = vmatpush1.msra.mxu0 %v1140
    %1871 = vmatprep.subr.mxu0 %v1133
    %1872 = vmatpush1.msra.mxu0 %v1132
    %1873 = vmatprep.subr.mxu0 %v1381
    %1874 = vmatpush2.msra.mxu0 %v1380
    %1875 = vmatprep.subr.mxu0 %v1373
    %1876 = vmatpush2.msra.mxu0 %v1372
    %1877 = vmatprep.subr.mxu0 %v1365
    %1878 = vmatpush2.msra.mxu0 %v1364
    %1879 = vmatprep.subr.mxu0 %v1357
    %1880 = vmatpush2.msra.mxu0 %v1356
    %1881 = vmatprep.subr.mxu0 %v1349
    %1882 = vmatpush2.msra.mxu0 %v1348
    %1883 = vmatprep.subr.mxu0 %v1341
    %1884 = vmatpush2.msra.mxu0 %v1340
    %1885 = vmatprep.subr.mxu0 %v1333
    %1886 = vmatpush2.msra.mxu0 %v1332
    %1887 = vmatprep.subr.mxu0 %v1325
    %1888 = vmatpush2.msra.mxu0 %v1324
    %1889 = vmatprep.subr.mxu0 %v1317
    %1890 = vmatpush2.msra.mxu0 %v1316
    %1891 = vmatprep.subr.mxu0 %v1309
    %1892 = vmatpush2.msra.mxu0 %v1308
    %1893 = vmatprep.subr.mxu0 %v1301
    %1894 = vmatpush2.msra.mxu0 %v1300
    %1895 = vmatprep.subr.mxu0 %v1293
    %1896 = vmatpush2.msra.mxu0 %v1292
    %1897 = vmatprep.subr.mxu0 %v1285
    %1898 = vmatpush2.msra.mxu0 %v1284
    %1899 = vmatprep.subr.mxu0 %v1277
    %1900 = vmatpush2.msra.mxu0 %v1276
    %1901 = vmatprep.subr.mxu0 %v1269
    %1902 = vmatpush2.msra.mxu0 %v1268
    %1903 = vmatprep.subr.mxu0 %v1261
    %1904 = vmatpush2.msra.mxu0 %v1260
    %1905 = vmatprep.mubr.f32.mxu0 0.0
    %1906 = vmatmul.mubr.f32.gmra.mxu0 0.0
    %v1907 = vpop.f32.mrf.mxu0
    %v1908 = vadd.f32 %v1837, %v1907
    %v1909 = vpop.f32.mrf.mxu0
    %v1910 = vadd.f32 %v1839, %v1909
    %1911 = vdwg.mxu0
    %1912 = vmatprep.subr.mxu0 %v999
    %1913 = vmatpush1.msra.mxu0 %v998
    %1914 = vmatprep.subr.mxu0 %v991
    %1915 = vmatpush1.msra.mxu0 %v990
    %1916 = vmatprep.subr.mxu0 %v983
    %1917 = vmatpush1.msra.mxu0 %v982
    %1918 = vmatprep.subr.mxu0 %v975
    %1919 = vmatpush1.msra.mxu0 %v974
    %1920 = vmatprep.subr.mxu0 %v967
    %1921 = vmatpush1.msra.mxu0 %v966
    %1922 = vmatprep.subr.mxu0 %v959
    %1923 = vmatpush1.msra.mxu0 %v958
    %1924 = vmatprep.subr.mxu0 %v951
    %1925 = vmatpush1.msra.mxu0 %v950
    %1926 = vmatprep.subr.mxu0 %v943
    %1927 = vmatpush1.msra.mxu0 %v942
    %1928 = vmatprep.subr.mxu0 %v935
    %1929 = vmatpush1.msra.mxu0 %v934
    %1930 = vmatprep.subr.mxu0 %v927
    %1931 = vmatpush1.msra.mxu0 %v926
    %1932 = vmatprep.subr.mxu0 %v919
    %1933 = vmatpush1.msra.mxu0 %v918
    %1934 = vmatprep.subr.mxu0 %v911
    %1935 = vmatpush1.msra.mxu0 %v910
    %1936 = vmatprep.subr.mxu0 %v903
    %1937 = vmatpush1.msra.mxu0 %v902
    %1938 = vmatprep.subr.mxu0 %v895
    %1939 = vmatpush1.msra.mxu0 %v894
    %1940 = vmatprep.subr.mxu0 %v887
    %1941 = vmatpush1.msra.mxu0 %v886
    %1942 = vmatprep.subr.mxu0 %v879
    %1943 = vmatpush1.msra.mxu0 %v878
    %1944 = vmatprep.subr.mxu0 %v1127
    %1945 = vmatpush2.msra.mxu0 %v1126
    %1946 = vmatprep.subr.mxu0 %v1119
    %1947 = vmatpush2.msra.mxu0 %v1118
    %1948 = vmatprep.subr.mxu0 %v1111
    %1949 = vmatpush2.msra.mxu0 %v1110
    %1950 = vmatprep.subr.mxu0 %v1103
    %1951 = vmatpush2.msra.mxu0 %v1102
    %1952 = vmatprep.subr.mxu0 %v1095
    %1953 = vmatpush2.msra.mxu0 %v1094
    %1954 = vmatprep.subr.mxu0 %v1087
    %1955 = vmatpush2.msra.mxu0 %v1086
    %1956 = vmatprep.subr.mxu0 %v1079
    %1957 = vmatpush2.msra.mxu0 %v1078
    %1958 = vmatprep.subr.mxu0 %v1071
    %1959 = vmatpush2.msra.mxu0 %v1070
    %1960 = vmatprep.subr.mxu0 %v1063
    %1961 = vmatpush2.msra.mxu0 %v1062
    %1962 = vmatprep.subr.mxu0 %v1055
    %1963 = vmatpush2.msra.mxu0 %v1054
    %1964 = vmatprep.subr.mxu0 %v1047
    %1965 = vmatpush2.msra.mxu0 %v1046
    %1966 = vmatprep.subr.mxu0 %v1039
    %1967 = vmatpush2.msra.mxu0 %v1038
    %1968 = vmatprep.subr.mxu0 %v1031
    %1969 = vmatpush2.msra.mxu0 %v1030
    %1970 = vmatprep.subr.mxu0 %v1023
    %1971 = vmatpush2.msra.mxu0 %v1022
    %1972 = vmatprep.subr.mxu0 %v1015
    %1973 = vmatpush2.msra.mxu0 %v1014
    %1974 = vmatprep.subr.mxu0 %v1007
    %1975 = vmatpush2.msra.mxu0 %v1006
    %1976 = vmatprep.mubr.f32.mxu0 %v1728
    %1977 = vmatmul.mubr.f32.gmra.mxu0 %v1727
    %v1978 = vpop.f32.mrf.mxu0
    %v1979 = vadd.f32 %v1741, %v1978
    %v1980 = vpop.f32.mrf.mxu0
    %v1981 = vadd.f32 %v1745, %v1980
    %1982 = vdwg.mxu0
    %1983 = vmatprep.subr.mxu0 %v1255
    %1984 = vmatpush1.msra.mxu0 %v1254
    %1985 = vmatprep.subr.mxu0 %v1247
    %1986 = vmatpush1.msra.mxu0 %v1246
    %1987 = vmatprep.subr.mxu0 %v1239
    %1988 = vmatpush1.msra.mxu0 %v1238
    %1989 = vmatprep.subr.mxu0 %v1231
    %1990 = vmatpush1.msra.mxu0 %v1230
    %1991 = vmatprep.subr.mxu0 %v1223
    %1992 = vmatpush1.msra.mxu0 %v1222
    %1993 = vmatprep.subr.mxu0 %v1215
    %1994 = vmatpush1.msra.mxu0 %v1214
    %1995 = vmatprep.subr.mxu0 %v1207
    %1996 = vmatpush1.msra.mxu0 %v1206
    %1997 = vmatprep.subr.mxu0 %v1199
    %1998 = vmatpush1.msra.mxu0 %v1198
    %1999 = vmatprep.subr.mxu0 %v1191
    %2000 = vmatpush1.msra.mxu0 %v1190
    %2001 = vmatprep.subr.mxu0 %v1183
    %2002 = vmatpush1.msra.mxu0 %v1182
    %2003 = vmatprep.subr.mxu0 %v1175
    %2004 = vmatpush1.msra.mxu0 %v1174
    %2005 = vmatprep.subr.mxu0 %v1167
    %2006 = vmatpush1.msra.mxu0 %v1166
    %2007 = vmatprep.subr.mxu0 %v1159
    %2008 = vmatpush1.msra.mxu0 %v1158
    %2009 = vmatprep.subr.mxu0 %v1151
    %2010 = vmatpush1.msra.mxu0 %v1150
    %2011 = vmatprep.subr.mxu0 %v1143
    %2012 = vmatpush1.msra.mxu0 %v1142
    %2013 = vmatprep.subr.mxu0 %v1135
    %2014 = vmatpush1.msra.mxu0 %v1134
    %2015 = vmatprep.subr.mxu0 %v1383
    %2016 = vmatpush2.msra.mxu0 %v1382
    %2017 = vmatprep.subr.mxu0 %v1375
    %2018 = vmatpush2.msra.mxu0 %v1374
    %2019 = vmatprep.subr.mxu0 %v1367
    %2020 = vmatpush2.msra.mxu0 %v1366
    %2021 = vmatprep.subr.mxu0 %v1359
    %2022 = vmatpush2.msra.mxu0 %v1358
    %2023 = vmatprep.subr.mxu0 %v1351
    %2024 = vmatpush2.msra.mxu0 %v1350
    %2025 = vmatprep.subr.mxu0 %v1343
    %2026 = vmatpush2.msra.mxu0 %v1342
    %2027 = vmatprep.subr.mxu0 %v1335
    %2028 = vmatpush2.msra.mxu0 %v1334
    %2029 = vmatprep.subr.mxu0 %v1327
    %2030 = vmatpush2.msra.mxu0 %v1326
    %2031 = vmatprep.subr.mxu0 %v1319
    %2032 = vmatpush2.msra.mxu0 %v1318
    %2033 = vmatprep.subr.mxu0 %v1311
    %2034 = vmatpush2.msra.mxu0 %v1310
    %2035 = vmatprep.subr.mxu0 %v1303
    %2036 = vmatpush2.msra.mxu0 %v1302
    %2037 = vmatprep.subr.mxu0 %v1295
    %2038 = vmatpush2.msra.mxu0 %v1294
    %2039 = vmatprep.subr.mxu0 %v1287
    %2040 = vmatpush2.msra.mxu0 %v1286
    %2041 = vmatprep.subr.mxu0 %v1279
    %2042 = vmatpush2.msra.mxu0 %v1278
    %2043 = vmatprep.subr.mxu0 %v1271
    %2044 = vmatpush2.msra.mxu0 %v1270
    %2045 = vmatprep.subr.mxu0 %v1263
    %2046 = vmatpush2.msra.mxu0 %v1262
    %2047 = vmatprep.mubr.f32.mxu0 0.0
    %2048 = vmatmul.mubr.f32.gmra.mxu0 0.0
    %v2049 = vpop.f32.mrf.mxu0
    %v2050 = vadd.f32 %v1979, %v2049
    %v2051 = vpop.f32.mrf.mxu0
    %v2052 = vadd.f32 %v1981, %v2051
    %2053 = vdwg.mxu0
    %2054 = vmatprep.subr.mxu0 %v1001
    %2055 = vmatpush1.msra.mxu0 %v1000
    %2056 = vmatprep.subr.mxu0 %v993
    %2057 = vmatpush1.msra.mxu0 %v992
    %2058 = vmatprep.subr.mxu0 %v985
    %2059 = vmatpush1.msra.mxu0 %v984
    %2060 = vmatprep.subr.mxu0 %v977
    %2061 = vmatpush1.msra.mxu0 %v976
    %2062 = vmatprep.subr.mxu0 %v969
    %2063 = vmatpush1.msra.mxu0 %v968
    %2064 = vmatprep.subr.mxu0 %v961
    %2065 = vmatpush1.msra.mxu0 %v960
    %2066 = vmatprep.subr.mxu0 %v953
    %2067 = vmatpush1.msra.mxu0 %v952
    %2068 = vmatprep.subr.mxu0 %v945
    %2069 = vmatpush1.msra.mxu0 %v944
    %2070 = vmatprep.subr.mxu0 %v937
    %2071 = vmatpush1.msra.mxu0 %v936
    %2072 = vmatprep.subr.mxu0 %v929
    %2073 = vmatpush1.msra.mxu0 %v928
    %2074 = vmatprep.subr.mxu0 %v921
    %2075 = vmatpush1.msra.mxu0 %v920
    %2076 = vmatprep.subr.mxu0 %v913
    %2077 = vmatpush1.msra.mxu0 %v912
    %2078 = vmatprep.subr.mxu0 %v905
    %2079 = vmatpush1.msra.mxu0 %v904
    %2080 = vmatprep.subr.mxu0 %v897
    %2081 = vmatpush1.msra.mxu0 %v896
    %2082 = vmatprep.subr.mxu0 %v889
    %2083 = vmatpush1.msra.mxu0 %v888
    %2084 = vmatprep.subr.mxu0 %v881
    %2085 = vmatpush1.msra.mxu0 %v880
    %2086 = vmatprep.subr.mxu0 %v1129
    %2087 = vmatpush2.msra.mxu0 %v1128
    %2088 = vmatprep.subr.mxu0 %v1121
    %2089 = vmatpush2.msra.mxu0 %v1120
    %2090 = vmatprep.subr.mxu0 %v1113
    %2091 = vmatpush2.msra.mxu0 %v1112
    %2092 = vmatprep.subr.mxu0 %v1105
    %2093 = vmatpush2.msra.mxu0 %v1104
    %2094 = vmatprep.subr.mxu0 %v1097
    %2095 = vmatpush2.msra.mxu0 %v1096
    %2096 = vmatprep.subr.mxu0 %v1089
    %2097 = vmatpush2.msra.mxu0 %v1088
    %2098 = vmatprep.subr.mxu0 %v1081
    %2099 = vmatpush2.msra.mxu0 %v1080
    %2100 = vmatprep.subr.mxu0 %v1073
    %2101 = vmatpush2.msra.mxu0 %v1072
    %2102 = vmatprep.subr.mxu0 %v1065
    %2103 = vmatpush2.msra.mxu0 %v1064
    %2104 = vmatprep.subr.mxu0 %v1057
    %2105 = vmatpush2.msra.mxu0 %v1056
    %2106 = vmatprep.subr.mxu0 %v1049
    %2107 = vmatpush2.msra.mxu0 %v1048
    %2108 = vmatprep.subr.mxu0 %v1041
    %2109 = vmatpush2.msra.mxu0 %v1040
    %2110 = vmatprep.subr.mxu0 %v1033
    %2111 = vmatpush2.msra.mxu0 %v1032
    %2112 = vmatprep.subr.mxu0 %v1025
    %2113 = vmatpush2.msra.mxu0 %v1024
    %2114 = vmatprep.subr.mxu0 %v1017
    %2115 = vmatpush2.msra.mxu0 %v1016
    %2116 = vmatprep.subr.mxu0 %v1009
    %2117 = vmatpush2.msra.mxu0 %v1008
    %2118 = vmatprep.mubr.f32.mxu0 %v1728
    %2119 = vmatmul.mubr.f32.gmra.mxu0 %v1727
    %v2120 = vpop.f32.mrf.mxu0
    %v2121 = vadd.f32 %v1749, %v2120
    %v2122 = vpop.f32.mrf.mxu0
    %v2123 = vadd.f32 %v1753, %v2122
    %2124 = vdwg.mxu0
    %2125 = vmatprep.subr.mxu0 %v1257
    %2126 = vmatpush1.msra.mxu0 %v1256
    %2127 = vmatprep.subr.mxu0 %v1249
    %2128 = vmatpush1.msra.mxu0 %v1248
    %2129 = vmatprep.subr.mxu0 %v1241
    %2130 = vmatpush1.msra.mxu0 %v1240
    %2131 = vmatprep.subr.mxu0 %v1233
    %2132 = vmatpush1.msra.mxu0 %v1232
    %2133 = vmatprep.subr.mxu0 %v1225
    %2134 = vmatpush1.msra.mxu0 %v1224
    %2135 = vmatprep.subr.mxu0 %v1217
    %2136 = vmatpush1.msra.mxu0 %v1216
    %2137 = vmatprep.subr.mxu0 %v1209
    %2138 = vmatpush1.msra.mxu0 %v1208
    %2139 = vmatprep.subr.mxu0 %v1201
    %2140 = vmatpush1.msra.mxu0 %v1200
    %2141 = vmatprep.subr.mxu0 %v1193
    %2142 = vmatpush1.msra.mxu0 %v1192
    %2143 = vmatprep.subr.mxu0 %v1185
    %2144 = vmatpush1.msra.mxu0 %v1184
    %2145 = vmatprep.subr.mxu0 %v1177
    %2146 = vmatpush1.msra.mxu0 %v1176
    %2147 = vmatprep.subr.mxu0 %v1169
    %2148 = vmatpush1.msra.mxu0 %v1168
    %2149 = vmatprep.subr.mxu0 %v1161
    %2150 = vmatpush1.msra.mxu0 %v1160
    %2151 = vmatprep.subr.mxu0 %v1153
    %2152 = vmatpush1.msra.mxu0 %v1152
    %2153 = vmatprep.subr.mxu0 %v1145
    %2154 = vmatpush1.msra.mxu0 %v1144
    %2155 = vmatprep.subr.mxu0 %v1137
    %2156 = vmatpush1.msra.mxu0 %v1136
    %2157 = vmatprep.subr.mxu0 %v1385
    %2158 = vmatpush2.msra.mxu0 %v1384
    %2159 = vmatprep.subr.mxu0 %v1377
    %2160 = vmatpush2.msra.mxu0 %v1376
    %2161 = vmatprep.subr.mxu0 %v1369
    %2162 = vmatpush2.msra.mxu0 %v1368
    %2163 = vmatprep.subr.mxu0 %v1361
    %2164 = vmatpush2.msra.mxu0 %v1360
    %2165 = vmatprep.subr.mxu0 %v1353
    %2166 = vmatpush2.msra.mxu0 %v1352
    %2167 = vmatprep.subr.mxu0 %v1345
    %2168 = vmatpush2.msra.mxu0 %v1344
    %2169 = vmatprep.subr.mxu0 %v1337
    %2170 = vmatpush2.msra.mxu0 %v1336
    %2171 = vmatprep.subr.mxu0 %v1329
    %2172 = vmatpush2.msra.mxu0 %v1328
    %2173 = vmatprep.subr.mxu0 %v1321
    %2174 = vmatpush2.msra.mxu0 %v1320
    %2175 = vmatprep.subr.mxu0 %v1313
    %2176 = vmatpush2.msra.mxu0 %v1312
    %2177 = vmatprep.subr.mxu0 %v1305
    %2178 = vmatpush2.msra.mxu0 %v1304
    %2179 = vmatprep.subr.mxu0 %v1297
    %2180 = vmatpush2.msra.mxu0 %v1296
    %2181 = vmatprep.subr.mxu0 %v1289
    %2182 = vmatpush2.msra.mxu0 %v1288
    %2183 = vmatprep.subr.mxu0 %v1281
    %2184 = vmatpush2.msra.mxu0 %v1280
    %2185 = vmatprep.subr.mxu0 %v1273
    %2186 = vmatpush2.msra.mxu0 %v1272
    %2187 = vmatprep.subr.mxu0 %v1265
    %2188 = vmatpush2.msra.mxu0 %v1264
    %2189 = vmatprep.mubr.f32.mxu0 0.0
    %2190 = vmatmul.mubr.f32.gmra.mxu0 0.0
    %v2191 = vpop.f32.mrf.mxu0
    %v2192 = vadd.f32 %v2121, %v2191
    %v2193 = vpop.f32.mrf.mxu0
    %v2194 = vadd.f32 %v2123, %v2193
    %2195 = vdwg.mxu0
    %2196 = vmatprep.subr.mxu0 %v1003
    %2197 = vmatpush1.msra.mxu0 %v1002
    %2198 = vmatprep.subr.mxu0 %v995
    %2199 = vmatpush1.msra.mxu0 %v994
    %2200 = vmatprep.subr.mxu0 %v987
    %2201 = vmatpush1.msra.mxu0 %v986
    %2202 = vmatprep.subr.mxu0 %v979
    %2203 = vmatpush1.msra.mxu0 %v978
    %2204 = vmatprep.subr.mxu0 %v971
    %2205 = vmatpush1.msra.mxu0 %v970
    %2206 = vmatprep.subr.mxu0 %v963
    %2207 = vmatpush1.msra.mxu0 %v962
    %2208 = vmatprep.subr.mxu0 %v955
    %2209 = vmatpush1.msra.mxu0 %v954
    %2210 = vmatprep.subr.mxu0 %v947
    %2211 = vmatpush1.msra.mxu0 %v946
    %2212 = vmatprep.subr.mxu0 %v939
    %2213 = vmatpush1.msra.mxu0 %v938
    %2214 = vmatprep.subr.mxu0 %v931
    %2215 = vmatpush1.msra.mxu0 %v930
    %2216 = vmatprep.subr.mxu0 %v923
    %2217 = vmatpush1.msra.mxu0 %v922
    %2218 = vmatprep.subr.mxu0 %v915
    %2219 = vmatpush1.msra.mxu0 %v914
    %2220 = vmatprep.subr.mxu0 %v907
    %2221 = vmatpush1.msra.mxu0 %v906
    %2222 = vmatprep.subr.mxu0 %v899
    %2223 = vmatpush1.msra.mxu0 %v898
    %2224 = vmatprep.subr.mxu0 %v891
    %2225 = vmatpush1.msra.mxu0 %v890
    %2226 = vmatprep.subr.mxu0 %v883
    %2227 = vmatpush1.msra.mxu0 %v882
    %2228 = vmatprep.subr.mxu0 %v1131
    %2229 = vmatpush2.msra.mxu0 %v1130
    %2230 = vmatprep.subr.mxu0 %v1123
    %2231 = vmatpush2.msra.mxu0 %v1122
    %2232 = vmatprep.subr.mxu0 %v1115
    %2233 = vmatpush2.msra.mxu0 %v1114
    %2234 = vmatprep.subr.mxu0 %v1107
    %2235 = vmatpush2.msra.mxu0 %v1106
    %2236 = vmatprep.subr.mxu0 %v1099
    %2237 = vmatpush2.msra.mxu0 %v1098
    %2238 = vmatprep.subr.mxu0 %v1091
    %2239 = vmatpush2.msra.mxu0 %v1090
    %2240 = vmatprep.subr.mxu0 %v1083
    %2241 = vmatpush2.msra.mxu0 %v1082
    %2242 = vmatprep.subr.mxu0 %v1075
    %2243 = vmatpush2.msra.mxu0 %v1074
    %2244 = vmatprep.subr.mxu0 %v1067
    %2245 = vmatpush2.msra.mxu0 %v1066
    %2246 = vmatprep.subr.mxu0 %v1059
    %2247 = vmatpush2.msra.mxu0 %v1058
    %2248 = vmatprep.subr.mxu0 %v1051
    %2249 = vmatpush2.msra.mxu0 %v1050
    %2250 = vmatprep.subr.mxu0 %v1043
    %2251 = vmatpush2.msra.mxu0 %v1042
    %2252 = vmatprep.subr.mxu0 %v1035
    %2253 = vmatpush2.msra.mxu0 %v1034
    %2254 = vmatprep.subr.mxu0 %v1027
    %2255 = vmatpush2.msra.mxu0 %v1026
    %2256 = vmatprep.subr.mxu0 %v1019
    %2257 = vmatpush2.msra.mxu0 %v1018
    %2258 = vmatprep.subr.mxu0 %v1011
    %2259 = vmatpush2.msra.mxu0 %v1010
    %2260 = vmatprep.mubr.f32.mxu0 %v1728
    %2261 = vmatmul.mubr.f32.gmra.mxu0 %v1727
    %v2262 = vpop.f32.mrf.mxu0
    %v2263 = vadd.f32 %v1757, %v2262
    %v2264 = vpop.f32.mrf.mxu0
    %v2265 = vadd.f32 %v1761, %v2264
    %2266 = vdwg.mxu0
    %2267 = vmatprep.subr.mxu0 %v1259
    %2268 = vmatpush1.msra.mxu0 %v1258
    %2269 = vmatprep.subr.mxu0 %v1251
    %2270 = vmatpush1.msra.mxu0 %v1250
    %2271 = vmatprep.subr.mxu0 %v1243
    %2272 = vmatpush1.msra.mxu0 %v1242
    %2273 = vmatprep.subr.mxu0 %v1235
    %2274 = vmatpush1.msra.mxu0 %v1234
    %2275 = vmatprep.subr.mxu0 %v1227
    %2276 = vmatpush1.msra.mxu0 %v1226
    %2277 = vmatprep.subr.mxu0 %v1219
    %2278 = vmatpush1.msra.mxu0 %v1218
    %2279 = vmatprep.subr.mxu0 %v1211
    %2280 = vmatpush1.msra.mxu0 %v1210
    %2281 = vmatprep.subr.mxu0 %v1203
    %2282 = vmatpush1.msra.mxu0 %v1202
    %2283 = vmatprep.subr.mxu0 %v1195
    %2284 = vmatpush1.msra.mxu0 %v1194
    %2285 = vmatprep.subr.mxu0 %v1187
    %2286 = vmatpush1.msra.mxu0 %v1186
    %2287 = vmatprep.subr.mxu0 %v1179
    %2288 = vmatpush1.msra.mxu0 %v1178
    %2289 = vmatprep.subr.mxu0 %v1171
    %2290 = vmatpush1.msra.mxu0 %v1170
    %2291 = vmatprep.subr.mxu0 %v1163
    %2292 = vmatpush1.msra.mxu0 %v1162
    %2293 = vmatprep.subr.mxu0 %v1155
    %2294 = vmatpush1.msra.mxu0 %v1154
    %2295 = vmatprep.subr.mxu0 %v1147
    %2296 = vmatpush1.msra.mxu0 %v1146
    %2297 = vmatprep.subr.mxu0 %v1139
    %2298 = vmatpush1.msra.mxu0 %v1138
    %2299 = vmatprep.subr.mxu0 %v1387
    %2300 = vmatpush2.msra.mxu0 %v1386
    %2301 = vmatprep.subr.mxu0 %v1379
    %2302 = vmatpush2.msra.mxu0 %v1378
    %2303 = vmatprep.subr.mxu0 %v1371
    %2304 = vmatpush2.msra.mxu0 %v1370
    %2305 = vmatprep.subr.mxu0 %v1363
    %2306 = vmatpush2.msra.mxu0 %v1362
    %2307 = vmatprep.subr.mxu0 %v1355
    %2308 = vmatpush2.msra.mxu0 %v1354
    %2309 = vmatprep.subr.mxu0 %v1347
    %2310 = vmatpush2.msra.mxu0 %v1346
    %2311 = vmatprep.subr.mxu0 %v1339
    %2312 = vmatpush2.msra.mxu0 %v1338
    %2313 = vmatprep.subr.mxu0 %v1331
    %2314 = vmatpush2.msra.mxu0 %v1330
    %2315 = vmatprep.subr.mxu0 %v1323
    %2316 = vmatpush2.msra.mxu0 %v1322
    %2317 = vmatprep.subr.mxu0 %v1315
    %2318 = vmatpush2.msra.mxu0 %v1314
    %2319 = vmatprep.subr.mxu0 %v1307
    %2320 = vmatpush2.msra.mxu0 %v1306
    %2321 = vmatprep.subr.mxu0 %v1299
    %2322 = vmatpush2.msra.mxu0 %v1298
    %2323 = vmatprep.subr.mxu0 %v1291
    %2324 = vmatpush2.msra.mxu0 %v1290
    %2325 = vmatprep.subr.mxu0 %v1283
    %2326 = vmatpush2.msra.mxu0 %v1282
    %2327 = vmatprep.subr.mxu0 %v1275
    %2328 = vmatpush2.msra.mxu0 %v1274
    %2329 = vmatprep.subr.mxu0 %v1267
    %2330 = vmatpush2.msra.mxu0 %v1266
    %2331 = vmatprep.mubr.f32.mxu0 0.0
    %2332 = vmatmul.mubr.f32.gmra.mxu0 0.0
    %v2333 = vpop.f32.mrf.mxu0
    %v2334 = vadd.f32 %v2263, %v2333
    %v2335 = vpop.f32.mrf.mxu0
    %v2336 = vadd.f32 %v2265, %v2335
    %2337 = vdwg.mxu0
    %v2338 = vxor.u32 %v1908, 2147483648
    %v2339 = vxor.u32 %v1910, 2147483648
    %v2340 = vxor.u32 %v2050, 2147483648
    %v2341 = vxor.u32 %v2052, 2147483648
    %v2342 = vxor.u32 %v2192, 2147483648
    %v2343 = vxor.u32 %v2194, 2147483648
    %v2344 = vmul.f32 %v2338, 1.442695
    %v2345 = vpow.pop %v2344
    %v2346 = vmul.f32 %v2339, 1.442695
    %v2347 = vpow.pop %v2346
    %v2348 = vmul.f32 %v2340, 1.442695
    %v2349 = vpow.pop %v2348
    %v2350 = vmul.f32 %v2341, 1.442695
    %v2351 = vpow.pop %v2350
    %v2352 = vmul.f32 %v2342, 1.442695
    %v2353 = vpow.pop %v2352
    %v2354 = vmul.f32 %v2343, 1.442695
    %v2355 = vpow.pop %v2354
    %v2356 = vadd.f32 %v2345, 1.0
    %v2357 = vadd.f32 %v2347, 1.0
    %v2358 = vadd.f32 %v2349, 1.0
    %v2359 = vadd.f32 %v2351, 1.0
    %v2360 = vadd.f32 %v2353, 1.0
    %v2361 = vadd.f32 %v2355, 1.0
    %v2362 = vrcp.pop %v2356
    %v2363 = vmul.f32 1.0, %v2362
    %v2364 = vrcp.pop %v2357
    %v2365 = vmul.f32 1.0, %v2364
    %v2366 = vrcp.pop %v2358
    %v2367 = vmul.f32 1.0, %v2366
    %v2368 = vrcp.pop %v2359
    %v2369 = vmul.f32 1.0, %v2368
    %v2370 = vrcp.pop %v2360
    %v2371 = vmul.f32 1.0, %v2370
    %v2372 = vrcp.pop %v2361
    %v2373 = vmul.f32 1.0, %v2372
    %v2374 = vtanh.pop %v2334
    %v2375 = vtanh.pop %v2336
    %v2376 = vmul.f32 %v2367, 0.0
    %v2377 = vmul.f32 %v2369, 0.0
    %v2378 = vmul.f32 %v2363, %v2374
    %v2379 = vmul.f32 %v2365, %v2375
    %v2380 = vadd.f32 %v2376, %v2378
    %v2381 = vadd.f32 %v2377, %v2379
    %v2382 = vtanh.pop %v2380
    %v2383 = vtanh.pop %v2381
    %v2384 = vmul.f32 %v2371, %v2382
    %v2385 = vmul.f32 %v2373, %v2383
    %2386 = vmatprep.subr.mxu0 %v741
    %2387 = vmatpush1.msra.mxu0 %v740
    %2388 = vmatprep.subr.mxu0 %v733
    %2389 = vmatpush1.msra.mxu0 %v732
    %2390 = vmatprep.subr.mxu0 %v725
    %2391 = vmatpush1.msra.mxu0 %v724
    %2392 = vmatprep.subr.mxu0 %v717
    %2393 = vmatpush1.msra.mxu0 %v716
    %2394 = vmatprep.subr.mxu0 %v709
    %2395 = vmatpush1.msra.mxu0 %v708
    %2396 = vmatprep.subr.mxu0 %v701
    %2397 = vmatpush1.msra.mxu0 %v700
    %2398 = vmatprep.subr.mxu0 %v693
    %2399 = vmatpush1.msra.mxu0 %v692
    %2400 = vmatprep.subr.mxu0 %v685
    %2401 = vmatpush1.msra.mxu0 %v684
    %2402 = vmatprep.subr.mxu0 %v677
    %2403 = vmatpush1.msra.mxu0 %v676
    %2404 = vmatprep.subr.mxu0 %v669
    %2405 = vmatpush1.msra.mxu0 %v668
    %2406 = vmatprep.subr.mxu0 %v661
    %2407 = vmatpush1.msra.mxu0 %v660
    %2408 = vmatprep.subr.mxu0 %v653
    %2409 = vmatpush1.msra.mxu0 %v652
    %2410 = vmatprep.subr.mxu0 %v645
    %2411 = vmatpush1.msra.mxu0 %v644
    %2412 = vmatprep.subr.mxu0 %v637
    %2413 = vmatpush1.msra.mxu0 %v636
    %2414 = vmatprep.subr.mxu0 %v629
    %2415 = vmatpush1.msra.mxu0 %v628
    %2416 = vmatprep.subr.mxu0 %v621
    %2417 = vmatpush1.msra.mxu0 %v620
    %2418 = vmatprep.subr.mxu0 %v869
    %2419 = vmatpush2.msra.mxu0 %v868
    %2420 = vmatprep.subr.mxu0 %v861
    %2421 = vmatpush2.msra.mxu0 %v860
    %2422 = vmatprep.subr.mxu0 %v853
    %2423 = vmatpush2.msra.mxu0 %v852
    %2424 = vmatprep.subr.mxu0 %v845
    %2425 = vmatpush2.msra.mxu0 %v844
    %2426 = vmatprep.subr.mxu0 %v837
    %2427 = vmatpush2.msra.mxu0 %v836
    %2428 = vmatprep.subr.mxu0 %v829
    %2429 = vmatpush2.msra.mxu0 %v828
    %2430 = vmatprep.subr.mxu0 %v821
    %2431 = vmatpush2.msra.mxu0 %v820
    %2432 = vmatprep.subr.mxu0 %v813
    %2433 = vmatpush2.msra.mxu0 %v812
    %2434 = vmatprep.subr.mxu0 %v805
    %2435 = vmatpush2.msra.mxu0 %v804
    %2436 = vmatprep.subr.mxu0 %v797
    %2437 = vmatpush2.msra.mxu0 %v796
    %2438 = vmatprep.subr.mxu0 %v789
    %2439 = vmatpush2.msra.mxu0 %v788
    %2440 = vmatprep.subr.mxu0 %v781
    %2441 = vmatpush2.msra.mxu0 %v780
    %2442 = vmatprep.subr.mxu0 %v773
    %2443 = vmatpush2.msra.mxu0 %v772
    %2444 = vmatprep.subr.mxu0 %v765
    %2445 = vmatpush2.msra.mxu0 %v764
    %2446 = vmatprep.subr.mxu0 %v757
    %2447 = vmatpush2.msra.mxu0 %v756
    %2448 = vmatprep.subr.mxu0 %v749
    %2449 = vmatpush2.msra.mxu0 %v748
    %2450 = vmatprep.mubr.f32.mxu0 %v1728
    %2451 = vmatmul.mubr.f32.gmra.mxu0 %v1727
    %v2452 = vpop.f32.mrf.mxu0
    %v2453 = vadd.f32 0.0, %v2452
    %v2454 = vpop.f32.mrf.mxu0
    %v2455 = vadd.f32 0.0, %v2454
    %2456 = vdwg.mxu0
    %2457 = vmatprep.subr.mxu0 %v743
    %2458 = vmatpush1.msra.mxu0 %v742
    %2459 = vmatprep.subr.mxu0 %v735
    %2460 = vmatpush1.msra.mxu0 %v734
    %2461 = vmatprep.subr.mxu0 %v727
    %2462 = vmatpush1.msra.mxu0 %v726
    %2463 = vmatprep.subr.mxu0 %v719
    %2464 = vmatpush1.msra.mxu0 %v718
    %2465 = vmatprep.subr.mxu0 %v711
    %2466 = vmatpush1.msra.mxu0 %v710
    %2467 = vmatprep.subr.mxu0 %v703
    %2468 = vmatpush1.msra.mxu0 %v702
    %2469 = vmatprep.subr.mxu0 %v695
    %2470 = vmatpush1.msra.mxu0 %v694
    %2471 = vmatprep.subr.mxu0 %v687
    %2472 = vmatpush1.msra.mxu0 %v686
    %2473 = vmatprep.subr.mxu0 %v679
    %2474 = vmatpush1.msra.mxu0 %v678
    %2475 = vmatprep.subr.mxu0 %v671
    %2476 = vmatpush1.msra.mxu0 %v670
    %2477 = vmatprep.subr.mxu0 %v663
    %2478 = vmatpush1.msra.mxu0 %v662
    %2479 = vmatprep.subr.mxu0 %v655
    %2480 = vmatpush1.msra.mxu0 %v654
    %2481 = vmatprep.subr.mxu0 %v647
    %2482 = vmatpush1.msra.mxu0 %v646
    %2483 = vmatprep.subr.mxu0 %v639
    %2484 = vmatpush1.msra.mxu0 %v638
    %2485 = vmatprep.subr.mxu0 %v631
    %2486 = vmatpush1.msra.mxu0 %v630
    %2487 = vmatprep.subr.mxu0 %v623
    %2488 = vmatpush1.msra.mxu0 %v622
    %2489 = vmatprep.subr.mxu0 %v871
    %2490 = vmatpush2.msra.mxu0 %v870
    %2491 = vmatprep.subr.mxu0 %v863
    %2492 = vmatpush2.msra.mxu0 %v862
    %2493 = vmatprep.subr.mxu0 %v855
    %2494 = vmatpush2.msra.mxu0 %v854
    %2495 = vmatprep.subr.mxu0 %v847
    %2496 = vmatpush2.msra.mxu0 %v846
    %2497 = vmatprep.subr.mxu0 %v839
    %2498 = vmatpush2.msra.mxu0 %v838
    %2499 = vmatprep.subr.mxu0 %v831
    %2500 = vmatpush2.msra.mxu0 %v830
    %2501 = vmatprep.subr.mxu0 %v823
    %2502 = vmatpush2.msra.mxu0 %v822
    %2503 = vmatprep.subr.mxu0 %v815
    %2504 = vmatpush2.msra.mxu0 %v814
    %2505 = vmatprep.subr.mxu0 %v807
    %2506 = vmatpush2.msra.mxu0 %v806
    %2507 = vmatprep.subr.mxu0 %v799
    %2508 = vmatpush2.msra.mxu0 %v798
    %2509 = vmatprep.subr.mxu0 %v791
    %2510 = vmatpush2.msra.mxu0 %v790
    %2511 = vmatprep.subr.mxu0 %v783
    %2512 = vmatpush2.msra.mxu0 %v782
    %2513 = vmatprep.subr.mxu0 %v775
    %2514 = vmatpush2.msra.mxu0 %v774
    %2515 = vmatprep.subr.mxu0 %v767
    %2516 = vmatpush2.msra.mxu0 %v766
    %2517 = vmatprep.subr.mxu0 %v759
    %2518 = vmatpush2.msra.mxu0 %v758
    %2519 = vmatprep.subr.mxu0 %v751
    %2520 = vmatpush2.msra.mxu0 %v750
    %2521 = vmatprep.mubr.f32.mxu0 %v1728
    %2522 = vmatmul.mubr.f32.gmra.mxu0 %v1727
    %v2523 = vpop.f32.mrf.mxu0
    %v2524 = vadd.f32 0.0, %v2523
    %v2525 = vpop.f32.mrf.mxu0
    %v2526 = vadd.f32 0.0, %v2525
    %2527 = vdwg.mxu0
    %2528 = vmatprep.subr.mxu0 %v745
    %2529 = vmatpush1.msra.mxu0 %v744
    %2530 = vmatprep.subr.mxu0 %v737
    %2531 = vmatpush1.msra.mxu0 %v736
    %2532 = vmatprep.subr.mxu0 %v729
    %2533 = vmatpush1.msra.mxu0 %v728
    %2534 = vmatprep.subr.mxu0 %v721
    %2535 = vmatpush1.msra.mxu0 %v720
    %2536 = vmatprep.subr.mxu0 %v713
    %2537 = vmatpush1.msra.mxu0 %v712
    %2538 = vmatprep.subr.mxu0 %v705
    %2539 = vmatpush1.msra.mxu0 %v704
    %2540 = vmatprep.subr.mxu0 %v697
    %2541 = vmatpush1.msra.mxu0 %v696
    %2542 = vmatprep.subr.mxu0 %v689
    %2543 = vmatpush1.msra.mxu0 %v688
    %2544 = vmatprep.subr.mxu0 %v681
    %2545 = vmatpush1.msra.mxu0 %v680
    %2546 = vmatprep.subr.mxu0 %v673
    %2547 = vmatpush1.msra.mxu0 %v672
    %2548 = vmatprep.subr.mxu0 %v665
    %2549 = vmatpush1.msra.mxu0 %v664
    %2550 = vmatprep.subr.mxu0 %v657
    %2551 = vmatpush1.msra.mxu0 %v656
    %2552 = vmatprep.subr.mxu0 %v649
    %2553 = vmatpush1.msra.mxu0 %v648
    %2554 = vmatprep.subr.mxu0 %v641
    %2555 = vmatpush1.msra.mxu0 %v640
    %2556 = vmatprep.subr.mxu0 %v633
    %2557 = vmatpush1.msra.mxu0 %v632
    %2558 = vmatprep.subr.mxu0 %v625
    %2559 = vmatpush1.msra.mxu0 %v624
    %2560 = vmatprep.subr.mxu0 %v873
    %2561 = vmatpush2.msra.mxu0 %v872
    %2562 = vmatprep.subr.mxu0 %v865
    %2563 = vmatpush2.msra.mxu0 %v864
    %2564 = vmatprep.subr.mxu0 %v857
    %2565 = vmatpush2.msra.mxu0 %v856
    %2566 = vmatprep.subr.mxu0 %v849
    %2567 = vmatpush2.msra.mxu0 %v848
    %2568 = vmatprep.subr.mxu0 %v841
    %2569 = vmatpush2.msra.mxu0 %v840
    %2570 = vmatprep.subr.mxu0 %v833
    %2571 = vmatpush2.msra.mxu0 %v832
    %2572 = vmatprep.subr.mxu0 %v825
    %2573 = vmatpush2.msra.mxu0 %v824
    %2574 = vmatprep.subr.mxu0 %v817
    %2575 = vmatpush2.msra.mxu0 %v816
    %2576 = vmatprep.subr.mxu0 %v809
    %2577 = vmatpush2.msra.mxu0 %v808
    %2578 = vmatprep.subr.mxu0 %v801
    %2579 = vmatpush2.msra.mxu0 %v800
    %2580 = vmatprep.subr.mxu0 %v793
    %2581 = vmatpush2.msra.mxu0 %v792
    %2582 = vmatprep.subr.mxu0 %v785
    %2583 = vmatpush2.msra.mxu0 %v784
    %2584 = vmatprep.subr.mxu0 %v777
    %2585 = vmatpush2.msra.mxu0 %v776
    %2586 = vmatprep.subr.mxu0 %v769
    %2587 = vmatpush2.msra.mxu0 %v768
    %2588 = vmatprep.subr.mxu0 %v761
    %2589 = vmatpush2.msra.mxu0 %v760
    %2590 = vmatprep.subr.mxu0 %v753
    %2591 = vmatpush2.msra.mxu0 %v752
    %2592 = vmatprep.mubr.f32.mxu0 %v1728
    %2593 = vmatmul.mubr.f32.gmra.mxu0 %v1727
    %v2594 = vpop.f32.mrf.mxu0
    %v2595 = vadd.f32 0.0, %v2594
    %v2596 = vpop.f32.mrf.mxu0
    %v2597 = vadd.f32 0.0, %v2596
    %2598 = vdwg.mxu0
    %2599 = vmatprep.subr.mxu0 %v747
    %2600 = vmatpush1.msra.mxu0 %v746
    %2601 = vmatprep.subr.mxu0 %v739
    %2602 = vmatpush1.msra.mxu0 %v738
    %2603 = vmatprep.subr.mxu0 %v731
    %2604 = vmatpush1.msra.mxu0 %v730
    %2605 = vmatprep.subr.mxu0 %v723
    %2606 = vmatpush1.msra.mxu0 %v722
    %2607 = vmatprep.subr.mxu0 %v715
    %2608 = vmatpush1.msra.mxu0 %v714
    %2609 = vmatprep.subr.mxu0 %v707
    %2610 = vmatpush1.msra.mxu0 %v706
    %2611 = vmatprep.subr.mxu0 %v699
    %2612 = vmatpush1.msra.mxu0 %v698
    %2613 = vmatprep.subr.mxu0 %v691
    %2614 = vmatpush1.msra.mxu0 %v690
    %2615 = vmatprep.subr.mxu0 %v683
    %2616 = vmatpush1.msra.mxu0 %v682
    %2617 = vmatprep.subr.mxu0 %v675
    %2618 = vmatpush1.msra.mxu0 %v674
    %2619 = vmatprep.subr.mxu0 %v667
    %2620 = vmatpush1.msra.mxu0 %v666
    %2621 = vmatprep.subr.mxu0 %v659
    %2622 = vmatpush1.msra.mxu0 %v658
    %2623 = vmatprep.subr.mxu0 %v651
    %2624 = vmatpush1.msra.mxu0 %v650
    %2625 = vmatprep.subr.mxu0 %v643
    %2626 = vmatpush1.msra.mxu0 %v642
    %2627 = vmatprep.subr.mxu0 %v635
    %2628 = vmatpush1.msra.mxu0 %v634
    %2629 = vmatprep.subr.mxu0 %v627
    %2630 = vmatpush1.msra.mxu0 %v626
    %2631 = vmatprep.subr.mxu0 %v875
    %2632 = vmatpush2.msra.mxu0 %v874
    %2633 = vmatprep.subr.mxu0 %v867
    %2634 = vmatpush2.msra.mxu0 %v866
    %2635 = vmatprep.subr.mxu0 %v859
    %2636 = vmatpush2.msra.mxu0 %v858
    %2637 = vmatprep.subr.mxu0 %v851
    %2638 = vmatpush2.msra.mxu0 %v850
    %2639 = vmatprep.subr.mxu0 %v843
    %2640 = vmatpush2.msra.mxu0 %v842
    %2641 = vmatprep.subr.mxu0 %v835
    %2642 = vmatpush2.msra.mxu0 %v834
    %2643 = vmatprep.subr.mxu0 %v827
    %2644 = vmatpush2.msra.mxu0 %v826
    %2645 = vmatprep.subr.mxu0 %v819
    %2646 = vmatpush2.msra.mxu0 %v818
    %2647 = vmatprep.subr.mxu0 %v811
    %2648 = vmatpush2.msra.mxu0 %v810
    %2649 = vmatprep.subr.mxu0 %v803
    %2650 = vmatpush2.msra.mxu0 %v802
    %2651 = vmatprep.subr.mxu0 %v795
    %2652 = vmatpush2.msra.mxu0 %v794
    %2653 = vmatprep.subr.mxu0 %v787
    %2654 = vmatpush2.msra.mxu0 %v786
    %2655 = vmatprep.subr.mxu0 %v779
    %2656 = vmatpush2.msra.mxu0 %v778
    %2657 = vmatprep.subr.mxu0 %v771
    %2658 = vmatpush2.msra.mxu0 %v770
    %2659 = vmatprep.subr.mxu0 %v763
    %2660 = vmatpush2.msra.mxu0 %v762
    %2661 = vmatprep.subr.mxu0 %v755
    %2662 = vmatpush2.msra.mxu0 %v754
    %2663 = vmatprep.mubr.f32.mxu0 %v1728
    %2664 = vmatmul.mubr.f32.gmra.mxu0 %v1727
    %v2665 = vpop.f32.mrf.mxu0
    %v2666 = vadd.f32 0.0, %v2665
    %v2667 = vpop.f32.mrf.mxu0
    %v2668 = vadd.f32 0.0, %v2667
    %2669 = vdwg.mxu0
    %v2670 = vadd.f32 %v241, %v2453
    %v2671 = vadd.f32 %v243, %v2455
    %v2672 = vadd.f32 %v354, %v2524
    %v2673 = vadd.f32 %v356, %v2526
    %v2674 = vadd.f32 %v467, %v2595
    %v2675 = vadd.f32 %v469, %v2597
    %v2676 = vadd.f32 %v580, %v2666
    %v2677 = vadd.f32 %v582, %v2668
    %v2678 = vxor.u32 %v2670, 2147483648
    %v2679 = vxor.u32 %v2671, 2147483648
    %v2680 = vxor.u32 %v2672, 2147483648
    %v2681 = vxor.u32 %v2673, 2147483648
    %v2682 = vxor.u32 %v2674, 2147483648
    %v2683 = vxor.u32 %v2675, 2147483648
    %v2684 = vmul.f32 %v2678, 1.442695
    %v2685 = vpow.pop %v2684
    %v2686 = vmul.f32 %v2679, 1.442695
    %v2687 = vpow.pop %v2686
    %v2688 = vmul.f32 %v2680, 1.442695
    %v2689 = vpow.pop %v2688
    %v2690 = vmul.f32 %v2681, 1.442695
    %v2691 = vpow.pop %v2690
    %v2692 = vmul.f32 %v2682, 1.442695
    %v2693 = vpow.pop %v2692
    %v2694 = vmul.f32 %v2683, 1.442695
    %v2695 = vpow.pop %v2694
    %v2696 = vadd.f32 %v2685, 1.0
    %v2697 = vadd.f32 %v2687, 1.0
    %v2698 = vadd.f32 %v2689, 1.0
    %v2699 = vadd.f32 %v2691, 1.0
    %v2700 = vadd.f32 %v2693, 1.0
    %v2701 = vadd.f32 %v2695, 1.0
    %v2702 = vrcp.pop %v2696
    %v2703 = vmul.f32 1.0, %v2702
    %v2704 = vrcp.pop %v2697
    %v2705 = vmul.f32 1.0, %v2704
    %v2706 = vrcp.pop %v2698
    %v2707 = vmul.f32 1.0, %v2706
    %v2708 = vrcp.pop %v2699
    %v2709 = vmul.f32 1.0, %v2708
    %v2710 = vrcp.pop %v2700
    %v2711 = vmul.f32 1.0, %v2710
    %v2712 = vrcp.pop %v2701
    %v2713 = vmul.f32 1.0, %v2712
    %v2714 = vtanh.pop %v2676
    %v2715 = vtanh.pop %v2677
    %v2716 = vmul.f32 %v2707, %v1723
    %v2717 = vmul.f32 %v2709, %v1724
    %v2718 = vmul.f32 %v2703, %v2714
    %v2719 = vmul.f32 %v2705, %v2715
    %v2720 = vadd.f32 %v2716, %v2718
    %v2721 = vadd.f32 %v2717, %v2719
    %v2722 = vtanh.pop %v2720
    %v2723 = vtanh.pop %v2721
    %v2724 = vmul.f32 %v2711, %v2722
    %v2725 = vmul.f32 %v2713, %v2723
    %2726 = vmatprep.subr.mxu0 %v997
    %2727 = vmatpush1.msra.mxu0 %v996
    %2728 = vmatprep.subr.mxu0 %v989
    %2729 = vmatpush1.msra.mxu0 %v988
    %2730 = vmatprep.subr.mxu0 %v981
    %2731 = vmatpush1.msra.mxu0 %v980
    %2732 = vmatprep.subr.mxu0 %v973
    %2733 = vmatpush1.msra.mxu0 %v972
    %2734 = vmatprep.subr.mxu0 %v965
    %2735 = vmatpush1.msra.mxu0 %v964
    %2736 = vmatprep.subr.mxu0 %v957
    %2737 = vmatpush1.msra.mxu0 %v956
    %2738 = vmatprep.subr.mxu0 %v949
    %2739 = vmatpush1.msra.mxu0 %v948
    %2740 = vmatprep.subr.mxu0 %v941
    %2741 = vmatpush1.msra.mxu0 %v940
    %2742 = vmatprep.subr.mxu0 %v933
    %2743 = vmatpush1.msra.mxu0 %v932
    %2744 = vmatprep.subr.mxu0 %v925
    %2745 = vmatpush1.msra.mxu0 %v924
    %2746 = vmatprep.subr.mxu0 %v917
    %2747 = vmatpush1.msra.mxu0 %v916
    %2748 = vmatprep.subr.mxu0 %v909
    %2749 = vmatpush1.msra.mxu0 %v908
    %2750 = vmatprep.subr.mxu0 %v901
    %2751 = vmatpush1.msra.mxu0 %v900
    %2752 = vmatprep.subr.mxu0 %v893
    %2753 = vmatpush1.msra.mxu0 %v892
    %2754 = vmatprep.subr.mxu0 %v885
    %2755 = vmatpush1.msra.mxu0 %v884
    %2756 = vmatprep.subr.mxu0 %v877
    %2757 = vmatpush1.msra.mxu0 %v876
    %2758 = vmatprep.subr.mxu0 %v1125
    %2759 = vmatpush2.msra.mxu0 %v1124
    %2760 = vmatprep.subr.mxu0 %v1117
    %2761 = vmatpush2.msra.mxu0 %v1116
    %2762 = vmatprep.subr.mxu0 %v1109
    %2763 = vmatpush2.msra.mxu0 %v1108
    %2764 = vmatprep.subr.mxu0 %v1101
    %2765 = vmatpush2.msra.mxu0 %v1100
    %2766 = vmatprep.subr.mxu0 %v1093
    %2767 = vmatpush2.msra.mxu0 %v1092
    %2768 = vmatprep.subr.mxu0 %v1085
    %2769 = vmatpush2.msra.mxu0 %v1084
    %2770 = vmatprep.subr.mxu0 %v1077
    %2771 = vmatpush2.msra.mxu0 %v1076
    %2772 = vmatprep.subr.mxu0 %v1069
    %2773 = vmatpush2.msra.mxu0 %v1068
    %2774 = vmatprep.subr.mxu0 %v1061
    %2775 = vmatpush2.msra.mxu0 %v1060
    %2776 = vmatprep.subr.mxu0 %v1053
    %2777 = vmatpush2.msra.mxu0 %v1052
    %2778 = vmatprep.subr.mxu0 %v1045
    %2779 = vmatpush2.msra.mxu0 %v1044
    %2780 = vmatprep.subr.mxu0 %v1037
    %2781 = vmatpush2.msra.mxu0 %v1036
    %2782 = vmatprep.subr.mxu0 %v1029
    %2783 = vmatpush2.msra.mxu0 %v1028
    %2784 = vmatprep.subr.mxu0 %v1021
    %2785 = vmatpush2.msra.mxu0 %v1020
    %2786 = vmatprep.subr.mxu0 %v1013
    %2787 = vmatpush2.msra.mxu0 %v1012
    %2788 = vmatprep.subr.mxu0 %v1005
    %2789 = vmatpush2.msra.mxu0 %v1004
    %2790 = vmatprep.mubr.f32.mxu0 %v2725
    %2791 = vmatmul.mubr.f32.gmra.mxu0 %v2724
    %v2792 = vpop.f32.mrf.mxu0
    %v2793 = vadd.f32 %v1733, %v2792
    %v2794 = vpop.f32.mrf.mxu0
    %v2795 = vadd.f32 %v1737, %v2794
    %2796 = vdwg.mxu0
    %2797 = vmatprep.subr.mxu0 %v1253
    %2798 = vmatpush1.msra.mxu0 %v1252
    %2799 = vmatprep.subr.mxu0 %v1245
    %2800 = vmatpush1.msra.mxu0 %v1244
    %2801 = vmatprep.subr.mxu0 %v1237
    %2802 = vmatpush1.msra.mxu0 %v1236
    %2803 = vmatprep.subr.mxu0 %v1229
    %2804 = vmatpush1.msra.mxu0 %v1228
    %2805 = vmatprep.subr.mxu0 %v1221
    %2806 = vmatpush1.msra.mxu0 %v1220
    %2807 = vmatprep.subr.mxu0 %v1213
    %2808 = vmatpush1.msra.mxu0 %v1212
    %2809 = vmatprep.subr.mxu0 %v1205
    %2810 = vmatpush1.msra.mxu0 %v1204
    %2811 = vmatprep.subr.mxu0 %v1197
    %2812 = vmatpush1.msra.mxu0 %v1196
    %2813 = vmatprep.subr.mxu0 %v1189
    %2814 = vmatpush1.msra.mxu0 %v1188
    %2815 = vmatprep.subr.mxu0 %v1181
    %2816 = vmatpush1.msra.mxu0 %v1180
    %2817 = vmatprep.subr.mxu0 %v1173
    %2818 = vmatpush1.msra.mxu0 %v1172
    %2819 = vmatprep.subr.mxu0 %v1165
    %2820 = vmatpush1.msra.mxu0 %v1164
    %2821 = vmatprep.subr.mxu0 %v1157
    %2822 = vmatpush1.msra.mxu0 %v1156
    %2823 = vmatprep.subr.mxu0 %v1149
    %2824 = vmatpush1.msra.mxu0 %v1148
    %2825 = vmatprep.subr.mxu0 %v1141
    %2826 = vmatpush1.msra.mxu0 %v1140
    %2827 = vmatprep.subr.mxu0 %v1133
    %2828 = vmatpush1.msra.mxu0 %v1132
    %2829 = vmatprep.subr.mxu0 %v1381
    %2830 = vmatpush2.msra.mxu0 %v1380
    %2831 = vmatprep.subr.mxu0 %v1373
    %2832 = vmatpush2.msra.mxu0 %v1372
    %2833 = vmatprep.subr.mxu0 %v1365
    %2834 = vmatpush2.msra.mxu0 %v1364
    %2835 = vmatprep.subr.mxu0 %v1357
    %2836 = vmatpush2.msra.mxu0 %v1356
    %2837 = vmatprep.subr.mxu0 %v1349
    %2838 = vmatpush2.msra.mxu0 %v1348
    %2839 = vmatprep.subr.mxu0 %v1341
    %2840 = vmatpush2.msra.mxu0 %v1340
    %2841 = vmatprep.subr.mxu0 %v1333
    %2842 = vmatpush2.msra.mxu0 %v1332
    %2843 = vmatprep.subr.mxu0 %v1325
    %2844 = vmatpush2.msra.mxu0 %v1324
    %2845 = vmatprep.subr.mxu0 %v1317
    %2846 = vmatpush2.msra.mxu0 %v1316
    %2847 = vmatprep.subr.mxu0 %v1309
    %2848 = vmatpush2.msra.mxu0 %v1308
    %2849 = vmatprep.subr.mxu0 %v1301
    %2850 = vmatpush2.msra.mxu0 %v1300
    %2851 = vmatprep.subr.mxu0 %v1293
    %2852 = vmatpush2.msra.mxu0 %v1292
    %2853 = vmatprep.subr.mxu0 %v1285
    %2854 = vmatpush2.msra.mxu0 %v1284
    %2855 = vmatprep.subr.mxu0 %v1277
    %2856 = vmatpush2.msra.mxu0 %v1276
    %2857 = vmatprep.subr.mxu0 %v1269
    %2858 = vmatpush2.msra.mxu0 %v1268
    %2859 = vmatprep.subr.mxu0 %v1261
    %2860 = vmatpush2.msra.mxu0 %v1260
    %2861 = vmatprep.mubr.f32.mxu0 %v2385
    %2862 = vmatmul.mubr.f32.gmra.mxu0 %v2384
    %v2863 = vpop.f32.mrf.mxu0
    %v2864 = vadd.f32 %v2793, %v2863
    %v2865 = vpop.f32.mrf.mxu0
    %v2866 = vadd.f32 %v2795, %v2865
    %2867 = vdwg.mxu0
    %2868 = vmatprep.subr.mxu0 %v999
    %2869 = vmatpush1.msra.mxu0 %v998
    %2870 = vmatprep.subr.mxu0 %v991
    %2871 = vmatpush1.msra.mxu0 %v990
    %2872 = vmatprep.subr.mxu0 %v983
    %2873 = vmatpush1.msra.mxu0 %v982
    %2874 = vmatprep.subr.mxu0 %v975
    %2875 = vmatpush1.msra.mxu0 %v974
    %2876 = vmatprep.subr.mxu0 %v967
    %2877 = vmatpush1.msra.mxu0 %v966
    %2878 = vmatprep.subr.mxu0 %v959
    %2879 = vmatpush1.msra.mxu0 %v958
    %2880 = vmatprep.subr.mxu0 %v951
    %2881 = vmatpush1.msra.mxu0 %v950
    %2882 = vmatprep.subr.mxu0 %v943
    %2883 = vmatpush1.msra.mxu0 %v942
    %2884 = vmatprep.subr.mxu0 %v935
    %2885 = vmatpush1.msra.mxu0 %v934
    %2886 = vmatprep.subr.mxu0 %v927
    %2887 = vmatpush1.msra.mxu0 %v926
    %2888 = vmatprep.subr.mxu0 %v919
    %2889 = vmatpush1.msra.mxu0 %v918
    %2890 = vmatprep.subr.mxu0 %v911
    %2891 = vmatpush1.msra.mxu0 %v910
    %2892 = vmatprep.subr.mxu0 %v903
    %2893 = vmatpush1.msra.mxu0 %v902
    %2894 = vmatprep.subr.mxu0 %v895
    %2895 = vmatpush1.msra.mxu0 %v894
    %2896 = vmatprep.subr.mxu0 %v887
    %2897 = vmatpush1.msra.mxu0 %v886
    %2898 = vmatprep.subr.mxu0 %v879
    %2899 = vmatpush1.msra.mxu0 %v878
    %2900 = vmatprep.subr.mxu0 %v1127
    %2901 = vmatpush2.msra.mxu0 %v1126
    %2902 = vmatprep.subr.mxu0 %v1119
    %2903 = vmatpush2.msra.mxu0 %v1118
    %2904 = vmatprep.subr.mxu0 %v1111
    %2905 = vmatpush2.msra.mxu0 %v1110
    %2906 = vmatprep.subr.mxu0 %v1103
    %2907 = vmatpush2.msra.mxu0 %v1102
    %2908 = vmatprep.subr.mxu0 %v1095
    %2909 = vmatpush2.msra.mxu0 %v1094
    %2910 = vmatprep.subr.mxu0 %v1087
    %2911 = vmatpush2.msra.mxu0 %v1086
    %2912 = vmatprep.subr.mxu0 %v1079
    %2913 = vmatpush2.msra.mxu0 %v1078
    %2914 = vmatprep.subr.mxu0 %v1071
    %2915 = vmatpush2.msra.mxu0 %v1070
    %2916 = vmatprep.subr.mxu0 %v1063
    %2917 = vmatpush2.msra.mxu0 %v1062
    %2918 = vmatprep.subr.mxu0 %v1055
    %2919 = vmatpush2.msra.mxu0 %v1054
    %2920 = vmatprep.subr.mxu0 %v1047
    %2921 = vmatpush2.msra.mxu0 %v1046
    %2922 = vmatprep.subr.mxu0 %v1039
    %2923 = vmatpush2.msra.mxu0 %v1038
    %2924 = vmatprep.subr.mxu0 %v1031
    %2925 = vmatpush2.msra.mxu0 %v1030
    %2926 = vmatprep.subr.mxu0 %v1023
    %2927 = vmatpush2.msra.mxu0 %v1022
    %2928 = vmatprep.subr.mxu0 %v1015
    %2929 = vmatpush2.msra.mxu0 %v1014
    %2930 = vmatprep.subr.mxu0 %v1007
    %2931 = vmatpush2.msra.mxu0 %v1006
    %2932 = vmatprep.mubr.f32.mxu0 %v2725
    %2933 = vmatmul.mubr.f32.gmra.mxu0 %v2724
    %v2934 = vpop.f32.mrf.mxu0
    %v2935 = vadd.f32 %v1741, %v2934
    %v2936 = vpop.f32.mrf.mxu0
    %v2937 = vadd.f32 %v1745, %v2936
    %2938 = vdwg.mxu0
    %2939 = vmatprep.subr.mxu0 %v1255
    %2940 = vmatpush1.msra.mxu0 %v1254
    %2941 = vmatprep.subr.mxu0 %v1247
    %2942 = vmatpush1.msra.mxu0 %v1246
    %2943 = vmatprep.subr.mxu0 %v1239
    %2944 = vmatpush1.msra.mxu0 %v1238
    %2945 = vmatprep.subr.mxu0 %v1231
    %2946 = vmatpush1.msra.mxu0 %v1230
    %2947 = vmatprep.subr.mxu0 %v1223
    %2948 = vmatpush1.msra.mxu0 %v1222
    %2949 = vmatprep.subr.mxu0 %v1215
    %2950 = vmatpush1.msra.mxu0 %v1214
    %2951 = vmatprep.subr.mxu0 %v1207
    %2952 = vmatpush1.msra.mxu0 %v1206
    %2953 = vmatprep.subr.mxu0 %v1199
    %2954 = vmatpush1.msra.mxu0 %v1198
    %2955 = vmatprep.subr.mxu0 %v1191
    %2956 = vmatpush1.msra.mxu0 %v1190
    %2957 = vmatprep.subr.mxu0 %v1183
    %2958 = vmatpush1.msra.mxu0 %v1182
    %2959 = vmatprep.subr.mxu0 %v1175
    %2960 = vmatpush1.msra.mxu0 %v1174
    %2961 = vmatprep.subr.mxu0 %v1167
    %2962 = vmatpush1.msra.mxu0 %v1166
    %2963 = vmatprep.subr.mxu0 %v1159
    %2964 = vmatpush1.msra.mxu0 %v1158
    %2965 = vmatprep.subr.mxu0 %v1151
    %2966 = vmatpush1.msra.mxu0 %v1150
    %2967 = vmatprep.subr.mxu0 %v1143
    %2968 = vmatpush1.msra.mxu0 %v1142
    %2969 = vmatprep.subr.mxu0 %v1135
    %2970 = vmatpush1.msra.mxu0 %v1134
    %2971 = vmatprep.subr.mxu0 %v1383
    %2972 = vmatpush2.msra.mxu0 %v1382
    %2973 = vmatprep.subr.mxu0 %v1375
    %2974 = vmatpush2.msra.mxu0 %v1374
    %2975 = vmatprep.subr.mxu0 %v1367
    %2976 = vmatpush2.msra.mxu0 %v1366
    %2977 = vmatprep.subr.mxu0 %v1359
    %2978 = vmatpush2.msra.mxu0 %v1358
    %2979 = vmatprep.subr.mxu0 %v1351
    %2980 = vmatpush2.msra.mxu0 %v1350
    %2981 = vmatprep.subr.mxu0 %v1343
    %2982 = vmatpush2.msra.mxu0 %v1342
    %2983 = vmatprep.subr.mxu0 %v1335
    %2984 = vmatpush2.msra.mxu0 %v1334
    %2985 = vmatprep.subr.mxu0 %v1327
    %2986 = vmatpush2.msra.mxu0 %v1326
    %2987 = vmatprep.subr.mxu0 %v1319
    %2988 = vmatpush2.msra.mxu0 %v1318
    %2989 = vmatprep.subr.mxu0 %v1311
    %2990 = vmatpush2.msra.mxu0 %v1310
    %2991 = vmatprep.subr.mxu0 %v1303
    %2992 = vmatpush2.msra.mxu0 %v1302
    %2993 = vmatprep.subr.mxu0 %v1295
    %2994 = vmatpush2.msra.mxu0 %v1294
    %2995 = vmatprep.subr.mxu0 %v1287
    %2996 = vmatpush2.msra.mxu0 %v1286
    %2997 = vmatprep.subr.mxu0 %v1279
    %2998 = vmatpush2.msra.mxu0 %v1278
    %2999 = vmatprep.subr.mxu0 %v1271
    %3000 = vmatpush2.msra.mxu0 %v1270
    %3001 = vmatprep.subr.mxu0 %v1263
    %3002 = vmatpush2.msra.mxu0 %v1262
    %3003 = vmatprep.mubr.f32.mxu0 %v2385
    %3004 = vmatmul.mubr.f32.gmra.mxu0 %v2384
    %v3005 = vpop.f32.mrf.mxu0
    %v3006 = vadd.f32 %v2935, %v3005
    %v3007 = vpop.f32.mrf.mxu0
    %v3008 = vadd.f32 %v2937, %v3007
    %3009 = vdwg.mxu0
    %3010 = vmatprep.subr.mxu0 %v1001
    %3011 = vmatpush1.msra.mxu0 %v1000
    %3012 = vmatprep.subr.mxu0 %v993
    %3013 = vmatpush1.msra.mxu0 %v992
    %3014 = vmatprep.subr.mxu0 %v985
    %3015 = vmatpush1.msra.mxu0 %v984
    %3016 = vmatprep.subr.mxu0 %v977
    %3017 = vmatpush1.msra.mxu0 %v976
    %3018 = vmatprep.subr.mxu0 %v969
    %3019 = vmatpush1.msra.mxu0 %v968
    %3020 = vmatprep.subr.mxu0 %v961
    %3021 = vmatpush1.msra.mxu0 %v960
    %3022 = vmatprep.subr.mxu0 %v953
    %3023 = vmatpush1.msra.mxu0 %v952
    %3024 = vmatprep.subr.mxu0 %v945
    %3025 = vmatpush1.msra.mxu0 %v944
    %3026 = vmatprep.subr.mxu0 %v937
    %3027 = vmatpush1.msra.mxu0 %v936
    %3028 = vmatprep.subr.mxu0 %v929
    %3029 = vmatpush1.msra.mxu0 %v928
    %3030 = vmatprep.subr.mxu0 %v921
    %3031 = vmatpush1.msra.mxu0 %v920
    %3032 = vmatprep.subr.mxu0 %v913
    %3033 = vmatpush1.msra.mxu0 %v912
    %3034 = vmatprep.subr.mxu0 %v905
    %3035 = vmatpush1.msra.mxu0 %v904
    %3036 = vmatprep.subr.mxu0 %v897
    %3037 = vmatpush1.msra.mxu0 %v896
    %3038 = vmatprep.subr.mxu0 %v889
    %3039 = vmatpush1.msra.mxu0 %v888
    %3040 = vmatprep.subr.mxu0 %v881
    %3041 = vmatpush1.msra.mxu0 %v880
    %3042 = vmatprep.subr.mxu0 %v1129
    %3043 = vmatpush2.msra.mxu0 %v1128
    %3044 = vmatprep.subr.mxu0 %v1121
    %3045 = vmatpush2.msra.mxu0 %v1120
    %3046 = vmatprep.subr.mxu0 %v1113
    %3047 = vmatpush2.msra.mxu0 %v1112
    %3048 = vmatprep.subr.mxu0 %v1105
    %3049 = vmatpush2.msra.mxu0 %v1104
    %3050 = vmatprep.subr.mxu0 %v1097
    %3051 = vmatpush2.msra.mxu0 %v1096
    %3052 = vmatprep.subr.mxu0 %v1089
    %3053 = vmatpush2.msra.mxu0 %v1088
    %3054 = vmatprep.subr.mxu0 %v1081
    %3055 = vmatpush2.msra.mxu0 %v1080
    %3056 = vmatprep.subr.mxu0 %v1073
    %3057 = vmatpush2.msra.mxu0 %v1072
    %3058 = vmatprep.subr.mxu0 %v1065
    %3059 = vmatpush2.msra.mxu0 %v1064
    %3060 = vmatprep.subr.mxu0 %v1057
    %3061 = vmatpush2.msra.mxu0 %v1056
    %3062 = vmatprep.subr.mxu0 %v1049
    %3063 = vmatpush2.msra.mxu0 %v1048
    %3064 = vmatprep.subr.mxu0 %v1041
    %3065 = vmatpush2.msra.mxu0 %v1040
    %3066 = vmatprep.subr.mxu0 %v1033
    %3067 = vmatpush2.msra.mxu0 %v1032
    %3068 = vmatprep.subr.mxu0 %v1025
    %3069 = vmatpush2.msra.mxu0 %v1024
    %3070 = vmatprep.subr.mxu0 %v1017
    %3071 = vmatpush2.msra.mxu0 %v1016
    %3072 = vmatprep.subr.mxu0 %v1009
    %3073 = vmatpush2.msra.mxu0 %v1008
    %3074 = vmatprep.mubr.f32.mxu0 %v2725
    %3075 = vmatmul.mubr.f32.gmra.mxu0 %v2724
    %v3076 = vpop.f32.mrf.mxu0
    %v3077 = vadd.f32 %v1749, %v3076
    %v3078 = vpop.f32.mrf.mxu0
    %v3079 = vadd.f32 %v1753, %v3078
    %3080 = vdwg.mxu0
    %3081 = vmatprep.subr.mxu0 %v1257
    %3082 = vmatpush1.msra.mxu0 %v1256
    %3083 = vmatprep.subr.mxu0 %v1249
    %3084 = vmatpush1.msra.mxu0 %v1248
    %3085 = vmatprep.subr.mxu0 %v1241
    %3086 = vmatpush1.msra.mxu0 %v1240
    %3087 = vmatprep.subr.mxu0 %v1233
    %3088 = vmatpush1.msra.mxu0 %v1232
    %3089 = vmatprep.subr.mxu0 %v1225
    %3090 = vmatpush1.msra.mxu0 %v1224
    %3091 = vmatprep.subr.mxu0 %v1217
    %3092 = vmatpush1.msra.mxu0 %v1216
    %3093 = vmatprep.subr.mxu0 %v1209
    %3094 = vmatpush1.msra.mxu0 %v1208
    %3095 = vmatprep.subr.mxu0 %v1201
    %3096 = vmatpush1.msra.mxu0 %v1200
    %3097 = vmatprep.subr.mxu0 %v1193
    %3098 = vmatpush1.msra.mxu0 %v1192
    %3099 = vmatprep.subr.mxu0 %v1185
    %3100 = vmatpush1.msra.mxu0 %v1184
    %3101 = vmatprep.subr.mxu0 %v1177
    %3102 = vmatpush1.msra.mxu0 %v1176
    %3103 = vmatprep.subr.mxu0 %v1169
    %3104 = vmatpush1.msra.mxu0 %v1168
    %3105 = vmatprep.subr.mxu0 %v1161
    %3106 = vmatpush1.msra.mxu0 %v1160
    %3107 = vmatprep.subr.mxu0 %v1153
    %3108 = vmatpush1.msra.mxu0 %v1152
    %3109 = vmatprep.subr.mxu0 %v1145
    %3110 = vmatpush1.msra.mxu0 %v1144
    %3111 = vmatprep.subr.mxu0 %v1137
    %3112 = vmatpush1.msra.mxu0 %v1136
    %3113 = vmatprep.subr.mxu0 %v1385
    %3114 = vmatpush2.msra.mxu0 %v1384
    %3115 = vmatprep.subr.mxu0 %v1377
    %3116 = vmatpush2.msra.mxu0 %v1376
    %3117 = vmatprep.subr.mxu0 %v1369
    %3118 = vmatpush2.msra.mxu0 %v1368
    %3119 = vmatprep.subr.mxu0 %v1361
    %3120 = vmatpush2.msra.mxu0 %v1360
    %3121 = vmatprep.subr.mxu0 %v1353
    %3122 = vmatpush2.msra.mxu0 %v1352
    %3123 = vmatprep.subr.mxu0 %v1345
    %3124 = vmatpush2.msra.mxu0 %v1344
    %3125 = vmatprep.subr.mxu0 %v1337
    %3126 = vmatpush2.msra.mxu0 %v1336
    %3127 = vmatprep.subr.mxu0 %v1329
    %3128 = vmatpush2.msra.mxu0 %v1328
    %3129 = vmatprep.subr.mxu0 %v1321
    %3130 = vmatpush2.msra.mxu0 %v1320
    %3131 = vmatprep.subr.mxu0 %v1313
    %3132 = vmatpush2.msra.mxu0 %v1312
    %3133 = vmatprep.subr.mxu0 %v1305
    %3134 = vmatpush2.msra.mxu0 %v1304
    %3135 = vmatprep.subr.mxu0 %v1297
    %3136 = vmatpush2.msra.mxu0 %v1296
    %3137 = vmatprep.subr.mxu0 %v1289
    %3138 = vmatpush2.msra.mxu0 %v1288
    %3139 = vmatprep.subr.mxu0 %v1281
    %3140 = vmatpush2.msra.mxu0 %v1280
    %3141 = vmatprep.subr.mxu0 %v1273
    %3142 = vmatpush2.msra.mxu0 %v1272
    %3143 = vmatprep.subr.mxu0 %v1265
    %3144 = vmatpush2.msra.mxu0 %v1264
    %3145 = vmatprep.mubr.f32.mxu0 %v2385
    %3146 = vmatmul.mubr.f32.gmra.mxu0 %v2384
    %v3147 = vpop.f32.mrf.mxu0
    %v3148 = vadd.f32 %v3077, %v3147
    %v3149 = vpop.f32.mrf.mxu0
    %v3150 = vadd.f32 %v3079, %v3149
    %3151 = vdwg.mxu0
    %3152 = vmatprep.subr.mxu0 %v1003
    %3153 = vmatpush1.msra.mxu0 %v1002
    %3154 = vmatprep.subr.mxu0 %v995
    %3155 = vmatpush1.msra.mxu0 %v994
    %3156 = vmatprep.subr.mxu0 %v987
    %3157 = vmatpush1.msra.mxu0 %v986
    %3158 = vmatprep.subr.mxu0 %v979
    %3159 = vmatpush1.msra.mxu0 %v978
    %3160 = vmatprep.subr.mxu0 %v971
    %3161 = vmatpush1.msra.mxu0 %v970
    %3162 = vmatprep.subr.mxu0 %v963
    %3163 = vmatpush1.msra.mxu0 %v962
    %3164 = vmatprep.subr.mxu0 %v955
    %3165 = vmatpush1.msra.mxu0 %v954
    %3166 = vmatprep.subr.mxu0 %v947
    %3167 = vmatpush1.msra.mxu0 %v946
    %3168 = vmatprep.subr.mxu0 %v939
    %3169 = vmatpush1.msra.mxu0 %v938
    %3170 = vmatprep.subr.mxu0 %v931
    %3171 = vmatpush1.msra.mxu0 %v930
    %3172 = vmatprep.subr.mxu0 %v923
    %3173 = vmatpush1.msra.mxu0 %v922
    %3174 = vmatprep.subr.mxu0 %v915
    %3175 = vmatpush1.msra.mxu0 %v914
    %3176 = vmatprep.subr.mxu0 %v907
    %3177 = vmatpush1.msra.mxu0 %v906
    %3178 = vmatprep.subr.mxu0 %v899
    %3179 = vmatpush1.msra.mxu0 %v898
    %3180 = vmatprep.subr.mxu0 %v891
    %3181 = vmatpush1.msra.mxu0 %v890
    %3182 = vmatprep.subr.mxu0 %v883
    %3183 = vmatpush1.msra.mxu0 %v882
    %3184 = vmatprep.subr.mxu0 %v1131
    %3185 = vmatpush2.msra.mxu0 %v1130
    %3186 = vmatprep.subr.mxu0 %v1123
    %3187 = vmatpush2.msra.mxu0 %v1122
    %3188 = vmatprep.subr.mxu0 %v1115
    %3189 = vmatpush2.msra.mxu0 %v1114
    %3190 = vmatprep.subr.mxu0 %v1107
    %3191 = vmatpush2.msra.mxu0 %v1106
    %3192 = vmatprep.subr.mxu0 %v1099
    %3193 = vmatpush2.msra.mxu0 %v1098
    %3194 = vmatprep.subr.mxu0 %v1091
    %3195 = vmatpush2.msra.mxu0 %v1090
    %3196 = vmatprep.subr.mxu0 %v1083
    %3197 = vmatpush2.msra.mxu0 %v1082
    %3198 = vmatprep.subr.mxu0 %v1075
    %3199 = vmatpush2.msra.mxu0 %v1074
    %3200 = vmatprep.subr.mxu0 %v1067
    %3201 = vmatpush2.msra.mxu0 %v1066
    %3202 = vmatprep.subr.mxu0 %v1059
    %3203 = vmatpush2.msra.mxu0 %v1058
    %3204 = vmatprep.subr.mxu0 %v1051
    %3205 = vmatpush2.msra.mxu0 %v1050
    %3206 = vmatprep.subr.mxu0 %v1043
    %3207 = vmatpush2.msra.mxu0 %v1042
    %3208 = vmatprep.subr.mxu0 %v1035
    %3209 = vmatpush2.msra.mxu0 %v1034
    %3210 = vmatprep.subr.mxu0 %v1027
    %3211 = vmatpush2.msra.mxu0 %v1026
    %3212 = vmatprep.subr.mxu0 %v1019
    %3213 = vmatpush2.msra.mxu0 %v1018
    %3214 = vmatprep.subr.mxu0 %v1011
    %3215 = vmatpush2.msra.mxu0 %v1010
    %3216 = vmatprep.mubr.f32.mxu0 %v2725
    %3217 = vmatmul.mubr.f32.gmra.mxu0 %v2724
    %v3218 = vpop.f32.mrf.mxu0
    %v3219 = vadd.f32 %v1757, %v3218
    %v3220 = vpop.f32.mrf.mxu0
    %v3221 = vadd.f32 %v1761, %v3220
    %3222 = vdwg.mxu0
    %3223 = vmatprep.subr.mxu0 %v1259
    %3224 = vmatpush1.msra.mxu0 %v1258
    %3225 = vmatprep.subr.mxu0 %v1251
    %3226 = vmatpush1.msra.mxu0 %v1250
    %3227 = vmatprep.subr.mxu0 %v1243
    %3228 = vmatpush1.msra.mxu0 %v1242
    %3229 = vmatprep.subr.mxu0 %v1235
    %3230 = vmatpush1.msra.mxu0 %v1234
    %3231 = vmatprep.subr.mxu0 %v1227
    %3232 = vmatpush1.msra.mxu0 %v1226
    %3233 = vmatprep.subr.mxu0 %v1219
    %3234 = vmatpush1.msra.mxu0 %v1218
    %3235 = vmatprep.subr.mxu0 %v1211
    %3236 = vmatpush1.msra.mxu0 %v1210
    %3237 = vmatprep.subr.mxu0 %v1203
    %3238 = vmatpush1.msra.mxu0 %v1202
    %3239 = vmatprep.subr.mxu0 %v1195
    %3240 = vmatpush1.msra.mxu0 %v1194
    %3241 = vmatprep.subr.mxu0 %v1187
    %3242 = vmatpush1.msra.mxu0 %v1186
    %3243 = vmatprep.subr.mxu0 %v1179
    %3244 = vmatpush1.msra.mxu0 %v1178
    %3245 = vmatprep.subr.mxu0 %v1171
    %3246 = vmatpush1.msra.mxu0 %v1170
    %3247 = vmatprep.subr.mxu0 %v1163
    %3248 = vmatpush1.msra.mxu0 %v1162
    %3249 = vmatprep.subr.mxu0 %v1155
    %3250 = vmatpush1.msra.mxu0 %v1154
    %3251 = vmatprep.subr.mxu0 %v1147
    %3252 = vmatpush1.msra.mxu0 %v1146
    %3253 = vmatprep.subr.mxu0 %v1139
    %3254 = vmatpush1.msra.mxu0 %v1138
    %3255 = vmatprep.subr.mxu0 %v1387
    %3256 = vmatpush2.msra.mxu0 %v1386
    %3257 = vmatprep.subr.mxu0 %v1379
    %3258 = vmatpush2.msra.mxu0 %v1378
    %3259 = vmatprep.subr.mxu0 %v1371
    %3260 = vmatpush2.msra.mxu0 %v1370
    %3261 = vmatprep.subr.mxu0 %v1363
    %3262 = vmatpush2.msra.mxu0 %v1362
    %3263 = vmatprep.subr.mxu0 %v1355
    %3264 = vmatpush2.msra.mxu0 %v1354
    %3265 = vmatprep.subr.mxu0 %v1347
    %3266 = vmatpush2.msra.mxu0 %v1346
    %3267 = vmatprep.subr.mxu0 %v1339
    %3268 = vmatpush2.msra.mxu0 %v1338
    %3269 = vmatprep.subr.mxu0 %v1331
    %3270 = vmatpush2.msra.mxu0 %v1330
    %3271 = vmatprep.subr.mxu0 %v1323
    %3272 = vmatpush2.msra.mxu0 %v1322
    %3273 = vmatprep.subr.mxu0 %v1315
    %3274 = vmatpush2.msra.mxu0 %v1314
    %3275 = vmatprep.subr.mxu0 %v1307
    %3276 = vmatpush2.msra.mxu0 %v1306
    %3277 = vmatprep.subr.mxu0 %v1299
    %3278 = vmatpush2.msra.mxu0 %v1298
    %3279 = vmatprep.subr.mxu0 %v1291
    %3280 = vmatpush2.msra.mxu0 %v1290
    %3281 = vmatprep.subr.mxu0 %v1283
    %3282 = vmatpush2.msra.mxu0 %v1282
    %3283 = vmatprep.subr.mxu0 %v1275
    %3284 = vmatpush2.msra.mxu0 %v1274
    %3285 = vmatprep.subr.mxu0 %v1267
    %3286 = vmatpush2.msra.mxu0 %v1266
    %3287 = vmatprep.mubr.f32.mxu0 %v2385
    %3288 = vmatmul.mubr.f32.gmra.mxu0 %v2384
    %v3289 = vpop.f32.mrf.mxu0
    %v3290 = vadd.f32 %v3219, %v3289
    %v3291 = vpop.f32.mrf.mxu0
    %v3292 = vadd.f32 %v3221, %v3291
    %3293 = vdwg.mxu0
    %v3294 = vxor.u32 %v2864, 2147483648
    %v3295 = vxor.u32 %v2866, 2147483648
    %v3296 = vxor.u32 %v3006, 2147483648
    %v3297 = vxor.u32 %v3008, 2147483648
    %v3298 = vxor.u32 %v3148, 2147483648
    %v3299 = vxor.u32 %v3150, 2147483648
    %v3300 = vmul.f32 %v3294, 1.442695
    %v3301 = vpow.pop %v3300
    %v3302 = vmul.f32 %v3295, 1.442695
    %v3303 = vpow.pop %v3302
    %v3304 = vmul.f32 %v3296, 1.442695
    %v3305 = vpow.pop %v3304
    %v3306 = vmul.f32 %v3297, 1.442695
    %v3307 = vpow.pop %v3306
    %v3308 = vmul.f32 %v3298, 1.442695
    %v3309 = vpow.pop %v3308
    %v3310 = vmul.f32 %v3299, 1.442695
    %v3311 = vpow.pop %v3310
    %v3312 = vadd.f32 %v3301, 1.0
    %v3313 = vadd.f32 %v3303, 1.0
    %v3314 = vadd.f32 %v3305, 1.0
    %v3315 = vadd.f32 %v3307, 1.0
    %v3316 = vadd.f32 %v3309, 1.0
    %v3317 = vadd.f32 %v3311, 1.0
    %v3318 = vrcp.pop %v3312
    %v3319 = vmul.f32 1.0, %v3318
    %v3320 = vrcp.pop %v3313
    %v3321 = vmul.f32 1.0, %v3320
    %v3322 = vrcp.pop %v3314
    %v3323 = vmul.f32 1.0, %v3322
    %v3324 = vrcp.pop %v3315
    %v3325 = vmul.f32 1.0, %v3324
    %v3326 = vrcp.pop %v3316
    %v3327 = vmul.f32 1.0, %v3326
    %v3328 = vrcp.pop %v3317
    %v3329 = vmul.f32 1.0, %v3328
    %v3330 = vtanh.pop %v3290
    %v3331 = vtanh.pop %v3292
    %v3332 = vmul.f32 %v3323, %v2380
    %v3333 = vmul.f32 %v3325, %v2381
    %v3334 = vmul.f32 %v3319, %v3330
    %v3335 = vmul.f32 %v3321, %v3331
    %v3336 = vadd.f32 %v3332, %v3334
    %v3337 = vadd.f32 %v3333, %v3335
    %v3338 = vtanh.pop %v3336
    %v3339 = vtanh.pop %v3337
    %v3340 = vmul.f32 %v3327, %v3338
    %v3341 = vmul.f32 %v3329, %v3339
    %3342 = vmatprep.subr.mxu0 %v741
    %3343 = vmatpush1.msra.mxu0 %v740
    %3344 = vmatprep.subr.mxu0 %v733
    %3345 = vmatpush1.msra.mxu0 %v732
    %3346 = vmatprep.subr.mxu0 %v725
    %3347 = vmatpush1.msra.mxu0 %v724
    %3348 = vmatprep.subr.mxu0 %v717
    %3349 = vmatpush1.msra.mxu0 %v716
    %3350 = vmatprep.subr.mxu0 %v709
    %3351 = vmatpush1.msra.mxu0 %v708
    %3352 = vmatprep.subr.mxu0 %v701
    %3353 = vmatpush1.msra.mxu0 %v700
    %3354 = vmatprep.subr.mxu0 %v693
    %3355 = vmatpush1.msra.mxu0 %v692
    %3356 = vmatprep.subr.mxu0 %v685
    %3357 = vmatpush1.msra.mxu0 %v684
    %3358 = vmatprep.subr.mxu0 %v677
    %3359 = vmatpush1.msra.mxu0 %v676
    %3360 = vmatprep.subr.mxu0 %v669
    %3361 = vmatpush1.msra.mxu0 %v668
    %3362 = vmatprep.subr.mxu0 %v661
    %3363 = vmatpush1.msra.mxu0 %v660
    %3364 = vmatprep.subr.mxu0 %v653
    %3365 = vmatpush1.msra.mxu0 %v652
    %3366 = vmatprep.subr.mxu0 %v645
    %3367 = vmatpush1.msra.mxu0 %v644
    %3368 = vmatprep.subr.mxu0 %v637
    %3369 = vmatpush1.msra.mxu0 %v636
    %3370 = vmatprep.subr.mxu0 %v629
    %3371 = vmatpush1.msra.mxu0 %v628
    %3372 = vmatprep.subr.mxu0 %v621
    %3373 = vmatpush1.msra.mxu0 %v620
    %3374 = vmatprep.subr.mxu0 %v869
    %3375 = vmatpush2.msra.mxu0 %v868
    %3376 = vmatprep.subr.mxu0 %v861
    %3377 = vmatpush2.msra.mxu0 %v860
    %3378 = vmatprep.subr.mxu0 %v853
    %3379 = vmatpush2.msra.mxu0 %v852
    %3380 = vmatprep.subr.mxu0 %v845
    %3381 = vmatpush2.msra.mxu0 %v844
    %3382 = vmatprep.subr.mxu0 %v837
    %3383 = vmatpush2.msra.mxu0 %v836
    %3384 = vmatprep.subr.mxu0 %v829
    %3385 = vmatpush2.msra.mxu0 %v828
    %3386 = vmatprep.subr.mxu0 %v821
    %3387 = vmatpush2.msra.mxu0 %v820
    %3388 = vmatprep.subr.mxu0 %v813
    %3389 = vmatpush2.msra.mxu0 %v812
    %3390 = vmatprep.subr.mxu0 %v805
    %3391 = vmatpush2.msra.mxu0 %v804
    %3392 = vmatprep.subr.mxu0 %v797
    %3393 = vmatpush2.msra.mxu0 %v796
    %3394 = vmatprep.subr.mxu0 %v789
    %3395 = vmatpush2.msra.mxu0 %v788
    %3396 = vmatprep.subr.mxu0 %v781
    %3397 = vmatpush2.msra.mxu0 %v780
    %3398 = vmatprep.subr.mxu0 %v773
    %3399 = vmatpush2.msra.mxu0 %v772
    %3400 = vmatprep.subr.mxu0 %v765
    %3401 = vmatpush2.msra.mxu0 %v764
    %3402 = vmatprep.subr.mxu0 %v757
    %3403 = vmatpush2.msra.mxu0 %v756
    %3404 = vmatprep.subr.mxu0 %v749
    %3405 = vmatpush2.msra.mxu0 %v748
    %3406 = vmatprep.mubr.f32.mxu0 %v2725
    %3407 = vmatmul.mubr.f32.gmra.mxu0 %v2724
    %v3408 = vpop.f32.mrf.mxu0
    %v3409 = vadd.f32 0.0, %v3408
    %v3410 = vpop.f32.mrf.mxu0
    %v3411 = vadd.f32 0.0, %v3410
    %3412 = vdwg.mxu0
    %3413 = vmatprep.subr.mxu0 %v743
    %3414 = vmatpush1.msra.mxu0 %v742
    %3415 = vmatprep.subr.mxu0 %v735
    %3416 = vmatpush1.msra.mxu0 %v734
    %3417 = vmatprep.subr.mxu0 %v727
    %3418 = vmatpush1.msra.mxu0 %v726
    %3419 = vmatprep.subr.mxu0 %v719
    %3420 = vmatpush1.msra.mxu0 %v718
    %3421 = vmatprep.subr.mxu0 %v711
    %3422 = vmatpush1.msra.mxu0 %v710
    %3423 = vmatprep.subr.mxu0 %v703
    %3424 = vmatpush1.msra.mxu0 %v702
    %3425 = vmatprep.subr.mxu0 %v695
    %3426 = vmatpush1.msra.mxu0 %v694
    %3427 = vmatprep.subr.mxu0 %v687
    %3428 = vmatpush1.msra.mxu0 %v686
    %3429 = vmatprep.subr.mxu0 %v679
    %3430 = vmatpush1.msra.mxu0 %v678
    %3431 = vmatprep.subr.mxu0 %v671
    %3432 = vmatpush1.msra.mxu0 %v670
    %3433 = vmatprep.subr.mxu0 %v663
    %3434 = vmatpush1.msra.mxu0 %v662
    %3435 = vmatprep.subr.mxu0 %v655
    %3436 = vmatpush1.msra.mxu0 %v654
    %3437 = vmatprep.subr.mxu0 %v647
    %3438 = vmatpush1.msra.mxu0 %v646
    %3439 = vmatprep.subr.mxu0 %v639
    %3440 = vmatpush1.msra.mxu0 %v638
    %3441 = vmatprep.subr.mxu0 %v631
    %3442 = vmatpush1.msra.mxu0 %v630
    %3443 = vmatprep.subr.mxu0 %v623
    %3444 = vmatpush1.msra.mxu0 %v622
    %3445 = vmatprep.subr.mxu0 %v871
    %3446 = vmatpush2.msra.mxu0 %v870
    %3447 = vmatprep.subr.mxu0 %v863
    %3448 = vmatpush2.msra.mxu0 %v862
    %3449 = vmatprep.subr.mxu0 %v855
    %3450 = vmatpush2.msra.mxu0 %v854
    %3451 = vmatprep.subr.mxu0 %v847
    %3452 = vmatpush2.msra.mxu0 %v846
    %3453 = vmatprep.subr.mxu0 %v839
    %3454 = vmatpush2.msra.mxu0 %v838
    %3455 = vmatprep.subr.mxu0 %v831
    %3456 = vmatpush2.msra.mxu0 %v830
    %3457 = vmatprep.subr.mxu0 %v823
    %3458 = vmatpush2.msra.mxu0 %v822
    %3459 = vmatprep.subr.mxu0 %v815
    %3460 = vmatpush2.msra.mxu0 %v814
    %3461 = vmatprep.subr.mxu0 %v807
    %3462 = vmatpush2.msra.mxu0 %v806
    %3463 = vmatprep.subr.mxu0 %v799
    %3464 = vmatpush2.msra.mxu0 %v798
    %3465 = vmatprep.subr.mxu0 %v791
    %3466 = vmatpush2.msra.mxu0 %v790
    %3467 = vmatprep.subr.mxu0 %v783
    %3468 = vmatpush2.msra.mxu0 %v782
    %3469 = vmatprep.subr.mxu0 %v775
    %3470 = vmatpush2.msra.mxu0 %v774
    %3471 = vmatprep.subr.mxu0 %v767
    %3472 = vmatpush2.msra.mxu0 %v766
    %3473 = vmatprep.subr.mxu0 %v759
    %3474 = vmatpush2.msra.mxu0 %v758
    %3475 = vmatprep.subr.mxu0 %v751
    %3476 = vmatpush2.msra.mxu0 %v750
    %3477 = vmatprep.mubr.f32.mxu0 %v2725
    %3478 = vmatmul.mubr.f32.gmra.mxu0 %v2724
    %v3479 = vpop.f32.mrf.mxu0
    %v3480 = vadd.f32 0.0, %v3479
    %v3481 = vpop.f32.mrf.mxu0
    %v3482 = vadd.f32 0.0, %v3481
    %3483 = vdwg.mxu0
    %3484 = vmatprep.subr.mxu0 %v745
    %3485 = vmatpush1.msra.mxu0 %v744
    %3486 = vmatprep.subr.mxu0 %v737
    %3487 = vmatpush1.msra.mxu0 %v736
    %3488 = vmatprep.subr.mxu0 %v729
    %3489 = vmatpush1.msra.mxu0 %v728
    %3490 = vmatprep.subr.mxu0 %v721
    %3491 = vmatpush1.msra.mxu0 %v720
    %3492 = vmatprep.subr.mxu0 %v713
    %3493 = vmatpush1.msra.mxu0 %v712
    %3494 = vmatprep.subr.mxu0 %v705
    %3495 = vmatpush1.msra.mxu0 %v704
    %3496 = vmatprep.subr.mxu0 %v697
    %3497 = vmatpush1.msra.mxu0 %v696
    %3498 = vmatprep.subr.mxu0 %v689
    %3499 = vmatpush1.msra.mxu0 %v688
    %3500 = vmatprep.subr.mxu0 %v681
    %3501 = vmatpush1.msra.mxu0 %v680
    %3502 = vmatprep.subr.mxu0 %v673
    %3503 = vmatpush1.msra.mxu0 %v672
    %3504 = vmatprep.subr.mxu0 %v665
    %3505 = vmatpush1.msra.mxu0 %v664
    %3506 = vmatprep.subr.mxu0 %v657
    %3507 = vmatpush1.msra.mxu0 %v656
    %3508 = vmatprep.subr.mxu0 %v649
    %3509 = vmatpush1.msra.mxu0 %v648
    %3510 = vmatprep.subr.mxu0 %v641
    %3511 = vmatpush1.msra.mxu0 %v640
    %3512 = vmatprep.subr.mxu0 %v633
    %3513 = vmatpush1.msra.mxu0 %v632
    %3514 = vmatprep.subr.mxu0 %v625
    %3515 = vmatpush1.msra.mxu0 %v624
    %3516 = vmatprep.subr.mxu0 %v873
    %3517 = vmatpush2.msra.mxu0 %v872
    %3518 = vmatprep.subr.mxu0 %v865
    %3519 = vmatpush2.msra.mxu0 %v864
    %3520 = vmatprep.subr.mxu0 %v857
    %3521 = vmatpush2.msra.mxu0 %v856
    %3522 = vmatprep.subr.mxu0 %v849
    %3523 = vmatpush2.msra.mxu0 %v848
    %3524 = vmatprep.subr.mxu0 %v841
    %3525 = vmatpush2.msra.mxu0 %v840
    %3526 = vmatprep.subr.mxu0 %v833
    %3527 = vmatpush2.msra.mxu0 %v832
    %3528 = vmatprep.subr.mxu0 %v825
    %3529 = vmatpush2.msra.mxu0 %v824
    %3530 = vmatprep.subr.mxu0 %v817
    %3531 = vmatpush2.msra.mxu0 %v816
    %3532 = vmatprep.subr.mxu0 %v809
    %3533 = vmatpush2.msra.mxu0 %v808
    %3534 = vmatprep.subr.mxu0 %v801
    %3535 = vmatpush2.msra.mxu0 %v800
    %3536 = vmatprep.subr.mxu0 %v793
    %3537 = vmatpush2.msra.mxu0 %v792
    %3538 = vmatprep.subr.mxu0 %v785
    %3539 = vmatpush2.msra.mxu0 %v784
    %3540 = vmatprep.subr.mxu0 %v777
    %3541 = vmatpush2.msra.mxu0 %v776
    %3542 = vmatprep.subr.mxu0 %v769
    %3543 = vmatpush2.msra.mxu0 %v768
    %3544 = vmatprep.subr.mxu0 %v761
    %3545 = vmatpush2.msra.mxu0 %v760
    %3546 = vmatprep.subr.mxu0 %v753
    %3547 = vmatpush2.msra.mxu0 %v752
    %3548 = vmatprep.mubr.f32.mxu0 %v2725
    %3549 = vmatmul.mubr.f32.gmra.mxu0 %v2724
    %v3550 = vpop.f32.mrf.mxu0
    %v3551 = vadd.f32 0.0, %v3550
    %v3552 = vpop.f32.mrf.mxu0
    %v3553 = vadd.f32 0.0, %v3552
    %3554 = vdwg.mxu0
    %3555 = vmatprep.subr.mxu0 %v747
    %3556 = vmatpush1.msra.mxu0 %v746
    %3557 = vmatprep.subr.mxu0 %v739
    %3558 = vmatpush1.msra.mxu0 %v738
    %3559 = vmatprep.subr.mxu0 %v731
    %3560 = vmatpush1.msra.mxu0 %v730
    %3561 = vmatprep.subr.mxu0 %v723
    %3562 = vmatpush1.msra.mxu0 %v722
    %3563 = vmatprep.subr.mxu0 %v715
    %3564 = vmatpush1.msra.mxu0 %v714
    %3565 = vmatprep.subr.mxu0 %v707
    %3566 = vmatpush1.msra.mxu0 %v706
    %3567 = vmatprep.subr.mxu0 %v699
    %3568 = vmatpush1.msra.mxu0 %v698
    %3569 = vmatprep.subr.mxu0 %v691
    %3570 = vmatpush1.msra.mxu0 %v690
    %3571 = vmatprep.subr.mxu0 %v683
    %3572 = vmatpush1.msra.mxu0 %v682
    %3573 = vmatprep.subr.mxu0 %v675
    %3574 = vmatpush1.msra.mxu0 %v674
    %3575 = vmatprep.subr.mxu0 %v667
    %3576 = vmatpush1.msra.mxu0 %v666
    %3577 = vmatprep.subr.mxu0 %v659
    %3578 = vmatpush1.msra.mxu0 %v658
    %3579 = vmatprep.subr.mxu0 %v651
    %3580 = vmatpush1.msra.mxu0 %v650
    %3581 = vmatprep.subr.mxu0 %v643
    %3582 = vmatpush1.msra.mxu0 %v642
    %3583 = vmatprep.subr.mxu0 %v635
    %3584 = vmatpush1.msra.mxu0 %v634
    %3585 = vmatprep.subr.mxu0 %v627
    %3586 = vmatpush1.msra.mxu0 %v626
    %3587 = vmatprep.subr.mxu0 %v875
    %3588 = vmatpush2.msra.mxu0 %v874
    %3589 = vmatprep.subr.mxu0 %v867
    %3590 = vmatpush2.msra.mxu0 %v866
    %3591 = vmatprep.subr.mxu0 %v859
    %3592 = vmatpush2.msra.mxu0 %v858
    %3593 = vmatprep.subr.mxu0 %v851
    %3594 = vmatpush2.msra.mxu0 %v850
    %3595 = vmatprep.subr.mxu0 %v843
    %3596 = vmatpush2.msra.mxu0 %v842
    %3597 = vmatprep.subr.mxu0 %v835
    %3598 = vmatpush2.msra.mxu0 %v834
    %3599 = vmatprep.subr.mxu0 %v827
    %3600 = vmatpush2.msra.mxu0 %v826
    %3601 = vmatprep.subr.mxu0 %v819
    %3602 = vmatpush2.msra.mxu0 %v818
    %3603 = vmatprep.subr.mxu0 %v811
    %3604 = vmatpush2.msra.mxu0 %v810
    %3605 = vmatprep.subr.mxu0 %v803
    %3606 = vmatpush2.msra.mxu0 %v802
    %3607 = vmatprep.subr.mxu0 %v795
    %3608 = vmatpush2.msra.mxu0 %v794
    %3609 = vmatprep.subr.mxu0 %v787
    %3610 = vmatpush2.msra.mxu0 %v786
    %3611 = vmatprep.subr.mxu0 %v779
    %3612 = vmatpush2.msra.mxu0 %v778
    %3613 = vmatprep.subr.mxu0 %v771
    %3614 = vmatpush2.msra.mxu0 %v770
    %3615 = vmatprep.subr.mxu0 %v763
    %3616 = vmatpush2.msra.mxu0 %v762
    %3617 = vmatprep.subr.mxu0 %v755
    %3618 = vmatpush2.msra.mxu0 %v754
    %3619 = vmatprep.mubr.f32.mxu0 %v2725
    %3620 = vmatmul.mubr.f32.gmra.mxu0 %v2724
    %v3621 = vpop.f32.mrf.mxu0
    %v3622 = vadd.f32 0.0, %v3621
    %v3623 = vpop.f32.mrf.mxu0
    %v3624 = vadd.f32 0.0, %v3623
    %3625 = vdwg.mxu0
    %v3626 = vadd.f32 %v247, %v3409
    %v3627 = vadd.f32 %v249, %v3411
    %v3628 = vadd.f32 %v360, %v3480
    %v3629 = vadd.f32 %v362, %v3482
    %v3630 = vadd.f32 %v473, %v3551
    %v3631 = vadd.f32 %v475, %v3553
    %v3632 = vadd.f32 %v586, %v3622
    %v3633 = vadd.f32 %v588, %v3624
    %v3634 = vxor.u32 %v3626, 2147483648
    %v3635 = vxor.u32 %v3627, 2147483648
    %v3636 = vxor.u32 %v3628, 2147483648
    %v3637 = vxor.u32 %v3629, 2147483648
    %v3638 = vxor.u32 %v3630, 2147483648
    %v3639 = vxor.u32 %v3631, 2147483648
    %v3640 = vmul.f32 %v3634, 1.442695
    %v3641 = vpow.pop %v3640
    %v3642 = vmul.f32 %v3635, 1.442695
    %v3643 = vpow.pop %v3642
    %v3644 = vmul.f32 %v3636, 1.442695
    %v3645 = vpow.pop %v3644
    %v3646 = vmul.f32 %v3637, 1.442695
    %v3647 = vpow.pop %v3646
    %v3648 = vmul.f32 %v3638, 1.442695
    %v3649 = vpow.pop %v3648
    %v3650 = vmul.f32 %v3639, 1.442695
    %v3651 = vpow.pop %v3650
    %v3652 = vadd.f32 %v3641, 1.0
    %v3653 = vadd.f32 %v3643, 1.0
    %v3654 = vadd.f32 %v3645, 1.0
    %v3655 = vadd.f32 %v3647, 1.0
    %v3656 = vadd.f32 %v3649, 1.0
    %v3657 = vadd.f32 %v3651, 1.0
    %v3658 = vrcp.pop %v3652
    %v3659 = vmul.f32 1.0, %v3658
    %v3660 = vrcp.pop %v3653
    %v3661 = vmul.f32 1.0, %v3660
    %v3662 = vrcp.pop %v3654
    %v3663 = vmul.f32 1.0, %v3662
    %v3664 = vrcp.pop %v3655
    %v3665 = vmul.f32 1.0, %v3664
    %v3666 = vrcp.pop %v3656
    %v3667 = vmul.f32 1.0, %v3666
    %v3668 = vrcp.pop %v3657
    %v3669 = vmul.f32 1.0, %v3668
    %v3670 = vtanh.pop %v3632
    %v3671 = vtanh.pop %v3633
    %v3672 = vmul.f32 %v3663, %v2720
    %v3673 = vmul.f32 %v3665, %v2721
    %v3674 = vmul.f32 %v3659, %v3670
    %v3675 = vmul.f32 %v3661, %v3671
    %v3676 = vadd.f32 %v3672, %v3674
    %v3677 = vadd.f32 %v3673, %v3675
    %v3678 = vtanh.pop %v3676
    %v3679 = vtanh.pop %v3677
    %v3680 = vmul.f32 %v3667, %v3678
    %v3681 = vmul.f32 %v3669, %v3679
    %3682 = vmatprep.subr.mxu0 %v997
    %3683 = vmatpush1.msra.mxu0 %v996
    %3684 = vmatprep.subr.mxu0 %v989
    %3685 = vmatpush1.msra.mxu0 %v988
    %3686 = vmatprep.subr.mxu0 %v981
    %3687 = vmatpush1.msra.mxu0 %v980
    %3688 = vmatprep.subr.mxu0 %v973
    %3689 = vmatpush1.msra.mxu0 %v972
    %3690 = vmatprep.subr.mxu0 %v965
    %3691 = vmatpush1.msra.mxu0 %v964
    %3692 = vmatprep.subr.mxu0 %v957
    %3693 = vmatpush1.msra.mxu0 %v956
    %3694 = vmatprep.subr.mxu0 %v949
    %3695 = vmatpush1.msra.mxu0 %v948
    %3696 = vmatprep.subr.mxu0 %v941
    %3697 = vmatpush1.msra.mxu0 %v940
    %3698 = vmatprep.subr.mxu0 %v933
    %3699 = vmatpush1.msra.mxu0 %v932
    %3700 = vmatprep.subr.mxu0 %v925
    %3701 = vmatpush1.msra.mxu0 %v924
    %3702 = vmatprep.subr.mxu0 %v917
    %3703 = vmatpush1.msra.mxu0 %v916
    %3704 = vmatprep.subr.mxu0 %v909
    %3705 = vmatpush1.msra.mxu0 %v908
    %3706 = vmatprep.subr.mxu0 %v901
    %3707 = vmatpush1.msra.mxu0 %v900
    %3708 = vmatprep.subr.mxu0 %v893
    %3709 = vmatpush1.msra.mxu0 %v892
    %3710 = vmatprep.subr.mxu0 %v885
    %3711 = vmatpush1.msra.mxu0 %v884
    %3712 = vmatprep.subr.mxu0 %v877
    %3713 = vmatpush1.msra.mxu0 %v876
    %3714 = vmatprep.subr.mxu0 %v1125
    %3715 = vmatpush2.msra.mxu0 %v1124
    %3716 = vmatprep.subr.mxu0 %v1117
    %3717 = vmatpush2.msra.mxu0 %v1116
    %3718 = vmatprep.subr.mxu0 %v1109
    %3719 = vmatpush2.msra.mxu0 %v1108
    %3720 = vmatprep.subr.mxu0 %v1101
    %3721 = vmatpush2.msra.mxu0 %v1100
    %3722 = vmatprep.subr.mxu0 %v1093
    %3723 = vmatpush2.msra.mxu0 %v1092
    %3724 = vmatprep.subr.mxu0 %v1085
    %3725 = vmatpush2.msra.mxu0 %v1084
    %3726 = vmatprep.subr.mxu0 %v1077
    %3727 = vmatpush2.msra.mxu0 %v1076
    %3728 = vmatprep.subr.mxu0 %v1069
    %3729 = vmatpush2.msra.mxu0 %v1068
    %3730 = vmatprep.subr.mxu0 %v1061
    %3731 = vmatpush2.msra.mxu0 %v1060
    %3732 = vmatprep.subr.mxu0 %v1053
    %3733 = vmatpush2.msra.mxu0 %v1052
    %3734 = vmatprep.subr.mxu0 %v1045
    %3735 = vmatpush2.msra.mxu0 %v1044
    %3736 = vmatprep.subr.mxu0 %v1037
    %3737 = vmatpush2.msra.mxu0 %v1036
    %3738 = vmatprep.subr.mxu0 %v1029
    %3739 = vmatpush2.msra.mxu0 %v1028
    %3740 = vmatprep.subr.mxu0 %v1021
    %3741 = vmatpush2.msra.mxu0 %v1020
    %3742 = vmatprep.subr.mxu0 %v1013
    %3743 = vmatpush2.msra.mxu0 %v1012
    %3744 = vmatprep.subr.mxu0 %v1005
    %3745 = vmatpush2.msra.mxu0 %v1004
    %3746 = vmatprep.mubr.f32.mxu0 %v3681
    %3747 = vmatmul.mubr.f32.gmra.mxu0 %v3680
    %v3748 = vpop.f32.mrf.mxu0
    %v3749 = vadd.f32 %v1733, %v3748
    %v3750 = vpop.f32.mrf.mxu0
    %v3751 = vadd.f32 %v1737, %v3750
    %3752 = vdwg.mxu0
    %3753 = vmatprep.subr.mxu0 %v1253
    %3754 = vmatpush1.msra.mxu0 %v1252
    %3755 = vmatprep.subr.mxu0 %v1245
    %3756 = vmatpush1.msra.mxu0 %v1244
    %3757 = vmatprep.subr.mxu0 %v1237
    %3758 = vmatpush1.msra.mxu0 %v1236
    %3759 = vmatprep.subr.mxu0 %v1229
    %3760 = vmatpush1.msra.mxu0 %v1228
    %3761 = vmatprep.subr.mxu0 %v1221
    %3762 = vmatpush1.msra.mxu0 %v1220
    %3763 = vmatprep.subr.mxu0 %v1213
    %3764 = vmatpush1.msra.mxu0 %v1212
    %3765 = vmatprep.subr.mxu0 %v1205
    %3766 = vmatpush1.msra.mxu0 %v1204
    %3767 = vmatprep.subr.mxu0 %v1197
    %3768 = vmatpush1.msra.mxu0 %v1196
    %3769 = vmatprep.subr.mxu0 %v1189
    %3770 = vmatpush1.msra.mxu0 %v1188
    %3771 = vmatprep.subr.mxu0 %v1181
    %3772 = vmatpush1.msra.mxu0 %v1180
    %3773 = vmatprep.subr.mxu0 %v1173
    %3774 = vmatpush1.msra.mxu0 %v1172
    %3775 = vmatprep.subr.mxu0 %v1165
    %3776 = vmatpush1.msra.mxu0 %v1164
    %3777 = vmatprep.subr.mxu0 %v1157
    %3778 = vmatpush1.msra.mxu0 %v1156
    %3779 = vmatprep.subr.mxu0 %v1149
    %3780 = vmatpush1.msra.mxu0 %v1148
    %3781 = vmatprep.subr.mxu0 %v1141
    %3782 = vmatpush1.msra.mxu0 %v1140
    %3783 = vmatprep.subr.mxu0 %v1133
    %3784 = vmatpush1.msra.mxu0 %v1132
    %3785 = vmatprep.subr.mxu0 %v1381
    %3786 = vmatpush2.msra.mxu0 %v1380
    %3787 = vmatprep.subr.mxu0 %v1373
    %3788 = vmatpush2.msra.mxu0 %v1372
    %3789 = vmatprep.subr.mxu0 %v1365
    %3790 = vmatpush2.msra.mxu0 %v1364
    %3791 = vmatprep.subr.mxu0 %v1357
    %3792 = vmatpush2.msra.mxu0 %v1356
    %3793 = vmatprep.subr.mxu0 %v1349
    %3794 = vmatpush2.msra.mxu0 %v1348
    %3795 = vmatprep.subr.mxu0 %v1341
    %3796 = vmatpush2.msra.mxu0 %v1340
    %3797 = vmatprep.subr.mxu0 %v1333
    %3798 = vmatpush2.msra.mxu0 %v1332
    %3799 = vmatprep.subr.mxu0 %v1325
    %3800 = vmatpush2.msra.mxu0 %v1324
    %3801 = vmatprep.subr.mxu0 %v1317
    %3802 = vmatpush2.msra.mxu0 %v1316
    %3803 = vmatprep.subr.mxu0 %v1309
    %3804 = vmatpush2.msra.mxu0 %v1308
    %3805 = vmatprep.subr.mxu0 %v1301
    %3806 = vmatpush2.msra.mxu0 %v1300
    %3807 = vmatprep.subr.mxu0 %v1293
    %3808 = vmatpush2.msra.mxu0 %v1292
    %3809 = vmatprep.subr.mxu0 %v1285
    %3810 = vmatpush2.msra.mxu0 %v1284
    %3811 = vmatprep.subr.mxu0 %v1277
    %3812 = vmatpush2.msra.mxu0 %v1276
    %3813 = vmatprep.subr.mxu0 %v1269
    %3814 = vmatpush2.msra.mxu0 %v1268
    %3815 = vmatprep.subr.mxu0 %v1261
    %3816 = vmatpush2.msra.mxu0 %v1260
    %3817 = vmatprep.mubr.f32.mxu0 %v3341
    %3818 = vmatmul.mubr.f32.gmra.mxu0 %v3340
    %v3819 = vpop.f32.mrf.mxu0
    %v3820 = vadd.f32 %v3749, %v3819
    %v3821 = vpop.f32.mrf.mxu0
    %v3822 = vadd.f32 %v3751, %v3821
    %3823 = vdwg.mxu0
    %3824 = vmatprep.subr.mxu0 %v999
    %3825 = vmatpush1.msra.mxu0 %v998
    %3826 = vmatprep.subr.mxu0 %v991
    %3827 = vmatpush1.msra.mxu0 %v990
    %3828 = vmatprep.subr.mxu0 %v983
    %3829 = vmatpush1.msra.mxu0 %v982
    %3830 = vmatprep.subr.mxu0 %v975
    %3831 = vmatpush1.msra.mxu0 %v974
    %3832 = vmatprep.subr.mxu0 %v967
    %3833 = vmatpush1.msra.mxu0 %v966
    %3834 = vmatprep.subr.mxu0 %v959
    %3835 = vmatpush1.msra.mxu0 %v958
    %3836 = vmatprep.subr.mxu0 %v951
    %3837 = vmatpush1.msra.mxu0 %v950
    %3838 = vmatprep.subr.mxu0 %v943
    %3839 = vmatpush1.msra.mxu0 %v942
    %3840 = vmatprep.subr.mxu0 %v935
    %3841 = vmatpush1.msra.mxu0 %v934
    %3842 = vmatprep.subr.mxu0 %v927
    %3843 = vmatpush1.msra.mxu0 %v926
    %3844 = vmatprep.subr.mxu0 %v919
    %3845 = vmatpush1.msra.mxu0 %v918
    %3846 = vmatprep.subr.mxu0 %v911
    %3847 = vmatpush1.msra.mxu0 %v910
    %3848 = vmatprep.subr.mxu0 %v903
    %3849 = vmatpush1.msra.mxu0 %v902
    %3850 = vmatprep.subr.mxu0 %v895
    %3851 = vmatpush1.msra.mxu0 %v894
    %3852 = vmatprep.subr.mxu0 %v887
    %3853 = vmatpush1.msra.mxu0 %v886
    %3854 = vmatprep.subr.mxu0 %v879
    %3855 = vmatpush1.msra.mxu0 %v878
    %3856 = vmatprep.subr.mxu0 %v1127
    %3857 = vmatpush2.msra.mxu0 %v1126
    %3858 = vmatprep.subr.mxu0 %v1119
    %3859 = vmatpush2.msra.mxu0 %v1118
    %3860 = vmatprep.subr.mxu0 %v1111
    %3861 = vmatpush2.msra.mxu0 %v1110
    %3862 = vmatprep.subr.mxu0 %v1103
    %3863 = vmatpush2.msra.mxu0 %v1102
    %3864 = vmatprep.subr.mxu0 %v1095
    %3865 = vmatpush2.msra.mxu0 %v1094
    %3866 = vmatprep.subr.mxu0 %v1087
    %3867 = vmatpush2.msra.mxu0 %v1086
    %3868 = vmatprep.subr.mxu0 %v1079
    %3869 = vmatpush2.msra.mxu0 %v1078
    %3870 = vmatprep.subr.mxu0 %v1071
    %3871 = vmatpush2.msra.mxu0 %v1070
    %3872 = vmatprep.subr.mxu0 %v1063
    %3873 = vmatpush2.msra.mxu0 %v1062
    %3874 = vmatprep.subr.mxu0 %v1055
    %3875 = vmatpush2.msra.mxu0 %v1054
    %3876 = vmatprep.subr.mxu0 %v1047
    %3877 = vmatpush2.msra.mxu0 %v1046
    %3878 = vmatprep.subr.mxu0 %v1039
    %3879 = vmatpush2.msra.mxu0 %v1038
    %3880 = vmatprep.subr.mxu0 %v1031
    %3881 = vmatpush2.msra.mxu0 %v1030
    %3882 = vmatprep.subr.mxu0 %v1023
    %3883 = vmatpush2.msra.mxu0 %v1022
    %3884 = vmatprep.subr.mxu0 %v1015
    %3885 = vmatpush2.msra.mxu0 %v1014
    %3886 = vmatprep.subr.mxu0 %v1007
    %3887 = vmatpush2.msra.mxu0 %v1006
    %3888 = vmatprep.mubr.f32.mxu0 %v3681
    %3889 = vmatmul.mubr.f32.gmra.mxu0 %v3680
    %v3890 = vpop.f32.mrf.mxu0
    %v3891 = vadd.f32 %v1741, %v3890
    %v3892 = vpop.f32.mrf.mxu0
    %v3893 = vadd.f32 %v1745, %v3892
    %3894 = vdwg.mxu0
    %3895 = vmatprep.subr.mxu0 %v1255
    %3896 = vmatpush1.msra.mxu0 %v1254
    %3897 = vmatprep.subr.mxu0 %v1247
    %3898 = vmatpush1.msra.mxu0 %v1246
    %3899 = vmatprep.subr.mxu0 %v1239
    %3900 = vmatpush1.msra.mxu0 %v1238
    %3901 = vmatprep.subr.mxu0 %v1231
    %3902 = vmatpush1.msra.mxu0 %v1230
    %3903 = vmatprep.subr.mxu0 %v1223
    %3904 = vmatpush1.msra.mxu0 %v1222
    %3905 = vmatprep.subr.mxu0 %v1215
    %3906 = vmatpush1.msra.mxu0 %v1214
    %3907 = vmatprep.subr.mxu0 %v1207
    %3908 = vmatpush1.msra.mxu0 %v1206
    %3909 = vmatprep.subr.mxu0 %v1199
    %3910 = vmatpush1.msra.mxu0 %v1198
    %3911 = vmatprep.subr.mxu0 %v1191
    %3912 = vmatpush1.msra.mxu0 %v1190
    %3913 = vmatprep.subr.mxu0 %v1183
    %3914 = vmatpush1.msra.mxu0 %v1182
    %3915 = vmatprep.subr.mxu0 %v1175
    %3916 = vmatpush1.msra.mxu0 %v1174
    %3917 = vmatprep.subr.mxu0 %v1167
    %3918 = vmatpush1.msra.mxu0 %v1166
    %3919 = vmatprep.subr.mxu0 %v1159
    %3920 = vmatpush1.msra.mxu0 %v1158
    %3921 = vmatprep.subr.mxu0 %v1151
    %3922 = vmatpush1.msra.mxu0 %v1150
    %3923 = vmatprep.subr.mxu0 %v1143
    %3924 = vmatpush1.msra.mxu0 %v1142
    %3925 = vmatprep.subr.mxu0 %v1135
    %3926 = vmatpush1.msra.mxu0 %v1134
    %3927 = vmatprep.subr.mxu0 %v1383
    %3928 = vmatpush2.msra.mxu0 %v1382
    %3929 = vmatprep.subr.mxu0 %v1375
    %3930 = vmatpush2.msra.mxu0 %v1374
    %3931 = vmatprep.subr.mxu0 %v1367
    %3932 = vmatpush2.msra.mxu0 %v1366
    %3933 = vmatprep.subr.mxu0 %v1359
    %3934 = vmatpush2.msra.mxu0 %v1358
    %3935 = vmatprep.subr.mxu0 %v1351
    %3936 = vmatpush2.msra.mxu0 %v1350
    %3937 = vmatprep.subr.mxu0 %v1343
    %3938 = vmatpush2.msra.mxu0 %v1342
    %3939 = vmatprep.subr.mxu0 %v1335
    %3940 = vmatpush2.msra.mxu0 %v1334
    %3941 = vmatprep.subr.mxu0 %v1327
    %3942 = vmatpush2.msra.mxu0 %v1326
    %3943 = vmatprep.subr.mxu0 %v1319
    %3944 = vmatpush2.msra.mxu0 %v1318
    %3945 = vmatprep.subr.mxu0 %v1311
    %3946 = vmatpush2.msra.mxu0 %v1310
    %3947 = vmatprep.subr.mxu0 %v1303
    %3948 = vmatpush2.msra.mxu0 %v1302
    %3949 = vmatprep.subr.mxu0 %v1295
    %3950 = vmatpush2.msra.mxu0 %v1294
    %3951 = vmatprep.subr.mxu0 %v1287
    %3952 = vmatpush2.msra.mxu0 %v1286
    %3953 = vmatprep.subr.mxu0 %v1279
    %3954 = vmatpush2.msra.mxu0 %v1278
    %3955 = vmatprep.subr.mxu0 %v1271
    %3956 = vmatpush2.msra.mxu0 %v1270
    %3957 = vmatprep.subr.mxu0 %v1263
    %3958 = vmatpush2.msra.mxu0 %v1262
    %3959 = vmatprep.mubr.f32.mxu0 %v3341
    %3960 = vmatmul.mubr.f32.gmra.mxu0 %v3340
    %v3961 = vpop.f32.mrf.mxu0
    %v3962 = vadd.f32 %v3891, %v3961
    %v3963 = vpop.f32.mrf.mxu0
    %v3964 = vadd.f32 %v3893, %v3963
    %3965 = vdwg.mxu0
    %3966 = vmatprep.subr.mxu0 %v1001
    %3967 = vmatpush1.msra.mxu0 %v1000
    %3968 = vmatprep.subr.mxu0 %v993
    %3969 = vmatpush1.msra.mxu0 %v992
    %3970 = vmatprep.subr.mxu0 %v985
    %3971 = vmatpush1.msra.mxu0 %v984
    %3972 = vmatprep.subr.mxu0 %v977
    %3973 = vmatpush1.msra.mxu0 %v976
    %3974 = vmatprep.subr.mxu0 %v969
    %3975 = vmatpush1.msra.mxu0 %v968
    %3976 = vmatprep.subr.mxu0 %v961
    %3977 = vmatpush1.msra.mxu0 %v960
    %3978 = vmatprep.subr.mxu0 %v953
    %3979 = vmatpush1.msra.mxu0 %v952
    %3980 = vmatprep.subr.mxu0 %v945
    %3981 = vmatpush1.msra.mxu0 %v944
    %3982 = vmatprep.subr.mxu0 %v937
    %3983 = vmatpush1.msra.mxu0 %v936
    %3984 = vmatprep.subr.mxu0 %v929
    %3985 = vmatpush1.msra.mxu0 %v928
    %3986 = vmatprep.subr.mxu0 %v921
    %3987 = vmatpush1.msra.mxu0 %v920
    %3988 = vmatprep.subr.mxu0 %v913
    %3989 = vmatpush1.msra.mxu0 %v912
    %3990 = vmatprep.subr.mxu0 %v905
    %3991 = vmatpush1.msra.mxu0 %v904
    %3992 = vmatprep.subr.mxu0 %v897
    %3993 = vmatpush1.msra.mxu0 %v896
    %3994 = vmatprep.subr.mxu0 %v889
    %3995 = vmatpush1.msra.mxu0 %v888
    %3996 = vmatprep.subr.mxu0 %v881
    %3997 = vmatpush1.msra.mxu0 %v880
    %3998 = vmatprep.subr.mxu0 %v1129
    %3999 = vmatpush2.msra.mxu0 %v1128
    %4000 = vmatprep.subr.mxu0 %v1121
    %4001 = vmatpush2.msra.mxu0 %v1120
    %4002 = vmatprep.subr.mxu0 %v1113
    %4003 = vmatpush2.msra.mxu0 %v1112
    %4004 = vmatprep.subr.mxu0 %v1105
    %4005 = vmatpush2.msra.mxu0 %v1104
    %4006 = vmatprep.subr.mxu0 %v1097
    %4007 = vmatpush2.msra.mxu0 %v1096
    %4008 = vmatprep.subr.mxu0 %v1089
    %4009 = vmatpush2.msra.mxu0 %v1088
    %4010 = vmatprep.subr.mxu0 %v1081
    %4011 = vmatpush2.msra.mxu0 %v1080
    %4012 = vmatprep.subr.mxu0 %v1073
    %4013 = vmatpush2.msra.mxu0 %v1072
    %4014 = vmatprep.subr.mxu0 %v1065
    %4015 = vmatpush2.msra.mxu0 %v1064
    %4016 = vmatprep.subr.mxu0 %v1057
    %4017 = vmatpush2.msra.mxu0 %v1056
    %4018 = vmatprep.subr.mxu0 %v1049
    %4019 = vmatpush2.msra.mxu0 %v1048
    %4020 = vmatprep.subr.mxu0 %v1041
    %4021 = vmatpush2.msra.mxu0 %v1040
    %4022 = vmatprep.subr.mxu0 %v1033
    %4023 = vmatpush2.msra.mxu0 %v1032
    %4024 = vmatprep.subr.mxu0 %v1025
    %4025 = vmatpush2.msra.mxu0 %v1024
    %4026 = vmatprep.subr.mxu0 %v1017
    %4027 = vmatpush2.msra.mxu0 %v1016
    %4028 = vmatprep.subr.mxu0 %v1009
    %4029 = vmatpush2.msra.mxu0 %v1008
    %4030 = vmatprep.mubr.f32.mxu0 %v3681
    %4031 = vmatmul.mubr.f32.gmra.mxu0 %v3680
    %v4032 = vpop.f32.mrf.mxu0
    %v4033 = vadd.f32 %v1749, %v4032
    %v4034 = vpop.f32.mrf.mxu0
    %v4035 = vadd.f32 %v1753, %v4034
    %4036 = vdwg.mxu0
    %4037 = vmatprep.subr.mxu0 %v1257
    %4038 = vmatpush1.msra.mxu0 %v1256
    %4039 = vmatprep.subr.mxu0 %v1249
    %4040 = vmatpush1.msra.mxu0 %v1248
    %4041 = vmatprep.subr.mxu0 %v1241
    %4042 = vmatpush1.msra.mxu0 %v1240
    %4043 = vmatprep.subr.mxu0 %v1233
    %4044 = vmatpush1.msra.mxu0 %v1232
    %4045 = vmatprep.subr.mxu0 %v1225
    %4046 = vmatpush1.msra.mxu0 %v1224
    %4047 = vmatprep.subr.mxu0 %v1217
    %4048 = vmatpush1.msra.mxu0 %v1216
    %4049 = vmatprep.subr.mxu0 %v1209
    %4050 = vmatpush1.msra.mxu0 %v1208
    %4051 = vmatprep.subr.mxu0 %v1201
    %4052 = vmatpush1.msra.mxu0 %v1200
    %4053 = vmatprep.subr.mxu0 %v1193
    %4054 = vmatpush1.msra.mxu0 %v1192
    %4055 = vmatprep.subr.mxu0 %v1185
    %4056 = vmatpush1.msra.mxu0 %v1184
    %4057 = vmatprep.subr.mxu0 %v1177
    %4058 = vmatpush1.msra.mxu0 %v1176
    %4059 = vmatprep.subr.mxu0 %v1169
    %4060 = vmatpush1.msra.mxu0 %v1168
    %4061 = vmatprep.subr.mxu0 %v1161
    %4062 = vmatpush1.msra.mxu0 %v1160
    %4063 = vmatprep.subr.mxu0 %v1153
    %4064 = vmatpush1.msra.mxu0 %v1152
    %4065 = vmatprep.subr.mxu0 %v1145
    %4066 = vmatpush1.msra.mxu0 %v1144
    %4067 = vmatprep.subr.mxu0 %v1137
    %4068 = vmatpush1.msra.mxu0 %v1136
    %4069 = vmatprep.subr.mxu0 %v1385
    %4070 = vmatpush2.msra.mxu0 %v1384
    %4071 = vmatprep.subr.mxu0 %v1377
    %4072 = vmatpush2.msra.mxu0 %v1376
    %4073 = vmatprep.subr.mxu0 %v1369
    %4074 = vmatpush2.msra.mxu0 %v1368
    %4075 = vmatprep.subr.mxu0 %v1361
    %4076 = vmatpush2.msra.mxu0 %v1360
    %4077 = vmatprep.subr.mxu0 %v1353
    %4078 = vmatpush2.msra.mxu0 %v1352
    %4079 = vmatprep.subr.mxu0 %v1345
    %4080 = vmatpush2.msra.mxu0 %v1344
    %4081 = vmatprep.subr.mxu0 %v1337
    %4082 = vmatpush2.msra.mxu0 %v1336
    %4083 = vmatprep.subr.mxu0 %v1329
    %4084 = vmatpush2.msra.mxu0 %v1328
    %4085 = vmatprep.subr.mxu0 %v1321
    %4086 = vmatpush2.msra.mxu0 %v1320
    %4087 = vmatprep.subr.mxu0 %v1313
    %4088 = vmatpush2.msra.mxu0 %v1312
    %4089 = vmatprep.subr.mxu0 %v1305
    %4090 = vmatpush2.msra.mxu0 %v1304
    %4091 = vmatprep.subr.mxu0 %v1297
    %4092 = vmatpush2.msra.mxu0 %v1296
    %4093 = vmatprep.subr.mxu0 %v1289
    %4094 = vmatpush2.msra.mxu0 %v1288
    %4095 = vmatprep.subr.mxu0 %v1281
    %4096 = vmatpush2.msra.mxu0 %v1280
    %4097 = vmatprep.subr.mxu0 %v1273
    %4098 = vmatpush2.msra.mxu0 %v1272
    %4099 = vmatprep.subr.mxu0 %v1265
    %4100 = vmatpush2.msra.mxu0 %v1264
    %4101 = vmatprep.mubr.f32.mxu0 %v3341
    %4102 = vmatmul.mubr.f32.gmra.mxu0 %v3340
    %v4103 = vpop.f32.mrf.mxu0
    %v4104 = vadd.f32 %v4033, %v4103
    %v4105 = vpop.f32.mrf.mxu0
    %v4106 = vadd.f32 %v4035, %v4105
    %4107 = vdwg.mxu0
    %4108 = vmatprep.subr.mxu0 %v1003
    %4109 = vmatpush1.msra.mxu0 %v1002
    %4110 = vmatprep.subr.mxu0 %v995
    %4111 = vmatpush1.msra.mxu0 %v994
    %4112 = vmatprep.subr.mxu0 %v987
    %4113 = vmatpush1.msra.mxu0 %v986
    %4114 = vmatprep.subr.mxu0 %v979
    %4115 = vmatpush1.msra.mxu0 %v978
    %4116 = vmatprep.subr.mxu0 %v971
    %4117 = vmatpush1.msra.mxu0 %v970
    %4118 = vmatprep.subr.mxu0 %v963
    %4119 = vmatpush1.msra.mxu0 %v962
    %4120 = vmatprep.subr.mxu0 %v955
    %4121 = vmatpush1.msra.mxu0 %v954
    %4122 = vmatprep.subr.mxu0 %v947
    %4123 = vmatpush1.msra.mxu0 %v946
    %4124 = vmatprep.subr.mxu0 %v939
    %4125 = vmatpush1.msra.mxu0 %v938
    %4126 = vmatprep.subr.mxu0 %v931
    %4127 = vmatpush1.msra.mxu0 %v930
    %4128 = vmatprep.subr.mxu0 %v923
    %4129 = vmatpush1.msra.mxu0 %v922
    %4130 = vmatprep.subr.mxu0 %v915
    %4131 = vmatpush1.msra.mxu0 %v914
    %4132 = vmatprep.subr.mxu0 %v907
    %4133 = vmatpush1.msra.mxu0 %v906
    %4134 = vmatprep.subr.mxu0 %v899
    %4135 = vmatpush1.msra.mxu0 %v898
    %4136 = vmatprep.subr.mxu0 %v891
    %4137 = vmatpush1.msra.mxu0 %v890
    %4138 = vmatprep.subr.mxu0 %v883
    %4139 = vmatpush1.msra.mxu0 %v882
    %4140 = vmatprep.subr.mxu0 %v1131
    %4141 = vmatpush2.msra.mxu0 %v1130
    %4142 = vmatprep.subr.mxu0 %v1123
    %4143 = vmatpush2.msra.mxu0 %v1122
    %4144 = vmatprep.subr.mxu0 %v1115
    %4145 = vmatpush2.msra.mxu0 %v1114
    %4146 = vmatprep.subr.mxu0 %v1107
    %4147 = vmatpush2.msra.mxu0 %v1106
    %4148 = vmatprep.subr.mxu0 %v1099
    %4149 = vmatpush2.msra.mxu0 %v1098
    %4150 = vmatprep.subr.mxu0 %v1091
    %4151 = vmatpush2.msra.mxu0 %v1090
    %4152 = vmatprep.subr.mxu0 %v1083
    %4153 = vmatpush2.msra.mxu0 %v1082
    %4154 = vmatprep.subr.mxu0 %v1075
    %4155 = vmatpush2.msra.mxu0 %v1074
    %4156 = vmatprep.subr.mxu0 %v1067
    %4157 = vmatpush2.msra.mxu0 %v1066
    %4158 = vmatprep.subr.mxu0 %v1059
    %4159 = vmatpush2.msra.mxu0 %v1058
    %4160 = vmatprep.subr.mxu0 %v1051
    %4161 = vmatpush2.msra.mxu0 %v1050
    %4162 = vmatprep.subr.mxu0 %v1043
    %4163 = vmatpush2.msra.mxu0 %v1042
    %4164 = vmatprep.subr.mxu0 %v1035
    %4165 = vmatpush2.msra.mxu0 %v1034
    %4166 = vmatprep.subr.mxu0 %v1027
    %4167 = vmatpush2.msra.mxu0 %v1026
    %4168 = vmatprep.subr.mxu0 %v1019
    %4169 = vmatpush2.msra.mxu0 %v1018
    %4170 = vmatprep.subr.mxu0 %v1011
    %4171 = vmatpush2.msra.mxu0 %v1010
    %4172 = vmatprep.mubr.f32.mxu0 %v3681
    %4173 = vmatmul.mubr.f32.gmra.mxu0 %v3680
    %v4174 = vpop.f32.mrf.mxu0
    %v4175 = vadd.f32 %v1757, %v4174
    %v4176 = vpop.f32.mrf.mxu0
    %v4177 = vadd.f32 %v1761, %v4176
    %4178 = vdwg.mxu0
    %4179 = vmatprep.subr.mxu0 %v1259
    %4180 = vmatpush1.msra.mxu0 %v1258
    %4181 = vmatprep.subr.mxu0 %v1251
    %4182 = vmatpush1.msra.mxu0 %v1250
    %4183 = vmatprep.subr.mxu0 %v1243
    %4184 = vmatpush1.msra.mxu0 %v1242
    %4185 = vmatprep.subr.mxu0 %v1235
    %4186 = vmatpush1.msra.mxu0 %v1234
    %4187 = vmatprep.subr.mxu0 %v1227
    %4188 = vmatpush1.msra.mxu0 %v1226
    %4189 = vmatprep.subr.mxu0 %v1219
    %4190 = vmatpush1.msra.mxu0 %v1218
    %4191 = vmatprep.subr.mxu0 %v1211
    %4192 = vmatpush1.msra.mxu0 %v1210
    %4193 = vmatprep.subr.mxu0 %v1203
    %4194 = vmatpush1.msra.mxu0 %v1202
    %4195 = vmatprep.subr.mxu0 %v1195
    %4196 = vmatpush1.msra.mxu0 %v1194
    %4197 = vmatprep.subr.mxu0 %v1187
    %4198 = vmatpush1.msra.mxu0 %v1186
    %4199 = vmatprep.subr.mxu0 %v1179
    %4200 = vmatpush1.msra.mxu0 %v1178
    %4201 = vmatprep.subr.mxu0 %v1171
    %4202 = vmatpush1.msra.mxu0 %v1170
    %4203 = vmatprep.subr.mxu0 %v1163
    %4204 = vmatpush1.msra.mxu0 %v1162
    %4205 = vmatprep.subr.mxu0 %v1155
    %4206 = vmatpush1.msra.mxu0 %v1154
    %4207 = vmatprep.subr.mxu0 %v1147
    %4208 = vmatpush1.msra.mxu0 %v1146
    %4209 = vmatprep.subr.mxu0 %v1139
    %4210 = vmatpush1.msra.mxu0 %v1138
    %4211 = vmatprep.subr.mxu0 %v1387
    %4212 = vmatpush2.msra.mxu0 %v1386
    %4213 = vmatprep.subr.mxu0 %v1379
    %4214 = vmatpush2.msra.mxu0 %v1378
    %4215 = vmatprep.subr.mxu0 %v1371
    %4216 = vmatpush2.msra.mxu0 %v1370
    %4217 = vmatprep.subr.mxu0 %v1363
    %4218 = vmatpush2.msra.mxu0 %v1362
    %4219 = vmatprep.subr.mxu0 %v1355
    %4220 = vmatpush2.msra.mxu0 %v1354
    %4221 = vmatprep.subr.mxu0 %v1347
    %4222 = vmatpush2.msra.mxu0 %v1346
    %4223 = vmatprep.subr.mxu0 %v1339
    %4224 = vmatpush2.msra.mxu0 %v1338
    %4225 = vmatprep.subr.mxu0 %v1331
    %4226 = vmatpush2.msra.mxu0 %v1330
    %4227 = vmatprep.subr.mxu0 %v1323
    %4228 = vmatpush2.msra.mxu0 %v1322
    %4229 = vmatprep.subr.mxu0 %v1315
    %4230 = vmatpush2.msra.mxu0 %v1314
    %4231 = vmatprep.subr.mxu0 %v1307
    %4232 = vmatpush2.msra.mxu0 %v1306
    %4233 = vmatprep.subr.mxu0 %v1299
    %4234 = vmatpush2.msra.mxu0 %v1298
    %4235 = vmatprep.subr.mxu0 %v1291
    %4236 = vmatpush2.msra.mxu0 %v1290
    %4237 = vmatprep.subr.mxu0 %v1283
    %4238 = vmatpush2.msra.mxu0 %v1282
    %4239 = vmatprep.subr.mxu0 %v1275
    %4240 = vmatpush2.msra.mxu0 %v1274
    %4241 = vmatprep.subr.mxu0 %v1267
    %4242 = vmatpush2.msra.mxu0 %v1266
    %4243 = vmatprep.mubr.f32.mxu0 %v3341
    %4244 = vmatmul.mubr.f32.gmra.mxu0 %v3340
    %v4245 = vpop.f32.mrf.mxu0
    %v4246 = vadd.f32 %v4175, %v4245
    %v4247 = vpop.f32.mrf.mxu0
    %v4248 = vadd.f32 %v4177, %v4247
    %4249 = vdwg.mxu0
    %v4250 = vxor.u32 %v3820, 2147483648
    %v4251 = vxor.u32 %v3822, 2147483648
    %v4252 = vxor.u32 %v3962, 2147483648
    %v4253 = vxor.u32 %v3964, 2147483648
    %v4254 = vxor.u32 %v4104, 2147483648
    %v4255 = vxor.u32 %v4106, 2147483648
    %v4256 = vmul.f32 %v4250, 1.442695
    %v4257 = vpow.pop %v4256
    %v4258 = vmul.f32 %v4251, 1.442695
    %v4259 = vpow.pop %v4258
    %v4260 = vmul.f32 %v4252, 1.442695
    %v4261 = vpow.pop %v4260
    %v4262 = vmul.f32 %v4253, 1.442695
    %v4263 = vpow.pop %v4262
    %v4264 = vmul.f32 %v4254, 1.442695
    %v4265 = vpow.pop %v4264
    %v4266 = vmul.f32 %v4255, 1.442695
    %v4267 = vpow.pop %v4266
    %v4268 = vadd.f32 %v4257, 1.0
    %v4269 = vadd.f32 %v4259, 1.0
    %v4270 = vadd.f32 %v4261, 1.0
    %v4271 = vadd.f32 %v4263, 1.0
    %v4272 = vadd.f32 %v4265, 1.0
    %v4273 = vadd.f32 %v4267, 1.0
    %v4274 = vrcp.pop %v4268
    %v4275 = vmul.f32 1.0, %v4274
    %v4276 = vrcp.pop %v4269
    %v4277 = vmul.f32 1.0, %v4276
    %v4278 = vrcp.pop %v4270
    %v4279 = vmul.f32 1.0, %v4278
    %v4280 = vrcp.pop %v4271
    %v4281 = vmul.f32 1.0, %v4280
    %v4282 = vrcp.pop %v4272
    %v4283 = vmul.f32 1.0, %v4282
    %v4284 = vrcp.pop %v4273
    %v4285 = vmul.f32 1.0, %v4284
    %v4286 = vtanh.pop %v4246
    %v4287 = vtanh.pop %v4248
    %v4288 = vmul.f32 %v4279, %v3336
    %v4289 = vmul.f32 %v4281, %v3337
    %v4290 = vmul.f32 %v4275, %v4286
    %v4291 = vmul.f32 %v4277, %v4287
    %v4292 = vadd.f32 %v4288, %v4290
    %v4293 = vadd.f32 %v4289, %v4291
    %v4294 = vtanh.pop %v4292
    %v4295 = vtanh.pop %v4293
    %v4296 = vmul.f32 %v4283, %v4294
    %v4297 = vmul.f32 %v4285, %v4295
    %4298 = vmatprep.subr.mxu0 %v741
    %4299 = vmatpush1.msra.mxu0 %v740
    %4300 = vmatprep.subr.mxu0 %v733
    %4301 = vmatpush1.msra.mxu0 %v732
    %4302 = vmatprep.subr.mxu0 %v725
    %4303 = vmatpush1.msra.mxu0 %v724
    %4304 = vmatprep.subr.mxu0 %v717
    %4305 = vmatpush1.msra.mxu0 %v716
    %4306 = vmatprep.subr.mxu0 %v709
    %4307 = vmatpush1.msra.mxu0 %v708
    %4308 = vmatprep.subr.mxu0 %v701
    %4309 = vmatpush1.msra.mxu0 %v700
    %4310 = vmatprep.subr.mxu0 %v693
    %4311 = vmatpush1.msra.mxu0 %v692
    %4312 = vmatprep.subr.mxu0 %v685
    %4313 = vmatpush1.msra.mxu0 %v684
    %4314 = vmatprep.subr.mxu0 %v677
    %4315 = vmatpush1.msra.mxu0 %v676
    %4316 = vmatprep.subr.mxu0 %v669
    %4317 = vmatpush1.msra.mxu0 %v668
    %4318 = vmatprep.subr.mxu0 %v661
    %4319 = vmatpush1.msra.mxu0 %v660
    %4320 = vmatprep.subr.mxu0 %v653
    %4321 = vmatpush1.msra.mxu0 %v652
    %4322 = vmatprep.subr.mxu0 %v645
    %4323 = vmatpush1.msra.mxu0 %v644
    %4324 = vmatprep.subr.mxu0 %v637
    %4325 = vmatpush1.msra.mxu0 %v636
    %4326 = vmatprep.subr.mxu0 %v629
    %4327 = vmatpush1.msra.mxu0 %v628
    %4328 = vmatprep.subr.mxu0 %v621
    %4329 = vmatpush1.msra.mxu0 %v620
    %4330 = vmatprep.subr.mxu0 %v869
    %4331 = vmatpush2.msra.mxu0 %v868
    %4332 = vmatprep.subr.mxu0 %v861
    %4333 = vmatpush2.msra.mxu0 %v860
    %4334 = vmatprep.subr.mxu0 %v853
    %4335 = vmatpush2.msra.mxu0 %v852
    %4336 = vmatprep.subr.mxu0 %v845
    %4337 = vmatpush2.msra.mxu0 %v844
    %4338 = vmatprep.subr.mxu0 %v837
    %4339 = vmatpush2.msra.mxu0 %v836
    %4340 = vmatprep.subr.mxu0 %v829
    %4341 = vmatpush2.msra.mxu0 %v828
    %4342 = vmatprep.subr.mxu0 %v821
    %4343 = vmatpush2.msra.mxu0 %v820
    %4344 = vmatprep.subr.mxu0 %v813
    %4345 = vmatpush2.msra.mxu0 %v812
    %4346 = vmatprep.subr.mxu0 %v805
    %4347 = vmatpush2.msra.mxu0 %v804
    %4348 = vmatprep.subr.mxu0 %v797
    %4349 = vmatpush2.msra.mxu0 %v796
    %4350 = vmatprep.subr.mxu0 %v789
    %4351 = vmatpush2.msra.mxu0 %v788
    %4352 = vmatprep.subr.mxu0 %v781
    %4353 = vmatpush2.msra.mxu0 %v780
    %4354 = vmatprep.subr.mxu0 %v773
    %4355 = vmatpush2.msra.mxu0 %v772
    %4356 = vmatprep.subr.mxu0 %v765
    %4357 = vmatpush2.msra.mxu0 %v764
    %4358 = vmatprep.subr.mxu0 %v757
    %4359 = vmatpush2.msra.mxu0 %v756
    %4360 = vmatprep.subr.mxu0 %v749
    %4361 = vmatpush2.msra.mxu0 %v748
    %4362 = vmatprep.mubr.f32.mxu0 %v3681
    %4363 = vmatmul.mubr.f32.gmra.mxu0 %v3680
    %v4364 = vpop.f32.mrf.mxu0
    %v4365 = vadd.f32 0.0, %v4364
    %v4366 = vpop.f32.mrf.mxu0
    %v4367 = vadd.f32 0.0, %v4366
    %4368 = vdwg.mxu0
    %4369 = vmatprep.subr.mxu0 %v743
    %4370 = vmatpush1.msra.mxu0 %v742
    %4371 = vmatprep.subr.mxu0 %v735
    %4372 = vmatpush1.msra.mxu0 %v734
    %4373 = vmatprep.subr.mxu0 %v727
    %4374 = vmatpush1.msra.mxu0 %v726
    %4375 = vmatprep.subr.mxu0 %v719
    %4376 = vmatpush1.msra.mxu0 %v718
    %4377 = vmatprep.subr.mxu0 %v711
    %4378 = vmatpush1.msra.mxu0 %v710
    %4379 = vmatprep.subr.mxu0 %v703
    %4380 = vmatpush1.msra.mxu0 %v702
    %4381 = vmatprep.subr.mxu0 %v695
    %4382 = vmatpush1.msra.mxu0 %v694
    %4383 = vmatprep.subr.mxu0 %v687
    %4384 = vmatpush1.msra.mxu0 %v686
    %4385 = vmatprep.subr.mxu0 %v679
    %4386 = vmatpush1.msra.mxu0 %v678
    %4387 = vmatprep.subr.mxu0 %v671
    %4388 = vmatpush1.msra.mxu0 %v670
    %4389 = vmatprep.subr.mxu0 %v663
    %4390 = vmatpush1.msra.mxu0 %v662
    %4391 = vmatprep.subr.mxu0 %v655
    %4392 = vmatpush1.msra.mxu0 %v654
    %4393 = vmatprep.subr.mxu0 %v647
    %4394 = vmatpush1.msra.mxu0 %v646
    %4395 = vmatprep.subr.mxu0 %v639
    %4396 = vmatpush1.msra.mxu0 %v638
    %4397 = vmatprep.subr.mxu0 %v631
    %4398 = vmatpush1.msra.mxu0 %v630
    %4399 = vmatprep.subr.mxu0 %v623
    %4400 = vmatpush1.msra.mxu0 %v622
    %4401 = vmatprep.subr.mxu0 %v871
    %4402 = vmatpush2.msra.mxu0 %v870
    %4403 = vmatprep.subr.mxu0 %v863
    %4404 = vmatpush2.msra.mxu0 %v862
    %4405 = vmatprep.subr.mxu0 %v855
    %4406 = vmatpush2.msra.mxu0 %v854
    %4407 = vmatprep.subr.mxu0 %v847
    %4408 = vmatpush2.msra.mxu0 %v846
    %4409 = vmatprep.subr.mxu0 %v839
    %4410 = vmatpush2.msra.mxu0 %v838
    %4411 = vmatprep.subr.mxu0 %v831
    %4412 = vmatpush2.msra.mxu0 %v830
    %4413 = vmatprep.subr.mxu0 %v823
    %4414 = vmatpush2.msra.mxu0 %v822
    %4415 = vmatprep.subr.mxu0 %v815
    %4416 = vmatpush2.msra.mxu0 %v814
    %4417 = vmatprep.subr.mxu0 %v807
    %4418 = vmatpush2.msra.mxu0 %v806
    %4419 = vmatprep.subr.mxu0 %v799
    %4420 = vmatpush2.msra.mxu0 %v798
    %4421 = vmatprep.subr.mxu0 %v791
    %4422 = vmatpush2.msra.mxu0 %v790
    %4423 = vmatprep.subr.mxu0 %v783
    %4424 = vmatpush2.msra.mxu0 %v782
    %4425 = vmatprep.subr.mxu0 %v775
    %4426 = vmatpush2.msra.mxu0 %v774
    %4427 = vmatprep.subr.mxu0 %v767
    %4428 = vmatpush2.msra.mxu0 %v766
    %4429 = vmatprep.subr.mxu0 %v759
    %4430 = vmatpush2.msra.mxu0 %v758
    %4431 = vmatprep.subr.mxu0 %v751
    %4432 = vmatpush2.msra.mxu0 %v750
    %4433 = vmatprep.mubr.f32.mxu0 %v3681
    %4434 = vmatmul.mubr.f32.gmra.mxu0 %v3680
    %v4435 = vpop.f32.mrf.mxu0
    %v4436 = vadd.f32 0.0, %v4435
    %v4437 = vpop.f32.mrf.mxu0
    %v4438 = vadd.f32 0.0, %v4437
    %4439 = vdwg.mxu0
    %4440 = vmatprep.subr.mxu0 %v745
    %4441 = vmatpush1.msra.mxu0 %v744
    %4442 = vmatprep.subr.mxu0 %v737
    %4443 = vmatpush1.msra.mxu0 %v736
    %4444 = vmatprep.subr.mxu0 %v729
    %4445 = vmatpush1.msra.mxu0 %v728
    %4446 = vmatprep.subr.mxu0 %v721
    %4447 = vmatpush1.msra.mxu0 %v720
    %4448 = vmatprep.subr.mxu0 %v713
    %4449 = vmatpush1.msra.mxu0 %v712
    %4450 = vmatprep.subr.mxu0 %v705
    %4451 = vmatpush1.msra.mxu0 %v704
    %4452 = vmatprep.subr.mxu0 %v697
    %4453 = vmatpush1.msra.mxu0 %v696
    %4454 = vmatprep.subr.mxu0 %v689
    %4455 = vmatpush1.msra.mxu0 %v688
    %4456 = vmatprep.subr.mxu0 %v681
    %4457 = vmatpush1.msra.mxu0 %v680
    %4458 = vmatprep.subr.mxu0 %v673
    %4459 = vmatpush1.msra.mxu0 %v672
    %4460 = vmatprep.subr.mxu0 %v665
    %4461 = vmatpush1.msra.mxu0 %v664
    %4462 = vmatprep.subr.mxu0 %v657
    %4463 = vmatpush1.msra.mxu0 %v656
    %4464 = vmatprep.subr.mxu0 %v649
    %4465 = vmatpush1.msra.mxu0 %v648
    %4466 = vmatprep.subr.mxu0 %v641
    %4467 = vmatpush1.msra.mxu0 %v640
    %4468 = vmatprep.subr.mxu0 %v633
    %4469 = vmatpush1.msra.mxu0 %v632
    %4470 = vmatprep.subr.mxu0 %v625
    %4471 = vmatpush1.msra.mxu0 %v624
    %4472 = vmatprep.subr.mxu0 %v873
    %4473 = vmatpush2.msra.mxu0 %v872
    %4474 = vmatprep.subr.mxu0 %v865
    %4475 = vmatpush2.msra.mxu0 %v864
    %4476 = vmatprep.subr.mxu0 %v857
    %4477 = vmatpush2.msra.mxu0 %v856
    %4478 = vmatprep.subr.mxu0 %v849
    %4479 = vmatpush2.msra.mxu0 %v848
    %4480 = vmatprep.subr.mxu0 %v841
    %4481 = vmatpush2.msra.mxu0 %v840
    %4482 = vmatprep.subr.mxu0 %v833
    %4483 = vmatpush2.msra.mxu0 %v832
    %4484 = vmatprep.subr.mxu0 %v825
    %4485 = vmatpush2.msra.mxu0 %v824
    %4486 = vmatprep.subr.mxu0 %v817
    %4487 = vmatpush2.msra.mxu0 %v816
    %4488 = vmatprep.subr.mxu0 %v809
    %4489 = vmatpush2.msra.mxu0 %v808
    %4490 = vmatprep.subr.mxu0 %v801
    %4491 = vmatpush2.msra.mxu0 %v800
    %4492 = vmatprep.subr.mxu0 %v793
    %4493 = vmatpush2.msra.mxu0 %v792
    %4494 = vmatprep.subr.mxu0 %v785
    %4495 = vmatpush2.msra.mxu0 %v784
    %4496 = vmatprep.subr.mxu0 %v777
    %4497 = vmatpush2.msra.mxu0 %v776
    %4498 = vmatprep.subr.mxu0 %v769
    %4499 = vmatpush2.msra.mxu0 %v768
    %4500 = vmatprep.subr.mxu0 %v761
    %4501 = vmatpush2.msra.mxu0 %v760
    %4502 = vmatprep.subr.mxu0 %v753
    %4503 = vmatpush2.msra.mxu0 %v752
    %4504 = vmatprep.mubr.f32.mxu0 %v3681
    %4505 = vmatmul.mubr.f32.gmra.mxu0 %v3680
    %v4506 = vpop.f32.mrf.mxu0
    %v4507 = vadd.f32 0.0, %v4506
    %v4508 = vpop.f32.mrf.mxu0
    %v4509 = vadd.f32 0.0, %v4508
    %4510 = vdwg.mxu0
    %4511 = vmatprep.subr.mxu0 %v747
    %4512 = vmatpush1.msra.mxu0 %v746
    %4513 = vmatprep.subr.mxu0 %v739
    %4514 = vmatpush1.msra.mxu0 %v738
    %4515 = vmatprep.subr.mxu0 %v731
    %4516 = vmatpush1.msra.mxu0 %v730
    %4517 = vmatprep.subr.mxu0 %v723
    %4518 = vmatpush1.msra.mxu0 %v722
    %4519 = vmatprep.subr.mxu0 %v715
    %4520 = vmatpush1.msra.mxu0 %v714
    %4521 = vmatprep.subr.mxu0 %v707
    %4522 = vmatpush1.msra.mxu0 %v706
    %4523 = vmatprep.subr.mxu0 %v699
    %4524 = vmatpush1.msra.mxu0 %v698
    %4525 = vmatprep.subr.mxu0 %v691
    %4526 = vmatpush1.msra.mxu0 %v690
    %4527 = vmatprep.subr.mxu0 %v683
    %4528 = vmatpush1.msra.mxu0 %v682
    %4529 = vmatprep.subr.mxu0 %v675
    %4530 = vmatpush1.msra.mxu0 %v674
    %4531 = vmatprep.subr.mxu0 %v667
    %4532 = vmatpush1.msra.mxu0 %v666
    %4533 = vmatprep.subr.mxu0 %v659
    %4534 = vmatpush1.msra.mxu0 %v658
    %4535 = vmatprep.subr.mxu0 %v651
    %4536 = vmatpush1.msra.mxu0 %v650
    %4537 = vmatprep.subr.mxu0 %v643
    %4538 = vmatpush1.msra.mxu0 %v642
    %4539 = vmatprep.subr.mxu0 %v635
    %4540 = vmatpush1.msra.mxu0 %v634
    %4541 = vmatprep.subr.mxu0 %v627
    %4542 = vmatpush1.msra.mxu0 %v626
    %4543 = vmatprep.subr.mxu0 %v875
    %4544 = vmatpush2.msra.mxu0 %v874
    %4545 = vmatprep.subr.mxu0 %v867
    %4546 = vmatpush2.msra.mxu0 %v866
    %4547 = vmatprep.subr.mxu0 %v859
    %4548 = vmatpush2.msra.mxu0 %v858
    %4549 = vmatprep.subr.mxu0 %v851
    %4550 = vmatpush2.msra.mxu0 %v850
    %4551 = vmatprep.subr.mxu0 %v843
    %4552 = vmatpush2.msra.mxu0 %v842
    %4553 = vmatprep.subr.mxu0 %v835
    %4554 = vmatpush2.msra.mxu0 %v834
    %4555 = vmatprep.subr.mxu0 %v827
    %4556 = vmatpush2.msra.mxu0 %v826
    %4557 = vmatprep.subr.mxu0 %v819
    %4558 = vmatpush2.msra.mxu0 %v818
    %4559 = vmatprep.subr.mxu0 %v811
    %4560 = vmatpush2.msra.mxu0 %v810
    %4561 = vmatprep.subr.mxu0 %v803
    %4562 = vmatpush2.msra.mxu0 %v802
    %4563 = vmatprep.subr.mxu0 %v795
    %4564 = vmatpush2.msra.mxu0 %v794
    %4565 = vmatprep.subr.mxu0 %v787
    %4566 = vmatpush2.msra.mxu0 %v786
    %4567 = vmatprep.subr.mxu0 %v779
    %4568 = vmatpush2.msra.mxu0 %v778
    %4569 = vmatprep.subr.mxu0 %v771
    %4570 = vmatpush2.msra.mxu0 %v770
    %4571 = vmatprep.subr.mxu0 %v763
    %4572 = vmatpush2.msra.mxu0 %v762
    %4573 = vmatprep.subr.mxu0 %v755
    %4574 = vmatpush2.msra.mxu0 %v754
    %4575 = vmatprep.mubr.f32.mxu0 %v3681
    %4576 = vmatmul.mubr.f32.gmra.mxu0 %v3680
    %v4577 = vpop.f32.mrf.mxu0
    %v4578 = vadd.f32 0.0, %v4577
    %v4579 = vpop.f32.mrf.mxu0
    %v4580 = vadd.f32 0.0, %v4579
    %4581 = vdwg.mxu0
    %v4582 = vadd.f32 %v253, %v4365
    %v4583 = vadd.f32 %v255, %v4367
    %v4584 = vadd.f32 %v366, %v4436
    %v4585 = vadd.f32 %v368, %v4438
    %v4586 = vadd.f32 %v479, %v4507
    %v4587 = vadd.f32 %v481, %v4509
    %v4588 = vadd.f32 %v592, %v4578
    %v4589 = vadd.f32 %v594, %v4580
    %v4590 = vxor.u32 %v4582, 2147483648
    %v4591 = vxor.u32 %v4583, 2147483648
    %v4592 = vxor.u32 %v4584, 2147483648
    %v4593 = vxor.u32 %v4585, 2147483648
    %v4594 = vxor.u32 %v4586, 2147483648
    %v4595 = vxor.u32 %v4587, 2147483648
    %v4596 = vmul.f32 %v4590, 1.442695
    %v4597 = vpow.pop %v4596
    %v4598 = vmul.f32 %v4591, 1.442695
    %v4599 = vpow.pop %v4598
    %v4600 = vmul.f32 %v4592, 1.442695
    %v4601 = vpow.pop %v4600
    %v4602 = vmul.f32 %v4593, 1.442695
    %v4603 = vpow.pop %v4602
    %v4604 = vmul.f32 %v4594, 1.442695
    %v4605 = vpow.pop %v4604
    %v4606 = vmul.f32 %v4595, 1.442695
    %v4607 = vpow.pop %v4606
    %v4608 = vadd.f32 %v4597, 1.0
    %v4609 = vadd.f32 %v4599, 1.0
    %v4610 = vadd.f32 %v4601, 1.0
    %v4611 = vadd.f32 %v4603, 1.0
    %v4612 = vadd.f32 %v4605, 1.0
    %v4613 = vadd.f32 %v4607, 1.0
    %v4614 = vrcp.pop %v4608
    %v4615 = vmul.f32 1.0, %v4614
    %v4616 = vrcp.pop %v4609
    %v4617 = vmul.f32 1.0, %v4616
    %v4618 = vrcp.pop %v4610
    %v4619 = vmul.f32 1.0, %v4618
    %v4620 = vrcp.pop %v4611
    %v4621 = vmul.f32 1.0, %v4620
    %v4622 = vrcp.pop %v4612
    %v4623 = vmul.f32 1.0, %v4622
    %v4624 = vrcp.pop %v4613
    %v4625 = vmul.f32 1.0, %v4624
    %v4626 = vtanh.pop %v4588
    %v4627 = vtanh.pop %v4589
    %v4628 = vmul.f32 %v4619, %v3676
    %v4629 = vmul.f32 %v4621, %v3677
    %v4630 = vmul.f32 %v4615, %v4626
    %v4631 = vmul.f32 %v4617, %v4627
    %v4632 = vadd.f32 %v4628, %v4630
    %v4633 = vadd.f32 %v4629, %v4631
    %v4634 = vtanh.pop %v4632
    %v4635 = vtanh.pop %v4633
    %v4636 = vmul.f32 %v4623, %v4634
    %v4637 = vmul.f32 %v4625, %v4635
    %4638 = vmatprep.subr.mxu0 %v997
    %4639 = vmatpush1.msra.mxu0 %v996
    %4640 = vmatprep.subr.mxu0 %v989
    %4641 = vmatpush1.msra.mxu0 %v988
    %4642 = vmatprep.subr.mxu0 %v981
    %4643 = vmatpush1.msra.mxu0 %v980
    %4644 = vmatprep.subr.mxu0 %v973
    %4645 = vmatpush1.msra.mxu0 %v972
    %4646 = vmatprep.subr.mxu0 %v965
    %4647 = vmatpush1.msra.mxu0 %v964
    %4648 = vmatprep.subr.mxu0 %v957
    %4649 = vmatpush1.msra.mxu0 %v956
    %4650 = vmatprep.subr.mxu0 %v949
    %4651 = vmatpush1.msra.mxu0 %v948
    %4652 = vmatprep.subr.mxu0 %v941
    %4653 = vmatpush1.msra.mxu0 %v940
    %4654 = vmatprep.subr.mxu0 %v933
    %4655 = vmatpush1.msra.mxu0 %v932
    %4656 = vmatprep.subr.mxu0 %v925
    %4657 = vmatpush1.msra.mxu0 %v924
    %4658 = vmatprep.subr.mxu0 %v917
    %4659 = vmatpush1.msra.mxu0 %v916
    %4660 = vmatprep.subr.mxu0 %v909
    %4661 = vmatpush1.msra.mxu0 %v908
    %4662 = vmatprep.subr.mxu0 %v901
    %4663 = vmatpush1.msra.mxu0 %v900
    %4664 = vmatprep.subr.mxu0 %v893
    %4665 = vmatpush1.msra.mxu0 %v892
    %4666 = vmatprep.subr.mxu0 %v885
    %4667 = vmatpush1.msra.mxu0 %v884
    %4668 = vmatprep.subr.mxu0 %v877
    %4669 = vmatpush1.msra.mxu0 %v876
    %4670 = vmatprep.subr.mxu0 %v1125
    %4671 = vmatpush2.msra.mxu0 %v1124
    %4672 = vmatprep.subr.mxu0 %v1117
    %4673 = vmatpush2.msra.mxu0 %v1116
    %4674 = vmatprep.subr.mxu0 %v1109
    %4675 = vmatpush2.msra.mxu0 %v1108
    %4676 = vmatprep.subr.mxu0 %v1101
    %4677 = vmatpush2.msra.mxu0 %v1100
    %4678 = vmatprep.subr.mxu0 %v1093
    %4679 = vmatpush2.msra.mxu0 %v1092
    %4680 = vmatprep.subr.mxu0 %v1085
    %4681 = vmatpush2.msra.mxu0 %v1084
    %4682 = vmatprep.subr.mxu0 %v1077
    %4683 = vmatpush2.msra.mxu0 %v1076
    %4684 = vmatprep.subr.mxu0 %v1069
    %4685 = vmatpush2.msra.mxu0 %v1068
    %4686 = vmatprep.subr.mxu0 %v1061
    %4687 = vmatpush2.msra.mxu0 %v1060
    %4688 = vmatprep.subr.mxu0 %v1053
    %4689 = vmatpush2.msra.mxu0 %v1052
    %4690 = vmatprep.subr.mxu0 %v1045
    %4691 = vmatpush2.msra.mxu0 %v1044
    %4692 = vmatprep.subr.mxu0 %v1037
    %4693 = vmatpush2.msra.mxu0 %v1036
    %4694 = vmatprep.subr.mxu0 %v1029
    %4695 = vmatpush2.msra.mxu0 %v1028
    %4696 = vmatprep.subr.mxu0 %v1021
    %4697 = vmatpush2.msra.mxu0 %v1020
    %4698 = vmatprep.subr.mxu0 %v1013
    %4699 = vmatpush2.msra.mxu0 %v1012
    %4700 = vmatprep.subr.mxu0 %v1005
    %4701 = vmatpush2.msra.mxu0 %v1004
    %4702 = vmatprep.mubr.f32.mxu0 %v4637
    %4703 = vmatmul.mubr.f32.gmra.mxu0 %v4636
    %v4704 = vpop.f32.mrf.mxu0
    %v4705 = vadd.f32 %v1733, %v4704
    %v4706 = vpop.f32.mrf.mxu0
    %v4707 = vadd.f32 %v1737, %v4706
    %4708 = vdwg.mxu0
    %4709 = vmatprep.subr.mxu0 %v1253
    %4710 = vmatpush1.msra.mxu0 %v1252
    %4711 = vmatprep.subr.mxu0 %v1245
    %4712 = vmatpush1.msra.mxu0 %v1244
    %4713 = vmatprep.subr.mxu0 %v1237
    %4714 = vmatpush1.msra.mxu0 %v1236
    %4715 = vmatprep.subr.mxu0 %v1229
    %4716 = vmatpush1.msra.mxu0 %v1228
    %4717 = vmatprep.subr.mxu0 %v1221
    %4718 = vmatpush1.msra.mxu0 %v1220
    %4719 = vmatprep.subr.mxu0 %v1213
    %4720 = vmatpush1.msra.mxu0 %v1212
    %4721 = vmatprep.subr.mxu0 %v1205
    %4722 = vmatpush1.msra.mxu0 %v1204
    %4723 = vmatprep.subr.mxu0 %v1197
    %4724 = vmatpush1.msra.mxu0 %v1196
    %4725 = vmatprep.subr.mxu0 %v1189
    %4726 = vmatpush1.msra.mxu0 %v1188
    %4727 = vmatprep.subr.mxu0 %v1181
    %4728 = vmatpush1.msra.mxu0 %v1180
    %4729 = vmatprep.subr.mxu0 %v1173
    %4730 = vmatpush1.msra.mxu0 %v1172
    %4731 = vmatprep.subr.mxu0 %v1165
    %4732 = vmatpush1.msra.mxu0 %v1164
    %4733 = vmatprep.subr.mxu0 %v1157
    %4734 = vmatpush1.msra.mxu0 %v1156
    %4735 = vmatprep.subr.mxu0 %v1149
    %4736 = vmatpush1.msra.mxu0 %v1148
    %4737 = vmatprep.subr.mxu0 %v1141
    %4738 = vmatpush1.msra.mxu0 %v1140
    %4739 = vmatprep.subr.mxu0 %v1133
    %4740 = vmatpush1.msra.mxu0 %v1132
    %4741 = vmatprep.subr.mxu0 %v1381
    %4742 = vmatpush2.msra.mxu0 %v1380
    %4743 = vmatprep.subr.mxu0 %v1373
    %4744 = vmatpush2.msra.mxu0 %v1372
    %4745 = vmatprep.subr.mxu0 %v1365
    %4746 = vmatpush2.msra.mxu0 %v1364
    %4747 = vmatprep.subr.mxu0 %v1357
    %4748 = vmatpush2.msra.mxu0 %v1356
    %4749 = vmatprep.subr.mxu0 %v1349
    %4750 = vmatpush2.msra.mxu0 %v1348
    %4751 = vmatprep.subr.mxu0 %v1341
    %4752 = vmatpush2.msra.mxu0 %v1340
    %4753 = vmatprep.subr.mxu0 %v1333
    %4754 = vmatpush2.msra.mxu0 %v1332
    %4755 = vmatprep.subr.mxu0 %v1325
    %4756 = vmatpush2.msra.mxu0 %v1324
    %4757 = vmatprep.subr.mxu0 %v1317
    %4758 = vmatpush2.msra.mxu0 %v1316
    %4759 = vmatprep.subr.mxu0 %v1309
    %4760 = vmatpush2.msra.mxu0 %v1308
    %4761 = vmatprep.subr.mxu0 %v1301
    %4762 = vmatpush2.msra.mxu0 %v1300
    %4763 = vmatprep.subr.mxu0 %v1293
    %4764 = vmatpush2.msra.mxu0 %v1292
    %4765 = vmatprep.subr.mxu0 %v1285
    %4766 = vmatpush2.msra.mxu0 %v1284
    %4767 = vmatprep.subr.mxu0 %v1277
    %4768 = vmatpush2.msra.mxu0 %v1276
    %4769 = vmatprep.subr.mxu0 %v1269
    %4770 = vmatpush2.msra.mxu0 %v1268
    %4771 = vmatprep.subr.mxu0 %v1261
    %4772 = vmatpush2.msra.mxu0 %v1260
    %4773 = vmatprep.mubr.f32.mxu0 %v4297
    %4774 = vmatmul.mubr.f32.gmra.mxu0 %v4296
    %v4775 = vpop.f32.mrf.mxu0
    %v4776 = vadd.f32 %v4705, %v4775
    %v4777 = vpop.f32.mrf.mxu0
    %v4778 = vadd.f32 %v4707, %v4777
    %4779 = vdwg.mxu0
    %4780 = vmatprep.subr.mxu0 %v999
    %4781 = vmatpush1.msra.mxu0 %v998
    %4782 = vmatprep.subr.mxu0 %v991
    %4783 = vmatpush1.msra.mxu0 %v990
    %4784 = vmatprep.subr.mxu0 %v983
    %4785 = vmatpush1.msra.mxu0 %v982
    %4786 = vmatprep.subr.mxu0 %v975
    %4787 = vmatpush1.msra.mxu0 %v974
    %4788 = vmatprep.subr.mxu0 %v967
    %4789 = vmatpush1.msra.mxu0 %v966
    %4790 = vmatprep.subr.mxu0 %v959
    %4791 = vmatpush1.msra.mxu0 %v958
    %4792 = vmatprep.subr.mxu0 %v951
    %4793 = vmatpush1.msra.mxu0 %v950
    %4794 = vmatprep.subr.mxu0 %v943
    %4795 = vmatpush1.msra.mxu0 %v942
    %4796 = vmatprep.subr.mxu0 %v935
    %4797 = vmatpush1.msra.mxu0 %v934
    %4798 = vmatprep.subr.mxu0 %v927
    %4799 = vmatpush1.msra.mxu0 %v926
    %4800 = vmatprep.subr.mxu0 %v919
    %4801 = vmatpush1.msra.mxu0 %v918
    %4802 = vmatprep.subr.mxu0 %v911
    %4803 = vmatpush1.msra.mxu0 %v910
    %4804 = vmatprep.subr.mxu0 %v903
    %4805 = vmatpush1.msra.mxu0 %v902
    %4806 = vmatprep.subr.mxu0 %v895
    %4807 = vmatpush1.msra.mxu0 %v894
    %4808 = vmatprep.subr.mxu0 %v887
    %4809 = vmatpush1.msra.mxu0 %v886
    %4810 = vmatprep.subr.mxu0 %v879
    %4811 = vmatpush1.msra.mxu0 %v878
    %4812 = vmatprep.subr.mxu0 %v1127
    %4813 = vmatpush2.msra.mxu0 %v1126
    %4814 = vmatprep.subr.mxu0 %v1119
    %4815 = vmatpush2.msra.mxu0 %v1118
    %4816 = vmatprep.subr.mxu0 %v1111
    %4817 = vmatpush2.msra.mxu0 %v1110
    %4818 = vmatprep.subr.mxu0 %v1103
    %4819 = vmatpush2.msra.mxu0 %v1102
    %4820 = vmatprep.subr.mxu0 %v1095
    %4821 = vmatpush2.msra.mxu0 %v1094
    %4822 = vmatprep.subr.mxu0 %v1087
    %4823 = vmatpush2.msra.mxu0 %v1086
    %4824 = vmatprep.subr.mxu0 %v1079
    %4825 = vmatpush2.msra.mxu0 %v1078
    %4826 = vmatprep.subr.mxu0 %v1071
    %4827 = vmatpush2.msra.mxu0 %v1070
    %4828 = vmatprep.subr.mxu0 %v1063
    %4829 = vmatpush2.msra.mxu0 %v1062
    %4830 = vmatprep.subr.mxu0 %v1055
    %4831 = vmatpush2.msra.mxu0 %v1054
    %4832 = vmatprep.subr.mxu0 %v1047
    %4833 = vmatpush2.msra.mxu0 %v1046
    %4834 = vmatprep.subr.mxu0 %v1039
    %4835 = vmatpush2.msra.mxu0 %v1038
    %4836 = vmatprep.subr.mxu0 %v1031
    %4837 = vmatpush2.msra.mxu0 %v1030
    %4838 = vmatprep.subr.mxu0 %v1023
    %4839 = vmatpush2.msra.mxu0 %v1022
    %4840 = vmatprep.subr.mxu0 %v1015
    %4841 = vmatpush2.msra.mxu0 %v1014
    %4842 = vmatprep.subr.mxu0 %v1007
    %4843 = vmatpush2.msra.mxu0 %v1006
    %4844 = vmatprep.mubr.f32.mxu0 %v4637
    %4845 = vmatmul.mubr.f32.gmra.mxu0 %v4636
    %v4846 = vpop.f32.mrf.mxu0
    %v4847 = vadd.f32 %v1741, %v4846
    %v4848 = vpop.f32.mrf.mxu0
    %v4849 = vadd.f32 %v1745, %v4848
    %4850 = vdwg.mxu0
    %4851 = vmatprep.subr.mxu0 %v1255
    %4852 = vmatpush1.msra.mxu0 %v1254
    %4853 = vmatprep.subr.mxu0 %v1247
    %4854 = vmatpush1.msra.mxu0 %v1246
    %4855 = vmatprep.subr.mxu0 %v1239
    %4856 = vmatpush1.msra.mxu0 %v1238
    %4857 = vmatprep.subr.mxu0 %v1231
    %4858 = vmatpush1.msra.mxu0 %v1230
    %4859 = vmatprep.subr.mxu0 %v1223
    %4860 = vmatpush1.msra.mxu0 %v1222
    %4861 = vmatprep.subr.mxu0 %v1215
    %4862 = vmatpush1.msra.mxu0 %v1214
    %4863 = vmatprep.subr.mxu0 %v1207
    %4864 = vmatpush1.msra.mxu0 %v1206
    %4865 = vmatprep.subr.mxu0 %v1199
    %4866 = vmatpush1.msra.mxu0 %v1198
    %4867 = vmatprep.subr.mxu0 %v1191
    %4868 = vmatpush1.msra.mxu0 %v1190
    %4869 = vmatprep.subr.mxu0 %v1183
    %4870 = vmatpush1.msra.mxu0 %v1182
    %4871 = vmatprep.subr.mxu0 %v1175
    %4872 = vmatpush1.msra.mxu0 %v1174
    %4873 = vmatprep.subr.mxu0 %v1167
    %4874 = vmatpush1.msra.mxu0 %v1166
    %4875 = vmatprep.subr.mxu0 %v1159
    %4876 = vmatpush1.msra.mxu0 %v1158
    %4877 = vmatprep.subr.mxu0 %v1151
    %4878 = vmatpush1.msra.mxu0 %v1150
    %4879 = vmatprep.subr.mxu0 %v1143
    %4880 = vmatpush1.msra.mxu0 %v1142
    %4881 = vmatprep.subr.mxu0 %v1135
    %4882 = vmatpush1.msra.mxu0 %v1134
    %4883 = vmatprep.subr.mxu0 %v1383
    %4884 = vmatpush2.msra.mxu0 %v1382
    %4885 = vmatprep.subr.mxu0 %v1375
    %4886 = vmatpush2.msra.mxu0 %v1374
    %4887 = vmatprep.subr.mxu0 %v1367
    %4888 = vmatpush2.msra.mxu0 %v1366
    %4889 = vmatprep.subr.mxu0 %v1359
    %4890 = vmatpush2.msra.mxu0 %v1358
    %4891 = vmatprep.subr.mxu0 %v1351
    %4892 = vmatpush2.msra.mxu0 %v1350
    %4893 = vmatprep.subr.mxu0 %v1343
    %4894 = vmatpush2.msra.mxu0 %v1342
    %4895 = vmatprep.subr.mxu0 %v1335
    %4896 = vmatpush2.msra.mxu0 %v1334
    %4897 = vmatprep.subr.mxu0 %v1327
    %4898 = vmatpush2.msra.mxu0 %v1326
    %4899 = vmatprep.subr.mxu0 %v1319
    %4900 = vmatpush2.msra.mxu0 %v1318
    %4901 = vmatprep.subr.mxu0 %v1311
    %4902 = vmatpush2.msra.mxu0 %v1310
    %4903 = vmatprep.subr.mxu0 %v1303
    %4904 = vmatpush2.msra.mxu0 %v1302
    %4905 = vmatprep.subr.mxu0 %v1295
    %4906 = vmatpush2.msra.mxu0 %v1294
    %4907 = vmatprep.subr.mxu0 %v1287
    %4908 = vmatpush2.msra.mxu0 %v1286
    %4909 = vmatprep.subr.mxu0 %v1279
    %4910 = vmatpush2.msra.mxu0 %v1278
    %4911 = vmatprep.subr.mxu0 %v1271
    %4912 = vmatpush2.msra.mxu0 %v1270
    %4913 = vmatprep.subr.mxu0 %v1263
    %4914 = vmatpush2.msra.mxu0 %v1262
    %4915 = vmatprep.mubr.f32.mxu0 %v4297
    %4916 = vmatmul.mubr.f32.gmra.mxu0 %v4296
    %v4917 = vpop.f32.mrf.mxu0
    %v4918 = vadd.f32 %v4847, %v4917
    %v4919 = vpop.f32.mrf.mxu0
    %v4920 = vadd.f32 %v4849, %v4919
    %4921 = vdwg.mxu0
    %4922 = vmatprep.subr.mxu0 %v1001
    %4923 = vmatpush1.msra.mxu0 %v1000
    %4924 = vmatprep.subr.mxu0 %v993
    %4925 = vmatpush1.msra.mxu0 %v992
    %4926 = vmatprep.subr.mxu0 %v985
    %4927 = vmatpush1.msra.mxu0 %v984
    %4928 = vmatprep.subr.mxu0 %v977
    %4929 = vmatpush1.msra.mxu0 %v976
    %4930 = vmatprep.subr.mxu0 %v969
    %4931 = vmatpush1.msra.mxu0 %v968
    %4932 = vmatprep.subr.mxu0 %v961
    %4933 = vmatpush1.msra.mxu0 %v960
    %4934 = vmatprep.subr.mxu0 %v953
    %4935 = vmatpush1.msra.mxu0 %v952
    %4936 = vmatprep.subr.mxu0 %v945
    %4937 = vmatpush1.msra.mxu0 %v944
    %4938 = vmatprep.subr.mxu0 %v937
    %4939 = vmatpush1.msra.mxu0 %v936
    %4940 = vmatprep.subr.mxu0 %v929
    %4941 = vmatpush1.msra.mxu0 %v928
    %4942 = vmatprep.subr.mxu0 %v921
    %4943 = vmatpush1.msra.mxu0 %v920
    %4944 = vmatprep.subr.mxu0 %v913
    %4945 = vmatpush1.msra.mxu0 %v912
    %4946 = vmatprep.subr.mxu0 %v905
    %4947 = vmatpush1.msra.mxu0 %v904
    %4948 = vmatprep.subr.mxu0 %v897
    %4949 = vmatpush1.msra.mxu0 %v896
    %4950 = vmatprep.subr.mxu0 %v889
    %4951 = vmatpush1.msra.mxu0 %v888
    %4952 = vmatprep.subr.mxu0 %v881
    %4953 = vmatpush1.msra.mxu0 %v880
    %4954 = vmatprep.subr.mxu0 %v1129
    %4955 = vmatpush2.msra.mxu0 %v1128
    %4956 = vmatprep.subr.mxu0 %v1121
    %4957 = vmatpush2.msra.mxu0 %v1120
    %4958 = vmatprep.subr.mxu0 %v1113
    %4959 = vmatpush2.msra.mxu0 %v1112
    %4960 = vmatprep.subr.mxu0 %v1105
    %4961 = vmatpush2.msra.mxu0 %v1104
    %4962 = vmatprep.subr.mxu0 %v1097
    %4963 = vmatpush2.msra.mxu0 %v1096
    %4964 = vmatprep.subr.mxu0 %v1089
    %4965 = vmatpush2.msra.mxu0 %v1088
    %4966 = vmatprep.subr.mxu0 %v1081
    %4967 = vmatpush2.msra.mxu0 %v1080
    %4968 = vmatprep.subr.mxu0 %v1073
    %4969 = vmatpush2.msra.mxu0 %v1072
    %4970 = vmatprep.subr.mxu0 %v1065
    %4971 = vmatpush2.msra.mxu0 %v1064
    %4972 = vmatprep.subr.mxu0 %v1057
    %4973 = vmatpush2.msra.mxu0 %v1056
    %4974 = vmatprep.subr.mxu0 %v1049
    %4975 = vmatpush2.msra.mxu0 %v1048
    %4976 = vmatprep.subr.mxu0 %v1041
    %4977 = vmatpush2.msra.mxu0 %v1040
    %4978 = vmatprep.subr.mxu0 %v1033
    %4979 = vmatpush2.msra.mxu0 %v1032
    %4980 = vmatprep.subr.mxu0 %v1025
    %4981 = vmatpush2.msra.mxu0 %v1024
    %4982 = vmatprep.subr.mxu0 %v1017
    %4983 = vmatpush2.msra.mxu0 %v1016
    %4984 = vmatprep.subr.mxu0 %v1009
    %4985 = vmatpush2.msra.mxu0 %v1008
    %4986 = vmatprep.mubr.f32.mxu0 %v4637
    %4987 = vmatmul.mubr.f32.gmra.mxu0 %v4636
    %v4988 = vpop.f32.mrf.mxu0
    %v4989 = vadd.f32 %v1749, %v4988
    %v4990 = vpop.f32.mrf.mxu0
    %v4991 = vadd.f32 %v1753, %v4990
    %4992 = vdwg.mxu0
    %4993 = vmatprep.subr.mxu0 %v1257
    %4994 = vmatpush1.msra.mxu0 %v1256
    %4995 = vmatprep.subr.mxu0 %v1249
    %4996 = vmatpush1.msra.mxu0 %v1248
    %4997 = vmatprep.subr.mxu0 %v1241
    %4998 = vmatpush1.msra.mxu0 %v1240
    %4999 = vmatprep.subr.mxu0 %v1233
    %5000 = vmatpush1.msra.mxu0 %v1232
    %5001 = vmatprep.subr.mxu0 %v1225
    %5002 = vmatpush1.msra.mxu0 %v1224
    %5003 = vmatprep.subr.mxu0 %v1217
    %5004 = vmatpush1.msra.mxu0 %v1216
    %5005 = vmatprep.subr.mxu0 %v1209
    %5006 = vmatpush1.msra.mxu0 %v1208
    %5007 = vmatprep.subr.mxu0 %v1201
    %5008 = vmatpush1.msra.mxu0 %v1200
    %5009 = vmatprep.subr.mxu0 %v1193
    %5010 = vmatpush1.msra.mxu0 %v1192
    %5011 = vmatprep.subr.mxu0 %v1185
    %5012 = vmatpush1.msra.mxu0 %v1184
    %5013 = vmatprep.subr.mxu0 %v1177
    %5014 = vmatpush1.msra.mxu0 %v1176
    %5015 = vmatprep.subr.mxu0 %v1169
    %5016 = vmatpush1.msra.mxu0 %v1168
    %5017 = vmatprep.subr.mxu0 %v1161
    %5018 = vmatpush1.msra.mxu0 %v1160
    %5019 = vmatprep.subr.mxu0 %v1153
    %5020 = vmatpush1.msra.mxu0 %v1152
    %5021 = vmatprep.subr.mxu0 %v1145
    %5022 = vmatpush1.msra.mxu0 %v1144
    %5023 = vmatprep.subr.mxu0 %v1137
    %5024 = vmatpush1.msra.mxu0 %v1136
    %5025 = vmatprep.subr.mxu0 %v1385
    %5026 = vmatpush2.msra.mxu0 %v1384
    %5027 = vmatprep.subr.mxu0 %v1377
    %5028 = vmatpush2.msra.mxu0 %v1376
    %5029 = vmatprep.subr.mxu0 %v1369
    %5030 = vmatpush2.msra.mxu0 %v1368
    %5031 = vmatprep.subr.mxu0 %v1361
    %5032 = vmatpush2.msra.mxu0 %v1360
    %5033 = vmatprep.subr.mxu0 %v1353
    %5034 = vmatpush2.msra.mxu0 %v1352
    %5035 = vmatprep.subr.mxu0 %v1345
    %5036 = vmatpush2.msra.mxu0 %v1344
    %5037 = vmatprep.subr.mxu0 %v1337
    %5038 = vmatpush2.msra.mxu0 %v1336
    %5039 = vmatprep.subr.mxu0 %v1329
    %5040 = vmatpush2.msra.mxu0 %v1328
    %5041 = vmatprep.subr.mxu0 %v1321
    %5042 = vmatpush2.msra.mxu0 %v1320
    %5043 = vmatprep.subr.mxu0 %v1313
    %5044 = vmatpush2.msra.mxu0 %v1312
    %5045 = vmatprep.subr.mxu0 %v1305
    %5046 = vmatpush2.msra.mxu0 %v1304
    %5047 = vmatprep.subr.mxu0 %v1297
    %5048 = vmatpush2.msra.mxu0 %v1296
    %5049 = vmatprep.subr.mxu0 %v1289
    %5050 = vmatpush2.msra.mxu0 %v1288
    %5051 = vmatprep.subr.mxu0 %v1281
    %5052 = vmatpush2.msra.mxu0 %v1280
    %5053 = vmatprep.subr.mxu0 %v1273
    %5054 = vmatpush2.msra.mxu0 %v1272
    %5055 = vmatprep.subr.mxu0 %v1265
    %5056 = vmatpush2.msra.mxu0 %v1264
    %5057 = vmatprep.mubr.f32.mxu0 %v4297
    %5058 = vmatmul.mubr.f32.gmra.mxu0 %v4296
    %v5059 = vpop.f32.mrf.mxu0
    %v5060 = vadd.f32 %v4989, %v5059
    %v5061 = vpop.f32.mrf.mxu0
    %v5062 = vadd.f32 %v4991, %v5061
    %5063 = vdwg.mxu0
    %5064 = vmatprep.subr.mxu0 %v1003
    %5065 = vmatpush1.msra.mxu0 %v1002
    %5066 = vmatprep.subr.mxu0 %v995
    %5067 = vmatpush1.msra.mxu0 %v994
    %5068 = vmatprep.subr.mxu0 %v987
    %5069 = vmatpush1.msra.mxu0 %v986
    %5070 = vmatprep.subr.mxu0 %v979
    %5071 = vmatpush1.msra.mxu0 %v978
    %5072 = vmatprep.subr.mxu0 %v971
    %5073 = vmatpush1.msra.mxu0 %v970
    %5074 = vmatprep.subr.mxu0 %v963
    %5075 = vmatpush1.msra.mxu0 %v962
    %5076 = vmatprep.subr.mxu0 %v955
    %5077 = vmatpush1.msra.mxu0 %v954
    %5078 = vmatprep.subr.mxu0 %v947
    %5079 = vmatpush1.msra.mxu0 %v946
    %5080 = vmatprep.subr.mxu0 %v939
    %5081 = vmatpush1.msra.mxu0 %v938
    %5082 = vmatprep.subr.mxu0 %v931
    %5083 = vmatpush1.msra.mxu0 %v930
    %5084 = vmatprep.subr.mxu0 %v923
    %5085 = vmatpush1.msra.mxu0 %v922
    %5086 = vmatprep.subr.mxu0 %v915
    %5087 = vmatpush1.msra.mxu0 %v914
    %5088 = vmatprep.subr.mxu0 %v907
    %5089 = vmatpush1.msra.mxu0 %v906
    %5090 = vmatprep.subr.mxu0 %v899
    %5091 = vmatpush1.msra.mxu0 %v898
    %5092 = vmatprep.subr.mxu0 %v891
    %5093 = vmatpush1.msra.mxu0 %v890
    %5094 = vmatprep.subr.mxu0 %v883
    %5095 = vmatpush1.msra.mxu0 %v882
    %5096 = vmatprep.subr.mxu0 %v1131
    %5097 = vmatpush2.msra.mxu0 %v1130
    %5098 = vmatprep.subr.mxu0 %v1123
    %5099 = vmatpush2.msra.mxu0 %v1122
    %5100 = vmatprep.subr.mxu0 %v1115
    %5101 = vmatpush2.msra.mxu0 %v1114
    %5102 = vmatprep.subr.mxu0 %v1107
    %5103 = vmatpush2.msra.mxu0 %v1106
    %5104 = vmatprep.subr.mxu0 %v1099
    %5105 = vmatpush2.msra.mxu0 %v1098
    %5106 = vmatprep.subr.mxu0 %v1091
    %5107 = vmatpush2.msra.mxu0 %v1090
    %5108 = vmatprep.subr.mxu0 %v1083
    %5109 = vmatpush2.msra.mxu0 %v1082
    %5110 = vmatprep.subr.mxu0 %v1075
    %5111 = vmatpush2.msra.mxu0 %v1074
    %5112 = vmatprep.subr.mxu0 %v1067
    %5113 = vmatpush2.msra.mxu0 %v1066
    %5114 = vmatprep.subr.mxu0 %v1059
    %5115 = vmatpush2.msra.mxu0 %v1058
    %5116 = vmatprep.subr.mxu0 %v1051
    %5117 = vmatpush2.msra.mxu0 %v1050
    %5118 = vmatprep.subr.mxu0 %v1043
    %5119 = vmatpush2.msra.mxu0 %v1042
    %5120 = vmatprep.subr.mxu0 %v1035
    %5121 = vmatpush2.msra.mxu0 %v1034
    %5122 = vmatprep.subr.mxu0 %v1027
    %5123 = vmatpush2.msra.mxu0 %v1026
    %5124 = vmatprep.subr.mxu0 %v1019
    %5125 = vmatpush2.msra.mxu0 %v1018
    %5126 = vmatprep.subr.mxu0 %v1011
    %5127 = vmatpush2.msra.mxu0 %v1010
    %5128 = vmatprep.mubr.f32.mxu0 %v4637
    %5129 = vmatmul.mubr.f32.gmra.mxu0 %v4636
    %v5130 = vpop.f32.mrf.mxu0
    %v5131 = vadd.f32 %v1757, %v5130
    %v5132 = vpop.f32.mrf.mxu0
    %v5133 = vadd.f32 %v1761, %v5132
    %5134 = vdwg.mxu0
    %5135 = vmatprep.subr.mxu0 %v1259
    %5136 = vmatpush1.msra.mxu0 %v1258
    %5137 = vmatprep.subr.mxu0 %v1251
    %5138 = vmatpush1.msra.mxu0 %v1250
    %5139 = vmatprep.subr.mxu0 %v1243
    %5140 = vmatpush1.msra.mxu0 %v1242
    %5141 = vmatprep.subr.mxu0 %v1235
    %5142 = vmatpush1.msra.mxu0 %v1234
    %5143 = vmatprep.subr.mxu0 %v1227
    %5144 = vmatpush1.msra.mxu0 %v1226
    %5145 = vmatprep.subr.mxu0 %v1219
    %5146 = vmatpush1.msra.mxu0 %v1218
    %5147 = vmatprep.subr.mxu0 %v1211
    %5148 = vmatpush1.msra.mxu0 %v1210
    %5149 = vmatprep.subr.mxu0 %v1203
    %5150 = vmatpush1.msra.mxu0 %v1202
    %5151 = vmatprep.subr.mxu0 %v1195
    %5152 = vmatpush1.msra.mxu0 %v1194
    %5153 = vmatprep.subr.mxu0 %v1187
    %5154 = vmatpush1.msra.mxu0 %v1186
    %5155 = vmatprep.subr.mxu0 %v1179
    %5156 = vmatpush1.msra.mxu0 %v1178
    %5157 = vmatprep.subr.mxu0 %v1171
    %5158 = vmatpush1.msra.mxu0 %v1170
    %5159 = vmatprep.subr.mxu0 %v1163
    %5160 = vmatpush1.msra.mxu0 %v1162
    %5161 = vmatprep.subr.mxu0 %v1155
    %5162 = vmatpush1.msra.mxu0 %v1154
    %5163 = vmatprep.subr.mxu0 %v1147
    %5164 = vmatpush1.msra.mxu0 %v1146
    %5165 = vmatprep.subr.mxu0 %v1139
    %5166 = vmatpush1.msra.mxu0 %v1138
    %5167 = vmatprep.subr.mxu0 %v1387
    %5168 = vmatpush2.msra.mxu0 %v1386
    %5169 = vmatprep.subr.mxu0 %v1379
    %5170 = vmatpush2.msra.mxu0 %v1378
    %5171 = vmatprep.subr.mxu0 %v1371
    %5172 = vmatpush2.msra.mxu0 %v1370
    %5173 = vmatprep.subr.mxu0 %v1363
    %5174 = vmatpush2.msra.mxu0 %v1362
    %5175 = vmatprep.subr.mxu0 %v1355
    %5176 = vmatpush2.msra.mxu0 %v1354
    %5177 = vmatprep.subr.mxu0 %v1347
    %5178 = vmatpush2.msra.mxu0 %v1346
    %5179 = vmatprep.subr.mxu0 %v1339
    %5180 = vmatpush2.msra.mxu0 %v1338
    %5181 = vmatprep.subr.mxu0 %v1331
    %5182 = vmatpush2.msra.mxu0 %v1330
    %5183 = vmatprep.subr.mxu0 %v1323
    %5184 = vmatpush2.msra.mxu0 %v1322
    %5185 = vmatprep.subr.mxu0 %v1315
    %5186 = vmatpush2.msra.mxu0 %v1314
    %5187 = vmatprep.subr.mxu0 %v1307
    %5188 = vmatpush2.msra.mxu0 %v1306
    %5189 = vmatprep.subr.mxu0 %v1299
    %5190 = vmatpush2.msra.mxu0 %v1298
    %5191 = vmatprep.subr.mxu0 %v1291
    %5192 = vmatpush2.msra.mxu0 %v1290
    %5193 = vmatprep.subr.mxu0 %v1283
    %5194 = vmatpush2.msra.mxu0 %v1282
    %5195 = vmatprep.subr.mxu0 %v1275
    %5196 = vmatpush2.msra.mxu0 %v1274
    %5197 = vmatprep.subr.mxu0 %v1267
    %5198 = vmatpush2.msra.mxu0 %v1266
    %5199 = vmatprep.mubr.f32.mxu0 %v4297
    %5200 = vmatmul.mubr.f32.gmra.mxu0 %v4296
    %v5201 = vpop.f32.mrf.mxu0
    %v5202 = vadd.f32 %v5131, %v5201
    %v5203 = vpop.f32.mrf.mxu0
    %v5204 = vadd.f32 %v5133, %v5203
    %5205 = vdwg.mxu0
    %v5206 = vxor.u32 %v4776, 2147483648
    %v5207 = vxor.u32 %v4778, 2147483648
    %v5208 = vxor.u32 %v4918, 2147483648
    %v5209 = vxor.u32 %v4920, 2147483648
    %v5210 = vxor.u32 %v5060, 2147483648
    %v5211 = vxor.u32 %v5062, 2147483648
    %v5212 = vmul.f32 %v5206, 1.442695
    %v5213 = vpow.pop %v5212
    %v5214 = vmul.f32 %v5207, 1.442695
    %v5215 = vpow.pop %v5214
    %v5216 = vmul.f32 %v5208, 1.442695
    %v5217 = vpow.pop %v5216
    %v5218 = vmul.f32 %v5209, 1.442695
    %v5219 = vpow.pop %v5218
    %v5220 = vmul.f32 %v5210, 1.442695
    %v5221 = vpow.pop %v5220
    %v5222 = vmul.f32 %v5211, 1.442695
    %v5223 = vpow.pop %v5222
    %v5224 = vadd.f32 %v5213, 1.0
    %v5225 = vadd.f32 %v5215, 1.0
    %v5226 = vadd.f32 %v5217, 1.0
    %v5227 = vadd.f32 %v5219, 1.0
    %v5228 = vadd.f32 %v5221, 1.0
    %v5229 = vadd.f32 %v5223, 1.0
    %v5230 = vrcp.pop %v5224
    %v5231 = vmul.f32 1.0, %v5230
    %v5232 = vrcp.pop %v5225
    %v5233 = vmul.f32 1.0, %v5232
    %v5234 = vrcp.pop %v5226
    %v5235 = vmul.f32 1.0, %v5234
    %v5236 = vrcp.pop %v5227
    %v5237 = vmul.f32 1.0, %v5236
    %v5238 = vrcp.pop %v5228
    %v5239 = vmul.f32 1.0, %v5238
    %v5240 = vrcp.pop %v5229
    %v5241 = vmul.f32 1.0, %v5240
    %v5242 = vtanh.pop %v5202
    %v5243 = vtanh.pop %v5204
    %v5244 = vmul.f32 %v5235, %v4292
    %v5245 = vmul.f32 %v5237, %v4293
    %v5246 = vmul.f32 %v5231, %v5242
    %v5247 = vmul.f32 %v5233, %v5243
    %v5248 = vadd.f32 %v5244, %v5246
    %v5249 = vadd.f32 %v5245, %v5247
    %v5250 = vtanh.pop %v5248
    %v5251 = vtanh.pop %v5249
    %v5252 = vmul.f32 %v5239, %v5250
    %v5253 = vmul.f32 %v5241, %v5251
    %5254 = vmatprep.subr.mxu0 %v741
    %5255 = vmatpush1.msra.mxu0 %v740
    %5256 = vmatprep.subr.mxu0 %v733
    %5257 = vmatpush1.msra.mxu0 %v732
    %5258 = vmatprep.subr.mxu0 %v725
    %5259 = vmatpush1.msra.mxu0 %v724
    %5260 = vmatprep.subr.mxu0 %v717
    %5261 = vmatpush1.msra.mxu0 %v716
    %5262 = vmatprep.subr.mxu0 %v709
    %5263 = vmatpush1.msra.mxu0 %v708
    %5264 = vmatprep.subr.mxu0 %v701
    %5265 = vmatpush1.msra.mxu0 %v700
    %5266 = vmatprep.subr.mxu0 %v693
    %5267 = vmatpush1.msra.mxu0 %v692
    %5268 = vmatprep.subr.mxu0 %v685
    %5269 = vmatpush1.msra.mxu0 %v684
    %5270 = vmatprep.subr.mxu0 %v677
    %5271 = vmatpush1.msra.mxu0 %v676
    %5272 = vmatprep.subr.mxu0 %v669
    %5273 = vmatpush1.msra.mxu0 %v668
    %5274 = vmatprep.subr.mxu0 %v661
    %5275 = vmatpush1.msra.mxu0 %v660
    %5276 = vmatprep.subr.mxu0 %v653
    %5277 = vmatpush1.msra.mxu0 %v652
    %5278 = vmatprep.subr.mxu0 %v645
    %5279 = vmatpush1.msra.mxu0 %v644
    %5280 = vmatprep.subr.mxu0 %v637
    %5281 = vmatpush1.msra.mxu0 %v636
    %5282 = vmatprep.subr.mxu0 %v629
    %5283 = vmatpush1.msra.mxu0 %v628
    %5284 = vmatprep.subr.mxu0 %v621
    %5285 = vmatpush1.msra.mxu0 %v620
    %5286 = vmatprep.subr.mxu0 %v869
    %5287 = vmatpush2.msra.mxu0 %v868
    %5288 = vmatprep.subr.mxu0 %v861
    %5289 = vmatpush2.msra.mxu0 %v860
    %5290 = vmatprep.subr.mxu0 %v853
    %5291 = vmatpush2.msra.mxu0 %v852
    %5292 = vmatprep.subr.mxu0 %v845
    %5293 = vmatpush2.msra.mxu0 %v844
    %5294 = vmatprep.subr.mxu0 %v837
    %5295 = vmatpush2.msra.mxu0 %v836
    %5296 = vmatprep.subr.mxu0 %v829
    %5297 = vmatpush2.msra.mxu0 %v828
    %5298 = vmatprep.subr.mxu0 %v821
    %5299 = vmatpush2.msra.mxu0 %v820
    %5300 = vmatprep.subr.mxu0 %v813
    %5301 = vmatpush2.msra.mxu0 %v812
    %5302 = vmatprep.subr.mxu0 %v805
    %5303 = vmatpush2.msra.mxu0 %v804
    %5304 = vmatprep.subr.mxu0 %v797
    %5305 = vmatpush2.msra.mxu0 %v796
    %5306 = vmatprep.subr.mxu0 %v789
    %5307 = vmatpush2.msra.mxu0 %v788
    %5308 = vmatprep.subr.mxu0 %v781
    %5309 = vmatpush2.msra.mxu0 %v780
    %5310 = vmatprep.subr.mxu0 %v773
    %5311 = vmatpush2.msra.mxu0 %v772
    %5312 = vmatprep.subr.mxu0 %v765
    %5313 = vmatpush2.msra.mxu0 %v764
    %5314 = vmatprep.subr.mxu0 %v757
    %5315 = vmatpush2.msra.mxu0 %v756
    %5316 = vmatprep.subr.mxu0 %v749
    %5317 = vmatpush2.msra.mxu0 %v748
    %5318 = vmatprep.mubr.f32.mxu0 %v4637
    %5319 = vmatmul.mubr.f32.gmra.mxu0 %v4636
    %v5320 = vpop.f32.mrf.mxu0
    %v5321 = vadd.f32 0.0, %v5320
    %v5322 = vpop.f32.mrf.mxu0
    %v5323 = vadd.f32 0.0, %v5322
    %5324 = vdwg.mxu0
    %5325 = vmatprep.subr.mxu0 %v743
    %5326 = vmatpush1.msra.mxu0 %v742
    %5327 = vmatprep.subr.mxu0 %v735
    %5328 = vmatpush1.msra.mxu0 %v734
    %5329 = vmatprep.subr.mxu0 %v727
    %5330 = vmatpush1.msra.mxu0 %v726
    %5331 = vmatprep.subr.mxu0 %v719
    %5332 = vmatpush1.msra.mxu0 %v718
    %5333 = vmatprep.subr.mxu0 %v711
    %5334 = vmatpush1.msra.mxu0 %v710
    %5335 = vmatprep.subr.mxu0 %v703
    %5336 = vmatpush1.msra.mxu0 %v702
    %5337 = vmatprep.subr.mxu0 %v695
    %5338 = vmatpush1.msra.mxu0 %v694
    %5339 = vmatprep.subr.mxu0 %v687
    %5340 = vmatpush1.msra.mxu0 %v686
    %5341 = vmatprep.subr.mxu0 %v679
    %5342 = vmatpush1.msra.mxu0 %v678
    %5343 = vmatprep.subr.mxu0 %v671
    %5344 = vmatpush1.msra.mxu0 %v670
    %5345 = vmatprep.subr.mxu0 %v663
    %5346 = vmatpush1.msra.mxu0 %v662
    %5347 = vmatprep.subr.mxu0 %v655
    %5348 = vmatpush1.msra.mxu0 %v654
    %5349 = vmatprep.subr.mxu0 %v647
    %5350 = vmatpush1.msra.mxu0 %v646
    %5351 = vmatprep.subr.mxu0 %v639
    %5352 = vmatpush1.msra.mxu0 %v638
    %5353 = vmatprep.subr.mxu0 %v631
    %5354 = vmatpush1.msra.mxu0 %v630
    %5355 = vmatprep.subr.mxu0 %v623
    %5356 = vmatpush1.msra.mxu0 %v622
    %5357 = vmatprep.subr.mxu0 %v871
    %5358 = vmatpush2.msra.mxu0 %v870
    %5359 = vmatprep.subr.mxu0 %v863
    %5360 = vmatpush2.msra.mxu0 %v862
    %5361 = vmatprep.subr.mxu0 %v855
    %5362 = vmatpush2.msra.mxu0 %v854
    %5363 = vmatprep.subr.mxu0 %v847
    %5364 = vmatpush2.msra.mxu0 %v846
    %5365 = vmatprep.subr.mxu0 %v839
    %5366 = vmatpush2.msra.mxu0 %v838
    %5367 = vmatprep.subr.mxu0 %v831
    %5368 = vmatpush2.msra.mxu0 %v830
    %5369 = vmatprep.subr.mxu0 %v823
    %5370 = vmatpush2.msra.mxu0 %v822
    %5371 = vmatprep.subr.mxu0 %v815
    %5372 = vmatpush2.msra.mxu0 %v814
    %5373 = vmatprep.subr.mxu0 %v807
    %5374 = vmatpush2.msra.mxu0 %v806
    %5375 = vmatprep.subr.mxu0 %v799
    %5376 = vmatpush2.msra.mxu0 %v798
    %5377 = vmatprep.subr.mxu0 %v791
    %5378 = vmatpush2.msra.mxu0 %v790
    %5379 = vmatprep.subr.mxu0 %v783
    %5380 = vmatpush2.msra.mxu0 %v782
    %5381 = vmatprep.subr.mxu0 %v775
    %5382 = vmatpush2.msra.mxu0 %v774
    %5383 = vmatprep.subr.mxu0 %v767
    %5384 = vmatpush2.msra.mxu0 %v766
    %5385 = vmatprep.subr.mxu0 %v759
    %5386 = vmatpush2.msra.mxu0 %v758
    %5387 = vmatprep.subr.mxu0 %v751
    %5388 = vmatpush2.msra.mxu0 %v750
    %5389 = vmatprep.mubr.f32.mxu0 %v4637
    %5390 = vmatmul.mubr.f32.gmra.mxu0 %v4636
    %v5391 = vpop.f32.mrf.mxu0
    %v5392 = vadd.f32 0.0, %v5391
    %v5393 = vpop.f32.mrf.mxu0
    %v5394 = vadd.f32 0.0, %v5393
    %5395 = vdwg.mxu0
    %5396 = vmatprep.subr.mxu0 %v745
    %5397 = vmatpush1.msra.mxu0 %v744
    %5398 = vmatprep.subr.mxu0 %v737
    %5399 = vmatpush1.msra.mxu0 %v736
    %5400 = vmatprep.subr.mxu0 %v729
    %5401 = vmatpush1.msra.mxu0 %v728
    %5402 = vmatprep.subr.mxu0 %v721
    %5403 = vmatpush1.msra.mxu0 %v720
    %5404 = vmatprep.subr.mxu0 %v713
    %5405 = vmatpush1.msra.mxu0 %v712
    %5406 = vmatprep.subr.mxu0 %v705
    %5407 = vmatpush1.msra.mxu0 %v704
    %5408 = vmatprep.subr.mxu0 %v697
    %5409 = vmatpush1.msra.mxu0 %v696
    %5410 = vmatprep.subr.mxu0 %v689
    %5411 = vmatpush1.msra.mxu0 %v688
    %5412 = vmatprep.subr.mxu0 %v681
    %5413 = vmatpush1.msra.mxu0 %v680
    %5414 = vmatprep.subr.mxu0 %v673
    %5415 = vmatpush1.msra.mxu0 %v672
    %5416 = vmatprep.subr.mxu0 %v665
    %5417 = vmatpush1.msra.mxu0 %v664
    %5418 = vmatprep.subr.mxu0 %v657
    %5419 = vmatpush1.msra.mxu0 %v656
    %5420 = vmatprep.subr.mxu0 %v649
    %5421 = vmatpush1.msra.mxu0 %v648
    %5422 = vmatprep.subr.mxu0 %v641
    %5423 = vmatpush1.msra.mxu0 %v640
    %5424 = vmatprep.subr.mxu0 %v633
    %5425 = vmatpush1.msra.mxu0 %v632
    %5426 = vmatprep.subr.mxu0 %v625
    %5427 = vmatpush1.msra.mxu0 %v624
    %5428 = vmatprep.subr.mxu0 %v873
    %5429 = vmatpush2.msra.mxu0 %v872
    %5430 = vmatprep.subr.mxu0 %v865
    %5431 = vmatpush2.msra.mxu0 %v864
    %5432 = vmatprep.subr.mxu0 %v857
    %5433 = vmatpush2.msra.mxu0 %v856
    %5434 = vmatprep.subr.mxu0 %v849
    %5435 = vmatpush2.msra.mxu0 %v848
    %5436 = vmatprep.subr.mxu0 %v841
    %5437 = vmatpush2.msra.mxu0 %v840
    %5438 = vmatprep.subr.mxu0 %v833
    %5439 = vmatpush2.msra.mxu0 %v832
    %5440 = vmatprep.subr.mxu0 %v825
    %5441 = vmatpush2.msra.mxu0 %v824
    %5442 = vmatprep.subr.mxu0 %v817
    %5443 = vmatpush2.msra.mxu0 %v816
    %5444 = vmatprep.subr.mxu0 %v809
    %5445 = vmatpush2.msra.mxu0 %v808
    %5446 = vmatprep.subr.mxu0 %v801
    %5447 = vmatpush2.msra.mxu0 %v800
    %5448 = vmatprep.subr.mxu0 %v793
    %5449 = vmatpush2.msra.mxu0 %v792
    %5450 = vmatprep.subr.mxu0 %v785
    %5451 = vmatpush2.msra.mxu0 %v784
    %5452 = vmatprep.subr.mxu0 %v777
    %5453 = vmatpush2.msra.mxu0 %v776
    %5454 = vmatprep.subr.mxu0 %v769
    %5455 = vmatpush2.msra.mxu0 %v768
    %5456 = vmatprep.subr.mxu0 %v761
    %5457 = vmatpush2.msra.mxu0 %v760
    %5458 = vmatprep.subr.mxu0 %v753
    %5459 = vmatpush2.msra.mxu0 %v752
    %5460 = vmatprep.mubr.f32.mxu0 %v4637
    %5461 = vmatmul.mubr.f32.gmra.mxu0 %v4636
    %v5462 = vpop.f32.mrf.mxu0
    %v5463 = vadd.f32 0.0, %v5462
    %v5464 = vpop.f32.mrf.mxu0
    %v5465 = vadd.f32 0.0, %v5464
    %5466 = vdwg.mxu0
    %5467 = vmatprep.subr.mxu0 %v747
    %5468 = vmatpush1.msra.mxu0 %v746
    %5469 = vmatprep.subr.mxu0 %v739
    %5470 = vmatpush1.msra.mxu0 %v738
    %5471 = vmatprep.subr.mxu0 %v731
    %5472 = vmatpush1.msra.mxu0 %v730
    %5473 = vmatprep.subr.mxu0 %v723
    %5474 = vmatpush1.msra.mxu0 %v722
    %5475 = vmatprep.subr.mxu0 %v715
    %5476 = vmatpush1.msra.mxu0 %v714
    %5477 = vmatprep.subr.mxu0 %v707
    %5478 = vmatpush1.msra.mxu0 %v706
    %5479 = vmatprep.subr.mxu0 %v699
    %5480 = vmatpush1.msra.mxu0 %v698
    %5481 = vmatprep.subr.mxu0 %v691
    %5482 = vmatpush1.msra.mxu0 %v690
    %5483 = vmatprep.subr.mxu0 %v683
    %5484 = vmatpush1.msra.mxu0 %v682
    %5485 = vmatprep.subr.mxu0 %v675
    %5486 = vmatpush1.msra.mxu0 %v674
    %5487 = vmatprep.subr.mxu0 %v667
    %5488 = vmatpush1.msra.mxu0 %v666
    %5489 = vmatprep.subr.mxu0 %v659
    %5490 = vmatpush1.msra.mxu0 %v658
    %5491 = vmatprep.subr.mxu0 %v651
    %5492 = vmatpush1.msra.mxu0 %v650
    %5493 = vmatprep.subr.mxu0 %v643
    %5494 = vmatpush1.msra.mxu0 %v642
    %5495 = vmatprep.subr.mxu0 %v635
    %5496 = vmatpush1.msra.mxu0 %v634
    %5497 = vmatprep.subr.mxu0 %v627
    %5498 = vmatpush1.msra.mxu0 %v626
    %5499 = vmatprep.subr.mxu0 %v875
    %5500 = vmatpush2.msra.mxu0 %v874
    %5501 = vmatprep.subr.mxu0 %v867
    %5502 = vmatpush2.msra.mxu0 %v866
    %5503 = vmatprep.subr.mxu0 %v859
    %5504 = vmatpush2.msra.mxu0 %v858
    %5505 = vmatprep.subr.mxu0 %v851
    %5506 = vmatpush2.msra.mxu0 %v850
    %5507 = vmatprep.subr.mxu0 %v843
    %5508 = vmatpush2.msra.mxu0 %v842
    %5509 = vmatprep.subr.mxu0 %v835
    %5510 = vmatpush2.msra.mxu0 %v834
    %5511 = vmatprep.subr.mxu0 %v827
    %5512 = vmatpush2.msra.mxu0 %v826
    %5513 = vmatprep.subr.mxu0 %v819
    %5514 = vmatpush2.msra.mxu0 %v818
    %5515 = vmatprep.subr.mxu0 %v811
    %5516 = vmatpush2.msra.mxu0 %v810
    %5517 = vmatprep.subr.mxu0 %v803
    %5518 = vmatpush2.msra.mxu0 %v802
    %5519 = vmatprep.subr.mxu0 %v795
    %5520 = vmatpush2.msra.mxu0 %v794
    %5521 = vmatprep.subr.mxu0 %v787
    %5522 = vmatpush2.msra.mxu0 %v786
    %5523 = vmatprep.subr.mxu0 %v779
    %5524 = vmatpush2.msra.mxu0 %v778
    %5525 = vmatprep.subr.mxu0 %v771
    %5526 = vmatpush2.msra.mxu0 %v770
    %5527 = vmatprep.subr.mxu0 %v763
    %5528 = vmatpush2.msra.mxu0 %v762
    %5529 = vmatprep.subr.mxu0 %v755
    %5530 = vmatpush2.msra.mxu0 %v754
    %5531 = vmatprep.mubr.f32.mxu0 %v4637
    %5532 = vmatmul.mubr.f32.gmra.mxu0 %v4636
    %v5533 = vpop.f32.mrf.mxu0
    %v5534 = vadd.f32 0.0, %v5533
    %v5535 = vpop.f32.mrf.mxu0
    %v5536 = vadd.f32 0.0, %v5535
    %5537 = vdwg.mxu0
    %v5538 = vadd.f32 %v259, %v5321
    %v5539 = vadd.f32 %v261, %v5323
    %v5540 = vadd.f32 %v372, %v5392
    %v5541 = vadd.f32 %v374, %v5394
    %v5542 = vadd.f32 %v485, %v5463
    %v5543 = vadd.f32 %v487, %v5465
    %v5544 = vadd.f32 %v598, %v5534
    %v5545 = vadd.f32 %v600, %v5536
    %v5546 = vxor.u32 %v5538, 2147483648
    %v5547 = vxor.u32 %v5539, 2147483648
    %v5548 = vxor.u32 %v5540, 2147483648
    %v5549 = vxor.u32 %v5541, 2147483648
    %v5550 = vxor.u32 %v5542, 2147483648
    %v5551 = vxor.u32 %v5543, 2147483648
    %v5552 = vmul.f32 %v5546, 1.442695
    %v5553 = vpow.pop %v5552
    %v5554 = vmul.f32 %v5547, 1.442695
    %v5555 = vpow.pop %v5554
    %v5556 = vmul.f32 %v5548, 1.442695
    %v5557 = vpow.pop %v5556
    %v5558 = vmul.f32 %v5549, 1.442695
    %v5559 = vpow.pop %v5558
    %v5560 = vmul.f32 %v5550, 1.442695
    %v5561 = vpow.pop %v5560
    %v5562 = vmul.f32 %v5551, 1.442695
    %v5563 = vpow.pop %v5562
    %v5564 = vadd.f32 %v5553, 1.0
    %v5565 = vadd.f32 %v5555, 1.0
    %v5566 = vadd.f32 %v5557, 1.0
    %v5567 = vadd.f32 %v5559, 1.0
    %v5568 = vadd.f32 %v5561, 1.0
    %v5569 = vadd.f32 %v5563, 1.0
    %v5570 = vrcp.pop %v5564
    %v5571 = vmul.f32 1.0, %v5570
    %v5572 = vrcp.pop %v5565
    %v5573 = vmul.f32 1.0, %v5572
    %v5574 = vrcp.pop %v5566
    %v5575 = vmul.f32 1.0, %v5574
    %v5576 = vrcp.pop %v5567
    %v5577 = vmul.f32 1.0, %v5576
    %v5578 = vrcp.pop %v5568
    %v5579 = vmul.f32 1.0, %v5578
    %v5580 = vrcp.pop %v5569
    %v5581 = vmul.f32 1.0, %v5580
    %v5582 = vtanh.pop %v5544
    %v5583 = vtanh.pop %v5545
    %v5584 = vmul.f32 %v5575, %v4632
    %v5585 = vmul.f32 %v5577, %v4633
    %v5586 = vmul.f32 %v5571, %v5582
    %v5587 = vmul.f32 %v5573, %v5583
    %v5588 = vadd.f32 %v5584, %v5586
    %v5589 = vadd.f32 %v5585, %v5587
    %v5590 = vtanh.pop %v5588
    %v5591 = vtanh.pop %v5589
    %v5592 = vmul.f32 %v5579, %v5590
    %v5593 = vmul.f32 %v5581, %v5591
    %5594 = vmatprep.subr.mxu0 %v997
    %5595 = vmatpush1.msra.mxu0 %v996
    %5596 = vmatprep.subr.mxu0 %v989
    %5597 = vmatpush1.msra.mxu0 %v988
    %5598 = vmatprep.subr.mxu0 %v981
    %5599 = vmatpush1.msra.mxu0 %v980
    %5600 = vmatprep.subr.mxu0 %v973
    %5601 = vmatpush1.msra.mxu0 %v972
    %5602 = vmatprep.subr.mxu0 %v965
    %5603 = vmatpush1.msra.mxu0 %v964
    %5604 = vmatprep.subr.mxu0 %v957
    %5605 = vmatpush1.msra.mxu0 %v956
    %5606 = vmatprep.subr.mxu0 %v949
    %5607 = vmatpush1.msra.mxu0 %v948
    %5608 = vmatprep.subr.mxu0 %v941
    %5609 = vmatpush1.msra.mxu0 %v940
    %5610 = vmatprep.subr.mxu0 %v933
    %5611 = vmatpush1.msra.mxu0 %v932
    %5612 = vmatprep.subr.mxu0 %v925
    %5613 = vmatpush1.msra.mxu0 %v924
    %5614 = vmatprep.subr.mxu0 %v917
    %5615 = vmatpush1.msra.mxu0 %v916
    %5616 = vmatprep.subr.mxu0 %v909
    %5617 = vmatpush1.msra.mxu0 %v908
    %5618 = vmatprep.subr.mxu0 %v901
    %5619 = vmatpush1.msra.mxu0 %v900
    %5620 = vmatprep.subr.mxu0 %v893
    %5621 = vmatpush1.msra.mxu0 %v892
    %5622 = vmatprep.subr.mxu0 %v885
    %5623 = vmatpush1.msra.mxu0 %v884
    %5624 = vmatprep.subr.mxu0 %v877
    %5625 = vmatpush1.msra.mxu0 %v876
    %5626 = vmatprep.subr.mxu0 %v1125
    %5627 = vmatpush2.msra.mxu0 %v1124
    %5628 = vmatprep.subr.mxu0 %v1117
    %5629 = vmatpush2.msra.mxu0 %v1116
    %5630 = vmatprep.subr.mxu0 %v1109
    %5631 = vmatpush2.msra.mxu0 %v1108
    %5632 = vmatprep.subr.mxu0 %v1101
    %5633 = vmatpush2.msra.mxu0 %v1100
    %5634 = vmatprep.subr.mxu0 %v1093
    %5635 = vmatpush2.msra.mxu0 %v1092
    %5636 = vmatprep.subr.mxu0 %v1085
    %5637 = vmatpush2.msra.mxu0 %v1084
    %5638 = vmatprep.subr.mxu0 %v1077
    %5639 = vmatpush2.msra.mxu0 %v1076
    %5640 = vmatprep.subr.mxu0 %v1069
    %5641 = vmatpush2.msra.mxu0 %v1068
    %5642 = vmatprep.subr.mxu0 %v1061
    %5643 = vmatpush2.msra.mxu0 %v1060
    %5644 = vmatprep.subr.mxu0 %v1053
    %5645 = vmatpush2.msra.mxu0 %v1052
    %5646 = vmatprep.subr.mxu0 %v1045
    %5647 = vmatpush2.msra.mxu0 %v1044
    %5648 = vmatprep.subr.mxu0 %v1037
    %5649 = vmatpush2.msra.mxu0 %v1036
    %5650 = vmatprep.subr.mxu0 %v1029
    %5651 = vmatpush2.msra.mxu0 %v1028
    %5652 = vmatprep.subr.mxu0 %v1021
    %5653 = vmatpush2.msra.mxu0 %v1020
    %5654 = vmatprep.subr.mxu0 %v1013
    %5655 = vmatpush2.msra.mxu0 %v1012
    %5656 = vmatprep.subr.mxu0 %v1005
    %5657 = vmatpush2.msra.mxu0 %v1004
    %5658 = vmatprep.mubr.f32.mxu0 %v5593
    %5659 = vmatmul.mubr.f32.gmra.mxu0 %v5592
    %v5660 = vpop.f32.mrf.mxu0
    %v5661 = vadd.f32 %v1733, %v5660
    %v5662 = vpop.f32.mrf.mxu0
    %v5663 = vadd.f32 %v1737, %v5662
    %5664 = vdwg.mxu0
    %5665 = vmatprep.subr.mxu0 %v1253
    %5666 = vmatpush1.msra.mxu0 %v1252
    %5667 = vmatprep.subr.mxu0 %v1245
    %5668 = vmatpush1.msra.mxu0 %v1244
    %5669 = vmatprep.subr.mxu0 %v1237
    %5670 = vmatpush1.msra.mxu0 %v1236
    %5671 = vmatprep.subr.mxu0 %v1229
    %5672 = vmatpush1.msra.mxu0 %v1228
    %5673 = vmatprep.subr.mxu0 %v1221
    %5674 = vmatpush1.msra.mxu0 %v1220
    %5675 = vmatprep.subr.mxu0 %v1213
    %5676 = vmatpush1.msra.mxu0 %v1212
    %5677 = vmatprep.subr.mxu0 %v1205
    %5678 = vmatpush1.msra.mxu0 %v1204
    %5679 = vmatprep.subr.mxu0 %v1197
    %5680 = vmatpush1.msra.mxu0 %v1196
    %5681 = vmatprep.subr.mxu0 %v1189
    %5682 = vmatpush1.msra.mxu0 %v1188
    %5683 = vmatprep.subr.mxu0 %v1181
    %5684 = vmatpush1.msra.mxu0 %v1180
    %5685 = vmatprep.subr.mxu0 %v1173
    %5686 = vmatpush1.msra.mxu0 %v1172
    %5687 = vmatprep.subr.mxu0 %v1165
    %5688 = vmatpush1.msra.mxu0 %v1164
    %5689 = vmatprep.subr.mxu0 %v1157
    %5690 = vmatpush1.msra.mxu0 %v1156
    %5691 = vmatprep.subr.mxu0 %v1149
    %5692 = vmatpush1.msra.mxu0 %v1148
    %5693 = vmatprep.subr.mxu0 %v1141
    %5694 = vmatpush1.msra.mxu0 %v1140
    %5695 = vmatprep.subr.mxu0 %v1133
    %5696 = vmatpush1.msra.mxu0 %v1132
    %5697 = vmatprep.subr.mxu0 %v1381
    %5698 = vmatpush2.msra.mxu0 %v1380
    %5699 = vmatprep.subr.mxu0 %v1373
    %5700 = vmatpush2.msra.mxu0 %v1372
    %5701 = vmatprep.subr.mxu0 %v1365
    %5702 = vmatpush2.msra.mxu0 %v1364
    %5703 = vmatprep.subr.mxu0 %v1357
    %5704 = vmatpush2.msra.mxu0 %v1356
    %5705 = vmatprep.subr.mxu0 %v1349
    %5706 = vmatpush2.msra.mxu0 %v1348
    %5707 = vmatprep.subr.mxu0 %v1341
    %5708 = vmatpush2.msra.mxu0 %v1340
    %5709 = vmatprep.subr.mxu0 %v1333
    %5710 = vmatpush2.msra.mxu0 %v1332
    %5711 = vmatprep.subr.mxu0 %v1325
    %5712 = vmatpush2.msra.mxu0 %v1324
    %5713 = vmatprep.subr.mxu0 %v1317
    %5714 = vmatpush2.msra.mxu0 %v1316
    %5715 = vmatprep.subr.mxu0 %v1309
    %5716 = vmatpush2.msra.mxu0 %v1308
    %5717 = vmatprep.subr.mxu0 %v1301
    %5718 = vmatpush2.msra.mxu0 %v1300
    %5719 = vmatprep.subr.mxu0 %v1293
    %5720 = vmatpush2.msra.mxu0 %v1292
    %5721 = vmatprep.subr.mxu0 %v1285
    %5722 = vmatpush2.msra.mxu0 %v1284
    %5723 = vmatprep.subr.mxu0 %v1277
    %5724 = vmatpush2.msra.mxu0 %v1276
    %5725 = vmatprep.subr.mxu0 %v1269
    %5726 = vmatpush2.msra.mxu0 %v1268
    %5727 = vmatprep.subr.mxu0 %v1261
    %5728 = vmatpush2.msra.mxu0 %v1260
    %5729 = vmatprep.mubr.f32.mxu0 %v5253
    %5730 = vmatmul.mubr.f32.gmra.mxu0 %v5252
    %v5731 = vpop.f32.mrf.mxu0
    %v5732 = vadd.f32 %v5661, %v5731
    %v5733 = vpop.f32.mrf.mxu0
    %v5734 = vadd.f32 %v5663, %v5733
    %5735 = vdwg.mxu0
    %5736 = vmatprep.subr.mxu0 %v999
    %5737 = vmatpush1.msra.mxu0 %v998
    %5738 = vmatprep.subr.mxu0 %v991
    %5739 = vmatpush1.msra.mxu0 %v990
    %5740 = vmatprep.subr.mxu0 %v983
    %5741 = vmatpush1.msra.mxu0 %v982
    %5742 = vmatprep.subr.mxu0 %v975
    %5743 = vmatpush1.msra.mxu0 %v974
    %5744 = vmatprep.subr.mxu0 %v967
    %5745 = vmatpush1.msra.mxu0 %v966
    %5746 = vmatprep.subr.mxu0 %v959
    %5747 = vmatpush1.msra.mxu0 %v958
    %5748 = vmatprep.subr.mxu0 %v951
    %5749 = vmatpush1.msra.mxu0 %v950
    %5750 = vmatprep.subr.mxu0 %v943
    %5751 = vmatpush1.msra.mxu0 %v942
    %5752 = vmatprep.subr.mxu0 %v935
    %5753 = vmatpush1.msra.mxu0 %v934
    %5754 = vmatprep.subr.mxu0 %v927
    %5755 = vmatpush1.msra.mxu0 %v926
    %5756 = vmatprep.subr.mxu0 %v919
    %5757 = vmatpush1.msra.mxu0 %v918
    %5758 = vmatprep.subr.mxu0 %v911
    %5759 = vmatpush1.msra.mxu0 %v910
    %5760 = vmatprep.subr.mxu0 %v903
    %5761 = vmatpush1.msra.mxu0 %v902
    %5762 = vmatprep.subr.mxu0 %v895
    %5763 = vmatpush1.msra.mxu0 %v894
    %5764 = vmatprep.subr.mxu0 %v887
    %5765 = vmatpush1.msra.mxu0 %v886
    %5766 = vmatprep.subr.mxu0 %v879
    %5767 = vmatpush1.msra.mxu0 %v878
    %5768 = vmatprep.subr.mxu0 %v1127
    %5769 = vmatpush2.msra.mxu0 %v1126
    %5770 = vmatprep.subr.mxu0 %v1119
    %5771 = vmatpush2.msra.mxu0 %v1118
    %5772 = vmatprep.subr.mxu0 %v1111
    %5773 = vmatpush2.msra.mxu0 %v1110
    %5774 = vmatprep.subr.mxu0 %v1103
    %5775 = vmatpush2.msra.mxu0 %v1102
    %5776 = vmatprep.subr.mxu0 %v1095
    %5777 = vmatpush2.msra.mxu0 %v1094
    %5778 = vmatprep.subr.mxu0 %v1087
    %5779 = vmatpush2.msra.mxu0 %v1086
    %5780 = vmatprep.subr.mxu0 %v1079
    %5781 = vmatpush2.msra.mxu0 %v1078
    %5782 = vmatprep.subr.mxu0 %v1071
    %5783 = vmatpush2.msra.mxu0 %v1070
    %5784 = vmatprep.subr.mxu0 %v1063
    %5785 = vmatpush2.msra.mxu0 %v1062
    %5786 = vmatprep.subr.mxu0 %v1055
    %5787 = vmatpush2.msra.mxu0 %v1054
    %5788 = vmatprep.subr.mxu0 %v1047
    %5789 = vmatpush2.msra.mxu0 %v1046
    %5790 = vmatprep.subr.mxu0 %v1039
    %5791 = vmatpush2.msra.mxu0 %v1038
    %5792 = vmatprep.subr.mxu0 %v1031
    %5793 = vmatpush2.msra.mxu0 %v1030
    %5794 = vmatprep.subr.mxu0 %v1023
    %5795 = vmatpush2.msra.mxu0 %v1022
    %5796 = vmatprep.subr.mxu0 %v1015
    %5797 = vmatpush2.msra.mxu0 %v1014
    %5798 = vmatprep.subr.mxu0 %v1007
    %5799 = vmatpush2.msra.mxu0 %v1006
    %5800 = vmatprep.mubr.f32.mxu0 %v5593
    %5801 = vmatmul.mubr.f32.gmra.mxu0 %v5592
    %v5802 = vpop.f32.mrf.mxu0
    %v5803 = vadd.f32 %v1741, %v5802
    %v5804 = vpop.f32.mrf.mxu0
    %v5805 = vadd.f32 %v1745, %v5804
    %5806 = vdwg.mxu0
    %5807 = vmatprep.subr.mxu0 %v1255
    %5808 = vmatpush1.msra.mxu0 %v1254
    %5809 = vmatprep.subr.mxu0 %v1247
    %5810 = vmatpush1.msra.mxu0 %v1246
    %5811 = vmatprep.subr.mxu0 %v1239
    %5812 = vmatpush1.msra.mxu0 %v1238
    %5813 = vmatprep.subr.mxu0 %v1231
    %5814 = vmatpush1.msra.mxu0 %v1230
    %5815 = vmatprep.subr.mxu0 %v1223
    %5816 = vmatpush1.msra.mxu0 %v1222
    %5817 = vmatprep.subr.mxu0 %v1215
    %5818 = vmatpush1.msra.mxu0 %v1214
    %5819 = vmatprep.subr.mxu0 %v1207
    %5820 = vmatpush1.msra.mxu0 %v1206
    %5821 = vmatprep.subr.mxu0 %v1199
    %5822 = vmatpush1.msra.mxu0 %v1198
    %5823 = vmatprep.subr.mxu0 %v1191
    %5824 = vmatpush1.msra.mxu0 %v1190
    %5825 = vmatprep.subr.mxu0 %v1183
    %5826 = vmatpush1.msra.mxu0 %v1182
    %5827 = vmatprep.subr.mxu0 %v1175
    %5828 = vmatpush1.msra.mxu0 %v1174
    %5829 = vmatprep.subr.mxu0 %v1167
    %5830 = vmatpush1.msra.mxu0 %v1166
    %5831 = vmatprep.subr.mxu0 %v1159
    %5832 = vmatpush1.msra.mxu0 %v1158
    %5833 = vmatprep.subr.mxu0 %v1151
    %5834 = vmatpush1.msra.mxu0 %v1150
    %5835 = vmatprep.subr.mxu0 %v1143
    %5836 = vmatpush1.msra.mxu0 %v1142
    %5837 = vmatprep.subr.mxu0 %v1135
    %5838 = vmatpush1.msra.mxu0 %v1134
    %5839 = vmatprep.subr.mxu0 %v1383
    %5840 = vmatpush2.msra.mxu0 %v1382
    %5841 = vmatprep.subr.mxu0 %v1375
    %5842 = vmatpush2.msra.mxu0 %v1374
    %5843 = vmatprep.subr.mxu0 %v1367
    %5844 = vmatpush2.msra.mxu0 %v1366
    %5845 = vmatprep.subr.mxu0 %v1359
    %5846 = vmatpush2.msra.mxu0 %v1358
    %5847 = vmatprep.subr.mxu0 %v1351
    %5848 = vmatpush2.msra.mxu0 %v1350
    %5849 = vmatprep.subr.mxu0 %v1343
    %5850 = vmatpush2.msra.mxu0 %v1342
    %5851 = vmatprep.subr.mxu0 %v1335
    %5852 = vmatpush2.msra.mxu0 %v1334
    %5853 = vmatprep.subr.mxu0 %v1327
    %5854 = vmatpush2.msra.mxu0 %v1326
    %5855 = vmatprep.subr.mxu0 %v1319
    %5856 = vmatpush2.msra.mxu0 %v1318
    %5857 = vmatprep.subr.mxu0 %v1311
    %5858 = vmatpush2.msra.mxu0 %v1310
    %5859 = vmatprep.subr.mxu0 %v1303
    %5860 = vmatpush2.msra.mxu0 %v1302
    %5861 = vmatprep.subr.mxu0 %v1295
    %5862 = vmatpush2.msra.mxu0 %v1294
    %5863 = vmatprep.subr.mxu0 %v1287
    %5864 = vmatpush2.msra.mxu0 %v1286
    %5865 = vmatprep.subr.mxu0 %v1279
    %5866 = vmatpush2.msra.mxu0 %v1278
    %5867 = vmatprep.subr.mxu0 %v1271
    %5868 = vmatpush2.msra.mxu0 %v1270
    %5869 = vmatprep.subr.mxu0 %v1263
    %5870 = vmatpush2.msra.mxu0 %v1262
    %5871 = vmatprep.mubr.f32.mxu0 %v5253
    %5872 = vmatmul.mubr.f32.gmra.mxu0 %v5252
    %v5873 = vpop.f32.mrf.mxu0
    %v5874 = vadd.f32 %v5803, %v5873
    %v5875 = vpop.f32.mrf.mxu0
    %v5876 = vadd.f32 %v5805, %v5875
    %5877 = vdwg.mxu0
    %5878 = vmatprep.subr.mxu0 %v1001
    %5879 = vmatpush1.msra.mxu0 %v1000
    %5880 = vmatprep.subr.mxu0 %v993
    %5881 = vmatpush1.msra.mxu0 %v992
    %5882 = vmatprep.subr.mxu0 %v985
    %5883 = vmatpush1.msra.mxu0 %v984
    %5884 = vmatprep.subr.mxu0 %v977
    %5885 = vmatpush1.msra.mxu0 %v976
    %5886 = vmatprep.subr.mxu0 %v969
    %5887 = vmatpush1.msra.mxu0 %v968
    %5888 = vmatprep.subr.mxu0 %v961
    %5889 = vmatpush1.msra.mxu0 %v960
    %5890 = vmatprep.subr.mxu0 %v953
    %5891 = vmatpush1.msra.mxu0 %v952
    %5892 = vmatprep.subr.mxu0 %v945
    %5893 = vmatpush1.msra.mxu0 %v944
    %5894 = vmatprep.subr.mxu0 %v937
    %5895 = vmatpush1.msra.mxu0 %v936
    %5896 = vmatprep.subr.mxu0 %v929
    %5897 = vmatpush1.msra.mxu0 %v928
    %5898 = vmatprep.subr.mxu0 %v921
    %5899 = vmatpush1.msra.mxu0 %v920
    %5900 = vmatprep.subr.mxu0 %v913
    %5901 = vmatpush1.msra.mxu0 %v912
    %5902 = vmatprep.subr.mxu0 %v905
    %5903 = vmatpush1.msra.mxu0 %v904
    %5904 = vmatprep.subr.mxu0 %v897
    %5905 = vmatpush1.msra.mxu0 %v896
    %5906 = vmatprep.subr.mxu0 %v889
    %5907 = vmatpush1.msra.mxu0 %v888
    %5908 = vmatprep.subr.mxu0 %v881
    %5909 = vmatpush1.msra.mxu0 %v880
    %5910 = vmatprep.subr.mxu0 %v1129
    %5911 = vmatpush2.msra.mxu0 %v1128
    %5912 = vmatprep.subr.mxu0 %v1121
    %5913 = vmatpush2.msra.mxu0 %v1120
    %5914 = vmatprep.subr.mxu0 %v1113
    %5915 = vmatpush2.msra.mxu0 %v1112
    %5916 = vmatprep.subr.mxu0 %v1105
    %5917 = vmatpush2.msra.mxu0 %v1104
    %5918 = vmatprep.subr.mxu0 %v1097
    %5919 = vmatpush2.msra.mxu0 %v1096
    %5920 = vmatprep.subr.mxu0 %v1089
    %5921 = vmatpush2.msra.mxu0 %v1088
    %5922 = vmatprep.subr.mxu0 %v1081
    %5923 = vmatpush2.msra.mxu0 %v1080
    %5924 = vmatprep.subr.mxu0 %v1073
    %5925 = vmatpush2.msra.mxu0 %v1072
    %5926 = vmatprep.subr.mxu0 %v1065
    %5927 = vmatpush2.msra.mxu0 %v1064
    %5928 = vmatprep.subr.mxu0 %v1057
    %5929 = vmatpush2.msra.mxu0 %v1056
    %5930 = vmatprep.subr.mxu0 %v1049
    %5931 = vmatpush2.msra.mxu0 %v1048
    %5932 = vmatprep.subr.mxu0 %v1041
    %5933 = vmatpush2.msra.mxu0 %v1040
    %5934 = vmatprep.subr.mxu0 %v1033
    %5935 = vmatpush2.msra.mxu0 %v1032
    %5936 = vmatprep.subr.mxu0 %v1025
    %5937 = vmatpush2.msra.mxu0 %v1024
    %5938 = vmatprep.subr.mxu0 %v1017
    %5939 = vmatpush2.msra.mxu0 %v1016
    %5940 = vmatprep.subr.mxu0 %v1009
    %5941 = vmatpush2.msra.mxu0 %v1008
    %5942 = vmatprep.mubr.f32.mxu0 %v5593
    %5943 = vmatmul.mubr.f32.gmra.mxu0 %v5592
    %v5944 = vpop.f32.mrf.mxu0
    %v5945 = vadd.f32 %v1749, %v5944
    %v5946 = vpop.f32.mrf.mxu0
    %v5947 = vadd.f32 %v1753, %v5946
    %5948 = vdwg.mxu0
    %5949 = vmatprep.subr.mxu0 %v1257
    %5950 = vmatpush1.msra.mxu0 %v1256
    %5951 = vmatprep.subr.mxu0 %v1249
    %5952 = vmatpush1.msra.mxu0 %v1248
    %5953 = vmatprep.subr.mxu0 %v1241
    %5954 = vmatpush1.msra.mxu0 %v1240
    %5955 = vmatprep.subr.mxu0 %v1233
    %5956 = vmatpush1.msra.mxu0 %v1232
    %5957 = vmatprep.subr.mxu0 %v1225
    %5958 = vmatpush1.msra.mxu0 %v1224
    %5959 = vmatprep.subr.mxu0 %v1217
    %5960 = vmatpush1.msra.mxu0 %v1216
    %5961 = vmatprep.subr.mxu0 %v1209
    %5962 = vmatpush1.msra.mxu0 %v1208
    %5963 = vmatprep.subr.mxu0 %v1201
    %5964 = vmatpush1.msra.mxu0 %v1200
    %5965 = vmatprep.subr.mxu0 %v1193
    %5966 = vmatpush1.msra.mxu0 %v1192
    %5967 = vmatprep.subr.mxu0 %v1185
    %5968 = vmatpush1.msra.mxu0 %v1184
    %5969 = vmatprep.subr.mxu0 %v1177
    %5970 = vmatpush1.msra.mxu0 %v1176
    %5971 = vmatprep.subr.mxu0 %v1169
    %5972 = vmatpush1.msra.mxu0 %v1168
    %5973 = vmatprep.subr.mxu0 %v1161
    %5974 = vmatpush1.msra.mxu0 %v1160
    %5975 = vmatprep.subr.mxu0 %v1153
    %5976 = vmatpush1.msra.mxu0 %v1152
    %5977 = vmatprep.subr.mxu0 %v1145
    %5978 = vmatpush1.msra.mxu0 %v1144
    %5979 = vmatprep.subr.mxu0 %v1137
    %5980 = vmatpush1.msra.mxu0 %v1136
    %5981 = vmatprep.subr.mxu0 %v1385
    %5982 = vmatpush2.msra.mxu0 %v1384
    %5983 = vmatprep.subr.mxu0 %v1377
    %5984 = vmatpush2.msra.mxu0 %v1376
    %5985 = vmatprep.subr.mxu0 %v1369
    %5986 = vmatpush2.msra.mxu0 %v1368
    %5987 = vmatprep.subr.mxu0 %v1361
    %5988 = vmatpush2.msra.mxu0 %v1360
    %5989 = vmatprep.subr.mxu0 %v1353
    %5990 = vmatpush2.msra.mxu0 %v1352
    %5991 = vmatprep.subr.mxu0 %v1345
    %5992 = vmatpush2.msra.mxu0 %v1344
    %5993 = vmatprep.subr.mxu0 %v1337
    %5994 = vmatpush2.msra.mxu0 %v1336
    %5995 = vmatprep.subr.mxu0 %v1329
    %5996 = vmatpush2.msra.mxu0 %v1328
    %5997 = vmatprep.subr.mxu0 %v1321
    %5998 = vmatpush2.msra.mxu0 %v1320
    %5999 = vmatprep.subr.mxu0 %v1313
    %6000 = vmatpush2.msra.mxu0 %v1312
    %6001 = vmatprep.subr.mxu0 %v1305
    %6002 = vmatpush2.msra.mxu0 %v1304
    %6003 = vmatprep.subr.mxu0 %v1297
    %6004 = vmatpush2.msra.mxu0 %v1296
    %6005 = vmatprep.subr.mxu0 %v1289
    %6006 = vmatpush2.msra.mxu0 %v1288
    %6007 = vmatprep.subr.mxu0 %v1281
    %6008 = vmatpush2.msra.mxu0 %v1280
    %6009 = vmatprep.subr.mxu0 %v1273
    %6010 = vmatpush2.msra.mxu0 %v1272
    %6011 = vmatprep.subr.mxu0 %v1265
    %6012 = vmatpush2.msra.mxu0 %v1264
    %6013 = vmatprep.mubr.f32.mxu0 %v5253
    %6014 = vmatmul.mubr.f32.gmra.mxu0 %v5252
    %v6015 = vpop.f32.mrf.mxu0
    %v6016 = vadd.f32 %v5945, %v6015
    %v6017 = vpop.f32.mrf.mxu0
    %v6018 = vadd.f32 %v5947, %v6017
    %6019 = vdwg.mxu0
    %6020 = vmatprep.subr.mxu0 %v1003
    %6021 = vmatpush1.msra.mxu0 %v1002
    %6022 = vmatprep.subr.mxu0 %v995
    %6023 = vmatpush1.msra.mxu0 %v994
    %6024 = vmatprep.subr.mxu0 %v987
    %6025 = vmatpush1.msra.mxu0 %v986
    %6026 = vmatprep.subr.mxu0 %v979
    %6027 = vmatpush1.msra.mxu0 %v978
    %6028 = vmatprep.subr.mxu0 %v971
    %6029 = vmatpush1.msra.mxu0 %v970
    %6030 = vmatprep.subr.mxu0 %v963
    %6031 = vmatpush1.msra.mxu0 %v962
    %6032 = vmatprep.subr.mxu0 %v955
    %6033 = vmatpush1.msra.mxu0 %v954
    %6034 = vmatprep.subr.mxu0 %v947
    %6035 = vmatpush1.msra.mxu0 %v946
    %6036 = vmatprep.subr.mxu0 %v939
    %6037 = vmatpush1.msra.mxu0 %v938
    %6038 = vmatprep.subr.mxu0 %v931
    %6039 = vmatpush1.msra.mxu0 %v930
    %6040 = vmatprep.subr.mxu0 %v923
    %6041 = vmatpush1.msra.mxu0 %v922
    %6042 = vmatprep.subr.mxu0 %v915
    %6043 = vmatpush1.msra.mxu0 %v914
    %6044 = vmatprep.subr.mxu0 %v907
    %6045 = vmatpush1.msra.mxu0 %v906
    %6046 = vmatprep.subr.mxu0 %v899
    %6047 = vmatpush1.msra.mxu0 %v898
    %6048 = vmatprep.subr.mxu0 %v891
    %6049 = vmatpush1.msra.mxu0 %v890
    %6050 = vmatprep.subr.mxu0 %v883
    %6051 = vmatpush1.msra.mxu0 %v882
    %6052 = vmatprep.subr.mxu0 %v1131
    %6053 = vmatpush2.msra.mxu0 %v1130
    %6054 = vmatprep.subr.mxu0 %v1123
    %6055 = vmatpush2.msra.mxu0 %v1122
    %6056 = vmatprep.subr.mxu0 %v1115
    %6057 = vmatpush2.msra.mxu0 %v1114
    %6058 = vmatprep.subr.mxu0 %v1107
    %6059 = vmatpush2.msra.mxu0 %v1106
    %6060 = vmatprep.subr.mxu0 %v1099
    %6061 = vmatpush2.msra.mxu0 %v1098
    %6062 = vmatprep.subr.mxu0 %v1091
    %6063 = vmatpush2.msra.mxu0 %v1090
    %6064 = vmatprep.subr.mxu0 %v1083
    %6065 = vmatpush2.msra.mxu0 %v1082
    %6066 = vmatprep.subr.mxu0 %v1075
    %6067 = vmatpush2.msra.mxu0 %v1074
    %6068 = vmatprep.subr.mxu0 %v1067
    %6069 = vmatpush2.msra.mxu0 %v1066
    %6070 = vmatprep.subr.mxu0 %v1059
    %6071 = vmatpush2.msra.mxu0 %v1058
    %6072 = vmatprep.subr.mxu0 %v1051
    %6073 = vmatpush2.msra.mxu0 %v1050
    %6074 = vmatprep.subr.mxu0 %v1043
    %6075 = vmatpush2.msra.mxu0 %v1042
    %6076 = vmatprep.subr.mxu0 %v1035
    %6077 = vmatpush2.msra.mxu0 %v1034
    %6078 = vmatprep.subr.mxu0 %v1027
    %6079 = vmatpush2.msra.mxu0 %v1026
    %6080 = vmatprep.subr.mxu0 %v1019
    %6081 = vmatpush2.msra.mxu0 %v1018
    %6082 = vmatprep.subr.mxu0 %v1011
    %6083 = vmatpush2.msra.mxu0 %v1010
    %6084 = vmatprep.mubr.f32.mxu0 %v5593
    %6085 = vmatmul.mubr.f32.gmra.mxu0 %v5592
    %v6086 = vpop.f32.mrf.mxu0
    %v6087 = vadd.f32 %v1757, %v6086
    %v6088 = vpop.f32.mrf.mxu0
    %v6089 = vadd.f32 %v1761, %v6088
    %6090 = vdwg.mxu0
    %6091 = vmatprep.subr.mxu0 %v1259
    %6092 = vmatpush1.msra.mxu0 %v1258
    %6093 = vmatprep.subr.mxu0 %v1251
    %6094 = vmatpush1.msra.mxu0 %v1250
    %6095 = vmatprep.subr.mxu0 %v1243
    %6096 = vmatpush1.msra.mxu0 %v1242
    %6097 = vmatprep.subr.mxu0 %v1235
    %6098 = vmatpush1.msra.mxu0 %v1234
    %6099 = vmatprep.subr.mxu0 %v1227
    %6100 = vmatpush1.msra.mxu0 %v1226
    %6101 = vmatprep.subr.mxu0 %v1219
    %6102 = vmatpush1.msra.mxu0 %v1218
    %6103 = vmatprep.subr.mxu0 %v1211
    %6104 = vmatpush1.msra.mxu0 %v1210
    %6105 = vmatprep.subr.mxu0 %v1203
    %6106 = vmatpush1.msra.mxu0 %v1202
    %6107 = vmatprep.subr.mxu0 %v1195
    %6108 = vmatpush1.msra.mxu0 %v1194
    %6109 = vmatprep.subr.mxu0 %v1187
    %6110 = vmatpush1.msra.mxu0 %v1186
    %6111 = vmatprep.subr.mxu0 %v1179
    %6112 = vmatpush1.msra.mxu0 %v1178
    %6113 = vmatprep.subr.mxu0 %v1171
    %6114 = vmatpush1.msra.mxu0 %v1170
    %6115 = vmatprep.subr.mxu0 %v1163
    %6116 = vmatpush1.msra.mxu0 %v1162
    %6117 = vmatprep.subr.mxu0 %v1155
    %6118 = vmatpush1.msra.mxu0 %v1154
    %6119 = vmatprep.subr.mxu0 %v1147
    %6120 = vmatpush1.msra.mxu0 %v1146
    %6121 = vmatprep.subr.mxu0 %v1139
    %6122 = vmatpush1.msra.mxu0 %v1138
    %6123 = vmatprep.subr.mxu0 %v1387
    %6124 = vmatpush2.msra.mxu0 %v1386
    %6125 = vmatprep.subr.mxu0 %v1379
    %6126 = vmatpush2.msra.mxu0 %v1378
    %6127 = vmatprep.subr.mxu0 %v1371
    %6128 = vmatpush2.msra.mxu0 %v1370
    %6129 = vmatprep.subr.mxu0 %v1363
    %6130 = vmatpush2.msra.mxu0 %v1362
    %6131 = vmatprep.subr.mxu0 %v1355
    %6132 = vmatpush2.msra.mxu0 %v1354
    %6133 = vmatprep.subr.mxu0 %v1347
    %6134 = vmatpush2.msra.mxu0 %v1346
    %6135 = vmatprep.subr.mxu0 %v1339
    %6136 = vmatpush2.msra.mxu0 %v1338
    %6137 = vmatprep.subr.mxu0 %v1331
    %6138 = vmatpush2.msra.mxu0 %v1330
    %6139 = vmatprep.subr.mxu0 %v1323
    %6140 = vmatpush2.msra.mxu0 %v1322
    %6141 = vmatprep.subr.mxu0 %v1315
    %6142 = vmatpush2.msra.mxu0 %v1314
    %6143 = vmatprep.subr.mxu0 %v1307
    %6144 = vmatpush2.msra.mxu0 %v1306
    %6145 = vmatprep.subr.mxu0 %v1299
    %6146 = vmatpush2.msra.mxu0 %v1298
    %6147 = vmatprep.subr.mxu0 %v1291
    %6148 = vmatpush2.msra.mxu0 %v1290
    %6149 = vmatprep.subr.mxu0 %v1283
    %6150 = vmatpush2.msra.mxu0 %v1282
    %6151 = vmatprep.subr.mxu0 %v1275
    %6152 = vmatpush2.msra.mxu0 %v1274
    %6153 = vmatprep.subr.mxu0 %v1267
    %6154 = vmatpush2.msra.mxu0 %v1266
    %6155 = vmatprep.mubr.f32.mxu0 %v5253
    %6156 = vmatmul.mubr.f32.gmra.mxu0 %v5252
    %v6157 = vpop.f32.mrf.mxu0
    %v6158 = vadd.f32 %v6087, %v6157
    %v6159 = vpop.f32.mrf.mxu0
    %v6160 = vadd.f32 %v6089, %v6159
    %6161 = vdwg.mxu0
    %v6162 = vxor.u32 %v5732, 2147483648
    %v6163 = vxor.u32 %v5734, 2147483648
    %v6164 = vxor.u32 %v5874, 2147483648
    %v6165 = vxor.u32 %v5876, 2147483648
    %v6166 = vxor.u32 %v6016, 2147483648
    %v6167 = vxor.u32 %v6018, 2147483648
    %v6168 = vmul.f32 %v6162, 1.442695
    %v6169 = vpow.pop %v6168
    %v6170 = vmul.f32 %v6163, 1.442695
    %v6171 = vpow.pop %v6170
    %v6172 = vmul.f32 %v6164, 1.442695
    %v6173 = vpow.pop %v6172
    %v6174 = vmul.f32 %v6165, 1.442695
    %v6175 = vpow.pop %v6174
    %v6176 = vmul.f32 %v6166, 1.442695
    %v6177 = vpow.pop %v6176
    %v6178 = vmul.f32 %v6167, 1.442695
    %v6179 = vpow.pop %v6178
    %v6180 = vadd.f32 %v6169, 1.0
    %v6181 = vadd.f32 %v6171, 1.0
    %v6182 = vadd.f32 %v6173, 1.0
    %v6183 = vadd.f32 %v6175, 1.0
    %v6184 = vadd.f32 %v6177, 1.0
    %v6185 = vadd.f32 %v6179, 1.0
    %v6186 = vrcp.pop %v6180
    %v6187 = vmul.f32 1.0, %v6186
    %v6188 = vrcp.pop %v6181
    %v6189 = vmul.f32 1.0, %v6188
    %v6190 = vrcp.pop %v6182
    %v6191 = vmul.f32 1.0, %v6190
    %v6192 = vrcp.pop %v6183
    %v6193 = vmul.f32 1.0, %v6192
    %v6194 = vrcp.pop %v6184
    %v6195 = vmul.f32 1.0, %v6194
    %v6196 = vrcp.pop %v6185
    %v6197 = vmul.f32 1.0, %v6196
    %v6198 = vtanh.pop %v6158
    %v6199 = vtanh.pop %v6160
    %v6200 = vmul.f32 %v6191, %v5248
    %v6201 = vmul.f32 %v6193, %v5249
    %v6202 = vmul.f32 %v6187, %v6198
    %v6203 = vmul.f32 %v6189, %v6199
    %v6204 = vadd.f32 %v6200, %v6202
    %v6205 = vadd.f32 %v6201, %v6203
    %v6206 = vtanh.pop %v6204
    %v6207 = vtanh.pop %v6205
    %v6208 = vmul.f32 %v6195, %v6206
    %v6209 = vmul.f32 %v6197, %v6207
    %6210 = vmatprep.subr.mxu0 %v741
    %6211 = vmatpush1.msra.mxu0 %v740
    %6212 = vmatprep.subr.mxu0 %v733
    %6213 = vmatpush1.msra.mxu0 %v732
    %6214 = vmatprep.subr.mxu0 %v725
    %6215 = vmatpush1.msra.mxu0 %v724
    %6216 = vmatprep.subr.mxu0 %v717
    %6217 = vmatpush1.msra.mxu0 %v716
    %6218 = vmatprep.subr.mxu0 %v709
    %6219 = vmatpush1.msra.mxu0 %v708
    %6220 = vmatprep.subr.mxu0 %v701
    %6221 = vmatpush1.msra.mxu0 %v700
    %6222 = vmatprep.subr.mxu0 %v693
    %6223 = vmatpush1.msra.mxu0 %v692
    %6224 = vmatprep.subr.mxu0 %v685
    %6225 = vmatpush1.msra.mxu0 %v684
    %6226 = vmatprep.subr.mxu0 %v677
    %6227 = vmatpush1.msra.mxu0 %v676
    %6228 = vmatprep.subr.mxu0 %v669
    %6229 = vmatpush1.msra.mxu0 %v668
    %6230 = vmatprep.subr.mxu0 %v661
    %6231 = vmatpush1.msra.mxu0 %v660
    %6232 = vmatprep.subr.mxu0 %v653
    %6233 = vmatpush1.msra.mxu0 %v652
    %6234 = vmatprep.subr.mxu0 %v645
    %6235 = vmatpush1.msra.mxu0 %v644
    %6236 = vmatprep.subr.mxu0 %v637
    %6237 = vmatpush1.msra.mxu0 %v636
    %6238 = vmatprep.subr.mxu0 %v629
    %6239 = vmatpush1.msra.mxu0 %v628
    %6240 = vmatprep.subr.mxu0 %v621
    %6241 = vmatpush1.msra.mxu0 %v620
    %6242 = vmatprep.subr.mxu0 %v869
    %6243 = vmatpush2.msra.mxu0 %v868
    %6244 = vmatprep.subr.mxu0 %v861
    %6245 = vmatpush2.msra.mxu0 %v860
    %6246 = vmatprep.subr.mxu0 %v853
    %6247 = vmatpush2.msra.mxu0 %v852
    %6248 = vmatprep.subr.mxu0 %v845
    %6249 = vmatpush2.msra.mxu0 %v844
    %6250 = vmatprep.subr.mxu0 %v837
    %6251 = vmatpush2.msra.mxu0 %v836
    %6252 = vmatprep.subr.mxu0 %v829
    %6253 = vmatpush2.msra.mxu0 %v828
    %6254 = vmatprep.subr.mxu0 %v821
    %6255 = vmatpush2.msra.mxu0 %v820
    %6256 = vmatprep.subr.mxu0 %v813
    %6257 = vmatpush2.msra.mxu0 %v812
    %6258 = vmatprep.subr.mxu0 %v805
    %6259 = vmatpush2.msra.mxu0 %v804
    %6260 = vmatprep.subr.mxu0 %v797
    %6261 = vmatpush2.msra.mxu0 %v796
    %6262 = vmatprep.subr.mxu0 %v789
    %6263 = vmatpush2.msra.mxu0 %v788
    %6264 = vmatprep.subr.mxu0 %v781
    %6265 = vmatpush2.msra.mxu0 %v780
    %6266 = vmatprep.subr.mxu0 %v773
    %6267 = vmatpush2.msra.mxu0 %v772
    %6268 = vmatprep.subr.mxu0 %v765
    %6269 = vmatpush2.msra.mxu0 %v764
    %6270 = vmatprep.subr.mxu0 %v757
    %6271 = vmatpush2.msra.mxu0 %v756
    %6272 = vmatprep.subr.mxu0 %v749
    %6273 = vmatpush2.msra.mxu0 %v748
    %6274 = vmatprep.mubr.f32.mxu0 %v5593
    %6275 = vmatmul.mubr.f32.gmra.mxu0 %v5592
    %v6276 = vpop.f32.mrf.mxu0
    %v6277 = vadd.f32 0.0, %v6276
    %v6278 = vpop.f32.mrf.mxu0
    %v6279 = vadd.f32 0.0, %v6278
    %6280 = vdwg.mxu0
    %6281 = vmatprep.subr.mxu0 %v743
    %6282 = vmatpush1.msra.mxu0 %v742
    %6283 = vmatprep.subr.mxu0 %v735
    %6284 = vmatpush1.msra.mxu0 %v734
    %6285 = vmatprep.subr.mxu0 %v727
    %6286 = vmatpush1.msra.mxu0 %v726
    %6287 = vmatprep.subr.mxu0 %v719
    %6288 = vmatpush1.msra.mxu0 %v718
    %6289 = vmatprep.subr.mxu0 %v711
    %6290 = vmatpush1.msra.mxu0 %v710
    %6291 = vmatprep.subr.mxu0 %v703
    %6292 = vmatpush1.msra.mxu0 %v702
    %6293 = vmatprep.subr.mxu0 %v695
    %6294 = vmatpush1.msra.mxu0 %v694
    %6295 = vmatprep.subr.mxu0 %v687
    %6296 = vmatpush1.msra.mxu0 %v686
    %6297 = vmatprep.subr.mxu0 %v679
    %6298 = vmatpush1.msra.mxu0 %v678
    %6299 = vmatprep.subr.mxu0 %v671
    %6300 = vmatpush1.msra.mxu0 %v670
    %6301 = vmatprep.subr.mxu0 %v663
    %6302 = vmatpush1.msra.mxu0 %v662
    %6303 = vmatprep.subr.mxu0 %v655
    %6304 = vmatpush1.msra.mxu0 %v654
    %6305 = vmatprep.subr.mxu0 %v647
    %6306 = vmatpush1.msra.mxu0 %v646
    %6307 = vmatprep.subr.mxu0 %v639
    %6308 = vmatpush1.msra.mxu0 %v638
    %6309 = vmatprep.subr.mxu0 %v631
    %6310 = vmatpush1.msra.mxu0 %v630
    %6311 = vmatprep.subr.mxu0 %v623
    %6312 = vmatpush1.msra.mxu0 %v622
    %6313 = vmatprep.subr.mxu0 %v871
    %6314 = vmatpush2.msra.mxu0 %v870
    %6315 = vmatprep.subr.mxu0 %v863
    %6316 = vmatpush2.msra.mxu0 %v862
    %6317 = vmatprep.subr.mxu0 %v855
    %6318 = vmatpush2.msra.mxu0 %v854
    %6319 = vmatprep.subr.mxu0 %v847
    %6320 = vmatpush2.msra.mxu0 %v846
    %6321 = vmatprep.subr.mxu0 %v839
    %6322 = vmatpush2.msra.mxu0 %v838
    %6323 = vmatprep.subr.mxu0 %v831
    %6324 = vmatpush2.msra.mxu0 %v830
    %6325 = vmatprep.subr.mxu0 %v823
    %6326 = vmatpush2.msra.mxu0 %v822
    %6327 = vmatprep.subr.mxu0 %v815
    %6328 = vmatpush2.msra.mxu0 %v814
    %6329 = vmatprep.subr.mxu0 %v807
    %6330 = vmatpush2.msra.mxu0 %v806
    %6331 = vmatprep.subr.mxu0 %v799
    %6332 = vmatpush2.msra.mxu0 %v798
    %6333 = vmatprep.subr.mxu0 %v791
    %6334 = vmatpush2.msra.mxu0 %v790
    %6335 = vmatprep.subr.mxu0 %v783
    %6336 = vmatpush2.msra.mxu0 %v782
    %6337 = vmatprep.subr.mxu0 %v775
    %6338 = vmatpush2.msra.mxu0 %v774
    %6339 = vmatprep.subr.mxu0 %v767
    %6340 = vmatpush2.msra.mxu0 %v766
    %6341 = vmatprep.subr.mxu0 %v759
    %6342 = vmatpush2.msra.mxu0 %v758
    %6343 = vmatprep.subr.mxu0 %v751
    %6344 = vmatpush2.msra.mxu0 %v750
    %6345 = vmatprep.mubr.f32.mxu0 %v5593
    %6346 = vmatmul.mubr.f32.gmra.mxu0 %v5592
    %v6347 = vpop.f32.mrf.mxu0
    %v6348 = vadd.f32 0.0, %v6347
    %v6349 = vpop.f32.mrf.mxu0
    %v6350 = vadd.f32 0.0, %v6349
    %6351 = vdwg.mxu0
    %6352 = vmatprep.subr.mxu0 %v745
    %6353 = vmatpush1.msra.mxu0 %v744
    %6354 = vmatprep.subr.mxu0 %v737
    %6355 = vmatpush1.msra.mxu0 %v736
    %6356 = vmatprep.subr.mxu0 %v729
    %6357 = vmatpush1.msra.mxu0 %v728
    %6358 = vmatprep.subr.mxu0 %v721
    %6359 = vmatpush1.msra.mxu0 %v720
    %6360 = vmatprep.subr.mxu0 %v713
    %6361 = vmatpush1.msra.mxu0 %v712
    %6362 = vmatprep.subr.mxu0 %v705
    %6363 = vmatpush1.msra.mxu0 %v704
    %6364 = vmatprep.subr.mxu0 %v697
    %6365 = vmatpush1.msra.mxu0 %v696
    %6366 = vmatprep.subr.mxu0 %v689
    %6367 = vmatpush1.msra.mxu0 %v688
    %6368 = vmatprep.subr.mxu0 %v681
    %6369 = vmatpush1.msra.mxu0 %v680
    %6370 = vmatprep.subr.mxu0 %v673
    %6371 = vmatpush1.msra.mxu0 %v672
    %6372 = vmatprep.subr.mxu0 %v665
    %6373 = vmatpush1.msra.mxu0 %v664
    %6374 = vmatprep.subr.mxu0 %v657
    %6375 = vmatpush1.msra.mxu0 %v656
    %6376 = vmatprep.subr.mxu0 %v649
    %6377 = vmatpush1.msra.mxu0 %v648
    %6378 = vmatprep.subr.mxu0 %v641
    %6379 = vmatpush1.msra.mxu0 %v640
    %6380 = vmatprep.subr.mxu0 %v633
    %6381 = vmatpush1.msra.mxu0 %v632
    %6382 = vmatprep.subr.mxu0 %v625
    %6383 = vmatpush1.msra.mxu0 %v624
    %6384 = vmatprep.subr.mxu0 %v873
    %6385 = vmatpush2.msra.mxu0 %v872
    %6386 = vmatprep.subr.mxu0 %v865
    %6387 = vmatpush2.msra.mxu0 %v864
    %6388 = vmatprep.subr.mxu0 %v857
    %6389 = vmatpush2.msra.mxu0 %v856
    %6390 = vmatprep.subr.mxu0 %v849
    %6391 = vmatpush2.msra.mxu0 %v848
    %6392 = vmatprep.subr.mxu0 %v841
    %6393 = vmatpush2.msra.mxu0 %v840
    %6394 = vmatprep.subr.mxu0 %v833
    %6395 = vmatpush2.msra.mxu0 %v832
    %6396 = vmatprep.subr.mxu0 %v825
    %6397 = vmatpush2.msra.mxu0 %v824
    %6398 = vmatprep.subr.mxu0 %v817
    %6399 = vmatpush2.msra.mxu0 %v816
    %6400 = vmatprep.subr.mxu0 %v809
    %6401 = vmatpush2.msra.mxu0 %v808
    %6402 = vmatprep.subr.mxu0 %v801
    %6403 = vmatpush2.msra.mxu0 %v800
    %6404 = vmatprep.subr.mxu0 %v793
    %6405 = vmatpush2.msra.mxu0 %v792
    %6406 = vmatprep.subr.mxu0 %v785
    %6407 = vmatpush2.msra.mxu0 %v784
    %6408 = vmatprep.subr.mxu0 %v777
    %6409 = vmatpush2.msra.mxu0 %v776
    %6410 = vmatprep.subr.mxu0 %v769
    %6411 = vmatpush2.msra.mxu0 %v768
    %6412 = vmatprep.subr.mxu0 %v761
    %6413 = vmatpush2.msra.mxu0 %v760
    %6414 = vmatprep.subr.mxu0 %v753
    %6415 = vmatpush2.msra.mxu0 %v752
    %6416 = vmatprep.mubr.f32.mxu0 %v5593
    %6417 = vmatmul.mubr.f32.gmra.mxu0 %v5592
    %v6418 = vpop.f32.mrf.mxu0
    %v6419 = vadd.f32 0.0, %v6418
    %v6420 = vpop.f32.mrf.mxu0
    %v6421 = vadd.f32 0.0, %v6420
    %6422 = vdwg.mxu0
    %6423 = vmatprep.subr.mxu0 %v747
    %6424 = vmatpush1.msra.mxu0 %v746
    %6425 = vmatprep.subr.mxu0 %v739
    %6426 = vmatpush1.msra.mxu0 %v738
    %6427 = vmatprep.subr.mxu0 %v731
    %6428 = vmatpush1.msra.mxu0 %v730
    %6429 = vmatprep.subr.mxu0 %v723
    %6430 = vmatpush1.msra.mxu0 %v722
    %6431 = vmatprep.subr.mxu0 %v715
    %6432 = vmatpush1.msra.mxu0 %v714
    %6433 = vmatprep.subr.mxu0 %v707
    %6434 = vmatpush1.msra.mxu0 %v706
    %6435 = vmatprep.subr.mxu0 %v699
    %6436 = vmatpush1.msra.mxu0 %v698
    %6437 = vmatprep.subr.mxu0 %v691
    %6438 = vmatpush1.msra.mxu0 %v690
    %6439 = vmatprep.subr.mxu0 %v683
    %6440 = vmatpush1.msra.mxu0 %v682
    %6441 = vmatprep.subr.mxu0 %v675
    %6442 = vmatpush1.msra.mxu0 %v674
    %6443 = vmatprep.subr.mxu0 %v667
    %6444 = vmatpush1.msra.mxu0 %v666
    %6445 = vmatprep.subr.mxu0 %v659
    %6446 = vmatpush1.msra.mxu0 %v658
    %6447 = vmatprep.subr.mxu0 %v651
    %6448 = vmatpush1.msra.mxu0 %v650
    %6449 = vmatprep.subr.mxu0 %v643
    %6450 = vmatpush1.msra.mxu0 %v642
    %6451 = vmatprep.subr.mxu0 %v635
    %6452 = vmatpush1.msra.mxu0 %v634
    %6453 = vmatprep.subr.mxu0 %v627
    %6454 = vmatpush1.msra.mxu0 %v626
    %6455 = vmatprep.subr.mxu0 %v875
    %6456 = vmatpush2.msra.mxu0 %v874
    %6457 = vmatprep.subr.mxu0 %v867
    %6458 = vmatpush2.msra.mxu0 %v866
    %6459 = vmatprep.subr.mxu0 %v859
    %6460 = vmatpush2.msra.mxu0 %v858
    %6461 = vmatprep.subr.mxu0 %v851
    %6462 = vmatpush2.msra.mxu0 %v850
    %6463 = vmatprep.subr.mxu0 %v843
    %6464 = vmatpush2.msra.mxu0 %v842
    %6465 = vmatprep.subr.mxu0 %v835
    %6466 = vmatpush2.msra.mxu0 %v834
    %6467 = vmatprep.subr.mxu0 %v827
    %6468 = vmatpush2.msra.mxu0 %v826
    %6469 = vmatprep.subr.mxu0 %v819
    %6470 = vmatpush2.msra.mxu0 %v818
    %6471 = vmatprep.subr.mxu0 %v811
    %6472 = vmatpush2.msra.mxu0 %v810
    %6473 = vmatprep.subr.mxu0 %v803
    %6474 = vmatpush2.msra.mxu0 %v802
    %6475 = vmatprep.subr.mxu0 %v795
    %6476 = vmatpush2.msra.mxu0 %v794
    %6477 = vmatprep.subr.mxu0 %v787
    %6478 = vmatpush2.msra.mxu0 %v786
    %6479 = vmatprep.subr.mxu0 %v779
    %6480 = vmatpush2.msra.mxu0 %v778
    %6481 = vmatprep.subr.mxu0 %v771
    %6482 = vmatpush2.msra.mxu0 %v770
    %6483 = vmatprep.subr.mxu0 %v763
    %6484 = vmatpush2.msra.mxu0 %v762
    %6485 = vmatprep.subr.mxu0 %v755
    %6486 = vmatpush2.msra.mxu0 %v754
    %6487 = vmatprep.mubr.f32.mxu0 %v5593
    %6488 = vmatmul.mubr.f32.gmra.mxu0 %v5592
    %v6489 = vpop.f32.mrf.mxu0
    %v6490 = vadd.f32 0.0, %v6489
    %v6491 = vpop.f32.mrf.mxu0
    %v6492 = vadd.f32 0.0, %v6491
    %6493 = vdwg.mxu0
    %v6494 = vadd.f32 %v265, %v6277
    %v6495 = vadd.f32 %v267, %v6279
    %v6496 = vadd.f32 %v378, %v6348
    %v6497 = vadd.f32 %v380, %v6350
    %v6498 = vadd.f32 %v491, %v6419
    %v6499 = vadd.f32 %v493, %v6421
    %v6500 = vadd.f32 %v604, %v6490
    %v6501 = vadd.f32 %v606, %v6492
    %v6502 = vxor.u32 %v6494, 2147483648
    %v6503 = vxor.u32 %v6495, 2147483648
    %v6504 = vxor.u32 %v6496, 2147483648
    %v6505 = vxor.u32 %v6497, 2147483648
    %v6506 = vxor.u32 %v6498, 2147483648
    %v6507 = vxor.u32 %v6499, 2147483648
    %v6508 = vmul.f32 %v6502, 1.442695
    %v6509 = vpow.pop %v6508
    %v6510 = vmul.f32 %v6503, 1.442695
    %v6511 = vpow.pop %v6510
    %v6512 = vmul.f32 %v6504, 1.442695
    %v6513 = vpow.pop %v6512
    %v6514 = vmul.f32 %v6505, 1.442695
    %v6515 = vpow.pop %v6514
    %v6516 = vmul.f32 %v6506, 1.442695
    %v6517 = vpow.pop %v6516
    %v6518 = vmul.f32 %v6507, 1.442695
    %v6519 = vpow.pop %v6518
    %v6520 = vadd.f32 %v6509, 1.0
    %v6521 = vadd.f32 %v6511, 1.0
    %v6522 = vadd.f32 %v6513, 1.0
    %v6523 = vadd.f32 %v6515, 1.0
    %v6524 = vadd.f32 %v6517, 1.0
    %v6525 = vadd.f32 %v6519, 1.0
    %v6526 = vrcp.pop %v6520
    %v6527 = vmul.f32 1.0, %v6526
    %v6528 = vrcp.pop %v6521
    %v6529 = vmul.f32 1.0, %v6528
    %v6530 = vrcp.pop %v6522
    %v6531 = vmul.f32 1.0, %v6530
    %v6532 = vrcp.pop %v6523
    %v6533 = vmul.f32 1.0, %v6532
    %v6534 = vrcp.pop %v6524
    %v6535 = vmul.f32 1.0, %v6534
    %v6536 = vrcp.pop %v6525
    %v6537 = vmul.f32 1.0, %v6536
    %v6538 = vtanh.pop %v6500
    %v6539 = vtanh.pop %v6501
    %v6540 = vmul.f32 %v6531, %v5588
    %v6541 = vmul.f32 %v6533, %v5589
    %v6542 = vmul.f32 %v6527, %v6538
    %v6543 = vmul.f32 %v6529, %v6539
    %v6544 = vadd.f32 %v6540, %v6542
    %v6545 = vadd.f32 %v6541, %v6543
    %v6546 = vtanh.pop %v6544
    %v6547 = vtanh.pop %v6545
    %v6548 = vmul.f32 %v6535, %v6546
    %v6549 = vmul.f32 %v6537, %v6547
    %6550 = vmatprep.subr.mxu0 %v997
    %6551 = vmatpush1.msra.mxu0 %v996
    %6552 = vmatprep.subr.mxu0 %v989
    %6553 = vmatpush1.msra.mxu0 %v988
    %6554 = vmatprep.subr.mxu0 %v981
    %6555 = vmatpush1.msra.mxu0 %v980
    %6556 = vmatprep.subr.mxu0 %v973
    %6557 = vmatpush1.msra.mxu0 %v972
    %6558 = vmatprep.subr.mxu0 %v965
    %6559 = vmatpush1.msra.mxu0 %v964
    %6560 = vmatprep.subr.mxu0 %v957
    %6561 = vmatpush1.msra.mxu0 %v956
    %6562 = vmatprep.subr.mxu0 %v949
    %6563 = vmatpush1.msra.mxu0 %v948
    %6564 = vmatprep.subr.mxu0 %v941
    %6565 = vmatpush1.msra.mxu0 %v940
    %6566 = vmatprep.subr.mxu0 %v933
    %6567 = vmatpush1.msra.mxu0 %v932
    %6568 = vmatprep.subr.mxu0 %v925
    %6569 = vmatpush1.msra.mxu0 %v924
    %6570 = vmatprep.subr.mxu0 %v917
    %6571 = vmatpush1.msra.mxu0 %v916
    %6572 = vmatprep.subr.mxu0 %v909
    %6573 = vmatpush1.msra.mxu0 %v908
    %6574 = vmatprep.subr.mxu0 %v901
    %6575 = vmatpush1.msra.mxu0 %v900
    %6576 = vmatprep.subr.mxu0 %v893
    %6577 = vmatpush1.msra.mxu0 %v892
    %6578 = vmatprep.subr.mxu0 %v885
    %6579 = vmatpush1.msra.mxu0 %v884
    %6580 = vmatprep.subr.mxu0 %v877
    %6581 = vmatpush1.msra.mxu0 %v876
    %6582 = vmatprep.subr.mxu0 %v1125
    %6583 = vmatpush2.msra.mxu0 %v1124
    %6584 = vmatprep.subr.mxu0 %v1117
    %6585 = vmatpush2.msra.mxu0 %v1116
    %6586 = vmatprep.subr.mxu0 %v1109
    %6587 = vmatpush2.msra.mxu0 %v1108
    %6588 = vmatprep.subr.mxu0 %v1101
    %6589 = vmatpush2.msra.mxu0 %v1100
    %6590 = vmatprep.subr.mxu0 %v1093
    %6591 = vmatpush2.msra.mxu0 %v1092
    %6592 = vmatprep.subr.mxu0 %v1085
    %6593 = vmatpush2.msra.mxu0 %v1084
    %6594 = vmatprep.subr.mxu0 %v1077
    %6595 = vmatpush2.msra.mxu0 %v1076
    %6596 = vmatprep.subr.mxu0 %v1069
    %6597 = vmatpush2.msra.mxu0 %v1068
    %6598 = vmatprep.subr.mxu0 %v1061
    %6599 = vmatpush2.msra.mxu0 %v1060
    %6600 = vmatprep.subr.mxu0 %v1053
    %6601 = vmatpush2.msra.mxu0 %v1052
    %6602 = vmatprep.subr.mxu0 %v1045
    %6603 = vmatpush2.msra.mxu0 %v1044
    %6604 = vmatprep.subr.mxu0 %v1037
    %6605 = vmatpush2.msra.mxu0 %v1036
    %6606 = vmatprep.subr.mxu0 %v1029
    %6607 = vmatpush2.msra.mxu0 %v1028
    %6608 = vmatprep.subr.mxu0 %v1021
    %6609 = vmatpush2.msra.mxu0 %v1020
    %6610 = vmatprep.subr.mxu0 %v1013
    %6611 = vmatpush2.msra.mxu0 %v1012
    %6612 = vmatprep.subr.mxu0 %v1005
    %6613 = vmatpush2.msra.mxu0 %v1004
    %6614 = vmatprep.mubr.f32.mxu0 %v6549
    %6615 = vmatmul.mubr.f32.gmra.mxu0 %v6548
    %v6616 = vpop.f32.mrf.mxu0
    %v6617 = vadd.f32 %v1733, %v6616
    %v6618 = vpop.f32.mrf.mxu0
    %v6619 = vadd.f32 %v1737, %v6618
    %6620 = vdwg.mxu0
    %6621 = vmatprep.subr.mxu0 %v1253
    %6622 = vmatpush1.msra.mxu0 %v1252
    %6623 = vmatprep.subr.mxu0 %v1245
    %6624 = vmatpush1.msra.mxu0 %v1244
    %6625 = vmatprep.subr.mxu0 %v1237
    %6626 = vmatpush1.msra.mxu0 %v1236
    %6627 = vmatprep.subr.mxu0 %v1229
    %6628 = vmatpush1.msra.mxu0 %v1228
    %6629 = vmatprep.subr.mxu0 %v1221
    %6630 = vmatpush1.msra.mxu0 %v1220
    %6631 = vmatprep.subr.mxu0 %v1213
    %6632 = vmatpush1.msra.mxu0 %v1212
    %6633 = vmatprep.subr.mxu0 %v1205
    %6634 = vmatpush1.msra.mxu0 %v1204
    %6635 = vmatprep.subr.mxu0 %v1197
    %6636 = vmatpush1.msra.mxu0 %v1196
    %6637 = vmatprep.subr.mxu0 %v1189
    %6638 = vmatpush1.msra.mxu0 %v1188
    %6639 = vmatprep.subr.mxu0 %v1181
    %6640 = vmatpush1.msra.mxu0 %v1180
    %6641 = vmatprep.subr.mxu0 %v1173
    %6642 = vmatpush1.msra.mxu0 %v1172
    %6643 = vmatprep.subr.mxu0 %v1165
    %6644 = vmatpush1.msra.mxu0 %v1164
    %6645 = vmatprep.subr.mxu0 %v1157
    %6646 = vmatpush1.msra.mxu0 %v1156
    %6647 = vmatprep.subr.mxu0 %v1149
    %6648 = vmatpush1.msra.mxu0 %v1148
    %6649 = vmatprep.subr.mxu0 %v1141
    %6650 = vmatpush1.msra.mxu0 %v1140
    %6651 = vmatprep.subr.mxu0 %v1133
    %6652 = vmatpush1.msra.mxu0 %v1132
    %6653 = vmatprep.subr.mxu0 %v1381
    %6654 = vmatpush2.msra.mxu0 %v1380
    %6655 = vmatprep.subr.mxu0 %v1373
    %6656 = vmatpush2.msra.mxu0 %v1372
    %6657 = vmatprep.subr.mxu0 %v1365
    %6658 = vmatpush2.msra.mxu0 %v1364
    %6659 = vmatprep.subr.mxu0 %v1357
    %6660 = vmatpush2.msra.mxu0 %v1356
    %6661 = vmatprep.subr.mxu0 %v1349
    %6662 = vmatpush2.msra.mxu0 %v1348
    %6663 = vmatprep.subr.mxu0 %v1341
    %6664 = vmatpush2.msra.mxu0 %v1340
    %6665 = vmatprep.subr.mxu0 %v1333
    %6666 = vmatpush2.msra.mxu0 %v1332
    %6667 = vmatprep.subr.mxu0 %v1325
    %6668 = vmatpush2.msra.mxu0 %v1324
    %6669 = vmatprep.subr.mxu0 %v1317
    %6670 = vmatpush2.msra.mxu0 %v1316
    %6671 = vmatprep.subr.mxu0 %v1309
    %6672 = vmatpush2.msra.mxu0 %v1308
    %6673 = vmatprep.subr.mxu0 %v1301
    %6674 = vmatpush2.msra.mxu0 %v1300
    %6675 = vmatprep.subr.mxu0 %v1293
    %6676 = vmatpush2.msra.mxu0 %v1292
    %6677 = vmatprep.subr.mxu0 %v1285
    %6678 = vmatpush2.msra.mxu0 %v1284
    %6679 = vmatprep.subr.mxu0 %v1277
    %6680 = vmatpush2.msra.mxu0 %v1276
    %6681 = vmatprep.subr.mxu0 %v1269
    %6682 = vmatpush2.msra.mxu0 %v1268
    %6683 = vmatprep.subr.mxu0 %v1261
    %6684 = vmatpush2.msra.mxu0 %v1260
    %6685 = vmatprep.mubr.f32.mxu0 %v6209
    %6686 = vmatmul.mubr.f32.gmra.mxu0 %v6208
    %v6687 = vpop.f32.mrf.mxu0
    %v6688 = vadd.f32 %v6617, %v6687
    %v6689 = vpop.f32.mrf.mxu0
    %v6690 = vadd.f32 %v6619, %v6689
    %6691 = vdwg.mxu0
    %6692 = vmatprep.subr.mxu0 %v999
    %6693 = vmatpush1.msra.mxu0 %v998
    %6694 = vmatprep.subr.mxu0 %v991
    %6695 = vmatpush1.msra.mxu0 %v990
    %6696 = vmatprep.subr.mxu0 %v983
    %6697 = vmatpush1.msra.mxu0 %v982
    %6698 = vmatprep.subr.mxu0 %v975
    %6699 = vmatpush1.msra.mxu0 %v974
    %6700 = vmatprep.subr.mxu0 %v967
    %6701 = vmatpush1.msra.mxu0 %v966
    %6702 = vmatprep.subr.mxu0 %v959
    %6703 = vmatpush1.msra.mxu0 %v958
    %6704 = vmatprep.subr.mxu0 %v951
    %6705 = vmatpush1.msra.mxu0 %v950
    %6706 = vmatprep.subr.mxu0 %v943
    %6707 = vmatpush1.msra.mxu0 %v942
    %6708 = vmatprep.subr.mxu0 %v935
    %6709 = vmatpush1.msra.mxu0 %v934
    %6710 = vmatprep.subr.mxu0 %v927
    %6711 = vmatpush1.msra.mxu0 %v926
    %6712 = vmatprep.subr.mxu0 %v919
    %6713 = vmatpush1.msra.mxu0 %v918
    %6714 = vmatprep.subr.mxu0 %v911
    %6715 = vmatpush1.msra.mxu0 %v910
    %6716 = vmatprep.subr.mxu0 %v903
    %6717 = vmatpush1.msra.mxu0 %v902
    %6718 = vmatprep.subr.mxu0 %v895
    %6719 = vmatpush1.msra.mxu0 %v894
    %6720 = vmatprep.subr.mxu0 %v887
    %6721 = vmatpush1.msra.mxu0 %v886
    %6722 = vmatprep.subr.mxu0 %v879
    %6723 = vmatpush1.msra.mxu0 %v878
    %6724 = vmatprep.subr.mxu0 %v1127
    %6725 = vmatpush2.msra.mxu0 %v1126
    %6726 = vmatprep.subr.mxu0 %v1119
    %6727 = vmatpush2.msra.mxu0 %v1118
    %6728 = vmatprep.subr.mxu0 %v1111
    %6729 = vmatpush2.msra.mxu0 %v1110
    %6730 = vmatprep.subr.mxu0 %v1103
    %6731 = vmatpush2.msra.mxu0 %v1102
    %6732 = vmatprep.subr.mxu0 %v1095
    %6733 = vmatpush2.msra.mxu0 %v1094
    %6734 = vmatprep.subr.mxu0 %v1087
    %6735 = vmatpush2.msra.mxu0 %v1086
    %6736 = vmatprep.subr.mxu0 %v1079
    %6737 = vmatpush2.msra.mxu0 %v1078
    %6738 = vmatprep.subr.mxu0 %v1071
    %6739 = vmatpush2.msra.mxu0 %v1070
    %6740 = vmatprep.subr.mxu0 %v1063
    %6741 = vmatpush2.msra.mxu0 %v1062
    %6742 = vmatprep.subr.mxu0 %v1055
    %6743 = vmatpush2.msra.mxu0 %v1054
    %6744 = vmatprep.subr.mxu0 %v1047
    %6745 = vmatpush2.msra.mxu0 %v1046
    %6746 = vmatprep.subr.mxu0 %v1039
    %6747 = vmatpush2.msra.mxu0 %v1038
    %6748 = vmatprep.subr.mxu0 %v1031
    %6749 = vmatpush2.msra.mxu0 %v1030
    %6750 = vmatprep.subr.mxu0 %v1023
    %6751 = vmatpush2.msra.mxu0 %v1022
    %6752 = vmatprep.subr.mxu0 %v1015
    %6753 = vmatpush2.msra.mxu0 %v1014
    %6754 = vmatprep.subr.mxu0 %v1007
    %6755 = vmatpush2.msra.mxu0 %v1006
    %6756 = vmatprep.mubr.f32.mxu0 %v6549
    %6757 = vmatmul.mubr.f32.gmra.mxu0 %v6548
    %v6758 = vpop.f32.mrf.mxu0
    %v6759 = vadd.f32 %v1741, %v6758
    %v6760 = vpop.f32.mrf.mxu0
    %v6761 = vadd.f32 %v1745, %v6760
    %6762 = vdwg.mxu0
    %6763 = vmatprep.subr.mxu0 %v1255
    %6764 = vmatpush1.msra.mxu0 %v1254
    %6765 = vmatprep.subr.mxu0 %v1247
    %6766 = vmatpush1.msra.mxu0 %v1246
    %6767 = vmatprep.subr.mxu0 %v1239
    %6768 = vmatpush1.msra.mxu0 %v1238
    %6769 = vmatprep.subr.mxu0 %v1231
    %6770 = vmatpush1.msra.mxu0 %v1230
    %6771 = vmatprep.subr.mxu0 %v1223
    %6772 = vmatpush1.msra.mxu0 %v1222
    %6773 = vmatprep.subr.mxu0 %v1215
    %6774 = vmatpush1.msra.mxu0 %v1214
    %6775 = vmatprep.subr.mxu0 %v1207
    %6776 = vmatpush1.msra.mxu0 %v1206
    %6777 = vmatprep.subr.mxu0 %v1199
    %6778 = vmatpush1.msra.mxu0 %v1198
    %6779 = vmatprep.subr.mxu0 %v1191
    %6780 = vmatpush1.msra.mxu0 %v1190
    %6781 = vmatprep.subr.mxu0 %v1183
    %6782 = vmatpush1.msra.mxu0 %v1182
    %6783 = vmatprep.subr.mxu0 %v1175
    %6784 = vmatpush1.msra.mxu0 %v1174
    %6785 = vmatprep.subr.mxu0 %v1167
    %6786 = vmatpush1.msra.mxu0 %v1166
    %6787 = vmatprep.subr.mxu0 %v1159
    %6788 = vmatpush1.msra.mxu0 %v1158
    %6789 = vmatprep.subr.mxu0 %v1151
    %6790 = vmatpush1.msra.mxu0 %v1150
    %6791 = vmatprep.subr.mxu0 %v1143
    %6792 = vmatpush1.msra.mxu0 %v1142
    %6793 = vmatprep.subr.mxu0 %v1135
    %6794 = vmatpush1.msra.mxu0 %v1134
    %6795 = vmatprep.subr.mxu0 %v1383
    %6796 = vmatpush2.msra.mxu0 %v1382
    %6797 = vmatprep.subr.mxu0 %v1375
    %6798 = vmatpush2.msra.mxu0 %v1374
    %6799 = vmatprep.subr.mxu0 %v1367
    %6800 = vmatpush2.msra.mxu0 %v1366
    %6801 = vmatprep.subr.mxu0 %v1359
    %6802 = vmatpush2.msra.mxu0 %v1358
    %6803 = vmatprep.subr.mxu0 %v1351
    %6804 = vmatpush2.msra.mxu0 %v1350
    %6805 = vmatprep.subr.mxu0 %v1343
    %6806 = vmatpush2.msra.mxu0 %v1342
    %6807 = vmatprep.subr.mxu0 %v1335
    %6808 = vmatpush2.msra.mxu0 %v1334
    %6809 = vmatprep.subr.mxu0 %v1327
    %6810 = vmatpush2.msra.mxu0 %v1326
    %6811 = vmatprep.subr.mxu0 %v1319
    %6812 = vmatpush2.msra.mxu0 %v1318
    %6813 = vmatprep.subr.mxu0 %v1311
    %6814 = vmatpush2.msra.mxu0 %v1310
    %6815 = vmatprep.subr.mxu0 %v1303
    %6816 = vmatpush2.msra.mxu0 %v1302
    %6817 = vmatprep.subr.mxu0 %v1295
    %6818 = vmatpush2.msra.mxu0 %v1294
    %6819 = vmatprep.subr.mxu0 %v1287
    %6820 = vmatpush2.msra.mxu0 %v1286
    %6821 = vmatprep.subr.mxu0 %v1279
    %6822 = vmatpush2.msra.mxu0 %v1278
    %6823 = vmatprep.subr.mxu0 %v1271
    %6824 = vmatpush2.msra.mxu0 %v1270
    %6825 = vmatprep.subr.mxu0 %v1263
    %6826 = vmatpush2.msra.mxu0 %v1262
    %6827 = vmatprep.mubr.f32.mxu0 %v6209
    %6828 = vmatmul.mubr.f32.gmra.mxu0 %v6208
    %v6829 = vpop.f32.mrf.mxu0
    %v6830 = vadd.f32 %v6759, %v6829
    %v6831 = vpop.f32.mrf.mxu0
    %v6832 = vadd.f32 %v6761, %v6831
    %6833 = vdwg.mxu0
    %6834 = vmatprep.subr.mxu0 %v1001
    %6835 = vmatpush1.msra.mxu0 %v1000
    %6836 = vmatprep.subr.mxu0 %v993
    %6837 = vmatpush1.msra.mxu0 %v992
    %6838 = vmatprep.subr.mxu0 %v985
    %6839 = vmatpush1.msra.mxu0 %v984
    %6840 = vmatprep.subr.mxu0 %v977
    %6841 = vmatpush1.msra.mxu0 %v976
    %6842 = vmatprep.subr.mxu0 %v969
    %6843 = vmatpush1.msra.mxu0 %v968
    %6844 = vmatprep.subr.mxu0 %v961
    %6845 = vmatpush1.msra.mxu0 %v960
    %6846 = vmatprep.subr.mxu0 %v953
    %6847 = vmatpush1.msra.mxu0 %v952
    %6848 = vmatprep.subr.mxu0 %v945
    %6849 = vmatpush1.msra.mxu0 %v944
    %6850 = vmatprep.subr.mxu0 %v937
    %6851 = vmatpush1.msra.mxu0 %v936
    %6852 = vmatprep.subr.mxu0 %v929
    %6853 = vmatpush1.msra.mxu0 %v928
    %6854 = vmatprep.subr.mxu0 %v921
    %6855 = vmatpush1.msra.mxu0 %v920
    %6856 = vmatprep.subr.mxu0 %v913
    %6857 = vmatpush1.msra.mxu0 %v912
    %6858 = vmatprep.subr.mxu0 %v905
    %6859 = vmatpush1.msra.mxu0 %v904
    %6860 = vmatprep.subr.mxu0 %v897
    %6861 = vmatpush1.msra.mxu0 %v896
    %6862 = vmatprep.subr.mxu0 %v889
    %6863 = vmatpush1.msra.mxu0 %v888
    %6864 = vmatprep.subr.mxu0 %v881
    %6865 = vmatpush1.msra.mxu0 %v880
    %6866 = vmatprep.subr.mxu0 %v1129
    %6867 = vmatpush2.msra.mxu0 %v1128
    %6868 = vmatprep.subr.mxu0 %v1121
    %6869 = vmatpush2.msra.mxu0 %v1120
    %6870 = vmatprep.subr.mxu0 %v1113
    %6871 = vmatpush2.msra.mxu0 %v1112
    %6872 = vmatprep.subr.mxu0 %v1105
    %6873 = vmatpush2.msra.mxu0 %v1104
    %6874 = vmatprep.subr.mxu0 %v1097
    %6875 = vmatpush2.msra.mxu0 %v1096
    %6876 = vmatprep.subr.mxu0 %v1089
    %6877 = vmatpush2.msra.mxu0 %v1088
    %6878 = vmatprep.subr.mxu0 %v1081
    %6879 = vmatpush2.msra.mxu0 %v1080
    %6880 = vmatprep.subr.mxu0 %v1073
    %6881 = vmatpush2.msra.mxu0 %v1072
    %6882 = vmatprep.subr.mxu0 %v1065
    %6883 = vmatpush2.msra.mxu0 %v1064
    %6884 = vmatprep.subr.mxu0 %v1057
    %6885 = vmatpush2.msra.mxu0 %v1056
    %6886 = vmatprep.subr.mxu0 %v1049
    %6887 = vmatpush2.msra.mxu0 %v1048
    %6888 = vmatprep.subr.mxu0 %v1041
    %6889 = vmatpush2.msra.mxu0 %v1040
    %6890 = vmatprep.subr.mxu0 %v1033
    %6891 = vmatpush2.msra.mxu0 %v1032
    %6892 = vmatprep.subr.mxu0 %v1025
    %6893 = vmatpush2.msra.mxu0 %v1024
    %6894 = vmatprep.subr.mxu0 %v1017
    %6895 = vmatpush2.msra.mxu0 %v1016
    %6896 = vmatprep.subr.mxu0 %v1009
    %6897 = vmatpush2.msra.mxu0 %v1008
    %6898 = vmatprep.mubr.f32.mxu0 %v6549
    %6899 = vmatmul.mubr.f32.gmra.mxu0 %v6548
    %v6900 = vpop.f32.mrf.mxu0
    %v6901 = vadd.f32 %v1749, %v6900
    %v6902 = vpop.f32.mrf.mxu0
    %v6903 = vadd.f32 %v1753, %v6902
    %6904 = vdwg.mxu0
    %6905 = vmatprep.subr.mxu0 %v1257
    %6906 = vmatpush1.msra.mxu0 %v1256
    %6907 = vmatprep.subr.mxu0 %v1249
    %6908 = vmatpush1.msra.mxu0 %v1248
    %6909 = vmatprep.subr.mxu0 %v1241
    %6910 = vmatpush1.msra.mxu0 %v1240
    %6911 = vmatprep.subr.mxu0 %v1233
    %6912 = vmatpush1.msra.mxu0 %v1232
    %6913 = vmatprep.subr.mxu0 %v1225
    %6914 = vmatpush1.msra.mxu0 %v1224
    %6915 = vmatprep.subr.mxu0 %v1217
    %6916 = vmatpush1.msra.mxu0 %v1216
    %6917 = vmatprep.subr.mxu0 %v1209
    %6918 = vmatpush1.msra.mxu0 %v1208
    %6919 = vmatprep.subr.mxu0 %v1201
    %6920 = vmatpush1.msra.mxu0 %v1200
    %6921 = vmatprep.subr.mxu0 %v1193
    %6922 = vmatpush1.msra.mxu0 %v1192
    %6923 = vmatprep.subr.mxu0 %v1185
    %6924 = vmatpush1.msra.mxu0 %v1184
    %6925 = vmatprep.subr.mxu0 %v1177
    %6926 = vmatpush1.msra.mxu0 %v1176
    %6927 = vmatprep.subr.mxu0 %v1169
    %6928 = vmatpush1.msra.mxu0 %v1168
    %6929 = vmatprep.subr.mxu0 %v1161
    %6930 = vmatpush1.msra.mxu0 %v1160
    %6931 = vmatprep.subr.mxu0 %v1153
    %6932 = vmatpush1.msra.mxu0 %v1152
    %6933 = vmatprep.subr.mxu0 %v1145
    %6934 = vmatpush1.msra.mxu0 %v1144
    %6935 = vmatprep.subr.mxu0 %v1137
    %6936 = vmatpush1.msra.mxu0 %v1136
    %6937 = vmatprep.subr.mxu0 %v1385
    %6938 = vmatpush2.msra.mxu0 %v1384
    %6939 = vmatprep.subr.mxu0 %v1377
    %6940 = vmatpush2.msra.mxu0 %v1376
    %6941 = vmatprep.subr.mxu0 %v1369
    %6942 = vmatpush2.msra.mxu0 %v1368
    %6943 = vmatprep.subr.mxu0 %v1361
    %6944 = vmatpush2.msra.mxu0 %v1360
    %6945 = vmatprep.subr.mxu0 %v1353
    %6946 = vmatpush2.msra.mxu0 %v1352
    %6947 = vmatprep.subr.mxu0 %v1345
    %6948 = vmatpush2.msra.mxu0 %v1344
    %6949 = vmatprep.subr.mxu0 %v1337
    %6950 = vmatpush2.msra.mxu0 %v1336
    %6951 = vmatprep.subr.mxu0 %v1329
    %6952 = vmatpush2.msra.mxu0 %v1328
    %6953 = vmatprep.subr.mxu0 %v1321
    %6954 = vmatpush2.msra.mxu0 %v1320
    %6955 = vmatprep.subr.mxu0 %v1313
    %6956 = vmatpush2.msra.mxu0 %v1312
    %6957 = vmatprep.subr.mxu0 %v1305
    %6958 = vmatpush2.msra.mxu0 %v1304
    %6959 = vmatprep.subr.mxu0 %v1297
    %6960 = vmatpush2.msra.mxu0 %v1296
    %6961 = vmatprep.subr.mxu0 %v1289
    %6962 = vmatpush2.msra.mxu0 %v1288
    %6963 = vmatprep.subr.mxu0 %v1281
    %6964 = vmatpush2.msra.mxu0 %v1280
    %6965 = vmatprep.subr.mxu0 %v1273
    %6966 = vmatpush2.msra.mxu0 %v1272
    %6967 = vmatprep.subr.mxu0 %v1265
    %6968 = vmatpush2.msra.mxu0 %v1264
    %6969 = vmatprep.mubr.f32.mxu0 %v6209
    %6970 = vmatmul.mubr.f32.gmra.mxu0 %v6208
    %v6971 = vpop.f32.mrf.mxu0
    %v6972 = vadd.f32 %v6901, %v6971
    %v6973 = vpop.f32.mrf.mxu0
    %v6974 = vadd.f32 %v6903, %v6973
    %6975 = vdwg.mxu0
    %6976 = vmatprep.subr.mxu0 %v1003
    %6977 = vmatpush1.msra.mxu0 %v1002
    %6978 = vmatprep.subr.mxu0 %v995
    %6979 = vmatpush1.msra.mxu0 %v994
    %6980 = vmatprep.subr.mxu0 %v987
    %6981 = vmatpush1.msra.mxu0 %v986
    %6982 = vmatprep.subr.mxu0 %v979
    %6983 = vmatpush1.msra.mxu0 %v978
    %6984 = vmatprep.subr.mxu0 %v971
    %6985 = vmatpush1.msra.mxu0 %v970
    %6986 = vmatprep.subr.mxu0 %v963
    %6987 = vmatpush1.msra.mxu0 %v962
    %6988 = vmatprep.subr.mxu0 %v955
    %6989 = vmatpush1.msra.mxu0 %v954
    %6990 = vmatprep.subr.mxu0 %v947
    %6991 = vmatpush1.msra.mxu0 %v946
    %6992 = vmatprep.subr.mxu0 %v939
    %6993 = vmatpush1.msra.mxu0 %v938
    %6994 = vmatprep.subr.mxu0 %v931
    %6995 = vmatpush1.msra.mxu0 %v930
    %6996 = vmatprep.subr.mxu0 %v923
    %6997 = vmatpush1.msra.mxu0 %v922
    %6998 = vmatprep.subr.mxu0 %v915
    %6999 = vmatpush1.msra.mxu0 %v914
    %7000 = vmatprep.subr.mxu0 %v907
    %7001 = vmatpush1.msra.mxu0 %v906
    %7002 = vmatprep.subr.mxu0 %v899
    %7003 = vmatpush1.msra.mxu0 %v898
    %7004 = vmatprep.subr.mxu0 %v891
    %7005 = vmatpush1.msra.mxu0 %v890
    %7006 = vmatprep.subr.mxu0 %v883
    %7007 = vmatpush1.msra.mxu0 %v882
    %7008 = vmatprep.subr.mxu0 %v1131
    %7009 = vmatpush2.msra.mxu0 %v1130
    %7010 = vmatprep.subr.mxu0 %v1123
    %7011 = vmatpush2.msra.mxu0 %v1122
    %7012 = vmatprep.subr.mxu0 %v1115
    %7013 = vmatpush2.msra.mxu0 %v1114
    %7014 = vmatprep.subr.mxu0 %v1107
    %7015 = vmatpush2.msra.mxu0 %v1106
    %7016 = vmatprep.subr.mxu0 %v1099
    %7017 = vmatpush2.msra.mxu0 %v1098
    %7018 = vmatprep.subr.mxu0 %v1091
    %7019 = vmatpush2.msra.mxu0 %v1090
    %7020 = vmatprep.subr.mxu0 %v1083
    %7021 = vmatpush2.msra.mxu0 %v1082
    %7022 = vmatprep.subr.mxu0 %v1075
    %7023 = vmatpush2.msra.mxu0 %v1074
    %7024 = vmatprep.subr.mxu0 %v1067
    %7025 = vmatpush2.msra.mxu0 %v1066
    %7026 = vmatprep.subr.mxu0 %v1059
    %7027 = vmatpush2.msra.mxu0 %v1058
    %7028 = vmatprep.subr.mxu0 %v1051
    %7029 = vmatpush2.msra.mxu0 %v1050
    %7030 = vmatprep.subr.mxu0 %v1043
    %7031 = vmatpush2.msra.mxu0 %v1042
    %7032 = vmatprep.subr.mxu0 %v1035
    %7033 = vmatpush2.msra.mxu0 %v1034
    %7034 = vmatprep.subr.mxu0 %v1027
    %7035 = vmatpush2.msra.mxu0 %v1026
    %7036 = vmatprep.subr.mxu0 %v1019
    %7037 = vmatpush2.msra.mxu0 %v1018
    %7038 = vmatprep.subr.mxu0 %v1011
    %7039 = vmatpush2.msra.mxu0 %v1010
    %7040 = vmatprep.mubr.f32.mxu0 %v6549
    %7041 = vmatmul.mubr.f32.gmra.mxu0 %v6548
    %v7042 = vpop.f32.mrf.mxu0
    %v7043 = vadd.f32 %v1757, %v7042
    %v7044 = vpop.f32.mrf.mxu0
    %v7045 = vadd.f32 %v1761, %v7044
    %7046 = vdwg.mxu0
    %7047 = vmatprep.subr.mxu0 %v1259
    %7048 = vmatpush1.msra.mxu0 %v1258
    %7049 = vmatprep.subr.mxu0 %v1251
    %7050 = vmatpush1.msra.mxu0 %v1250
    %7051 = vmatprep.subr.mxu0 %v1243
    %7052 = vmatpush1.msra.mxu0 %v1242
    %7053 = vmatprep.subr.mxu0 %v1235
    %7054 = vmatpush1.msra.mxu0 %v1234
    %7055 = vmatprep.subr.mxu0 %v1227
    %7056 = vmatpush1.msra.mxu0 %v1226
    %7057 = vmatprep.subr.mxu0 %v1219
    %7058 = vmatpush1.msra.mxu0 %v1218
    %7059 = vmatprep.subr.mxu0 %v1211
    %7060 = vmatpush1.msra.mxu0 %v1210
    %7061 = vmatprep.subr.mxu0 %v1203
    %7062 = vmatpush1.msra.mxu0 %v1202
    %7063 = vmatprep.subr.mxu0 %v1195
    %7064 = vmatpush1.msra.mxu0 %v1194
    %7065 = vmatprep.subr.mxu0 %v1187
    %7066 = vmatpush1.msra.mxu0 %v1186
    %7067 = vmatprep.subr.mxu0 %v1179
    %7068 = vmatpush1.msra.mxu0 %v1178
    %7069 = vmatprep.subr.mxu0 %v1171
    %7070 = vmatpush1.msra.mxu0 %v1170
    %7071 = vmatprep.subr.mxu0 %v1163
    %7072 = vmatpush1.msra.mxu0 %v1162
    %7073 = vmatprep.subr.mxu0 %v1155
    %7074 = vmatpush1.msra.mxu0 %v1154
    %7075 = vmatprep.subr.mxu0 %v1147
    %7076 = vmatpush1.msra.mxu0 %v1146
    %7077 = vmatprep.subr.mxu0 %v1139
    %7078 = vmatpush1.msra.mxu0 %v1138
    %7079 = vmatprep.subr.mxu0 %v1387
    %7080 = vmatpush2.msra.mxu0 %v1386
    %7081 = vmatprep.subr.mxu0 %v1379
    %7082 = vmatpush2.msra.mxu0 %v1378
    %7083 = vmatprep.subr.mxu0 %v1371
    %7084 = vmatpush2.msra.mxu0 %v1370
    %7085 = vmatprep.subr.mxu0 %v1363
    %7086 = vmatpush2.msra.mxu0 %v1362
    %7087 = vmatprep.subr.mxu0 %v1355
    %7088 = vmatpush2.msra.mxu0 %v1354
    %7089 = vmatprep.subr.mxu0 %v1347
    %7090 = vmatpush2.msra.mxu0 %v1346
    %7091 = vmatprep.subr.mxu0 %v1339
    %7092 = vmatpush2.msra.mxu0 %v1338
    %7093 = vmatprep.subr.mxu0 %v1331
    %7094 = vmatpush2.msra.mxu0 %v1330
    %7095 = vmatprep.subr.mxu0 %v1323
    %7096 = vmatpush2.msra.mxu0 %v1322
    %7097 = vmatprep.subr.mxu0 %v1315
    %7098 = vmatpush2.msra.mxu0 %v1314
    %7099 = vmatprep.subr.mxu0 %v1307
    %7100 = vmatpush2.msra.mxu0 %v1306
    %7101 = vmatprep.subr.mxu0 %v1299
    %7102 = vmatpush2.msra.mxu0 %v1298
    %7103 = vmatprep.subr.mxu0 %v1291
    %7104 = vmatpush2.msra.mxu0 %v1290
    %7105 = vmatprep.subr.mxu0 %v1283
    %7106 = vmatpush2.msra.mxu0 %v1282
    %7107 = vmatprep.subr.mxu0 %v1275
    %7108 = vmatpush2.msra.mxu0 %v1274
    %7109 = vmatprep.subr.mxu0 %v1267
    %7110 = vmatpush2.msra.mxu0 %v1266
    %7111 = vmatprep.mubr.f32.mxu0 %v6209
    %7112 = vmatmul.mubr.f32.gmra.mxu0 %v6208
    %v7113 = vpop.f32.mrf.mxu0
    %v7114 = vadd.f32 %v7043, %v7113
    %v7115 = vpop.f32.mrf.mxu0
    %v7116 = vadd.f32 %v7045, %v7115
    %7117 = vdwg.mxu0
    %v7118 = vxor.u32 %v6688, 2147483648
    %v7119 = vxor.u32 %v6690, 2147483648
    %v7120 = vxor.u32 %v6830, 2147483648
    %v7121 = vxor.u32 %v6832, 2147483648
    %v7122 = vxor.u32 %v6972, 2147483648
    %v7123 = vxor.u32 %v6974, 2147483648
    %v7124 = vmul.f32 %v7118, 1.442695
    %v7125 = vpow.pop %v7124
    %v7126 = vmul.f32 %v7119, 1.442695
    %v7127 = vpow.pop %v7126
    %v7128 = vmul.f32 %v7120, 1.442695
    %v7129 = vpow.pop %v7128
    %v7130 = vmul.f32 %v7121, 1.442695
    %v7131 = vpow.pop %v7130
    %v7132 = vmul.f32 %v7122, 1.442695
    %v7133 = vpow.pop %v7132
    %v7134 = vmul.f32 %v7123, 1.442695
    %v7135 = vpow.pop %v7134
    %v7136 = vadd.f32 %v7125, 1.0
    %v7137 = vadd.f32 %v7127, 1.0
    %v7138 = vadd.f32 %v7129, 1.0
    %v7139 = vadd.f32 %v7131, 1.0
    %v7140 = vadd.f32 %v7133, 1.0
    %v7141 = vadd.f32 %v7135, 1.0
    %v7142 = vrcp.pop %v7136
    %v7143 = vmul.f32 1.0, %v7142
    %v7144 = vrcp.pop %v7137
    %v7145 = vmul.f32 1.0, %v7144
    %v7146 = vrcp.pop %v7138
    %v7147 = vmul.f32 1.0, %v7146
    %v7148 = vrcp.pop %v7139
    %v7149 = vmul.f32 1.0, %v7148
    %v7150 = vrcp.pop %v7140
    %v7151 = vmul.f32 1.0, %v7150
    %v7152 = vrcp.pop %v7141
    %v7153 = vmul.f32 1.0, %v7152
    %v7154 = vtanh.pop %v7114
    %v7155 = vtanh.pop %v7116
    %v7156 = vmul.f32 %v7147, %v6204
    %v7157 = vmul.f32 %v7149, %v6205
    %v7158 = vmul.f32 %v7143, %v7154
    %v7159 = vmul.f32 %v7145, %v7155
    %v7160 = vadd.f32 %v7156, %v7158
    %v7161 = vadd.f32 %v7157, %v7159
    %v7162 = vtanh.pop %v7160
    %v7163 = vtanh.pop %v7161
    %v7164 = vmul.f32 %v7151, %v7162
    %v7165 = vmul.f32 %v7153, %v7163
    %7166 = vmatprep.subr.mxu0 %v741
    %7167 = vmatpush1.msra.mxu0 %v740
    %7168 = vmatprep.subr.mxu0 %v733
    %7169 = vmatpush1.msra.mxu0 %v732
    %7170 = vmatprep.subr.mxu0 %v725
    %7171 = vmatpush1.msra.mxu0 %v724
    %7172 = vmatprep.subr.mxu0 %v717
    %7173 = vmatpush1.msra.mxu0 %v716
    %7174 = vmatprep.subr.mxu0 %v709
    %7175 = vmatpush1.msra.mxu0 %v708
    %7176 = vmatprep.subr.mxu0 %v701
    %7177 = vmatpush1.msra.mxu0 %v700
    %7178 = vmatprep.subr.mxu0 %v693
    %7179 = vmatpush1.msra.mxu0 %v692
    %7180 = vmatprep.subr.mxu0 %v685
    %7181 = vmatpush1.msra.mxu0 %v684
    %7182 = vmatprep.subr.mxu0 %v677
    %7183 = vmatpush1.msra.mxu0 %v676
    %7184 = vmatprep.subr.mxu0 %v669
    %7185 = vmatpush1.msra.mxu0 %v668
    %7186 = vmatprep.subr.mxu0 %v661
    %7187 = vmatpush1.msra.mxu0 %v660
    %7188 = vmatprep.subr.mxu0 %v653
    %7189 = vmatpush1.msra.mxu0 %v652
    %7190 = vmatprep.subr.mxu0 %v645
    %7191 = vmatpush1.msra.mxu0 %v644
    %7192 = vmatprep.subr.mxu0 %v637
    %7193 = vmatpush1.msra.mxu0 %v636
    %7194 = vmatprep.subr.mxu0 %v629
    %7195 = vmatpush1.msra.mxu0 %v628
    %7196 = vmatprep.subr.mxu0 %v621
    %7197 = vmatpush1.msra.mxu0 %v620
    %7198 = vmatprep.subr.mxu0 %v869
    %7199 = vmatpush2.msra.mxu0 %v868
    %7200 = vmatprep.subr.mxu0 %v861
    %7201 = vmatpush2.msra.mxu0 %v860
    %7202 = vmatprep.subr.mxu0 %v853
    %7203 = vmatpush2.msra.mxu0 %v852
    %7204 = vmatprep.subr.mxu0 %v845
    %7205 = vmatpush2.msra.mxu0 %v844
    %7206 = vmatprep.subr.mxu0 %v837
    %7207 = vmatpush2.msra.mxu0 %v836
    %7208 = vmatprep.subr.mxu0 %v829
    %7209 = vmatpush2.msra.mxu0 %v828
    %7210 = vmatprep.subr.mxu0 %v821
    %7211 = vmatpush2.msra.mxu0 %v820
    %7212 = vmatprep.subr.mxu0 %v813
    %7213 = vmatpush2.msra.mxu0 %v812
    %7214 = vmatprep.subr.mxu0 %v805
    %7215 = vmatpush2.msra.mxu0 %v804
    %7216 = vmatprep.subr.mxu0 %v797
    %7217 = vmatpush2.msra.mxu0 %v796
    %7218 = vmatprep.subr.mxu0 %v789
    %7219 = vmatpush2.msra.mxu0 %v788
    %7220 = vmatprep.subr.mxu0 %v781
    %7221 = vmatpush2.msra.mxu0 %v780
    %7222 = vmatprep.subr.mxu0 %v773
    %7223 = vmatpush2.msra.mxu0 %v772
    %7224 = vmatprep.subr.mxu0 %v765
    %7225 = vmatpush2.msra.mxu0 %v764
    %7226 = vmatprep.subr.mxu0 %v757
    %7227 = vmatpush2.msra.mxu0 %v756
    %7228 = vmatprep.subr.mxu0 %v749
    %7229 = vmatpush2.msra.mxu0 %v748
    %7230 = vmatprep.mubr.f32.mxu0 %v6549
    %7231 = vmatmul.mubr.f32.gmra.mxu0 %v6548
    %v7232 = vpop.f32.mrf.mxu0
    %v7233 = vadd.f32 0.0, %v7232
    %v7234 = vpop.f32.mrf.mxu0
    %v7235 = vadd.f32 0.0, %v7234
    %7236 = vdwg.mxu0
    %7237 = vmatprep.subr.mxu0 %v743
    %7238 = vmatpush1.msra.mxu0 %v742
    %7239 = vmatprep.subr.mxu0 %v735
    %7240 = vmatpush1.msra.mxu0 %v734
    %7241 = vmatprep.subr.mxu0 %v727
    %7242 = vmatpush1.msra.mxu0 %v726
    %7243 = vmatprep.subr.mxu0 %v719
    %7244 = vmatpush1.msra.mxu0 %v718
    %7245 = vmatprep.subr.mxu0 %v711
    %7246 = vmatpush1.msra.mxu0 %v710
    %7247 = vmatprep.subr.mxu0 %v703
    %7248 = vmatpush1.msra.mxu0 %v702
    %7249 = vmatprep.subr.mxu0 %v695
    %7250 = vmatpush1.msra.mxu0 %v694
    %7251 = vmatprep.subr.mxu0 %v687
    %7252 = vmatpush1.msra.mxu0 %v686
    %7253 = vmatprep.subr.mxu0 %v679
    %7254 = vmatpush1.msra.mxu0 %v678
    %7255 = vmatprep.subr.mxu0 %v671
    %7256 = vmatpush1.msra.mxu0 %v670
    %7257 = vmatprep.subr.mxu0 %v663
    %7258 = vmatpush1.msra.mxu0 %v662
    %7259 = vmatprep.subr.mxu0 %v655
    %7260 = vmatpush1.msra.mxu0 %v654
    %7261 = vmatprep.subr.mxu0 %v647
    %7262 = vmatpush1.msra.mxu0 %v646
    %7263 = vmatprep.subr.mxu0 %v639
    %7264 = vmatpush1.msra.mxu0 %v638
    %7265 = vmatprep.subr.mxu0 %v631
    %7266 = vmatpush1.msra.mxu0 %v630
    %7267 = vmatprep.subr.mxu0 %v623
    %7268 = vmatpush1.msra.mxu0 %v622
    %7269 = vmatprep.subr.mxu0 %v871
    %7270 = vmatpush2.msra.mxu0 %v870
    %7271 = vmatprep.subr.mxu0 %v863
    %7272 = vmatpush2.msra.mxu0 %v862
    %7273 = vmatprep.subr.mxu0 %v855
    %7274 = vmatpush2.msra.mxu0 %v854
    %7275 = vmatprep.subr.mxu0 %v847
    %7276 = vmatpush2.msra.mxu0 %v846
    %7277 = vmatprep.subr.mxu0 %v839
    %7278 = vmatpush2.msra.mxu0 %v838
    %7279 = vmatprep.subr.mxu0 %v831
    %7280 = vmatpush2.msra.mxu0 %v830
    %7281 = vmatprep.subr.mxu0 %v823
    %7282 = vmatpush2.msra.mxu0 %v822
    %7283 = vmatprep.subr.mxu0 %v815
    %7284 = vmatpush2.msra.mxu0 %v814
    %7285 = vmatprep.subr.mxu0 %v807
    %7286 = vmatpush2.msra.mxu0 %v806
    %7287 = vmatprep.subr.mxu0 %v799
    %7288 = vmatpush2.msra.mxu0 %v798
    %7289 = vmatprep.subr.mxu0 %v791
    %7290 = vmatpush2.msra.mxu0 %v790
    %7291 = vmatprep.subr.mxu0 %v783
    %7292 = vmatpush2.msra.mxu0 %v782
    %7293 = vmatprep.subr.mxu0 %v775
    %7294 = vmatpush2.msra.mxu0 %v774
    %7295 = vmatprep.subr.mxu0 %v767
    %7296 = vmatpush2.msra.mxu0 %v766
    %7297 = vmatprep.subr.mxu0 %v759
    %7298 = vmatpush2.msra.mxu0 %v758
    %7299 = vmatprep.subr.mxu0 %v751
    %7300 = vmatpush2.msra.mxu0 %v750
    %7301 = vmatprep.mubr.f32.mxu0 %v6549
    %7302 = vmatmul.mubr.f32.gmra.mxu0 %v6548
    %v7303 = vpop.f32.mrf.mxu0
    %v7304 = vadd.f32 0.0, %v7303
    %v7305 = vpop.f32.mrf.mxu0
    %v7306 = vadd.f32 0.0, %v7305
    %7307 = vdwg.mxu0
    %7308 = vmatprep.subr.mxu0 %v745
    %7309 = vmatpush1.msra.mxu0 %v744
    %7310 = vmatprep.subr.mxu0 %v737
    %7311 = vmatpush1.msra.mxu0 %v736
    %7312 = vmatprep.subr.mxu0 %v729
    %7313 = vmatpush1.msra.mxu0 %v728
    %7314 = vmatprep.subr.mxu0 %v721
    %7315 = vmatpush1.msra.mxu0 %v720
    %7316 = vmatprep.subr.mxu0 %v713
    %7317 = vmatpush1.msra.mxu0 %v712
    %7318 = vmatprep.subr.mxu0 %v705
    %7319 = vmatpush1.msra.mxu0 %v704
    %7320 = vmatprep.subr.mxu0 %v697
    %7321 = vmatpush1.msra.mxu0 %v696
    %7322 = vmatprep.subr.mxu0 %v689
    %7323 = vmatpush1.msra.mxu0 %v688
    %7324 = vmatprep.subr.mxu0 %v681
    %7325 = vmatpush1.msra.mxu0 %v680
    %7326 = vmatprep.subr.mxu0 %v673
    %7327 = vmatpush1.msra.mxu0 %v672
    %7328 = vmatprep.subr.mxu0 %v665
    %7329 = vmatpush1.msra.mxu0 %v664
    %7330 = vmatprep.subr.mxu0 %v657
    %7331 = vmatpush1.msra.mxu0 %v656
    %7332 = vmatprep.subr.mxu0 %v649
    %7333 = vmatpush1.msra.mxu0 %v648
    %7334 = vmatprep.subr.mxu0 %v641
    %7335 = vmatpush1.msra.mxu0 %v640
    %7336 = vmatprep.subr.mxu0 %v633
    %7337 = vmatpush1.msra.mxu0 %v632
    %7338 = vmatprep.subr.mxu0 %v625
    %7339 = vmatpush1.msra.mxu0 %v624
    %7340 = vmatprep.subr.mxu0 %v873
    %7341 = vmatpush2.msra.mxu0 %v872
    %7342 = vmatprep.subr.mxu0 %v865
    %7343 = vmatpush2.msra.mxu0 %v864
    %7344 = vmatprep.subr.mxu0 %v857
    %7345 = vmatpush2.msra.mxu0 %v856
    %7346 = vmatprep.subr.mxu0 %v849
    %7347 = vmatpush2.msra.mxu0 %v848
    %7348 = vmatprep.subr.mxu0 %v841
    %7349 = vmatpush2.msra.mxu0 %v840
    %7350 = vmatprep.subr.mxu0 %v833
    %7351 = vmatpush2.msra.mxu0 %v832
    %7352 = vmatprep.subr.mxu0 %v825
    %7353 = vmatpush2.msra.mxu0 %v824
    %7354 = vmatprep.subr.mxu0 %v817
    %7355 = vmatpush2.msra.mxu0 %v816
    %7356 = vmatprep.subr.mxu0 %v809
    %7357 = vmatpush2.msra.mxu0 %v808
    %7358 = vmatprep.subr.mxu0 %v801
    %7359 = vmatpush2.msra.mxu0 %v800
    %7360 = vmatprep.subr.mxu0 %v793
    %7361 = vmatpush2.msra.mxu0 %v792
    %7362 = vmatprep.subr.mxu0 %v785
    %7363 = vmatpush2.msra.mxu0 %v784
    %7364 = vmatprep.subr.mxu0 %v777
    %7365 = vmatpush2.msra.mxu0 %v776
    %7366 = vmatprep.subr.mxu0 %v769
    %7367 = vmatpush2.msra.mxu0 %v768
    %7368 = vmatprep.subr.mxu0 %v761
    %7369 = vmatpush2.msra.mxu0 %v760
    %7370 = vmatprep.subr.mxu0 %v753
    %7371 = vmatpush2.msra.mxu0 %v752
    %7372 = vmatprep.mubr.f32.mxu0 %v6549
    %7373 = vmatmul.mubr.f32.gmra.mxu0 %v6548
    %v7374 = vpop.f32.mrf.mxu0
    %v7375 = vadd.f32 0.0, %v7374
    %v7376 = vpop.f32.mrf.mxu0
    %v7377 = vadd.f32 0.0, %v7376
    %7378 = vdwg.mxu0
    %7379 = vmatprep.subr.mxu0 %v747
    %7380 = vmatpush1.msra.mxu0 %v746
    %7381 = vmatprep.subr.mxu0 %v739
    %7382 = vmatpush1.msra.mxu0 %v738
    %7383 = vmatprep.subr.mxu0 %v731
    %7384 = vmatpush1.msra.mxu0 %v730
    %7385 = vmatprep.subr.mxu0 %v723
    %7386 = vmatpush1.msra.mxu0 %v722
    %7387 = vmatprep.subr.mxu0 %v715
    %7388 = vmatpush1.msra.mxu0 %v714
    %7389 = vmatprep.subr.mxu0 %v707
    %7390 = vmatpush1.msra.mxu0 %v706
    %7391 = vmatprep.subr.mxu0 %v699
    %7392 = vmatpush1.msra.mxu0 %v698
    %7393 = vmatprep.subr.mxu0 %v691
    %7394 = vmatpush1.msra.mxu0 %v690
    %7395 = vmatprep.subr.mxu0 %v683
    %7396 = vmatpush1.msra.mxu0 %v682
    %7397 = vmatprep.subr.mxu0 %v675
    %7398 = vmatpush1.msra.mxu0 %v674
    %7399 = vmatprep.subr.mxu0 %v667
    %7400 = vmatpush1.msra.mxu0 %v666
    %7401 = vmatprep.subr.mxu0 %v659
    %7402 = vmatpush1.msra.mxu0 %v658
    %7403 = vmatprep.subr.mxu0 %v651
    %7404 = vmatpush1.msra.mxu0 %v650
    %7405 = vmatprep.subr.mxu0 %v643
    %7406 = vmatpush1.msra.mxu0 %v642
    %7407 = vmatprep.subr.mxu0 %v635
    %7408 = vmatpush1.msra.mxu0 %v634
    %7409 = vmatprep.subr.mxu0 %v627
    %7410 = vmatpush1.msra.mxu0 %v626
    %7411 = vmatprep.subr.mxu0 %v875
    %7412 = vmatpush2.msra.mxu0 %v874
    %7413 = vmatprep.subr.mxu0 %v867
    %7414 = vmatpush2.msra.mxu0 %v866
    %7415 = vmatprep.subr.mxu0 %v859
    %7416 = vmatpush2.msra.mxu0 %v858
    %7417 = vmatprep.subr.mxu0 %v851
    %7418 = vmatpush2.msra.mxu0 %v850
    %7419 = vmatprep.subr.mxu0 %v843
    %7420 = vmatpush2.msra.mxu0 %v842
    %7421 = vmatprep.subr.mxu0 %v835
    %7422 = vmatpush2.msra.mxu0 %v834
    %7423 = vmatprep.subr.mxu0 %v827
    %7424 = vmatpush2.msra.mxu0 %v826
    %7425 = vmatprep.subr.mxu0 %v819
    %7426 = vmatpush2.msra.mxu0 %v818
    %7427 = vmatprep.subr.mxu0 %v811
    %7428 = vmatpush2.msra.mxu0 %v810
    %7429 = vmatprep.subr.mxu0 %v803
    %7430 = vmatpush2.msra.mxu0 %v802
    %7431 = vmatprep.subr.mxu0 %v795
    %7432 = vmatpush2.msra.mxu0 %v794
    %7433 = vmatprep.subr.mxu0 %v787
    %7434 = vmatpush2.msra.mxu0 %v786
    %7435 = vmatprep.subr.mxu0 %v779
    %7436 = vmatpush2.msra.mxu0 %v778
    %7437 = vmatprep.subr.mxu0 %v771
    %7438 = vmatpush2.msra.mxu0 %v770
    %7439 = vmatprep.subr.mxu0 %v763
    %7440 = vmatpush2.msra.mxu0 %v762
    %7441 = vmatprep.subr.mxu0 %v755
    %7442 = vmatpush2.msra.mxu0 %v754
    %7443 = vmatprep.mubr.f32.mxu0 %v6549
    %7444 = vmatmul.mubr.f32.gmra.mxu0 %v6548
    %v7445 = vpop.f32.mrf.mxu0
    %v7446 = vadd.f32 0.0, %v7445
    %v7447 = vpop.f32.mrf.mxu0
    %v7448 = vadd.f32 0.0, %v7447
    %7449 = vdwg.mxu0
    %v7450 = vadd.f32 %v271, %v7233
    %v7451 = vadd.f32 %v273, %v7235
    %v7452 = vadd.f32 %v384, %v7304
    %v7453 = vadd.f32 %v386, %v7306
    %v7454 = vadd.f32 %v497, %v7375
    %v7455 = vadd.f32 %v499, %v7377
    %v7456 = vadd.f32 %v610, %v7446
    %v7457 = vadd.f32 %v612, %v7448
    %v7458 = vxor.u32 %v7450, 2147483648
    %v7459 = vxor.u32 %v7451, 2147483648
    %v7460 = vxor.u32 %v7452, 2147483648
    %v7461 = vxor.u32 %v7453, 2147483648
    %v7462 = vxor.u32 %v7454, 2147483648
    %v7463 = vxor.u32 %v7455, 2147483648
    %v7464 = vmul.f32 %v7458, 1.442695
    %v7465 = vpow.pop %v7464
    %v7466 = vmul.f32 %v7459, 1.442695
    %v7467 = vpow.pop %v7466
    %v7468 = vmul.f32 %v7460, 1.442695
    %v7469 = vpow.pop %v7468
    %v7470 = vmul.f32 %v7461, 1.442695
    %v7471 = vpow.pop %v7470
    %v7472 = vmul.f32 %v7462, 1.442695
    %v7473 = vpow.pop %v7472
    %v7474 = vmul.f32 %v7463, 1.442695
    %v7475 = vpow.pop %v7474
    %v7476 = vadd.f32 %v7465, 1.0
    %v7477 = vadd.f32 %v7467, 1.0
    %v7478 = vadd.f32 %v7469, 1.0
    %v7479 = vadd.f32 %v7471, 1.0
    %v7480 = vadd.f32 %v7473, 1.0
    %v7481 = vadd.f32 %v7475, 1.0
    %v7482 = vrcp.pop %v7476
    %v7483 = vmul.f32 1.0, %v7482
    %v7484 = vrcp.pop %v7477
    %v7485 = vmul.f32 1.0, %v7484
    %v7486 = vrcp.pop %v7478
    %v7487 = vmul.f32 1.0, %v7486
    %v7488 = vrcp.pop %v7479
    %v7489 = vmul.f32 1.0, %v7488
    %v7490 = vrcp.pop %v7480
    %v7491 = vmul.f32 1.0, %v7490
    %v7492 = vrcp.pop %v7481
    %v7493 = vmul.f32 1.0, %v7492
    %v7494 = vtanh.pop %v7456
    %v7495 = vtanh.pop %v7457
    %v7496 = vmul.f32 %v7487, %v6544
    %v7497 = vmul.f32 %v7489, %v6545
    %v7498 = vmul.f32 %v7483, %v7494
    %v7499 = vmul.f32 %v7485, %v7495
    %v7500 = vadd.f32 %v7496, %v7498
    %v7501 = vadd.f32 %v7497, %v7499
    %v7502 = vtanh.pop %v7500
    %v7503 = vtanh.pop %v7501
    %v7504 = vmul.f32 %v7491, %v7502
    %v7505 = vmul.f32 %v7493, %v7503
    %7506 = vmatprep.subr.mxu0 %v997
    %7507 = vmatpush1.msra.mxu0 %v996
    %7508 = vmatprep.subr.mxu0 %v989
    %7509 = vmatpush1.msra.mxu0 %v988
    %7510 = vmatprep.subr.mxu0 %v981
    %7511 = vmatpush1.msra.mxu0 %v980
    %7512 = vmatprep.subr.mxu0 %v973
    %7513 = vmatpush1.msra.mxu0 %v972
    %7514 = vmatprep.subr.mxu0 %v965
    %7515 = vmatpush1.msra.mxu0 %v964
    %7516 = vmatprep.subr.mxu0 %v957
    %7517 = vmatpush1.msra.mxu0 %v956
    %7518 = vmatprep.subr.mxu0 %v949
    %7519 = vmatpush1.msra.mxu0 %v948
    %7520 = vmatprep.subr.mxu0 %v941
    %7521 = vmatpush1.msra.mxu0 %v940
    %7522 = vmatprep.subr.mxu0 %v933
    %7523 = vmatpush1.msra.mxu0 %v932
    %7524 = vmatprep.subr.mxu0 %v925
    %7525 = vmatpush1.msra.mxu0 %v924
    %7526 = vmatprep.subr.mxu0 %v917
    %7527 = vmatpush1.msra.mxu0 %v916
    %7528 = vmatprep.subr.mxu0 %v909
    %7529 = vmatpush1.msra.mxu0 %v908
    %7530 = vmatprep.subr.mxu0 %v901
    %7531 = vmatpush1.msra.mxu0 %v900
    %7532 = vmatprep.subr.mxu0 %v893
    %7533 = vmatpush1.msra.mxu0 %v892
    %7534 = vmatprep.subr.mxu0 %v885
    %7535 = vmatpush1.msra.mxu0 %v884
    %7536 = vmatprep.subr.mxu0 %v877
    %7537 = vmatpush1.msra.mxu0 %v876
    %7538 = vmatprep.subr.mxu0 %v1125
    %7539 = vmatpush2.msra.mxu0 %v1124
    %7540 = vmatprep.subr.mxu0 %v1117
    %7541 = vmatpush2.msra.mxu0 %v1116
    %7542 = vmatprep.subr.mxu0 %v1109
    %7543 = vmatpush2.msra.mxu0 %v1108
    %7544 = vmatprep.subr.mxu0 %v1101
    %7545 = vmatpush2.msra.mxu0 %v1100
    %7546 = vmatprep.subr.mxu0 %v1093
    %7547 = vmatpush2.msra.mxu0 %v1092
    %7548 = vmatprep.subr.mxu0 %v1085
    %7549 = vmatpush2.msra.mxu0 %v1084
    %7550 = vmatprep.subr.mxu0 %v1077
    %7551 = vmatpush2.msra.mxu0 %v1076
    %7552 = vmatprep.subr.mxu0 %v1069
    %7553 = vmatpush2.msra.mxu0 %v1068
    %7554 = vmatprep.subr.mxu0 %v1061
    %7555 = vmatpush2.msra.mxu0 %v1060
    %7556 = vmatprep.subr.mxu0 %v1053
    %7557 = vmatpush2.msra.mxu0 %v1052
    %7558 = vmatprep.subr.mxu0 %v1045
    %7559 = vmatpush2.msra.mxu0 %v1044
    %7560 = vmatprep.subr.mxu0 %v1037
    %7561 = vmatpush2.msra.mxu0 %v1036
    %7562 = vmatprep.subr.mxu0 %v1029
    %7563 = vmatpush2.msra.mxu0 %v1028
    %7564 = vmatprep.subr.mxu0 %v1021
    %7565 = vmatpush2.msra.mxu0 %v1020
    %7566 = vmatprep.subr.mxu0 %v1013
    %7567 = vmatpush2.msra.mxu0 %v1012
    %7568 = vmatprep.subr.mxu0 %v1005
    %7569 = vmatpush2.msra.mxu0 %v1004
    %7570 = vmatprep.mubr.f32.mxu0 %v7505
    %7571 = vmatmul.mubr.f32.gmra.mxu0 %v7504
    %v7572 = vpop.f32.mrf.mxu0
    %v7573 = vadd.f32 %v1733, %v7572
    %v7574 = vpop.f32.mrf.mxu0
    %v7575 = vadd.f32 %v1737, %v7574
    %7576 = vdwg.mxu0
    %7577 = vmatprep.subr.mxu0 %v1253
    %7578 = vmatpush1.msra.mxu0 %v1252
    %7579 = vmatprep.subr.mxu0 %v1245
    %7580 = vmatpush1.msra.mxu0 %v1244
    %7581 = vmatprep.subr.mxu0 %v1237
    %7582 = vmatpush1.msra.mxu0 %v1236
    %7583 = vmatprep.subr.mxu0 %v1229
    %7584 = vmatpush1.msra.mxu0 %v1228
    %7585 = vmatprep.subr.mxu0 %v1221
    %7586 = vmatpush1.msra.mxu0 %v1220
    %7587 = vmatprep.subr.mxu0 %v1213
    %7588 = vmatpush1.msra.mxu0 %v1212
    %7589 = vmatprep.subr.mxu0 %v1205
    %7590 = vmatpush1.msra.mxu0 %v1204
    %7591 = vmatprep.subr.mxu0 %v1197
    %7592 = vmatpush1.msra.mxu0 %v1196
    %7593 = vmatprep.subr.mxu0 %v1189
    %7594 = vmatpush1.msra.mxu0 %v1188
    %7595 = vmatprep.subr.mxu0 %v1181
    %7596 = vmatpush1.msra.mxu0 %v1180
    %7597 = vmatprep.subr.mxu0 %v1173
    %7598 = vmatpush1.msra.mxu0 %v1172
    %7599 = vmatprep.subr.mxu0 %v1165
    %7600 = vmatpush1.msra.mxu0 %v1164
    %7601 = vmatprep.subr.mxu0 %v1157
    %7602 = vmatpush1.msra.mxu0 %v1156
    %7603 = vmatprep.subr.mxu0 %v1149
    %7604 = vmatpush1.msra.mxu0 %v1148
    %7605 = vmatprep.subr.mxu0 %v1141
    %7606 = vmatpush1.msra.mxu0 %v1140
    %7607 = vmatprep.subr.mxu0 %v1133
    %7608 = vmatpush1.msra.mxu0 %v1132
    %7609 = vmatprep.subr.mxu0 %v1381
    %7610 = vmatpush2.msra.mxu0 %v1380
    %7611 = vmatprep.subr.mxu0 %v1373
    %7612 = vmatpush2.msra.mxu0 %v1372
    %7613 = vmatprep.subr.mxu0 %v1365
    %7614 = vmatpush2.msra.mxu0 %v1364
    %7615 = vmatprep.subr.mxu0 %v1357
    %7616 = vmatpush2.msra.mxu0 %v1356
    %7617 = vmatprep.subr.mxu0 %v1349
    %7618 = vmatpush2.msra.mxu0 %v1348
    %7619 = vmatprep.subr.mxu0 %v1341
    %7620 = vmatpush2.msra.mxu0 %v1340
    %7621 = vmatprep.subr.mxu0 %v1333
    %7622 = vmatpush2.msra.mxu0 %v1332
    %7623 = vmatprep.subr.mxu0 %v1325
    %7624 = vmatpush2.msra.mxu0 %v1324
    %7625 = vmatprep.subr.mxu0 %v1317
    %7626 = vmatpush2.msra.mxu0 %v1316
    %7627 = vmatprep.subr.mxu0 %v1309
    %7628 = vmatpush2.msra.mxu0 %v1308
    %7629 = vmatprep.subr.mxu0 %v1301
    %7630 = vmatpush2.msra.mxu0 %v1300
    %7631 = vmatprep.subr.mxu0 %v1293
    %7632 = vmatpush2.msra.mxu0 %v1292
    %7633 = vmatprep.subr.mxu0 %v1285
    %7634 = vmatpush2.msra.mxu0 %v1284
    %7635 = vmatprep.subr.mxu0 %v1277
    %7636 = vmatpush2.msra.mxu0 %v1276
    %7637 = vmatprep.subr.mxu0 %v1269
    %7638 = vmatpush2.msra.mxu0 %v1268
    %7639 = vmatprep.subr.mxu0 %v1261
    %7640 = vmatpush2.msra.mxu0 %v1260
    %7641 = vmatprep.mubr.f32.mxu0 %v7165
    %7642 = vmatmul.mubr.f32.gmra.mxu0 %v7164
    %v7643 = vpop.f32.mrf.mxu0
    %v7644 = vadd.f32 %v7573, %v7643
    %v7645 = vpop.f32.mrf.mxu0
    %v7646 = vadd.f32 %v7575, %v7645
    %7647 = vdwg.mxu0
    %7648 = vmatprep.subr.mxu0 %v999
    %7649 = vmatpush1.msra.mxu0 %v998
    %7650 = vmatprep.subr.mxu0 %v991
    %7651 = vmatpush1.msra.mxu0 %v990
    %7652 = vmatprep.subr.mxu0 %v983
    %7653 = vmatpush1.msra.mxu0 %v982
    %7654 = vmatprep.subr.mxu0 %v975
    %7655 = vmatpush1.msra.mxu0 %v974
    %7656 = vmatprep.subr.mxu0 %v967
    %7657 = vmatpush1.msra.mxu0 %v966
    %7658 = vmatprep.subr.mxu0 %v959
    %7659 = vmatpush1.msra.mxu0 %v958
    %7660 = vmatprep.subr.mxu0 %v951
    %7661 = vmatpush1.msra.mxu0 %v950
    %7662 = vmatprep.subr.mxu0 %v943
    %7663 = vmatpush1.msra.mxu0 %v942
    %7664 = vmatprep.subr.mxu0 %v935
    %7665 = vmatpush1.msra.mxu0 %v934
    %7666 = vmatprep.subr.mxu0 %v927
    %7667 = vmatpush1.msra.mxu0 %v926
    %7668 = vmatprep.subr.mxu0 %v919
    %7669 = vmatpush1.msra.mxu0 %v918
    %7670 = vmatprep.subr.mxu0 %v911
    %7671 = vmatpush1.msra.mxu0 %v910
    %7672 = vmatprep.subr.mxu0 %v903
    %7673 = vmatpush1.msra.mxu0 %v902
    %7674 = vmatprep.subr.mxu0 %v895
    %7675 = vmatpush1.msra.mxu0 %v894
    %7676 = vmatprep.subr.mxu0 %v887
    %7677 = vmatpush1.msra.mxu0 %v886
    %7678 = vmatprep.subr.mxu0 %v879
    %7679 = vmatpush1.msra.mxu0 %v878
    %7680 = vmatprep.subr.mxu0 %v1127
    %7681 = vmatpush2.msra.mxu0 %v1126
    %7682 = vmatprep.subr.mxu0 %v1119
    %7683 = vmatpush2.msra.mxu0 %v1118
    %7684 = vmatprep.subr.mxu0 %v1111
    %7685 = vmatpush2.msra.mxu0 %v1110
    %7686 = vmatprep.subr.mxu0 %v1103
    %7687 = vmatpush2.msra.mxu0 %v1102
    %7688 = vmatprep.subr.mxu0 %v1095
    %7689 = vmatpush2.msra.mxu0 %v1094
    %7690 = vmatprep.subr.mxu0 %v1087
    %7691 = vmatpush2.msra.mxu0 %v1086
    %7692 = vmatprep.subr.mxu0 %v1079
    %7693 = vmatpush2.msra.mxu0 %v1078
    %7694 = vmatprep.subr.mxu0 %v1071
    %7695 = vmatpush2.msra.mxu0 %v1070
    %7696 = vmatprep.subr.mxu0 %v1063
    %7697 = vmatpush2.msra.mxu0 %v1062
    %7698 = vmatprep.subr.mxu0 %v1055
    %7699 = vmatpush2.msra.mxu0 %v1054
    %7700 = vmatprep.subr.mxu0 %v1047
    %7701 = vmatpush2.msra.mxu0 %v1046
    %7702 = vmatprep.subr.mxu0 %v1039
    %7703 = vmatpush2.msra.mxu0 %v1038
    %7704 = vmatprep.subr.mxu0 %v1031
    %7705 = vmatpush2.msra.mxu0 %v1030
    %7706 = vmatprep.subr.mxu0 %v1023
    %7707 = vmatpush2.msra.mxu0 %v1022
    %7708 = vmatprep.subr.mxu0 %v1015
    %7709 = vmatpush2.msra.mxu0 %v1014
    %7710 = vmatprep.subr.mxu0 %v1007
    %7711 = vmatpush2.msra.mxu0 %v1006
    %7712 = vmatprep.mubr.f32.mxu0 %v7505
    %7713 = vmatmul.mubr.f32.gmra.mxu0 %v7504
    %v7714 = vpop.f32.mrf.mxu0
    %v7715 = vadd.f32 %v1741, %v7714
    %v7716 = vpop.f32.mrf.mxu0
    %v7717 = vadd.f32 %v1745, %v7716
    %7718 = vdwg.mxu0
    %7719 = vmatprep.subr.mxu0 %v1255
    %7720 = vmatpush1.msra.mxu0 %v1254
    %7721 = vmatprep.subr.mxu0 %v1247
    %7722 = vmatpush1.msra.mxu0 %v1246
    %7723 = vmatprep.subr.mxu0 %v1239
    %7724 = vmatpush1.msra.mxu0 %v1238
    %7725 = vmatprep.subr.mxu0 %v1231
    %7726 = vmatpush1.msra.mxu0 %v1230
    %7727 = vmatprep.subr.mxu0 %v1223
    %7728 = vmatpush1.msra.mxu0 %v1222
    %7729 = vmatprep.subr.mxu0 %v1215
    %7730 = vmatpush1.msra.mxu0 %v1214
    %7731 = vmatprep.subr.mxu0 %v1207
    %7732 = vmatpush1.msra.mxu0 %v1206
    %7733 = vmatprep.subr.mxu0 %v1199
    %7734 = vmatpush1.msra.mxu0 %v1198
    %7735 = vmatprep.subr.mxu0 %v1191
    %7736 = vmatpush1.msra.mxu0 %v1190
    %7737 = vmatprep.subr.mxu0 %v1183
    %7738 = vmatpush1.msra.mxu0 %v1182
    %7739 = vmatprep.subr.mxu0 %v1175
    %7740 = vmatpush1.msra.mxu0 %v1174
    %7741 = vmatprep.subr.mxu0 %v1167
    %7742 = vmatpush1.msra.mxu0 %v1166
    %7743 = vmatprep.subr.mxu0 %v1159
    %7744 = vmatpush1.msra.mxu0 %v1158
    %7745 = vmatprep.subr.mxu0 %v1151
    %7746 = vmatpush1.msra.mxu0 %v1150
    %7747 = vmatprep.subr.mxu0 %v1143
    %7748 = vmatpush1.msra.mxu0 %v1142
    %7749 = vmatprep.subr.mxu0 %v1135
    %7750 = vmatpush1.msra.mxu0 %v1134
    %7751 = vmatprep.subr.mxu0 %v1383
    %7752 = vmatpush2.msra.mxu0 %v1382
    %7753 = vmatprep.subr.mxu0 %v1375
    %7754 = vmatpush2.msra.mxu0 %v1374
    %7755 = vmatprep.subr.mxu0 %v1367
    %7756 = vmatpush2.msra.mxu0 %v1366
    %7757 = vmatprep.subr.mxu0 %v1359
    %7758 = vmatpush2.msra.mxu0 %v1358
    %7759 = vmatprep.subr.mxu0 %v1351
    %7760 = vmatpush2.msra.mxu0 %v1350
    %7761 = vmatprep.subr.mxu0 %v1343
    %7762 = vmatpush2.msra.mxu0 %v1342
    %7763 = vmatprep.subr.mxu0 %v1335
    %7764 = vmatpush2.msra.mxu0 %v1334
    %7765 = vmatprep.subr.mxu0 %v1327
    %7766 = vmatpush2.msra.mxu0 %v1326
    %7767 = vmatprep.subr.mxu0 %v1319
    %7768 = vmatpush2.msra.mxu0 %v1318
    %7769 = vmatprep.subr.mxu0 %v1311
    %7770 = vmatpush2.msra.mxu0 %v1310
    %7771 = vmatprep.subr.mxu0 %v1303
    %7772 = vmatpush2.msra.mxu0 %v1302
    %7773 = vmatprep.subr.mxu0 %v1295
    %7774 = vmatpush2.msra.mxu0 %v1294
    %7775 = vmatprep.subr.mxu0 %v1287
    %7776 = vmatpush2.msra.mxu0 %v1286
    %7777 = vmatprep.subr.mxu0 %v1279
    %7778 = vmatpush2.msra.mxu0 %v1278
    %7779 = vmatprep.subr.mxu0 %v1271
    %7780 = vmatpush2.msra.mxu0 %v1270
    %7781 = vmatprep.subr.mxu0 %v1263
    %7782 = vmatpush2.msra.mxu0 %v1262
    %7783 = vmatprep.mubr.f32.mxu0 %v7165
    %7784 = vmatmul.mubr.f32.gmra.mxu0 %v7164
    %v7785 = vpop.f32.mrf.mxu0
    %v7786 = vadd.f32 %v7715, %v7785
    %v7787 = vpop.f32.mrf.mxu0
    %v7788 = vadd.f32 %v7717, %v7787
    %7789 = vdwg.mxu0
    %7790 = vmatprep.subr.mxu0 %v1001
    %7791 = vmatpush1.msra.mxu0 %v1000
    %7792 = vmatprep.subr.mxu0 %v993
    %7793 = vmatpush1.msra.mxu0 %v992
    %7794 = vmatprep.subr.mxu0 %v985
    %7795 = vmatpush1.msra.mxu0 %v984
    %7796 = vmatprep.subr.mxu0 %v977
    %7797 = vmatpush1.msra.mxu0 %v976
    %7798 = vmatprep.subr.mxu0 %v969
    %7799 = vmatpush1.msra.mxu0 %v968
    %7800 = vmatprep.subr.mxu0 %v961
    %7801 = vmatpush1.msra.mxu0 %v960
    %7802 = vmatprep.subr.mxu0 %v953
    %7803 = vmatpush1.msra.mxu0 %v952
    %7804 = vmatprep.subr.mxu0 %v945
    %7805 = vmatpush1.msra.mxu0 %v944
    %7806 = vmatprep.subr.mxu0 %v937
    %7807 = vmatpush1.msra.mxu0 %v936
    %7808 = vmatprep.subr.mxu0 %v929
    %7809 = vmatpush1.msra.mxu0 %v928
    %7810 = vmatprep.subr.mxu0 %v921
    %7811 = vmatpush1.msra.mxu0 %v920
    %7812 = vmatprep.subr.mxu0 %v913
    %7813 = vmatpush1.msra.mxu0 %v912
    %7814 = vmatprep.subr.mxu0 %v905
    %7815 = vmatpush1.msra.mxu0 %v904
    %7816 = vmatprep.subr.mxu0 %v897
    %7817 = vmatpush1.msra.mxu0 %v896
    %7818 = vmatprep.subr.mxu0 %v889
    %7819 = vmatpush1.msra.mxu0 %v888
    %7820 = vmatprep.subr.mxu0 %v881
    %7821 = vmatpush1.msra.mxu0 %v880
    %7822 = vmatprep.subr.mxu0 %v1129
    %7823 = vmatpush2.msra.mxu0 %v1128
    %7824 = vmatprep.subr.mxu0 %v1121
    %7825 = vmatpush2.msra.mxu0 %v1120
    %7826 = vmatprep.subr.mxu0 %v1113
    %7827 = vmatpush2.msra.mxu0 %v1112
    %7828 = vmatprep.subr.mxu0 %v1105
    %7829 = vmatpush2.msra.mxu0 %v1104
    %7830 = vmatprep.subr.mxu0 %v1097
    %7831 = vmatpush2.msra.mxu0 %v1096
    %7832 = vmatprep.subr.mxu0 %v1089
    %7833 = vmatpush2.msra.mxu0 %v1088
    %7834 = vmatprep.subr.mxu0 %v1081
    %7835 = vmatpush2.msra.mxu0 %v1080
    %7836 = vmatprep.subr.mxu0 %v1073
    %7837 = vmatpush2.msra.mxu0 %v1072
    %7838 = vmatprep.subr.mxu0 %v1065
    %7839 = vmatpush2.msra.mxu0 %v1064
    %7840 = vmatprep.subr.mxu0 %v1057
    %7841 = vmatpush2.msra.mxu0 %v1056
    %7842 = vmatprep.subr.mxu0 %v1049
    %7843 = vmatpush2.msra.mxu0 %v1048
    %7844 = vmatprep.subr.mxu0 %v1041
    %7845 = vmatpush2.msra.mxu0 %v1040
    %7846 = vmatprep.subr.mxu0 %v1033
    %7847 = vmatpush2.msra.mxu0 %v1032
    %7848 = vmatprep.subr.mxu0 %v1025
    %7849 = vmatpush2.msra.mxu0 %v1024
    %7850 = vmatprep.subr.mxu0 %v1017
    %7851 = vmatpush2.msra.mxu0 %v1016
    %7852 = vmatprep.subr.mxu0 %v1009
    %7853 = vmatpush2.msra.mxu0 %v1008
    %7854 = vmatprep.mubr.f32.mxu0 %v7505
    %7855 = vmatmul.mubr.f32.gmra.mxu0 %v7504
    %v7856 = vpop.f32.mrf.mxu0
    %v7857 = vadd.f32 %v1749, %v7856
    %v7858 = vpop.f32.mrf.mxu0
    %v7859 = vadd.f32 %v1753, %v7858
    %7860 = vdwg.mxu0
    %7861 = vmatprep.subr.mxu0 %v1257
    %7862 = vmatpush1.msra.mxu0 %v1256
    %7863 = vmatprep.subr.mxu0 %v1249
    %7864 = vmatpush1.msra.mxu0 %v1248
    %7865 = vmatprep.subr.mxu0 %v1241
    %7866 = vmatpush1.msra.mxu0 %v1240
    %7867 = vmatprep.subr.mxu0 %v1233
    %7868 = vmatpush1.msra.mxu0 %v1232
    %7869 = vmatprep.subr.mxu0 %v1225
    %7870 = vmatpush1.msra.mxu0 %v1224
    %7871 = vmatprep.subr.mxu0 %v1217
    %7872 = vmatpush1.msra.mxu0 %v1216
    %7873 = vmatprep.subr.mxu0 %v1209
    %7874 = vmatpush1.msra.mxu0 %v1208
    %7875 = vmatprep.subr.mxu0 %v1201
    %7876 = vmatpush1.msra.mxu0 %v1200
    %7877 = vmatprep.subr.mxu0 %v1193
    %7878 = vmatpush1.msra.mxu0 %v1192
    %7879 = vmatprep.subr.mxu0 %v1185
    %7880 = vmatpush1.msra.mxu0 %v1184
    %7881 = vmatprep.subr.mxu0 %v1177
    %7882 = vmatpush1.msra.mxu0 %v1176
    %7883 = vmatprep.subr.mxu0 %v1169
    %7884 = vmatpush1.msra.mxu0 %v1168
    %7885 = vmatprep.subr.mxu0 %v1161
    %7886 = vmatpush1.msra.mxu0 %v1160
    %7887 = vmatprep.subr.mxu0 %v1153
    %7888 = vmatpush1.msra.mxu0 %v1152
    %7889 = vmatprep.subr.mxu0 %v1145
    %7890 = vmatpush1.msra.mxu0 %v1144
    %7891 = vmatprep.subr.mxu0 %v1137
    %7892 = vmatpush1.msra.mxu0 %v1136
    %7893 = vmatprep.subr.mxu0 %v1385
    %7894 = vmatpush2.msra.mxu0 %v1384
    %7895 = vmatprep.subr.mxu0 %v1377
    %7896 = vmatpush2.msra.mxu0 %v1376
    %7897 = vmatprep.subr.mxu0 %v1369
    %7898 = vmatpush2.msra.mxu0 %v1368
    %7899 = vmatprep.subr.mxu0 %v1361
    %7900 = vmatpush2.msra.mxu0 %v1360
    %7901 = vmatprep.subr.mxu0 %v1353
    %7902 = vmatpush2.msra.mxu0 %v1352
    %7903 = vmatprep.subr.mxu0 %v1345
    %7904 = vmatpush2.msra.mxu0 %v1344
    %7905 = vmatprep.subr.mxu0 %v1337
    %7906 = vmatpush2.msra.mxu0 %v1336
    %7907 = vmatprep.subr.mxu0 %v1329
    %7908 = vmatpush2.msra.mxu0 %v1328
    %7909 = vmatprep.subr.mxu0 %v1321
    %7910 = vmatpush2.msra.mxu0 %v1320
    %7911 = vmatprep.subr.mxu0 %v1313
    %7912 = vmatpush2.msra.mxu0 %v1312
    %7913 = vmatprep.subr.mxu0 %v1305
    %7914 = vmatpush2.msra.mxu0 %v1304
    %7915 = vmatprep.subr.mxu0 %v1297
    %7916 = vmatpush2.msra.mxu0 %v1296
    %7917 = vmatprep.subr.mxu0 %v1289
    %7918 = vmatpush2.msra.mxu0 %v1288
    %7919 = vmatprep.subr.mxu0 %v1281
    %7920 = vmatpush2.msra.mxu0 %v1280
    %7921 = vmatprep.subr.mxu0 %v1273
    %7922 = vmatpush2.msra.mxu0 %v1272
    %7923 = vmatprep.subr.mxu0 %v1265
    %7924 = vmatpush2.msra.mxu0 %v1264
    %7925 = vmatprep.mubr.f32.mxu0 %v7165
    %7926 = vmatmul.mubr.f32.gmra.mxu0 %v7164
    %v7927 = vpop.f32.mrf.mxu0
    %v7928 = vadd.f32 %v7857, %v7927
    %v7929 = vpop.f32.mrf.mxu0
    %v7930 = vadd.f32 %v7859, %v7929
    %7931 = vdwg.mxu0
    %7932 = vmatprep.subr.mxu0 %v1003
    %7933 = vmatpush1.msra.mxu0 %v1002
    %7934 = vmatprep.subr.mxu0 %v995
    %7935 = vmatpush1.msra.mxu0 %v994
    %7936 = vmatprep.subr.mxu0 %v987
    %7937 = vmatpush1.msra.mxu0 %v986
    %7938 = vmatprep.subr.mxu0 %v979
    %7939 = vmatpush1.msra.mxu0 %v978
    %7940 = vmatprep.subr.mxu0 %v971
    %7941 = vmatpush1.msra.mxu0 %v970
    %7942 = vmatprep.subr.mxu0 %v963
    %7943 = vmatpush1.msra.mxu0 %v962
    %7944 = vmatprep.subr.mxu0 %v955
    %7945 = vmatpush1.msra.mxu0 %v954
    %7946 = vmatprep.subr.mxu0 %v947
    %7947 = vmatpush1.msra.mxu0 %v946
    %7948 = vmatprep.subr.mxu0 %v939
    %7949 = vmatpush1.msra.mxu0 %v938
    %7950 = vmatprep.subr.mxu0 %v931
    %7951 = vmatpush1.msra.mxu0 %v930
    %7952 = vmatprep.subr.mxu0 %v923
    %7953 = vmatpush1.msra.mxu0 %v922
    %7954 = vmatprep.subr.mxu0 %v915
    %7955 = vmatpush1.msra.mxu0 %v914
    %7956 = vmatprep.subr.mxu0 %v907
    %7957 = vmatpush1.msra.mxu0 %v906
    %7958 = vmatprep.subr.mxu0 %v899
    %7959 = vmatpush1.msra.mxu0 %v898
    %7960 = vmatprep.subr.mxu0 %v891
    %7961 = vmatpush1.msra.mxu0 %v890
    %7962 = vmatprep.subr.mxu0 %v883
    %7963 = vmatpush1.msra.mxu0 %v882
    %7964 = vmatprep.subr.mxu0 %v1131
    %7965 = vmatpush2.msra.mxu0 %v1130
    %7966 = vmatprep.subr.mxu0 %v1123
    %7967 = vmatpush2.msra.mxu0 %v1122
    %7968 = vmatprep.subr.mxu0 %v1115
    %7969 = vmatpush2.msra.mxu0 %v1114
    %7970 = vmatprep.subr.mxu0 %v1107
    %7971 = vmatpush2.msra.mxu0 %v1106
    %7972 = vmatprep.subr.mxu0 %v1099
    %7973 = vmatpush2.msra.mxu0 %v1098
    %7974 = vmatprep.subr.mxu0 %v1091
    %7975 = vmatpush2.msra.mxu0 %v1090
    %7976 = vmatprep.subr.mxu0 %v1083
    %7977 = vmatpush2.msra.mxu0 %v1082
    %7978 = vmatprep.subr.mxu0 %v1075
    %7979 = vmatpush2.msra.mxu0 %v1074
    %7980 = vmatprep.subr.mxu0 %v1067
    %7981 = vmatpush2.msra.mxu0 %v1066
    %7982 = vmatprep.subr.mxu0 %v1059
    %7983 = vmatpush2.msra.mxu0 %v1058
    %7984 = vmatprep.subr.mxu0 %v1051
    %7985 = vmatpush2.msra.mxu0 %v1050
    %7986 = vmatprep.subr.mxu0 %v1043
    %7987 = vmatpush2.msra.mxu0 %v1042
    %7988 = vmatprep.subr.mxu0 %v1035
    %7989 = vmatpush2.msra.mxu0 %v1034
    %7990 = vmatprep.subr.mxu0 %v1027
    %7991 = vmatpush2.msra.mxu0 %v1026
    %7992 = vmatprep.subr.mxu0 %v1019
    %7993 = vmatpush2.msra.mxu0 %v1018
    %7994 = vmatprep.subr.mxu0 %v1011
    %7995 = vmatpush2.msra.mxu0 %v1010
    %7996 = vmatprep.mubr.f32.mxu0 %v7505
    %7997 = vmatmul.mubr.f32.gmra.mxu0 %v7504
    %v7998 = vpop.f32.mrf.mxu0
    %v7999 = vadd.f32 %v1757, %v7998
    %v8000 = vpop.f32.mrf.mxu0
    %v8001 = vadd.f32 %v1761, %v8000
    %8002 = vdwg.mxu0
    %8003 = vmatprep.subr.mxu0 %v1259
    %8004 = vmatpush1.msra.mxu0 %v1258
    %8005 = vmatprep.subr.mxu0 %v1251
    %8006 = vmatpush1.msra.mxu0 %v1250
    %8007 = vmatprep.subr.mxu0 %v1243
    %8008 = vmatpush1.msra.mxu0 %v1242
    %8009 = vmatprep.subr.mxu0 %v1235
    %8010 = vmatpush1.msra.mxu0 %v1234
    %8011 = vmatprep.subr.mxu0 %v1227
    %8012 = vmatpush1.msra.mxu0 %v1226
    %8013 = vmatprep.subr.mxu0 %v1219
    %8014 = vmatpush1.msra.mxu0 %v1218
    %8015 = vmatprep.subr.mxu0 %v1211
    %8016 = vmatpush1.msra.mxu0 %v1210
    %8017 = vmatprep.subr.mxu0 %v1203
    %8018 = vmatpush1.msra.mxu0 %v1202
    %8019 = vmatprep.subr.mxu0 %v1195
    %8020 = vmatpush1.msra.mxu0 %v1194
    %8021 = vmatprep.subr.mxu0 %v1187
    %8022 = vmatpush1.msra.mxu0 %v1186
    %8023 = vmatprep.subr.mxu0 %v1179
    %8024 = vmatpush1.msra.mxu0 %v1178
    %8025 = vmatprep.subr.mxu0 %v1171
    %8026 = vmatpush1.msra.mxu0 %v1170
    %8027 = vmatprep.subr.mxu0 %v1163
    %8028 = vmatpush1.msra.mxu0 %v1162
    %8029 = vmatprep.subr.mxu0 %v1155
    %8030 = vmatpush1.msra.mxu0 %v1154
    %8031 = vmatprep.subr.mxu0 %v1147
    %8032 = vmatpush1.msra.mxu0 %v1146
    %8033 = vmatprep.subr.mxu0 %v1139
    %8034 = vmatpush1.msra.mxu0 %v1138
    %8035 = vmatprep.subr.mxu0 %v1387
    %8036 = vmatpush2.msra.mxu0 %v1386
    %8037 = vmatprep.subr.mxu0 %v1379
    %8038 = vmatpush2.msra.mxu0 %v1378
    %8039 = vmatprep.subr.mxu0 %v1371
    %8040 = vmatpush2.msra.mxu0 %v1370
    %8041 = vmatprep.subr.mxu0 %v1363
    %8042 = vmatpush2.msra.mxu0 %v1362
    %8043 = vmatprep.subr.mxu0 %v1355
    %8044 = vmatpush2.msra.mxu0 %v1354
    %8045 = vmatprep.subr.mxu0 %v1347
    %8046 = vmatpush2.msra.mxu0 %v1346
    %8047 = vmatprep.subr.mxu0 %v1339
    %8048 = vmatpush2.msra.mxu0 %v1338
    %8049 = vmatprep.subr.mxu0 %v1331
    %8050 = vmatpush2.msra.mxu0 %v1330
    %8051 = vmatprep.subr.mxu0 %v1323
    %8052 = vmatpush2.msra.mxu0 %v1322
    %8053 = vmatprep.subr.mxu0 %v1315
    %8054 = vmatpush2.msra.mxu0 %v1314
    %8055 = vmatprep.subr.mxu0 %v1307
    %8056 = vmatpush2.msra.mxu0 %v1306
    %8057 = vmatprep.subr.mxu0 %v1299
    %8058 = vmatpush2.msra.mxu0 %v1298
    %8059 = vmatprep.subr.mxu0 %v1291
    %8060 = vmatpush2.msra.mxu0 %v1290
    %8061 = vmatprep.subr.mxu0 %v1283
    %8062 = vmatpush2.msra.mxu0 %v1282
    %8063 = vmatprep.subr.mxu0 %v1275
    %8064 = vmatpush2.msra.mxu0 %v1274
    %8065 = vmatprep.subr.mxu0 %v1267
    %8066 = vmatpush2.msra.mxu0 %v1266
    %8067 = vmatprep.mubr.f32.mxu0 %v7165
    %8068 = vmatmul.mubr.f32.gmra.mxu0 %v7164
    %v8069 = vpop.f32.mrf.mxu0
    %v8070 = vadd.f32 %v7999, %v8069
    %v8071 = vpop.f32.mrf.mxu0
    %v8072 = vadd.f32 %v8001, %v8071
    %8073 = vdwg.mxu0
    %v8074 = vxor.u32 %v7644, 2147483648
    %v8075 = vxor.u32 %v7646, 2147483648
    %v8076 = vxor.u32 %v7786, 2147483648
    %v8077 = vxor.u32 %v7788, 2147483648
    %v8078 = vxor.u32 %v7928, 2147483648
    %v8079 = vxor.u32 %v7930, 2147483648
    %v8080 = vmul.f32 %v8074, 1.442695
    %v8081 = vpow.pop %v8080
    %v8082 = vmul.f32 %v8075, 1.442695
    %v8083 = vpow.pop %v8082
    %v8084 = vmul.f32 %v8076, 1.442695
    %v8085 = vpow.pop %v8084
    %v8086 = vmul.f32 %v8077, 1.442695
    %v8087 = vpow.pop %v8086
    %v8088 = vmul.f32 %v8078, 1.442695
    %v8089 = vpow.pop %v8088
    %v8090 = vmul.f32 %v8079, 1.442695
    %v8091 = vpow.pop %v8090
    %v8092 = vadd.f32 %v8081, 1.0
    %v8093 = vadd.f32 %v8083, 1.0
    %v8094 = vadd.f32 %v8085, 1.0
    %v8095 = vadd.f32 %v8087, 1.0
    %v8096 = vadd.f32 %v8089, 1.0
    %v8097 = vadd.f32 %v8091, 1.0
    %v8098 = vrcp.pop %v8092
    %v8099 = vmul.f32 1.0, %v8098
    %v8100 = vrcp.pop %v8093
    %v8101 = vmul.f32 1.0, %v8100
    %v8102 = vrcp.pop %v8094
    %v8103 = vmul.f32 1.0, %v8102
    %v8104 = vrcp.pop %v8095
    %v8105 = vmul.f32 1.0, %v8104
    %v8106 = vrcp.pop %v8096
    %v8107 = vmul.f32 1.0, %v8106
    %v8108 = vrcp.pop %v8097
    %v8109 = vmul.f32 1.0, %v8108
    %v8110 = vtanh.pop %v8070
    %v8111 = vtanh.pop %v8072
    %v8112 = vmul.f32 %v8103, %v7160
    %v8113 = vmul.f32 %v8105, %v7161
    %v8114 = vmul.f32 %v8099, %v8110
    %v8115 = vmul.f32 %v8101, %v8111
    %v8116 = vadd.f32 %v8112, %v8114
    %v8117 = vadd.f32 %v8113, %v8115
    %v8118 = vtanh.pop %v8116
    %v8119 = vtanh.pop %v8117
    %v8120 = vmul.f32 %v8107, %v8118
    %v8121 = vmul.f32 %v8109, %v8119
    %8122 = vmatprep.subr.mxu0 %v741
    %8123 = vmatpush1.msra.mxu0 %v740
    %8124 = vmatprep.subr.mxu0 %v733
    %8125 = vmatpush1.msra.mxu0 %v732
    %8126 = vmatprep.subr.mxu0 %v725
    %8127 = vmatpush1.msra.mxu0 %v724
    %8128 = vmatprep.subr.mxu0 %v717
    %8129 = vmatpush1.msra.mxu0 %v716
    %8130 = vmatprep.subr.mxu0 %v709
    %8131 = vmatpush1.msra.mxu0 %v708
    %8132 = vmatprep.subr.mxu0 %v701
    %8133 = vmatpush1.msra.mxu0 %v700
    %8134 = vmatprep.subr.mxu0 %v693
    %8135 = vmatpush1.msra.mxu0 %v692
    %8136 = vmatprep.subr.mxu0 %v685
    %8137 = vmatpush1.msra.mxu0 %v684
    %8138 = vmatprep.subr.mxu0 %v677
    %8139 = vmatpush1.msra.mxu0 %v676
    %8140 = vmatprep.subr.mxu0 %v669
    %8141 = vmatpush1.msra.mxu0 %v668
    %8142 = vmatprep.subr.mxu0 %v661
    %8143 = vmatpush1.msra.mxu0 %v660
    %8144 = vmatprep.subr.mxu0 %v653
    %8145 = vmatpush1.msra.mxu0 %v652
    %8146 = vmatprep.subr.mxu0 %v645
    %8147 = vmatpush1.msra.mxu0 %v644
    %8148 = vmatprep.subr.mxu0 %v637
    %8149 = vmatpush1.msra.mxu0 %v636
    %8150 = vmatprep.subr.mxu0 %v629
    %8151 = vmatpush1.msra.mxu0 %v628
    %8152 = vmatprep.subr.mxu0 %v621
    %8153 = vmatpush1.msra.mxu0 %v620
    %8154 = vmatprep.subr.mxu0 %v869
    %8155 = vmatpush2.msra.mxu0 %v868
    %8156 = vmatprep.subr.mxu0 %v861
    %8157 = vmatpush2.msra.mxu0 %v860
    %8158 = vmatprep.subr.mxu0 %v853
    %8159 = vmatpush2.msra.mxu0 %v852
    %8160 = vmatprep.subr.mxu0 %v845
    %8161 = vmatpush2.msra.mxu0 %v844
    %8162 = vmatprep.subr.mxu0 %v837
    %8163 = vmatpush2.msra.mxu0 %v836
    %8164 = vmatprep.subr.mxu0 %v829
    %8165 = vmatpush2.msra.mxu0 %v828
    %8166 = vmatprep.subr.mxu0 %v821
    %8167 = vmatpush2.msra.mxu0 %v820
    %8168 = vmatprep.subr.mxu0 %v813
    %8169 = vmatpush2.msra.mxu0 %v812
    %8170 = vmatprep.subr.mxu0 %v805
    %8171 = vmatpush2.msra.mxu0 %v804
    %8172 = vmatprep.subr.mxu0 %v797
    %8173 = vmatpush2.msra.mxu0 %v796
    %8174 = vmatprep.subr.mxu0 %v789
    %8175 = vmatpush2.msra.mxu0 %v788
    %8176 = vmatprep.subr.mxu0 %v781
    %8177 = vmatpush2.msra.mxu0 %v780
    %8178 = vmatprep.subr.mxu0 %v773
    %8179 = vmatpush2.msra.mxu0 %v772
    %8180 = vmatprep.subr.mxu0 %v765
    %8181 = vmatpush2.msra.mxu0 %v764
    %8182 = vmatprep.subr.mxu0 %v757
    %8183 = vmatpush2.msra.mxu0 %v756
    %8184 = vmatprep.subr.mxu0 %v749
    %8185 = vmatpush2.msra.mxu0 %v748
    %8186 = vmatprep.mubr.f32.mxu0 %v7505
    %8187 = vmatmul.mubr.f32.gmra.mxu0 %v7504
    %v8188 = vpop.f32.mrf.mxu0
    %v8189 = vadd.f32 0.0, %v8188
    %v8190 = vpop.f32.mrf.mxu0
    %v8191 = vadd.f32 0.0, %v8190
    %8192 = vdwg.mxu0
    %8193 = vmatprep.subr.mxu0 %v743
    %8194 = vmatpush1.msra.mxu0 %v742
    %8195 = vmatprep.subr.mxu0 %v735
    %8196 = vmatpush1.msra.mxu0 %v734
    %8197 = vmatprep.subr.mxu0 %v727
    %8198 = vmatpush1.msra.mxu0 %v726
    %8199 = vmatprep.subr.mxu0 %v719
    %8200 = vmatpush1.msra.mxu0 %v718
    %8201 = vmatprep.subr.mxu0 %v711
    %8202 = vmatpush1.msra.mxu0 %v710
    %8203 = vmatprep.subr.mxu0 %v703
    %8204 = vmatpush1.msra.mxu0 %v702
    %8205 = vmatprep.subr.mxu0 %v695
    %8206 = vmatpush1.msra.mxu0 %v694
    %8207 = vmatprep.subr.mxu0 %v687
    %8208 = vmatpush1.msra.mxu0 %v686
    %8209 = vmatprep.subr.mxu0 %v679
    %8210 = vmatpush1.msra.mxu0 %v678
    %8211 = vmatprep.subr.mxu0 %v671
    %8212 = vmatpush1.msra.mxu0 %v670
    %8213 = vmatprep.subr.mxu0 %v663
    %8214 = vmatpush1.msra.mxu0 %v662
    %8215 = vmatprep.subr.mxu0 %v655
    %8216 = vmatpush1.msra.mxu0 %v654
    %8217 = vmatprep.subr.mxu0 %v647
    %8218 = vmatpush1.msra.mxu0 %v646
    %8219 = vmatprep.subr.mxu0 %v639
    %8220 = vmatpush1.msra.mxu0 %v638
    %8221 = vmatprep.subr.mxu0 %v631
    %8222 = vmatpush1.msra.mxu0 %v630
    %8223 = vmatprep.subr.mxu0 %v623
    %8224 = vmatpush1.msra.mxu0 %v622
    %8225 = vmatprep.subr.mxu0 %v871
    %8226 = vmatpush2.msra.mxu0 %v870
    %8227 = vmatprep.subr.mxu0 %v863
    %8228 = vmatpush2.msra.mxu0 %v862
    %8229 = vmatprep.subr.mxu0 %v855
    %8230 = vmatpush2.msra.mxu0 %v854
    %8231 = vmatprep.subr.mxu0 %v847
    %8232 = vmatpush2.msra.mxu0 %v846
    %8233 = vmatprep.subr.mxu0 %v839
    %8234 = vmatpush2.msra.mxu0 %v838
    %8235 = vmatprep.subr.mxu0 %v831
    %8236 = vmatpush2.msra.mxu0 %v830
    %8237 = vmatprep.subr.mxu0 %v823
    %8238 = vmatpush2.msra.mxu0 %v822
    %8239 = vmatprep.subr.mxu0 %v815
    %8240 = vmatpush2.msra.mxu0 %v814
    %8241 = vmatprep.subr.mxu0 %v807
    %8242 = vmatpush2.msra.mxu0 %v806
    %8243 = vmatprep.subr.mxu0 %v799
    %8244 = vmatpush2.msra.mxu0 %v798
    %8245 = vmatprep.subr.mxu0 %v791
    %8246 = vmatpush2.msra.mxu0 %v790
    %8247 = vmatprep.subr.mxu0 %v783
    %8248 = vmatpush2.msra.mxu0 %v782
    %8249 = vmatprep.subr.mxu0 %v775
    %8250 = vmatpush2.msra.mxu0 %v774
    %8251 = vmatprep.subr.mxu0 %v767
    %8252 = vmatpush2.msra.mxu0 %v766
    %8253 = vmatprep.subr.mxu0 %v759
    %8254 = vmatpush2.msra.mxu0 %v758
    %8255 = vmatprep.subr.mxu0 %v751
    %8256 = vmatpush2.msra.mxu0 %v750
    %8257 = vmatprep.mubr.f32.mxu0 %v7505
    %8258 = vmatmul.mubr.f32.gmra.mxu0 %v7504
    %v8259 = vpop.f32.mrf.mxu0
    %v8260 = vadd.f32 0.0, %v8259
    %v8261 = vpop.f32.mrf.mxu0
    %v8262 = vadd.f32 0.0, %v8261
    %8263 = vdwg.mxu0
    %8264 = vmatprep.subr.mxu0 %v745
    %8265 = vmatpush1.msra.mxu0 %v744
    %8266 = vmatprep.subr.mxu0 %v737
    %8267 = vmatpush1.msra.mxu0 %v736
    %8268 = vmatprep.subr.mxu0 %v729
    %8269 = vmatpush1.msra.mxu0 %v728
    %8270 = vmatprep.subr.mxu0 %v721
    %8271 = vmatpush1.msra.mxu0 %v720
    %8272 = vmatprep.subr.mxu0 %v713
    %8273 = vmatpush1.msra.mxu0 %v712
    %8274 = vmatprep.subr.mxu0 %v705
    %8275 = vmatpush1.msra.mxu0 %v704
    %8276 = vmatprep.subr.mxu0 %v697
    %8277 = vmatpush1.msra.mxu0 %v696
    %8278 = vmatprep.subr.mxu0 %v689
    %8279 = vmatpush1.msra.mxu0 %v688
    %8280 = vmatprep.subr.mxu0 %v681
    %8281 = vmatpush1.msra.mxu0 %v680
    %8282 = vmatprep.subr.mxu0 %v673
    %8283 = vmatpush1.msra.mxu0 %v672
    %8284 = vmatprep.subr.mxu0 %v665
    %8285 = vmatpush1.msra.mxu0 %v664
    %8286 = vmatprep.subr.mxu0 %v657
    %8287 = vmatpush1.msra.mxu0 %v656
    %8288 = vmatprep.subr.mxu0 %v649
    %8289 = vmatpush1.msra.mxu0 %v648
    %8290 = vmatprep.subr.mxu0 %v641
    %8291 = vmatpush1.msra.mxu0 %v640
    %8292 = vmatprep.subr.mxu0 %v633
    %8293 = vmatpush1.msra.mxu0 %v632
    %8294 = vmatprep.subr.mxu0 %v625
    %8295 = vmatpush1.msra.mxu0 %v624
    %8296 = vmatprep.subr.mxu0 %v873
    %8297 = vmatpush2.msra.mxu0 %v872
    %8298 = vmatprep.subr.mxu0 %v865
    %8299 = vmatpush2.msra.mxu0 %v864
    %8300 = vmatprep.subr.mxu0 %v857
    %8301 = vmatpush2.msra.mxu0 %v856
    %8302 = vmatprep.subr.mxu0 %v849
    %8303 = vmatpush2.msra.mxu0 %v848
    %8304 = vmatprep.subr.mxu0 %v841
    %8305 = vmatpush2.msra.mxu0 %v840
    %8306 = vmatprep.subr.mxu0 %v833
    %8307 = vmatpush2.msra.mxu0 %v832
    %8308 = vmatprep.subr.mxu0 %v825
    %8309 = vmatpush2.msra.mxu0 %v824
    %8310 = vmatprep.subr.mxu0 %v817
    %8311 = vmatpush2.msra.mxu0 %v816
    %8312 = vmatprep.subr.mxu0 %v809
    %8313 = vmatpush2.msra.mxu0 %v808
    %8314 = vmatprep.subr.mxu0 %v801
    %8315 = vmatpush2.msra.mxu0 %v800
    %8316 = vmatprep.subr.mxu0 %v793
    %8317 = vmatpush2.msra.mxu0 %v792
    %8318 = vmatprep.subr.mxu0 %v785
    %8319 = vmatpush2.msra.mxu0 %v784
    %8320 = vmatprep.subr.mxu0 %v777
    %8321 = vmatpush2.msra.mxu0 %v776
    %8322 = vmatprep.subr.mxu0 %v769
    %8323 = vmatpush2.msra.mxu0 %v768
    %8324 = vmatprep.subr.mxu0 %v761
    %8325 = vmatpush2.msra.mxu0 %v760
    %8326 = vmatprep.subr.mxu0 %v753
    %8327 = vmatpush2.msra.mxu0 %v752
    %8328 = vmatprep.mubr.f32.mxu0 %v7505
    %8329 = vmatmul.mubr.f32.gmra.mxu0 %v7504
    %v8330 = vpop.f32.mrf.mxu0
    %v8331 = vadd.f32 0.0, %v8330
    %v8332 = vpop.f32.mrf.mxu0
    %v8333 = vadd.f32 0.0, %v8332
    %8334 = vdwg.mxu0
    %8335 = vmatprep.subr.mxu0 %v747
    %8336 = vmatpush1.msra.mxu0 %v746
    %8337 = vmatprep.subr.mxu0 %v739
    %8338 = vmatpush1.msra.mxu0 %v738
    %8339 = vmatprep.subr.mxu0 %v731
    %8340 = vmatpush1.msra.mxu0 %v730
    %8341 = vmatprep.subr.mxu0 %v723
    %8342 = vmatpush1.msra.mxu0 %v722
    %8343 = vmatprep.subr.mxu0 %v715
    %8344 = vmatpush1.msra.mxu0 %v714
    %8345 = vmatprep.subr.mxu0 %v707
    %8346 = vmatpush1.msra.mxu0 %v706
    %8347 = vmatprep.subr.mxu0 %v699
    %8348 = vmatpush1.msra.mxu0 %v698
    %8349 = vmatprep.subr.mxu0 %v691
    %8350 = vmatpush1.msra.mxu0 %v690
    %8351 = vmatprep.subr.mxu0 %v683
    %8352 = vmatpush1.msra.mxu0 %v682
    %8353 = vmatprep.subr.mxu0 %v675
    %8354 = vmatpush1.msra.mxu0 %v674
    %8355 = vmatprep.subr.mxu0 %v667
    %8356 = vmatpush1.msra.mxu0 %v666
    %8357 = vmatprep.subr.mxu0 %v659
    %8358 = vmatpush1.msra.mxu0 %v658
    %8359 = vmatprep.subr.mxu0 %v651
    %8360 = vmatpush1.msra.mxu0 %v650
    %8361 = vmatprep.subr.mxu0 %v643
    %8362 = vmatpush1.msra.mxu0 %v642
    %8363 = vmatprep.subr.mxu0 %v635
    %8364 = vmatpush1.msra.mxu0 %v634
    %8365 = vmatprep.subr.mxu0 %v627
    %8366 = vmatpush1.msra.mxu0 %v626
    %8367 = vmatprep.subr.mxu0 %v875
    %8368 = vmatpush2.msra.mxu0 %v874
    %8369 = vmatprep.subr.mxu0 %v867
    %8370 = vmatpush2.msra.mxu0 %v866
    %8371 = vmatprep.subr.mxu0 %v859
    %8372 = vmatpush2.msra.mxu0 %v858
    %8373 = vmatprep.subr.mxu0 %v851
    %8374 = vmatpush2.msra.mxu0 %v850
    %8375 = vmatprep.subr.mxu0 %v843
    %8376 = vmatpush2.msra.mxu0 %v842
    %8377 = vmatprep.subr.mxu0 %v835
    %8378 = vmatpush2.msra.mxu0 %v834
    %8379 = vmatprep.subr.mxu0 %v827
    %8380 = vmatpush2.msra.mxu0 %v826
    %8381 = vmatprep.subr.mxu0 %v819
    %8382 = vmatpush2.msra.mxu0 %v818
    %8383 = vmatprep.subr.mxu0 %v811
    %8384 = vmatpush2.msra.mxu0 %v810
    %8385 = vmatprep.subr.mxu0 %v803
    %8386 = vmatpush2.msra.mxu0 %v802
    %8387 = vmatprep.subr.mxu0 %v795
    %8388 = vmatpush2.msra.mxu0 %v794
    %8389 = vmatprep.subr.mxu0 %v787
    %8390 = vmatpush2.msra.mxu0 %v786
    %8391 = vmatprep.subr.mxu0 %v779
    %8392 = vmatpush2.msra.mxu0 %v778
    %8393 = vmatprep.subr.mxu0 %v771
    %8394 = vmatpush2.msra.mxu0 %v770
    %8395 = vmatprep.subr.mxu0 %v763
    %8396 = vmatpush2.msra.mxu0 %v762
    %8397 = vmatprep.subr.mxu0 %v755
    %8398 = vmatpush2.msra.mxu0 %v754
    %8399 = vmatprep.mubr.f32.mxu0 %v7505
    %8400 = vmatmul.mubr.f32.gmra.mxu0 %v7504
    %v8401 = vpop.f32.mrf.mxu0
    %v8402 = vadd.f32 0.0, %v8401
    %v8403 = vpop.f32.mrf.mxu0
    %v8404 = vadd.f32 0.0, %v8403
    %8405 = vdwg.mxu0
    %v8406 = vadd.f32 %v277, %v8189
    %v8407 = vadd.f32 %v279, %v8191
    %v8408 = vadd.f32 %v390, %v8260
    %v8409 = vadd.f32 %v392, %v8262
    %v8410 = vadd.f32 %v503, %v8331
    %v8411 = vadd.f32 %v505, %v8333
    %v8412 = vadd.f32 %v616, %v8402
    %v8413 = vadd.f32 %v618, %v8404
    %v8414 = vxor.u32 %v8406, 2147483648
    %v8415 = vxor.u32 %v8407, 2147483648
    %v8416 = vxor.u32 %v8408, 2147483648
    %v8417 = vxor.u32 %v8409, 2147483648
    %v8418 = vxor.u32 %v8410, 2147483648
    %v8419 = vxor.u32 %v8411, 2147483648
    %v8420 = vmul.f32 %v8414, 1.442695
    %v8421 = vpow.pop %v8420
    %v8422 = vmul.f32 %v8415, 1.442695
    %v8423 = vpow.pop %v8422
    %v8424 = vmul.f32 %v8416, 1.442695
    %v8425 = vpow.pop %v8424
    %v8426 = vmul.f32 %v8417, 1.442695
    %v8427 = vpow.pop %v8426
    %v8428 = vmul.f32 %v8418, 1.442695
    %v8429 = vpow.pop %v8428
    %v8430 = vmul.f32 %v8419, 1.442695
    %v8431 = vpow.pop %v8430
    %v8432 = vadd.f32 %v8421, 1.0
    %v8433 = vadd.f32 %v8423, 1.0
    %v8434 = vadd.f32 %v8425, 1.0
    %v8435 = vadd.f32 %v8427, 1.0
    %v8436 = vadd.f32 %v8429, 1.0
    %v8437 = vadd.f32 %v8431, 1.0
    %v8438 = vrcp.pop %v8432
    %v8439 = vmul.f32 1.0, %v8438
    %v8440 = vrcp.pop %v8433
    %v8441 = vmul.f32 1.0, %v8440
    %v8442 = vrcp.pop %v8434
    %v8443 = vmul.f32 1.0, %v8442
    %v8444 = vrcp.pop %v8435
    %v8445 = vmul.f32 1.0, %v8444
    %v8446 = vrcp.pop %v8436
    %v8447 = vmul.f32 1.0, %v8446
    %v8448 = vrcp.pop %v8437
    %v8449 = vmul.f32 1.0, %v8448
    %v8450 = vtanh.pop %v8412
    %v8451 = vtanh.pop %v8413
    %v8452 = vmul.f32 %v8443, %v7500
    %v8453 = vmul.f32 %v8445, %v7501
    %v8454 = vmul.f32 %v8439, %v8450
    %v8455 = vmul.f32 %v8441, %v8451
    %v8456 = vadd.f32 %v8452, %v8454
    %v8457 = vadd.f32 %v8453, %v8455
    %v8458 = vtanh.pop %v8456
    %v8459 = vtanh.pop %v8457
    %v8460 = vmul.f32 %v8447, %v8458
    %v8461 = vmul.f32 %v8449, %v8459
    %8462 = vmatprep.subr.mxu0 %v997
    %8463 = vmatpush1.msra.mxu0 %v996
    %8464 = vmatprep.subr.mxu0 %v989
    %8465 = vmatpush1.msra.mxu0 %v988
    %8466 = vmatprep.subr.mxu0 %v981
    %8467 = vmatpush1.msra.mxu0 %v980
    %8468 = vmatprep.subr.mxu0 %v973
    %8469 = vmatpush1.msra.mxu0 %v972
    %8470 = vmatprep.subr.mxu0 %v965
    %8471 = vmatpush1.msra.mxu0 %v964
    %8472 = vmatprep.subr.mxu0 %v957
    %8473 = vmatpush1.msra.mxu0 %v956
    %8474 = vmatprep.subr.mxu0 %v949
    %8475 = vmatpush1.msra.mxu0 %v948
    %8476 = vmatprep.subr.mxu0 %v941
    %8477 = vmatpush1.msra.mxu0 %v940
    %8478 = vmatprep.subr.mxu0 %v933
    %8479 = vmatpush1.msra.mxu0 %v932
    %8480 = vmatprep.subr.mxu0 %v925
    %8481 = vmatpush1.msra.mxu0 %v924
    %8482 = vmatprep.subr.mxu0 %v917
    %8483 = vmatpush1.msra.mxu0 %v916
    %8484 = vmatprep.subr.mxu0 %v909
    %8485 = vmatpush1.msra.mxu0 %v908
    %8486 = vmatprep.subr.mxu0 %v901
    %8487 = vmatpush1.msra.mxu0 %v900
    %8488 = vmatprep.subr.mxu0 %v893
    %8489 = vmatpush1.msra.mxu0 %v892
    %8490 = vmatprep.subr.mxu0 %v885
    %8491 = vmatpush1.msra.mxu0 %v884
    %8492 = vmatprep.subr.mxu0 %v877
    %8493 = vmatpush1.msra.mxu0 %v876
    %8494 = vmatprep.subr.mxu0 %v1125
    %8495 = vmatpush2.msra.mxu0 %v1124
    %8496 = vmatprep.subr.mxu0 %v1117
    %8497 = vmatpush2.msra.mxu0 %v1116
    %8498 = vmatprep.subr.mxu0 %v1109
    %8499 = vmatpush2.msra.mxu0 %v1108
    %8500 = vmatprep.subr.mxu0 %v1101
    %8501 = vmatpush2.msra.mxu0 %v1100
    %8502 = vmatprep.subr.mxu0 %v1093
    %8503 = vmatpush2.msra.mxu0 %v1092
    %8504 = vmatprep.subr.mxu0 %v1085
    %8505 = vmatpush2.msra.mxu0 %v1084
    %8506 = vmatprep.subr.mxu0 %v1077
    %8507 = vmatpush2.msra.mxu0 %v1076
    %8508 = vmatprep.subr.mxu0 %v1069
    %8509 = vmatpush2.msra.mxu0 %v1068
    %8510 = vmatprep.subr.mxu0 %v1061
    %8511 = vmatpush2.msra.mxu0 %v1060
    %8512 = vmatprep.subr.mxu0 %v1053
    %8513 = vmatpush2.msra.mxu0 %v1052
    %8514 = vmatprep.subr.mxu0 %v1045
    %8515 = vmatpush2.msra.mxu0 %v1044
    %8516 = vmatprep.subr.mxu0 %v1037
    %8517 = vmatpush2.msra.mxu0 %v1036
    %8518 = vmatprep.subr.mxu0 %v1029
    %8519 = vmatpush2.msra.mxu0 %v1028
    %8520 = vmatprep.subr.mxu0 %v1021
    %8521 = vmatpush2.msra.mxu0 %v1020
    %8522 = vmatprep.subr.mxu0 %v1013
    %8523 = vmatpush2.msra.mxu0 %v1012
    %8524 = vmatprep.subr.mxu0 %v1005
    %8525 = vmatpush2.msra.mxu0 %v1004
    %8526 = vmatprep.mubr.f32.mxu0 %v8461
    %8527 = vmatmul.mubr.f32.gmra.mxu0 %v8460
    %v8528 = vpop.f32.mrf.mxu0
    %v8529 = vadd.f32 %v1733, %v8528
    %v8530 = vpop.f32.mrf.mxu0
    %v8531 = vadd.f32 %v1737, %v8530
    %8532 = vdwg.mxu0
    %8533 = vmatprep.subr.mxu0 %v1253
    %8534 = vmatpush1.msra.mxu0 %v1252
    %8535 = vmatprep.subr.mxu0 %v1245
    %8536 = vmatpush1.msra.mxu0 %v1244
    %8537 = vmatprep.subr.mxu0 %v1237
    %8538 = vmatpush1.msra.mxu0 %v1236
    %8539 = vmatprep.subr.mxu0 %v1229
    %8540 = vmatpush1.msra.mxu0 %v1228
    %8541 = vmatprep.subr.mxu0 %v1221
    %8542 = vmatpush1.msra.mxu0 %v1220
    %8543 = vmatprep.subr.mxu0 %v1213
    %8544 = vmatpush1.msra.mxu0 %v1212
    %8545 = vmatprep.subr.mxu0 %v1205
    %8546 = vmatpush1.msra.mxu0 %v1204
    %8547 = vmatprep.subr.mxu0 %v1197
    %8548 = vmatpush1.msra.mxu0 %v1196
    %8549 = vmatprep.subr.mxu0 %v1189
    %8550 = vmatpush1.msra.mxu0 %v1188
    %8551 = vmatprep.subr.mxu0 %v1181
    %8552 = vmatpush1.msra.mxu0 %v1180
    %8553 = vmatprep.subr.mxu0 %v1173
    %8554 = vmatpush1.msra.mxu0 %v1172
    %8555 = vmatprep.subr.mxu0 %v1165
    %8556 = vmatpush1.msra.mxu0 %v1164
    %8557 = vmatprep.subr.mxu0 %v1157
    %8558 = vmatpush1.msra.mxu0 %v1156
    %8559 = vmatprep.subr.mxu0 %v1149
    %8560 = vmatpush1.msra.mxu0 %v1148
    %8561 = vmatprep.subr.mxu0 %v1141
    %8562 = vmatpush1.msra.mxu0 %v1140
    %8563 = vmatprep.subr.mxu0 %v1133
    %8564 = vmatpush1.msra.mxu0 %v1132
    %8565 = vmatprep.subr.mxu0 %v1381
    %8566 = vmatpush2.msra.mxu0 %v1380
    %8567 = vmatprep.subr.mxu0 %v1373
    %8568 = vmatpush2.msra.mxu0 %v1372
    %8569 = vmatprep.subr.mxu0 %v1365
    %8570 = vmatpush2.msra.mxu0 %v1364
    %8571 = vmatprep.subr.mxu0 %v1357
    %8572 = vmatpush2.msra.mxu0 %v1356
    %8573 = vmatprep.subr.mxu0 %v1349
    %8574 = vmatpush2.msra.mxu0 %v1348
    %8575 = vmatprep.subr.mxu0 %v1341
    %8576 = vmatpush2.msra.mxu0 %v1340
    %8577 = vmatprep.subr.mxu0 %v1333
    %8578 = vmatpush2.msra.mxu0 %v1332
    %8579 = vmatprep.subr.mxu0 %v1325
    %8580 = vmatpush2.msra.mxu0 %v1324
    %8581 = vmatprep.subr.mxu0 %v1317
    %8582 = vmatpush2.msra.mxu0 %v1316
    %8583 = vmatprep.subr.mxu0 %v1309
    %8584 = vmatpush2.msra.mxu0 %v1308
    %8585 = vmatprep.subr.mxu0 %v1301
    %8586 = vmatpush2.msra.mxu0 %v1300
    %8587 = vmatprep.subr.mxu0 %v1293
    %8588 = vmatpush2.msra.mxu0 %v1292
    %8589 = vmatprep.subr.mxu0 %v1285
    %8590 = vmatpush2.msra.mxu0 %v1284
    %8591 = vmatprep.subr.mxu0 %v1277
    %8592 = vmatpush2.msra.mxu0 %v1276
    %8593 = vmatprep.subr.mxu0 %v1269
    %8594 = vmatpush2.msra.mxu0 %v1268
    %8595 = vmatprep.subr.mxu0 %v1261
    %8596 = vmatpush2.msra.mxu0 %v1260
    %8597 = vmatprep.mubr.f32.mxu0 %v8121
    %8598 = vmatmul.mubr.f32.gmra.mxu0 %v8120
    %v8599 = vpop.f32.mrf.mxu0
    %v8600 = vadd.f32 %v8529, %v8599
    %v8601 = vpop.f32.mrf.mxu0
    %v8602 = vadd.f32 %v8531, %v8601
    %8603 = vdwg.mxu0
    %8604 = vmatprep.subr.mxu0 %v999
    %8605 = vmatpush1.msra.mxu0 %v998
    %8606 = vmatprep.subr.mxu0 %v991
    %8607 = vmatpush1.msra.mxu0 %v990
    %8608 = vmatprep.subr.mxu0 %v983
    %8609 = vmatpush1.msra.mxu0 %v982
    %8610 = vmatprep.subr.mxu0 %v975
    %8611 = vmatpush1.msra.mxu0 %v974
    %8612 = vmatprep.subr.mxu0 %v967
    %8613 = vmatpush1.msra.mxu0 %v966
    %8614 = vmatprep.subr.mxu0 %v959
    %8615 = vmatpush1.msra.mxu0 %v958
    %8616 = vmatprep.subr.mxu0 %v951
    %8617 = vmatpush1.msra.mxu0 %v950
    %8618 = vmatprep.subr.mxu0 %v943
    %8619 = vmatpush1.msra.mxu0 %v942
    %8620 = vmatprep.subr.mxu0 %v935
    %8621 = vmatpush1.msra.mxu0 %v934
    %8622 = vmatprep.subr.mxu0 %v927
    %8623 = vmatpush1.msra.mxu0 %v926
    %8624 = vmatprep.subr.mxu0 %v919
    %8625 = vmatpush1.msra.mxu0 %v918
    %8626 = vmatprep.subr.mxu0 %v911
    %8627 = vmatpush1.msra.mxu0 %v910
    %8628 = vmatprep.subr.mxu0 %v903
    %8629 = vmatpush1.msra.mxu0 %v902
    %8630 = vmatprep.subr.mxu0 %v895
    %8631 = vmatpush1.msra.mxu0 %v894
    %8632 = vmatprep.subr.mxu0 %v887
    %8633 = vmatpush1.msra.mxu0 %v886
    %8634 = vmatprep.subr.mxu0 %v879
    %8635 = vmatpush1.msra.mxu0 %v878
    %8636 = vmatprep.subr.mxu0 %v1127
    %8637 = vmatpush2.msra.mxu0 %v1126
    %8638 = vmatprep.subr.mxu0 %v1119
    %8639 = vmatpush2.msra.mxu0 %v1118
    %8640 = vmatprep.subr.mxu0 %v1111
    %8641 = vmatpush2.msra.mxu0 %v1110
    %8642 = vmatprep.subr.mxu0 %v1103
    %8643 = vmatpush2.msra.mxu0 %v1102
    %8644 = vmatprep.subr.mxu0 %v1095
    %8645 = vmatpush2.msra.mxu0 %v1094
    %8646 = vmatprep.subr.mxu0 %v1087
    %8647 = vmatpush2.msra.mxu0 %v1086
    %8648 = vmatprep.subr.mxu0 %v1079
    %8649 = vmatpush2.msra.mxu0 %v1078
    %8650 = vmatprep.subr.mxu0 %v1071
    %8651 = vmatpush2.msra.mxu0 %v1070
    %8652 = vmatprep.subr.mxu0 %v1063
    %8653 = vmatpush2.msra.mxu0 %v1062
    %8654 = vmatprep.subr.mxu0 %v1055
    %8655 = vmatpush2.msra.mxu0 %v1054
    %8656 = vmatprep.subr.mxu0 %v1047
    %8657 = vmatpush2.msra.mxu0 %v1046
    %8658 = vmatprep.subr.mxu0 %v1039
    %8659 = vmatpush2.msra.mxu0 %v1038
    %8660 = vmatprep.subr.mxu0 %v1031
    %8661 = vmatpush2.msra.mxu0 %v1030
    %8662 = vmatprep.subr.mxu0 %v1023
    %8663 = vmatpush2.msra.mxu0 %v1022
    %8664 = vmatprep.subr.mxu0 %v1015
    %8665 = vmatpush2.msra.mxu0 %v1014
    %8666 = vmatprep.subr.mxu0 %v1007
    %8667 = vmatpush2.msra.mxu0 %v1006
    %8668 = vmatprep.mubr.f32.mxu0 %v8461
    %8669 = vmatmul.mubr.f32.gmra.mxu0 %v8460
    %v8670 = vpop.f32.mrf.mxu0
    %v8671 = vadd.f32 %v1741, %v8670
    %v8672 = vpop.f32.mrf.mxu0
    %v8673 = vadd.f32 %v1745, %v8672
    %8674 = vdwg.mxu0
    %8675 = vmatprep.subr.mxu0 %v1255
    %8676 = vmatpush1.msra.mxu0 %v1254
    %8677 = vmatprep.subr.mxu0 %v1247
    %8678 = vmatpush1.msra.mxu0 %v1246
    %8679 = vmatprep.subr.mxu0 %v1239
    %8680 = vmatpush1.msra.mxu0 %v1238
    %8681 = vmatprep.subr.mxu0 %v1231
    %8682 = vmatpush1.msra.mxu0 %v1230
    %8683 = vmatprep.subr.mxu0 %v1223
    %8684 = vmatpush1.msra.mxu0 %v1222
    %8685 = vmatprep.subr.mxu0 %v1215
    %8686 = vmatpush1.msra.mxu0 %v1214
    %8687 = vmatprep.subr.mxu0 %v1207
    %8688 = vmatpush1.msra.mxu0 %v1206
    %8689 = vmatprep.subr.mxu0 %v1199
    %8690 = vmatpush1.msra.mxu0 %v1198
    %8691 = vmatprep.subr.mxu0 %v1191
    %8692 = vmatpush1.msra.mxu0 %v1190
    %8693 = vmatprep.subr.mxu0 %v1183
    %8694 = vmatpush1.msra.mxu0 %v1182
    %8695 = vmatprep.subr.mxu0 %v1175
    %8696 = vmatpush1.msra.mxu0 %v1174
    %8697 = vmatprep.subr.mxu0 %v1167
    %8698 = vmatpush1.msra.mxu0 %v1166
    %8699 = vmatprep.subr.mxu0 %v1159
    %8700 = vmatpush1.msra.mxu0 %v1158
    %8701 = vmatprep.subr.mxu0 %v1151
    %8702 = vmatpush1.msra.mxu0 %v1150
    %8703 = vmatprep.subr.mxu0 %v1143
    %8704 = vmatpush1.msra.mxu0 %v1142
    %8705 = vmatprep.subr.mxu0 %v1135
    %8706 = vmatpush1.msra.mxu0 %v1134
    %8707 = vmatprep.subr.mxu0 %v1383
    %8708 = vmatpush2.msra.mxu0 %v1382
    %8709 = vmatprep.subr.mxu0 %v1375
    %8710 = vmatpush2.msra.mxu0 %v1374
    %8711 = vmatprep.subr.mxu0 %v1367
    %8712 = vmatpush2.msra.mxu0 %v1366
    %8713 = vmatprep.subr.mxu0 %v1359
    %8714 = vmatpush2.msra.mxu0 %v1358
    %8715 = vmatprep.subr.mxu0 %v1351
    %8716 = vmatpush2.msra.mxu0 %v1350
    %8717 = vmatprep.subr.mxu0 %v1343
    %8718 = vmatpush2.msra.mxu0 %v1342
    %8719 = vmatprep.subr.mxu0 %v1335
    %8720 = vmatpush2.msra.mxu0 %v1334
    %8721 = vmatprep.subr.mxu0 %v1327
    %8722 = vmatpush2.msra.mxu0 %v1326
    %8723 = vmatprep.subr.mxu0 %v1319
    %8724 = vmatpush2.msra.mxu0 %v1318
    %8725 = vmatprep.subr.mxu0 %v1311
    %8726 = vmatpush2.msra.mxu0 %v1310
    %8727 = vmatprep.subr.mxu0 %v1303
    %8728 = vmatpush2.msra.mxu0 %v1302
    %8729 = vmatprep.subr.mxu0 %v1295
    %8730 = vmatpush2.msra.mxu0 %v1294
    %8731 = vmatprep.subr.mxu0 %v1287
    %8732 = vmatpush2.msra.mxu0 %v1286
    %8733 = vmatprep.subr.mxu0 %v1279
    %8734 = vmatpush2.msra.mxu0 %v1278
    %8735 = vmatprep.subr.mxu0 %v1271
    %8736 = vmatpush2.msra.mxu0 %v1270
    %8737 = vmatprep.subr.mxu0 %v1263
    %8738 = vmatpush2.msra.mxu0 %v1262
    %8739 = vmatprep.mubr.f32.mxu0 %v8121
    %8740 = vmatmul.mubr.f32.gmra.mxu0 %v8120
    %v8741 = vpop.f32.mrf.mxu0
    %v8742 = vadd.f32 %v8671, %v8741
    %v8743 = vpop.f32.mrf.mxu0
    %v8744 = vadd.f32 %v8673, %v8743
    %8745 = vdwg.mxu0
    %8746 = vmatprep.subr.mxu0 %v1001
    %8747 = vmatpush1.msra.mxu0 %v1000
    %8748 = vmatprep.subr.mxu0 %v993
    %8749 = vmatpush1.msra.mxu0 %v992
    %8750 = vmatprep.subr.mxu0 %v985
    %8751 = vmatpush1.msra.mxu0 %v984
    %8752 = vmatprep.subr.mxu0 %v977
    %8753 = vmatpush1.msra.mxu0 %v976
    %8754 = vmatprep.subr.mxu0 %v969
    %8755 = vmatpush1.msra.mxu0 %v968
    %8756 = vmatprep.subr.mxu0 %v961
    %8757 = vmatpush1.msra.mxu0 %v960
    %8758 = vmatprep.subr.mxu0 %v953
    %8759 = vmatpush1.msra.mxu0 %v952
    %8760 = vmatprep.subr.mxu0 %v945
    %8761 = vmatpush1.msra.mxu0 %v944
    %8762 = vmatprep.subr.mxu0 %v937
    %8763 = vmatpush1.msra.mxu0 %v936
    %8764 = vmatprep.subr.mxu0 %v929
    %8765 = vmatpush1.msra.mxu0 %v928
    %8766 = vmatprep.subr.mxu0 %v921
    %8767 = vmatpush1.msra.mxu0 %v920
    %8768 = vmatprep.subr.mxu0 %v913
    %8769 = vmatpush1.msra.mxu0 %v912
    %8770 = vmatprep.subr.mxu0 %v905
    %8771 = vmatpush1.msra.mxu0 %v904
    %8772 = vmatprep.subr.mxu0 %v897
    %8773 = vmatpush1.msra.mxu0 %v896
    %8774 = vmatprep.subr.mxu0 %v889
    %8775 = vmatpush1.msra.mxu0 %v888
    %8776 = vmatprep.subr.mxu0 %v881
    %8777 = vmatpush1.msra.mxu0 %v880
    %8778 = vmatprep.subr.mxu0 %v1129
    %8779 = vmatpush2.msra.mxu0 %v1128
    %8780 = vmatprep.subr.mxu0 %v1121
    %8781 = vmatpush2.msra.mxu0 %v1120
    %8782 = vmatprep.subr.mxu0 %v1113
    %8783 = vmatpush2.msra.mxu0 %v1112
    %8784 = vmatprep.subr.mxu0 %v1105
    %8785 = vmatpush2.msra.mxu0 %v1104
    %8786 = vmatprep.subr.mxu0 %v1097
    %8787 = vmatpush2.msra.mxu0 %v1096
    %8788 = vmatprep.subr.mxu0 %v1089
    %8789 = vmatpush2.msra.mxu0 %v1088
    %8790 = vmatprep.subr.mxu0 %v1081
    %8791 = vmatpush2.msra.mxu0 %v1080
    %8792 = vmatprep.subr.mxu0 %v1073
    %8793 = vmatpush2.msra.mxu0 %v1072
    %8794 = vmatprep.subr.mxu0 %v1065
    %8795 = vmatpush2.msra.mxu0 %v1064
    %8796 = vmatprep.subr.mxu0 %v1057
    %8797 = vmatpush2.msra.mxu0 %v1056
    %8798 = vmatprep.subr.mxu0 %v1049
    %8799 = vmatpush2.msra.mxu0 %v1048
    %8800 = vmatprep.subr.mxu0 %v1041
    %8801 = vmatpush2.msra.mxu0 %v1040
    %8802 = vmatprep.subr.mxu0 %v1033
    %8803 = vmatpush2.msra.mxu0 %v1032
    %8804 = vmatprep.subr.mxu0 %v1025
    %8805 = vmatpush2.msra.mxu0 %v1024
    %8806 = vmatprep.subr.mxu0 %v1017
    %8807 = vmatpush2.msra.mxu0 %v1016
    %8808 = vmatprep.subr.mxu0 %v1009
    %8809 = vmatpush2.msra.mxu0 %v1008
    %8810 = vmatprep.mubr.f32.mxu0 %v8461
    %8811 = vmatmul.mubr.f32.gmra.mxu0 %v8460
    %v8812 = vpop.f32.mrf.mxu0
    %v8813 = vadd.f32 %v1749, %v8812
    %v8814 = vpop.f32.mrf.mxu0
    %v8815 = vadd.f32 %v1753, %v8814
    %8816 = vdwg.mxu0
    %8817 = vmatprep.subr.mxu0 %v1257
    %8818 = vmatpush1.msra.mxu0 %v1256
    %8819 = vmatprep.subr.mxu0 %v1249
    %8820 = vmatpush1.msra.mxu0 %v1248
    %8821 = vmatprep.subr.mxu0 %v1241
    %8822 = vmatpush1.msra.mxu0 %v1240
    %8823 = vmatprep.subr.mxu0 %v1233
    %8824 = vmatpush1.msra.mxu0 %v1232
    %8825 = vmatprep.subr.mxu0 %v1225
    %8826 = vmatpush1.msra.mxu0 %v1224
    %8827 = vmatprep.subr.mxu0 %v1217
    %8828 = vmatpush1.msra.mxu0 %v1216
    %8829 = vmatprep.subr.mxu0 %v1209
    %8830 = vmatpush1.msra.mxu0 %v1208
    %8831 = vmatprep.subr.mxu0 %v1201
    %8832 = vmatpush1.msra.mxu0 %v1200
    %8833 = vmatprep.subr.mxu0 %v1193
    %8834 = vmatpush1.msra.mxu0 %v1192
    %8835 = vmatprep.subr.mxu0 %v1185
    %8836 = vmatpush1.msra.mxu0 %v1184
    %8837 = vmatprep.subr.mxu0 %v1177
    %8838 = vmatpush1.msra.mxu0 %v1176
    %8839 = vmatprep.subr.mxu0 %v1169
    %8840 = vmatpush1.msra.mxu0 %v1168
    %8841 = vmatprep.subr.mxu0 %v1161
    %8842 = vmatpush1.msra.mxu0 %v1160
    %8843 = vmatprep.subr.mxu0 %v1153
    %8844 = vmatpush1.msra.mxu0 %v1152
    %8845 = vmatprep.subr.mxu0 %v1145
    %8846 = vmatpush1.msra.mxu0 %v1144
    %8847 = vmatprep.subr.mxu0 %v1137
    %8848 = vmatpush1.msra.mxu0 %v1136
    %8849 = vmatprep.subr.mxu0 %v1385
    %8850 = vmatpush2.msra.mxu0 %v1384
    %8851 = vmatprep.subr.mxu0 %v1377
    %8852 = vmatpush2.msra.mxu0 %v1376
    %8853 = vmatprep.subr.mxu0 %v1369
    %8854 = vmatpush2.msra.mxu0 %v1368
    %8855 = vmatprep.subr.mxu0 %v1361
    %8856 = vmatpush2.msra.mxu0 %v1360
    %8857 = vmatprep.subr.mxu0 %v1353
    %8858 = vmatpush2.msra.mxu0 %v1352
    %8859 = vmatprep.subr.mxu0 %v1345
    %8860 = vmatpush2.msra.mxu0 %v1344
    %8861 = vmatprep.subr.mxu0 %v1337
    %8862 = vmatpush2.msra.mxu0 %v1336
    %8863 = vmatprep.subr.mxu0 %v1329
    %8864 = vmatpush2.msra.mxu0 %v1328
    %8865 = vmatprep.subr.mxu0 %v1321
    %8866 = vmatpush2.msra.mxu0 %v1320
    %8867 = vmatprep.subr.mxu0 %v1313
    %8868 = vmatpush2.msra.mxu0 %v1312
    %8869 = vmatprep.subr.mxu0 %v1305
    %8870 = vmatpush2.msra.mxu0 %v1304
    %8871 = vmatprep.subr.mxu0 %v1297
    %8872 = vmatpush2.msra.mxu0 %v1296
    %8873 = vmatprep.subr.mxu0 %v1289
    %8874 = vmatpush2.msra.mxu0 %v1288
    %8875 = vmatprep.subr.mxu0 %v1281
    %8876 = vmatpush2.msra.mxu0 %v1280
    %8877 = vmatprep.subr.mxu0 %v1273
    %8878 = vmatpush2.msra.mxu0 %v1272
    %8879 = vmatprep.subr.mxu0 %v1265
    %8880 = vmatpush2.msra.mxu0 %v1264
    %8881 = vmatprep.mubr.f32.mxu0 %v8121
    %8882 = vmatmul.mubr.f32.gmra.mxu0 %v8120
    %v8883 = vpop.f32.mrf.mxu0
    %v8884 = vadd.f32 %v8813, %v8883
    %v8885 = vpop.f32.mrf.mxu0
    %v8886 = vadd.f32 %v8815, %v8885
    %8887 = vdwg.mxu0
    %8888 = vmatprep.subr.mxu0 %v1003
    %8889 = vmatpush1.msra.mxu0 %v1002
    %8890 = vmatprep.subr.mxu0 %v995
    %8891 = vmatpush1.msra.mxu0 %v994
    %8892 = vmatprep.subr.mxu0 %v987
    %8893 = vmatpush1.msra.mxu0 %v986
    %8894 = vmatprep.subr.mxu0 %v979
    %8895 = vmatpush1.msra.mxu0 %v978
    %8896 = vmatprep.subr.mxu0 %v971
    %8897 = vmatpush1.msra.mxu0 %v970
    %8898 = vmatprep.subr.mxu0 %v963
    %8899 = vmatpush1.msra.mxu0 %v962
    %8900 = vmatprep.subr.mxu0 %v955
    %8901 = vmatpush1.msra.mxu0 %v954
    %8902 = vmatprep.subr.mxu0 %v947
    %8903 = vmatpush1.msra.mxu0 %v946
    %8904 = vmatprep.subr.mxu0 %v939
    %8905 = vmatpush1.msra.mxu0 %v938
    %8906 = vmatprep.subr.mxu0 %v931
    %8907 = vmatpush1.msra.mxu0 %v930
    %8908 = vmatprep.subr.mxu0 %v923
    %8909 = vmatpush1.msra.mxu0 %v922
    %8910 = vmatprep.subr.mxu0 %v915
    %8911 = vmatpush1.msra.mxu0 %v914
    %8912 = vmatprep.subr.mxu0 %v907
    %8913 = vmatpush1.msra.mxu0 %v906
    %8914 = vmatprep.subr.mxu0 %v899
    %8915 = vmatpush1.msra.mxu0 %v898
    %8916 = vmatprep.subr.mxu0 %v891
    %8917 = vmatpush1.msra.mxu0 %v890
    %8918 = vmatprep.subr.mxu0 %v883
    %8919 = vmatpush1.msra.mxu0 %v882
    %8920 = vmatprep.subr.mxu0 %v1131
    %8921 = vmatpush2.msra.mxu0 %v1130
    %8922 = vmatprep.subr.mxu0 %v1123
    %8923 = vmatpush2.msra.mxu0 %v1122
    %8924 = vmatprep.subr.mxu0 %v1115
    %8925 = vmatpush2.msra.mxu0 %v1114
    %8926 = vmatprep.subr.mxu0 %v1107
    %8927 = vmatpush2.msra.mxu0 %v1106
    %8928 = vmatprep.subr.mxu0 %v1099
    %8929 = vmatpush2.msra.mxu0 %v1098
    %8930 = vmatprep.subr.mxu0 %v1091
    %8931 = vmatpush2.msra.mxu0 %v1090
    %8932 = vmatprep.subr.mxu0 %v1083
    %8933 = vmatpush2.msra.mxu0 %v1082
    %8934 = vmatprep.subr.mxu0 %v1075
    %8935 = vmatpush2.msra.mxu0 %v1074
    %8936 = vmatprep.subr.mxu0 %v1067
    %8937 = vmatpush2.msra.mxu0 %v1066
    %8938 = vmatprep.subr.mxu0 %v1059
    %8939 = vmatpush2.msra.mxu0 %v1058
    %8940 = vmatprep.subr.mxu0 %v1051
    %8941 = vmatpush2.msra.mxu0 %v1050
    %8942 = vmatprep.subr.mxu0 %v1043
    %8943 = vmatpush2.msra.mxu0 %v1042
    %8944 = vmatprep.subr.mxu0 %v1035
    %8945 = vmatpush2.msra.mxu0 %v1034
    %8946 = vmatprep.subr.mxu0 %v1027
    %8947 = vmatpush2.msra.mxu0 %v1026
    %8948 = vmatprep.subr.mxu0 %v1019
    %8949 = vmatpush2.msra.mxu0 %v1018
    %8950 = vmatprep.subr.mxu0 %v1011
    %8951 = vmatpush2.msra.mxu0 %v1010
    %8952 = vmatprep.mubr.f32.mxu0 %v8461
    %8953 = vmatmul.mubr.f32.gmra.mxu0 %v8460
    %v8954 = vpop.f32.mrf.mxu0
    %v8955 = vadd.f32 %v1757, %v8954
    %v8956 = vpop.f32.mrf.mxu0
    %v8957 = vadd.f32 %v1761, %v8956
    %8958 = vdwg.mxu0
    %8959 = vmatprep.subr.mxu0 %v1259
    %8960 = vmatpush1.msra.mxu0 %v1258
    %8961 = vmatprep.subr.mxu0 %v1251
    %8962 = vmatpush1.msra.mxu0 %v1250
    %8963 = vmatprep.subr.mxu0 %v1243
    %8964 = vmatpush1.msra.mxu0 %v1242
    %8965 = vmatprep.subr.mxu0 %v1235
    %8966 = vmatpush1.msra.mxu0 %v1234
    %8967 = vmatprep.subr.mxu0 %v1227
    %8968 = vmatpush1.msra.mxu0 %v1226
    %8969 = vmatprep.subr.mxu0 %v1219
    %8970 = vmatpush1.msra.mxu0 %v1218
    %8971 = vmatprep.subr.mxu0 %v1211
    %8972 = vmatpush1.msra.mxu0 %v1210
    %8973 = vmatprep.subr.mxu0 %v1203
    %8974 = vmatpush1.msra.mxu0 %v1202
    %8975 = vmatprep.subr.mxu0 %v1195
    %8976 = vmatpush1.msra.mxu0 %v1194
    %8977 = vmatprep.subr.mxu0 %v1187
    %8978 = vmatpush1.msra.mxu0 %v1186
    %8979 = vmatprep.subr.mxu0 %v1179
    %8980 = vmatpush1.msra.mxu0 %v1178
    %8981 = vmatprep.subr.mxu0 %v1171
    %8982 = vmatpush1.msra.mxu0 %v1170
    %8983 = vmatprep.subr.mxu0 %v1163
    %8984 = vmatpush1.msra.mxu0 %v1162
    %8985 = vmatprep.subr.mxu0 %v1155
    %8986 = vmatpush1.msra.mxu0 %v1154
    %8987 = vmatprep.subr.mxu0 %v1147
    %8988 = vmatpush1.msra.mxu0 %v1146
    %8989 = vmatprep.subr.mxu0 %v1139
    %8990 = vmatpush1.msra.mxu0 %v1138
    %8991 = vmatprep.subr.mxu0 %v1387
    %8992 = vmatpush2.msra.mxu0 %v1386
    %8993 = vmatprep.subr.mxu0 %v1379
    %8994 = vmatpush2.msra.mxu0 %v1378
    %8995 = vmatprep.subr.mxu0 %v1371
    %8996 = vmatpush2.msra.mxu0 %v1370
    %8997 = vmatprep.subr.mxu0 %v1363
    %8998 = vmatpush2.msra.mxu0 %v1362
    %8999 = vmatprep.subr.mxu0 %v1355
    %9000 = vmatpush2.msra.mxu0 %v1354
    %9001 = vmatprep.subr.mxu0 %v1347
    %9002 = vmatpush2.msra.mxu0 %v1346
    %9003 = vmatprep.subr.mxu0 %v1339
    %9004 = vmatpush2.msra.mxu0 %v1338
    %9005 = vmatprep.subr.mxu0 %v1331
    %9006 = vmatpush2.msra.mxu0 %v1330
    %9007 = vmatprep.subr.mxu0 %v1323
    %9008 = vmatpush2.msra.mxu0 %v1322
    %9009 = vmatprep.subr.mxu0 %v1315
    %9010 = vmatpush2.msra.mxu0 %v1314
    %9011 = vmatprep.subr.mxu0 %v1307
    %9012 = vmatpush2.msra.mxu0 %v1306
    %9013 = vmatprep.subr.mxu0 %v1299
    %9014 = vmatpush2.msra.mxu0 %v1298
    %9015 = vmatprep.subr.mxu0 %v1291
    %9016 = vmatpush2.msra.mxu0 %v1290
    %9017 = vmatprep.subr.mxu0 %v1283
    %9018 = vmatpush2.msra.mxu0 %v1282
    %9019 = vmatprep.subr.mxu0 %v1275
    %9020 = vmatpush2.msra.mxu0 %v1274
    %9021 = vmatprep.subr.mxu0 %v1267
    %9022 = vmatpush2.msra.mxu0 %v1266
    %9023 = vmatprep.mubr.f32.mxu0 %v8121
    %9024 = vmatmul.mubr.f32.gmra.mxu0 %v8120
    %v9025 = vpop.f32.mrf.mxu0
    %v9026 = vadd.f32 %v8955, %v9025
    %v9027 = vpop.f32.mrf.mxu0
    %v9028 = vadd.f32 %v8957, %v9027
    %9029 = vdwg.mxu0
    %v9030 = vxor.u32 %v8600, 2147483648
    %v9031 = vxor.u32 %v8602, 2147483648
    %v9032 = vxor.u32 %v8742, 2147483648
    %v9033 = vxor.u32 %v8744, 2147483648
    %v9034 = vxor.u32 %v8884, 2147483648
    %v9035 = vxor.u32 %v8886, 2147483648
    %v9036 = vmul.f32 %v9030, 1.442695
    %v9037 = vpow.pop %v9036
    %v9038 = vmul.f32 %v9031, 1.442695
    %v9039 = vpow.pop %v9038
    %v9040 = vmul.f32 %v9032, 1.442695
    %v9041 = vpow.pop %v9040
    %v9042 = vmul.f32 %v9033, 1.442695
    %v9043 = vpow.pop %v9042
    %v9044 = vmul.f32 %v9034, 1.442695
    %v9045 = vpow.pop %v9044
    %v9046 = vmul.f32 %v9035, 1.442695
    %v9047 = vpow.pop %v9046
    %v9048 = vadd.f32 %v9037, 1.0
    %v9049 = vadd.f32 %v9039, 1.0
    %v9050 = vadd.f32 %v9041, 1.0
    %v9051 = vadd.f32 %v9043, 1.0
    %v9052 = vadd.f32 %v9045, 1.0
    %v9053 = vadd.f32 %v9047, 1.0
    %v9054 = vrcp.pop %v9048
    %v9055 = vmul.f32 1.0, %v9054
    %v9056 = vrcp.pop %v9049
    %v9057 = vmul.f32 1.0, %v9056
    %v9058 = vrcp.pop %v9050
    %v9059 = vmul.f32 1.0, %v9058
    %v9060 = vrcp.pop %v9051
    %v9061 = vmul.f32 1.0, %v9060
    %v9062 = vrcp.pop %v9052
    %v9063 = vmul.f32 1.0, %v9062
    %v9064 = vrcp.pop %v9053
    %v9065 = vmul.f32 1.0, %v9064
    %v9066 = vtanh.pop %v9026
    %v9067 = vtanh.pop %v9028
    %v9068 = vmul.f32 %v9059, %v8116
    %v9069 = vmul.f32 %v9061, %v8117
    %v9070 = vmul.f32 %v9055, %v9066
    %v9071 = vmul.f32 %v9057, %v9067
    %v9072 = vadd.f32 %v9068, %v9070
    %v9073 = vadd.f32 %v9069, %v9071
    %v9074 = vtanh.pop %v9072
    %v9075 = vtanh.pop %v9073
    %v9076 = vmul.f32 %v9063, %v9074
    %v9077 = vmul.f32 %v9065, %v9075
    %9078 = vst [vmem:[%s6] sm:$0xff] %v9076
    %9079 = vst [vmem:[%s6 + $0x8] sm:$0xff] %v9077
    // Predicated region
    $region46: #{shake_backbone_forward.1} parent=1 // pred_check
      _
    $region47: #{shake_backbone_forward.1} parent=1 // pred_check_branch
      %9081 = sbr.rel (0) target = $region49
    $region48: #{shake_backbone_forward.1} parent=1 // pred_region
      _
    $region49: #{shake_backbone_forward.1} parent=1 // pred_fallthru
      _
    // Predicated region
    $region50: #{shake_backbone_forward.1} parent=1 // pred_check
      _
    $region51: #{shake_backbone_forward.1} parent=1 // pred_check_branch
      %9083 = sbr.rel (0) target = $region53
    $region52: #{shake_backbone_forward.1} parent=1 // pred_region
      _
    $region53: #{shake_backbone_forward.1} parent=1 // pred_fallthru
      _
    %9084 = vsyncpa [#allocation3], 1
    %9085 = vsyncpa [#allocation5], 1
    %9086 = vsyncpa [#allocation8], 1

</llo_original>
